<compile_context>
chip_gen: v7x
topology: tpu7x:2x2x1
jax: 0.10.0
libtpu: 0.0.40
codegen_flags: <defaults>
</compile_context>

<pallas_src>
import functools

import jax
import jax.numpy as jnp
from jax.experimental import pallas as pl
from jax.experimental.pallas import tpu as pltpu

# ---- fixed MLP dims from the module spec ----
FC1_OUT = 256      # extractor fc hidden
FEAT = 64          # features_dim
QH1 = 128          # q_net hidden 1
QH2 = 64           # q_net hidden 2

# packed-bias lane offsets (each segment padded to a multiple of 128 lanes)
_B_CB1, _B_CB2, _B_B1, _B_B2, _B_B3, _B_B4, _B_B5 = 0, 128, 256, 512, 640, 768, 896
_BIAS_LANES = 1024
# packed small-MLP-weight row offsets (common 128-lane width, bf16)
_W2_R, _W3_R, _W4_R, _W5_R, _PK_ROWS = 0, 256, 320, 448, 512


# ------------------------------ fused forward kernel ---------------------------------
def _dqn_kernel(x_ref, cw1_ref, cw2_ref, w1_ref, mlppk_ref, bias_ref,
                o_ref,
                pad1, pad2, h2_ref, xflat_ref, y1_ref,
                *, B, H, W, C_IN, C1, C2, A, TK, NK):
    # x_ref    : (B, H, W, C_IN)  NHWC observation (whole batch resident)
    # cw1_ref  : (9, C_IN, C1)    conv1 weights, tap-major
    # cw2_ref  : (9, C1, C2)      conv2 weights, tap-major
    # w1_ref   : (TK, 256) bf16   fc1 weight K-chunk for this grid step (streamed)
    # mlppk_ref: (512, 128) bf16  packed w2..w5
    # bias_ref : (1, 1024) f32    packed biases (conv1, conv2, fc1, fc2, q1, q2, q3)
    # o_ref    : (B, 128) int32   greedy action broadcast over lanes (lane-dense store)
    k = pl.program_id(0)
    HW = H * W
    M = B * HW
    PPC = TK // C2                       # flattened spatial positions per fc1 K-chunk

    # ---------------- step 0: whole conv stack + flatten, all in VMEM ----------------
    @pl.when(k == 0)
    def _():
        # ---- conv1: zero only the 1-px halo (interior is fully overwritten) ----
        zrow1 = jnp.zeros((B, 1, W + 2, C_IN), jnp.float32)
        zcol1 = jnp.zeros((B, H + 2, 1, C_IN), jnp.float32)
        pad1[:, 0:1, :, :] = zrow1
        pad1[:, H + 1:H + 2, :, :] = zrow1
        pad1[:, :, 0:1, :] = zcol1
        pad1[:, :, W + 1:W + 2, :] = zcol1
        pad1[:, 1:H + 1, 1:W + 1, :] = x_ref[...]

        cb1 = bias_ref[:, _B_CB1:_B_CB1 + C1]
        a1 = jnp.zeros((M, C_IN * 0 + C1), jnp.float32)
        a1 = jnp.zeros((M, C1), jnp.float32)
        for t in range(9):                       # 9 shifted-slice matmuls, accumulated
            dh, dw = t // 3, t % 3
            lhs = pad1[:, dh:dh + H, dw:dw + W, :].reshape(M, C_IN)
            a1 = a1 + jnp.dot(lhs, cw1_ref[t], preferred_element_type=jnp.float32)
        h1 = jnp.maximum(a1 + cb1, 0.0)                                   # (M, 32)

        # ---- conv2 ----
        zrow2 = jnp.zeros((B, 1, W + 2, C1), jnp.float32)
        zcol2 = jnp.zeros((B, H + 2, 1, C1), jnp.float32)
        pad2[:, 0:1, :, :] = zrow2
        pad2[:, H + 1:H + 2, :, :] = zrow2
        pad2[:, :, 0:1, :] = zcol2
        pad2[:, :, W + 1:W + 2, :] = zcol2
        pad2[:, 1:H + 1, 1:W + 1, :] = h1.reshape(B, H, W, C1)

        cb2 = bias_ref[:, _B_CB2:_B_CB2 + C2]
        a2 = jnp.zeros((M, C2), jnp.float32)
        for t in range(9):
            dh, dw = t // 3, t % 3
            lhs = pad2[:, dh:dh + H, dw:dw + W, :].reshape(M, C1)
            a2 = a2 + jnp.dot(lhs, cw2_ref[t], preferred_element_type=jnp.float32)
        h2_ref[...] = jnp.maximum(a2 + cb2, 0.0)                          # (M, 64)

        # ---- flatten (b,h,w)-major conv features into (NK, B, TK) fc1 input chunks.
        # Per-position 64-lane copies (static offsets, VMEM only) replace the old
        # HBM writeback + XLA reshape + second kernel launch.
        for p in range(HW):
            kk, j = p // PPC, p % PPC
            for b in range(B):
                r = b * HW + p
                xflat_ref[kk, b:b + 1, j * C2:(j + 1) * C2] = h2_ref[r:r + 1, :]

        y1_ref[...] = jnp.zeros_like(y1_ref)

    # ------------- every step: one K-chunk of fc1 (w1 streamed by the grid) -----------
    lhs = xflat_ref[k].astype(jnp.bfloat16)                               # (B, TK)
    y1_ref[...] += jnp.dot(lhs, w1_ref[...], preferred_element_type=jnp.float32)

    # ---------------- last step: fc2 + q-net + greedy argmax ----------------
    @pl.when(k == NK - 1)
    def _():
        b1 = bias_ref[:, _B_B1:_B_B1 + FC1_OUT]
        b2 = bias_ref[:, _B_B2:_B_B2 + FEAT]
        b3 = bias_ref[:, _B_B3:_B_B3 + QH1]
        b4 = bias_ref[:, _B_B4:_B_B4 + QH2]
        b5 = bias_ref[:, _B_B5:_B_B5 + A]
        w2 = mlppk_ref[_W2_R:_W2_R + FC1_OUT, 0:FEAT]
        w3 = mlppk_ref[_W3_R:_W3_R + FEAT, 0:QH1]
        w4 = mlppk_ref[_W4_R:_W4_R + QH1, 0:QH2]
        w5 = mlppk_ref[_W5_R:_W5_R + QH2, 0:A]

        h = jnp.maximum(y1_ref[...] + b1, 0.0)                            # fc1 + ReLU
        feat = jnp.dot(h.astype(jnp.bfloat16), w2,
                       preferred_element_type=jnp.float32) + b2           # features (64)
        h = jnp.maximum(jnp.dot(feat.astype(jnp.bfloat16), w3,
                                preferred_element_type=jnp.float32) + b3, 0.0)
        h = jnp.maximum(jnp.dot(h.astype(jnp.bfloat16), w4,
                                preferred_element_type=jnp.float32) + b4, 0.0)
        q = jnp.dot(h.astype(jnp.bfloat16), w5,
                    preferred_element_type=jnp.float32) + b5              # (B, A)

        # greedy action = first argmax (torch.argmax semantics); clamp guards NaN rows.
        mx = jnp.max(q, axis=-1, keepdims=True)
        idx = jax.lax.broadcasted_iota(jnp.int32, q.shape, 1)
        cand = jnp.where(q >= mx, idx, jnp.int32(A))
        act = jnp.min(cand, axis=-1, keepdims=True)
        act = jnp.minimum(act, jnp.int32(A - 1))
        o_ref[...] = jnp.broadcast_to(act, o_ref.shape)                   # lane-dense int32


def dqn_greedy_actions(x_nhwc, cw1, cw2, w1, mlp_pk, bias_pk, *, n_actions):
    B, H, W, C_IN = x_nhwc.shape
    C1 = cw1.shape[-1]
    C2 = cw2.shape[-1]
    F = H * W * C2
    assert w1.shape == (F, FC1_OUT)
    # Stream fc1's weight over a trailing reduction grid axis in <=1024-row blocks:
    # pipelined DMA, and VMEM stays bounded if the observation resolution grows (v7x).
    NK = max(1, F // 1024)
    while F % NK:
        NK -= 1
    TK = F // NK
    assert TK % C2 == 0
    M = B * H * W

    kernel = functools.partial(
        _dqn_kernel, B=B, H=H, W=W, C_IN=C_IN, C1=C1, C2=C2,
        A=n_actions, TK=TK, NK=NK)

    return pl.pallas_call(
        kernel,
        out_shape=jax.ShapeDtypeStruct((B, 128), jnp.int32),
        grid_spec=pltpu.PrefetchScalarGridSpec(
            num_scalar_prefetch=0,
            grid=(NK,),
            in_specs=[
                pl.BlockSpec((B, H, W, C_IN), lambda k: (0, 0, 0, 0)),   # obs (resident)
                pl.BlockSpec((9, C_IN, C1), lambda k: (0, 0, 0)),        # conv1 w
                pl.BlockSpec((9, C1, C2), lambda k: (0, 0, 0)),          # conv2 w
                pl.BlockSpec((TK, FC1_OUT), lambda k: (k, 0)),           # fc1 w, streamed
                pl.BlockSpec((_PK_ROWS, 128), lambda k: (0, 0)),         # packed w2..w5
                pl.BlockSpec((1, _BIAS_LANES), lambda k: (0, 0)),        # packed biases
            ],
            out_specs=pl.BlockSpec((B, 128), lambda k: (0, 0)),
            scratch_shapes=[
                pltpu.VMEM((B, H + 2, W + 2, C_IN), jnp.float32),  # conv1 padded input
                pltpu.VMEM((B, H + 2, W + 2, C1), jnp.float32),    # conv2 padded input
                pltpu.VMEM((M, C2), jnp.float32),                  # conv2 output (ReLU)
                pltpu.VMEM((NK, B, TK), jnp.float32),              # flattened fc1 input
                pltpu.VMEM((B, FC1_OUT), jnp.float32),             # fc1 accumulator
            ]),
        compiler_params=pltpu.CompilerParams(
            dimension_semantics=("arbitrary",),   # K-reduction axis; see note on v7x cores
            vmem_limit_bytes=32 * 1024 * 1024),
    )(x_nhwc, cw1, cw2, w1, mlp_pk, bias_pk)


# ----------------------------------- parameters --------------------------------------
def init_params(key, H, W, n_actions):
    # Same parameterization as the PyTorch module: conv weights HWIO, fc weights
    # (fan_in, fan_out); fc1 rows indexed in torch CHW-flatten order.
    ks = jax.random.split(key, 14)
    s = 0.05

    def lin(kw, kb, fi, fo):
        return (s * jax.random.normal(kw, (fi, fo), jnp.float32),
                s * jax.random.normal(kb, (1, fo), jnp.float32))

    conv1_w = s * jax.random.normal(ks[0], (3, 3, 3, 32), jnp.float32)
    conv1_b = s * jax.random.normal(ks[1], (1, 32), jnp.float32)
    conv2_w = s * jax.random.normal(ks[2], (3, 3, 32, 64), jnp.float32)
    conv2_b = s * jax.random.normal(ks[3], (1, 64), jnp.float32)
    fc = [
        lin(ks[4], ks[5], 64 * H * W, FC1_OUT),   # extractor fc1 (+ReLU), CHW row order
        lin(ks[6], ks[7], FC1_OUT, FEAT),         # extractor fc2 (features)
        lin(ks[8], ks[9], FEAT, QH1),             # q_net l1 (+ReLU)
        lin(ks[10], ks[11], QH1, QH2),            # q_net l2 (+ReLU)
        lin(ks[12], ks[13], QH2, n_actions),      # q_net l3 -> Q values
    ]
    return conv1_w, conv1_b, conv2_w, conv2_b, fc


def prepare_params(params, H, W, n_actions):
    # One-time host-side repack into kernel-ready layouts (zero per-step cost):
    #  * conv weights (3,3,Cin,Cout) -> (9,Cin,Cout), tap-major
    #  * fc1 rows permuted CHW -> HWC (so conv output flattens with no transpose),
    #    stored bf16 (95% of the weight bytes -> halves the HBM weight stream)
    #  * w2..w5 packed into one (512,128) bf16 buffer; all 7 biases into one (1,1024) f32
    # TODO(synk): loading a real PyTorch checkpoint requires OIHW->HWIO conv and
    # (out,in)->(in,out) linear transposes before this repack.
    assert n_actions <= 128
    conv1_w, conv1_b, conv2_w, conv2_b, fc = params
    cw1 = conv1_w.reshape(9, 3, 32)
    cw2 = conv2_w.reshape(9, 32, 64)
    C2 = 64
    (w1, b1), (w2, b2), (w3, b3), (w4, b4), (w5, b5) = fc
    w1 = (w1.reshape(C2, H, W, FC1_OUT).transpose(1, 2, 0, 3)
            .reshape(H * W * C2, FC1_OUT).astype(jnp.bfloat16))
    A = n_actions

    mlp_pk = jnp.zeros((_PK_ROWS, 128), jnp.bfloat16)
    mlp_pk = mlp_pk.at[_W2_R:_W2_R + FC1_OUT, 0:FEAT].set(w2.astype(jnp.bfloat16))
    mlp_pk = mlp_pk.at[_W3_R:_W3_R + FEAT, 0:QH1].set(w3.astype(jnp.bfloat16))
    mlp_pk = mlp_pk.at[_W4_R:_W4_R + QH1, 0:QH2].set(w4.astype(jnp.bfloat16))
    mlp_pk = mlp_pk.at[_W5_R:_W5_R + QH2, 0:A].set(w5.astype(jnp.bfloat16))

    bias_pk = jnp.zeros((1, _BIAS_LANES), jnp.float32)
    bias_pk = bias_pk.at[:, _B_CB1:_B_CB1 + 32].set(conv1_b)
    bias_pk = bias_pk.at[:, _B_CB2:_B_CB2 + 64].set(conv2_b)
    bias_pk = bias_pk.at[:, _B_B1:_B_B1 + FC1_OUT].set(b1)
    bias_pk = bias_pk.at[:, _B_B2:_B_B2 + FEAT].set(b2)
    bias_pk = bias_pk.at[:, _B_B3:_B_B3 + QH1].set(b3)
    bias_pk = bias_pk.at[:, _B_B4:_B_B4 + QH2].set(b4)
    bias_pk = bias_pk.at[:, _B_B5:_B_B5 + A].set(b5)
    return cw1, cw2, w1, mlp_pk, bias_pk


# ----------------------------------- forward ------------------------------------------
@functools.partial(jax.jit, static_argnames=("n_actions",))
def custom_dqn_forward(x_nchw, cw1, cw2, w1, mlp_pk, bias_pk, *, n_actions):
    # TODO(synk): SB3 DQN.predict() epsilon-greedy exploration / obs normalization is
    # stochastic framework glue and is not reproduced; greedy (deterministic) action is.
    # The tiny NCHW->NHWC transpose stays in XLA (1.5 KiB): the in-kernel alternative is
    # a per-channel single-lane scatter that Mosaic does not reliably lower.
    x = jnp.transpose(x_nchw, (0, 2, 3, 1)).astype(jnp.float32)
    acts = dqn_greedy_actions(x, cw1, cw2, w1, mlp_pk, bias_pk, n_actions=n_actions)
    return acts[:, 0]


if __name__ == "__main__":
    B, C, H, W = 2, 3, 8, 8
    n_actions = 4

    key = jax.random.PRNGKey(0)
    k_obs, k_par = jax.random.split(key)
    x = jax.random.normal(k_obs, (B, C, H, W), jnp.float32)   # NCHW observation

    params = init_params(k_par, H, W, n_actions)
    cw1, cw2, w1, mlp_pk, bias_pk = prepare_params(params, H, W, n_actions)

    actions = custom_dqn_forward(x, cw1, cw2, w1, mlp_pk, bias_pk, n_actions=n_actions)
    actions = jax.block_until_ready(actions)
    assert actions.shape == (B,) and actions.dtype == jnp.int32
    assert bool(jnp.all(actions >= 0)) and bool(jnp.all(actions < n_actions))
    print("KERNEL_OK")
</pallas_src>

<mosaic_0001>
module attributes {stable_mosaic.version = 11 : i64} {
  func.func @_dqn_kernel(%arg0: i32, %arg1: memref<2x8x8x3xf32, #tpu.memory_space<vmem>>, %arg2: memref<9x3x32xf32, #tpu.memory_space<vmem>>, %arg3: memref<9x32x64xf32, #tpu.memory_space<vmem>>, %arg4: memref<1024x256xbf16, #tpu.memory_space<vmem>>, %arg5: memref<512x128xbf16, #tpu.memory_space<vmem>>, %arg6: memref<1x1024xf32, #tpu.memory_space<vmem>>, %arg7: memref<2x128xi32, #tpu.memory_space<vmem>>, %arg8: memref<2x10x10x3xf32, #tpu.memory_space<vmem>>, %arg9: memref<2x10x10x32xf32, #tpu.memory_space<vmem>>, %arg10: memref<128x64xf32, #tpu.memory_space<vmem>>, %arg11: memref<4x2x1024xf32, #tpu.memory_space<vmem>>, %arg12: memref<2x256xf32, #tpu.memory_space<vmem>>) attributes {dimension_semantics = [#tpu.dimension_semantics<arbitrary>], iteration_bounds = array<i64: 4>, scalar_prefetch = 0 : i64, scratch_operands = 5 : i64, tpu.core_type = #tpu.core_type<tc>, window_params = [{pipeline_mode = #tpu.pipeline_mode<synchronous>, transform_indices = @transform_0, window_bounds = array<i64: 2, 8, 8, 3>}, {pipeline_mode = #tpu.pipeline_mode<synchronous>, transform_indices = @transform_1, window_bounds = array<i64: 9, 3, 32>}, {pipeline_mode = #tpu.pipeline_mode<synchronous>, transform_indices = @transform_2, window_bounds = array<i64: 9, 32, 64>}, {transform_indices = @transform_3, window_bounds = array<i64: 1024, 256>}, {pipeline_mode = #tpu.pipeline_mode<synchronous>, transform_indices = @transform_4, window_bounds = array<i64: 512, 128>}, {pipeline_mode = #tpu.pipeline_mode<synchronous>, transform_indices = @transform_5, window_bounds = array<i64: 1, 1024>}, {pipeline_mode = #tpu.pipeline_mode<synchronous>, transform_indices = @transform_6, window_bounds = array<i64: 2, 128>}]} {
    %c0_i32 = arith.constant 0 : i32
    %0 = arith.cmpi eq, %arg0, %c0_i32 : i32
    %1 = arith.extui %0 : i1 to i32
    %c0_i32_0 = arith.constant 0 : i32
    %2 = arith.cmpi ne, %1, %c0_i32_0 : i32
    scf.if %2 {
      %cst_9 = arith.constant 0.000000e+00 : f32
      %15 = vector.broadcast %cst_9 : f32 to vector<2x1x10x3xf32>
      %cst_10 = arith.constant 0.000000e+00 : f32
      %16 = vector.broadcast %cst_10 : f32 to vector<2x10x1x3xf32>
      %c0_11 = arith.constant 0 : index
      %c0_12 = arith.constant 0 : index
      %c0_13 = arith.constant 0 : index
      %c0_14 = arith.constant 0 : index
      %17 = vector.load %arg8[%c0_11, %c0_12, %c0_13, %c0_14] : memref<2x10x10x3xf32, #tpu.memory_space<vmem>>, vector<2x1x10x3xf32>
      tpu.vector_store %arg8[%c0_11, %c0_12, %c0_13, %c0_14], %15 {strides = array<i32>} : memref<2x10x10x3xf32, #tpu.memory_space<vmem>>, vector<2x1x10x3xf32>,
      %c0_15 = arith.constant 0 : index
      %c9 = arith.constant 9 : index
      %c0_16 = arith.constant 0 : index
      %c0_17 = arith.constant 0 : index
      %18 = vector.load %arg8[%c0_15, %c9, %c0_16, %c0_17] : memref<2x10x10x3xf32, #tpu.memory_space<vmem>>, vector<2x1x10x3xf32>
      tpu.vector_store %arg8[%c0_15, %c9, %c0_16, %c0_17], %15 {strides = array<i32>} : memref<2x10x10x3xf32, #tpu.memory_space<vmem>>, vector<2x1x10x3xf32>,
      %c0_18 = arith.constant 0 : index
      %c0_19 = arith.constant 0 : index
      %c0_20 = arith.constant 0 : index
      %c0_21 = arith.constant 0 : index
      %19 = vector.load %arg8[%c0_18, %c0_19, %c0_20, %c0_21] : memref<2x10x10x3xf32, #tpu.memory_space<vmem>>, vector<2x10x1x3xf32>
      tpu.vector_store %arg8[%c0_18, %c0_19, %c0_20, %c0_21], %16 {strides = array<i32>} : memref<2x10x10x3xf32, #tpu.memory_space<vmem>>, vector<2x10x1x3xf32>,
      %c0_22 = arith.constant 0 : index
      %c0_23 = arith.constant 0 : index
      %c9_24 = arith.constant 9 : index
      %c0_25 = arith.constant 0 : index
      %20 = vector.load %arg8[%c0_22, %c0_23, %c9_24, %c0_25] : memref<2x10x10x3xf32, #tpu.memory_space<vmem>>, vector<2x10x1x3xf32>
      tpu.vector_store %arg8[%c0_22, %c0_23, %c9_24, %c0_25], %16 {strides = array<i32>} : memref<2x10x10x3xf32, #tpu.memory_space<vmem>>, vector<2x10x1x3xf32>,
      %c0_26 = arith.constant 0 : index
      %c0_27 = arith.constant 0 : index
      %c0_28 = arith.constant 0 : index
      %c0_29 = arith.constant 0 : index
      %21 = vector.load %arg1[%c0_26, %c0_27, %c0_28, %c0_29] : memref<2x8x8x3xf32, #tpu.memory_space<vmem>>, vector<2x8x8x3xf32>
      %c0_30 = arith.constant 0 : index
      %c1 = arith.constant 1 : index
      %c1_31 = arith.constant 1 : index
      %c0_32 = arith.constant 0 : index
      %22 = vector.load %arg8[%c0_30, %c1, %c1_31, %c0_32] : memref<2x10x10x3xf32, #tpu.memory_space<vmem>>, vector<2x8x8x3xf32>
      tpu.vector_store %arg8[%c0_30, %c1, %c1_31, %c0_32], %21 {strides = array<i32>} : memref<2x10x10x3xf32, #tpu.memory_space<vmem>>, vector<2x8x8x3xf32>,
      %c0_33 = arith.constant 0 : index
      %c0_34 = arith.constant 0 : index
      %23 = vector.load %arg6[%c0_33, %c0_34] : memref<1x1024xf32, #tpu.memory_space<vmem>>, vector<1x32xf32>
      %cst_35 = arith.constant 0.000000e+00 : f32
      %24 = vector.broadcast %cst_35 : f32 to vector<128x32xf32>
      %c0_36 = arith.constant 0 : index
      %c0_37 = arith.constant 0 : index
      %c0_38 = arith.constant 0 : index
      %c0_39 = arith.constant 0 : index
      %25 = vector.load %arg8[%c0_36, %c0_37, %c0_38, %c0_39] : memref<2x10x10x3xf32, #tpu.memory_space<vmem>>, vector<2x8x8x3xf32>
      %26 = vector.shape_cast %25 : vector<2x8x8x3xf32> to vector<128x3xf32>
      %c0_40 = arith.constant 0 : index
      %c0_41 = arith.constant 0 : index
      %c0_42 = arith.constant 0 : index
      %27 = vector.load %arg2[%c0_40, %c0_41, %c0_42] : memref<9x3x32xf32, #tpu.memory_space<vmem>>, vector<1x3x32xf32>
      %28 = vector.shape_cast %27 : vector<1x3x32xf32> to vector<3x32xf32>
      %cst_43 = arith.constant dense<0.000000e+00> : vector<128x32xf32>
      %29 = tpu.matmul %26, %28, %cst_43 {dimension_numbers = #tpu.dot_dimension_numbers<[1], [0], [0], [1], [0, 0, 1, 1], [], []>} : vector<128x3xf32>, vector<3x32xf32>, vector<128x32xf32> -> vector<128x32xf32>
      %30 = arith.addf %24, %29 : vector<128x32xf32>
      %c0_44 = arith.constant 0 : index
      %c0_45 = arith.constant 0 : index
      %c1_46 = arith.constant 1 : index
      %c0_47 = arith.constant 0 : index
      %31 = vector.load %arg8[%c0_44, %c0_45, %c1_46, %c0_47] : memref<2x10x10x3xf32, #tpu.memory_space<vmem>>, vector<2x8x8x3xf32>
      %32 = vector.shape_cast %31 : vector<2x8x8x3xf32> to vector<128x3xf32>
      %c1_48 = arith.constant 1 : index
      %c0_49 = arith.constant 0 : index
      %c0_50 = arith.constant 0 : index
      %33 = vector.load %arg2[%c1_48, %c0_49, %c0_50] : memref<9x3x32xf32, #tpu.memory_space<vmem>>, vector<1x3x32xf32>
      %34 = vector.shape_cast %33 : vector<1x3x32xf32> to vector<3x32xf32>
      %cst_51 = arith.constant dense<0.000000e+00> : vector<128x32xf32>
      %35 = tpu.matmul %32, %34, %cst_51 {dimension_numbers = #tpu.dot_dimension_numbers<[1], [0], [0], [1], [0, 0, 1, 1], [], []>} : vector<128x3xf32>, vector<3x32xf32>, vector<128x32xf32> -> vector<128x32xf32>
      %36 = arith.addf %30, %35 : vector<128x32xf32>
      %c0_52 = arith.constant 0 : index
      %c0_53 = arith.constant 0 : index
      %c2 = arith.constant 2 : index
      %c0_54 = arith.constant 0 : index
      %37 = vector.load %arg8[%c0_52, %c0_53, %c2, %c0_54] : memref<2x10x10x3xf32, #tpu.memory_space<vmem>>, vector<2x8x8x3xf32>
      %38 = vector.shape_cast %37 : vector<2x8x8x3xf32> to vector<128x3xf32>
      %c2_55 = arith.constant 2 : index
      %c0_56 = arith.constant 0 : index
      %c0_57 = arith.constant 0 : index
      %39 = vector.load %arg2[%c2_55, %c0_56, %c0_57] : memref<9x3x32xf32, #tpu.memory_space<vmem>>, vector<1x3x32xf32>
      %40 = vector.shape_cast %39 : vector<1x3x32xf32> to vector<3x32xf32>
      %cst_58 = arith.constant dense<0.000000e+00> : vector<128x32xf32>
      %41 = tpu.matmul %38, %40, %cst_58 {dimension_numbers = #tpu.dot_dimension_numbers<[1], [0], [0], [1], [0, 0, 1, 1], [], []>} : vector<128x3xf32>, vector<3x32xf32>, vector<128x32xf32> -> vector<128x32xf32>
      %42 = arith.addf %36, %41 : vector<128x32xf32>
      %c0_59 = arith.constant 0 : index
      %c1_60 = arith.constant 1 : index
      %c0_61 = arith.constant 0 : index
      %c0_62 = arith.constant 0 : index
      %43 = vector.load %arg8[%c0_59, %c1_60, %c0_61, %c0_62] : memref<2x10x10x3xf32, #tpu.memory_space<vmem>>, vector<2x8x8x3xf32>
      %44 = vector.shape_cast %43 : vector<2x8x8x3xf32> to vector<128x3xf32>
      %c3 = arith.constant 3 : index
      %c0_63 = arith.constant 0 : index
      %c0_64 = arith.constant 0 : index
      %45 = vector.load %arg2[%c3, %c0_63, %c0_64] : memref<9x3x32xf32, #tpu.memory_space<vmem>>, vector<1x3x32xf32>
      %46 = vector.shape_cast %45 : vector<1x3x32xf32> to vector<3x32xf32>
      %cst_65 = arith.constant dense<0.000000e+00> : vector<128x32xf32>
      %47 = tpu.matmul %44, %46, %cst_65 {dimension_numbers = #tpu.dot_dimension_numbers<[1], [0], [0], [1], [0, 0, 1, 1], [], []>} : vector<128x3xf32>, vector<3x32xf32>, vector<128x32xf32> -> vector<128x32xf32>
      %48 = arith.addf %42, %47 : vector<128x32xf32>
      %c0_66 = arith.constant 0 : index
      %c1_67 = arith.constant 1 : index
      %c1_68 = arith.constant 1 : index
      %c0_69 = arith.constant 0 : index
      %49 = vector.load %arg8[%c0_66, %c1_67, %c1_68, %c0_69] : memref<2x10x10x3xf32, #tpu.memory_space<vmem>>, vector<2x8x8x3xf32>
      %50 = vector.shape_cast %49 : vector<2x8x8x3xf32> to vector<128x3xf32>
      %c4 = arith.constant 4 : index
      %c0_70 = arith.constant 0 : index
      %c0_71 = arith.constant 0 : index
      %51 = vector.load %arg2[%c4, %c0_70, %c0_71] : memref<9x3x32xf32, #tpu.memory_space<vmem>>, vector<1x3x32xf32>
      %52 = vector.shape_cast %51 : vector<1x3x32xf32> to vector<3x32xf32>
      %cst_72 = arith.constant dense<0.000000e+00> : vector<128x32xf32>
      %53 = tpu.matmul %50, %52, %cst_72 {dimension_numbers = #tpu.dot_dimension_numbers<[1], [0], [0], [1], [0, 0, 1, 1], [], []>} : vector<128x3xf32>, vector<3x32xf32>, vector<128x32xf32> -> vector<128x32xf32>
      %54 = arith.addf %48, %53 : vector<128x32xf32>
      %c0_73 = arith.constant 0 : index
      %c1_74 = arith.constant 1 : index
      %c2_75 = arith.constant 2 : index
      %c0_76 = arith.constant 0 : index
      %55 = vector.load %arg8[%c0_73, %c1_74, %c2_75, %c0_76] : memref<2x10x10x3xf32, #tpu.memory_space<vmem>>, vector<2x8x8x3xf32>
      %56 = vector.shape_cast %55 : vector<2x8x8x3xf32> to vector<128x3xf32>
      %c5 = arith.constant 5 : index
      %c0_77 = arith.constant 0 : index
      %c0_78 = arith.constant 0 : index
      %57 = vector.load %arg2[%c5, %c0_77, %c0_78] : memref<9x3x32xf32, #tpu.memory_space<vmem>>, vector<1x3x32xf32>
      %58 = vector.shape_cast %57 : vector<1x3x32xf32> to vector<3x32xf32>
      %cst_79 = arith.constant dense<0.000000e+00> : vector<128x32xf32>
      %59 = tpu.matmul %56, %58, %cst_79 {dimension_numbers = #tpu.dot_dimension_numbers<[1], [0], [0], [1], [0, 0, 1, 1], [], []>} : vector<128x3xf32>, vector<3x32xf32>, vector<128x32xf32> -> vector<128x32xf32>
      %60 = arith.addf %54, %59 : vector<128x32xf32>
      %c0_80 = arith.constant 0 : index
      %c2_81 = arith.constant 2 : index
      %c0_82 = arith.constant 0 : index
      %c0_83 = arith.constant 0 : index
      %61 = vector.load %arg8[%c0_80, %c2_81, %c0_82, %c0_83] : memref<2x10x10x3xf32, #tpu.memory_space<vmem>>, vector<2x8x8x3xf32>
      %62 = vector.shape_cast %61 : vector<2x8x8x3xf32> to vector<128x3xf32>
      %c6 = arith.constant 6 : index
      %c0_84 = arith.constant 0 : index
      %c0_85 = arith.constant 0 : index
      %63 = vector.load %arg2[%c6, %c0_84, %c0_85] : memref<9x3x32xf32, #tpu.memory_space<vmem>>, vector<1x3x32xf32>
      %64 = vector.shape_cast %63 : vector<1x3x32xf32> to vector<3x32xf32>
      %cst_86 = arith.constant dense<0.000000e+00> : vector<128x32xf32>
      %65 = tpu.matmul %62, %64, %cst_86 {dimension_numbers = #tpu.dot_dimension_numbers<[1], [0], [0], [1], [0, 0, 1, 1], [], []>} : vector<128x3xf32>, vector<3x32xf32>, vector<128x32xf32> -> vector<128x32xf32>
      %66 = arith.addf %60, %65 : vector<128x32xf32>
      %c0_87 = arith.constant 0 : index
      %c2_88 = arith.constant 2 : index
      %c1_89 = arith.constant 1 : index
      %c0_90 = arith.constant 0 : index
      %67 = vector.load %arg8[%c0_87, %c2_88, %c1_89, %c0_90] : memref<2x10x10x3xf32, #tpu.memory_space<vmem>>, vector<2x8x8x3xf32>
      %68 = vector.shape_cast %67 : vector<2x8x8x3xf32> to vector<128x3xf32>
      %c7 = arith.constant 7 : index
      %c0_91 = arith.constant 0 : index
      %c0_92 = arith.constant 0 : index
      %69 = vector.load %arg2[%c7, %c0_91, %c0_92] : memref<9x3x32xf32, #tpu.memory_space<vmem>>, vector<1x3x32xf32>
      %70 = vector.shape_cast %69 : vector<1x3x32xf32> to vector<3x32xf32>
      %cst_93 = arith.constant dense<0.000000e+00> : vector<128x32xf32>
      %71 = tpu.matmul %68, %70, %cst_93 {dimension_numbers = #tpu.dot_dimension_numbers<[1], [0], [0], [1], [0, 0, 1, 1], [], []>} : vector<128x3xf32>, vector<3x32xf32>, vector<128x32xf32> -> vector<128x32xf32>
      %72 = arith.addf %66, %71 : vector<128x32xf32>
      %c0_94 = arith.constant 0 : index
      %c2_95 = arith.constant 2 : index
      %c2_96 = arith.constant 2 : index
      %c0_97 = arith.constant 0 : index
      %73 = vector.load %arg8[%c0_94, %c2_95, %c2_96, %c0_97] : memref<2x10x10x3xf32, #tpu.memory_space<vmem>>, vector<2x8x8x3xf32>
      %74 = vector.shape_cast %73 : vector<2x8x8x3xf32> to vector<128x3xf32>
      %c8 = arith.constant 8 : index
      %c0_98 = arith.constant 0 : index
      %c0_99 = arith.constant 0 : index
      %75 = vector.load %arg2[%c8, %c0_98, %c0_99] : memref<9x3x32xf32, #tpu.memory_space<vmem>>, vector<1x3x32xf32>
      %76 = vector.shape_cast %75 : vector<1x3x32xf32> to vector<3x32xf32>
      %cst_100 = arith.constant dense<0.000000e+00> : vector<128x32xf32>
      %77 = tpu.matmul %74, %76, %cst_100 {dimension_numbers = #tpu.dot_dimension_numbers<[1], [0], [0], [1], [0, 0, 1, 1], [], []>} : vector<128x3xf32>, vector<3x32xf32>, vector<128x32xf32> -> vector<128x32xf32>
      %78 = arith.addf %72, %77 : vector<128x32xf32>
      %79 = vector.broadcast %23 : vector<1x32xf32> to vector<128x32xf32>
      %80 = arith.addf %78, %79 : vector<128x32xf32>
      %cst_101 = arith.constant 0.000000e+00 : f32
      %81 = vector.broadcast %cst_101 : f32 to vector<128x32xf32>
      %82 = arith.maximumf %80, %81 : vector<128x32xf32>
      %cst_102 = arith.constant 0.000000e+00 : f32
      %83 = vector.broadcast %cst_102 : f32 to vector<2x1x10x32xf32>
      %cst_103 = arith.constant 0.000000e+00 : f32
      %84 = vector.broadcast %cst_103 : f32 to vector<2x10x1x32xf32>
      %c0_104 = arith.constant 0 : index
      %c0_105 = arith.constant 0 : index
      %c0_106 = arith.constant 0 : index
      %c0_107 = arith.constant 0 : index
      %85 = vector.load %arg9[%c0_104, %c0_105, %c0_106, %c0_107] : memref<2x10x10x32xf32, #tpu.memory_space<vmem>>, vector<2x1x10x32xf32>
      tpu.vector_store %arg9[%c0_104, %c0_105, %c0_106, %c0_107], %83 {strides = array<i32>} : memref<2x10x10x32xf32, #tpu.memory_space<vmem>>, vector<2x1x10x32xf32>,
      %c0_108 = arith.constant 0 : index
      %c9_109 = arith.constant 9 : index
      %c0_110 = arith.constant 0 : index
      %c0_111 = arith.constant 0 : index
      %86 = vector.load %arg9[%c0_108, %c9_109, %c0_110, %c0_111] : memref<2x10x10x32xf32, #tpu.memory_space<vmem>>, vector<2x1x10x32xf32>
      tpu.vector_store %arg9[%c0_108, %c9_109, %c0_110, %c0_111], %83 {strides = array<i32>} : memref<2x10x10x32xf32, #tpu.memory_space<vmem>>, vector<2x1x10x32xf32>,
      %c0_112 = arith.constant 0 : index
      %c0_113 = arith.constant 0 : index
      %c0_114 = arith.constant 0 : index
      %c0_115 = arith.constant 0 : index
      %87 = vector.load %arg9[%c0_112, %c0_113, %c0_114, %c0_115] : memref<2x10x10x32xf32, #tpu.memory_space<vmem>>, vector<2x10x1x32xf32>
      tpu.vector_store %arg9[%c0_112, %c0_113, %c0_114, %c0_115], %84 {strides = array<i32>} : memref<2x10x10x32xf32, #tpu.memory_space<vmem>>, vector<2x10x1x32xf32>,
      %c0_116 = arith.constant 0 : index
      %c0_117 = arith.constant 0 : index
      %c9_118 = arith.constant 9 : index
      %c0_119 = arith.constant 0 : index
      %88 = vector.load %arg9[%c0_116, %c0_117, %c9_118, %c0_119] : memref<2x10x10x32xf32, #tpu.memory_space<vmem>>, vector<2x10x1x32xf32>
      tpu.vector_store %arg9[%c0_116, %c0_117, %c9_118, %c0_119], %84 {strides = array<i32>} : memref<2x10x10x32xf32, #tpu.memory_space<vmem>>, vector<2x10x1x32xf32>,
      %89 = vector.shape_cast %82 : vector<128x32xf32> to vector<2x8x8x32xf32>
      %c0_120 = arith.constant 0 : index
      %c1_121 = arith.constant 1 : index
      %c1_122 = arith.constant 1 : index
      %c0_123 = arith.constant 0 : index
      %90 = vector.load %arg9[%c0_120, %c1_121, %c1_122, %c0_123] : memref<2x10x10x32xf32, #tpu.memory_space<vmem>>, vector<2x8x8x32xf32>
      tpu.vector_store %arg9[%c0_120, %c1_121, %c1_122, %c0_123], %89 {strides = array<i32>} : memref<2x10x10x32xf32, #tpu.memory_space<vmem>>, vector<2x8x8x32xf32>,
      %c0_124 = arith.constant 0 : index
      %c128 = arith.constant 128 : index
      %91 = vector.load %arg6[%c0_124, %c128] : memref<1x1024xf32, #tpu.memory_space<vmem>>, vector<1x64xf32>
      %cst_125 = arith.constant 0.000000e+00 : f32
      %92 = vector.broadcast %cst_125 : f32 to vector<128x64xf32>
      %c0_126 = arith.constant 0 : index
      %c0_127 = arith.constant 0 : index
      %c0_128 = arith.constant 0 : index
      %c0_129 = arith.constant 0 : index
      %93 = vector.load %arg9[%c0_126, %c0_127, %c0_128, %c0_129] : memref<2x10x10x32xf32, #tpu.memory_space<vmem>>, vector<2x8x8x32xf32>
      %94 = vector.shape_cast %93 : vector<2x8x8x32xf32> to vector<128x32xf32>
      %c0_130 = arith.constant 0 : index
      %c0_131 = arith.constant 0 : index
      %c0_132 = arith.constant 0 : index
      %95 = vector.load %arg3[%c0_130, %c0_131, %c0_132] : memref<9x32x64xf32, #tpu.memory_space<vmem>>, vector<1x32x64xf32>
      %96 = vector.shape_cast %95 : vector<1x32x64xf32> to vector<32x64xf32>
      %cst_133 = arith.constant dense<0.000000e+00> : vector<128x64xf32>
      %97 = tpu.matmul %94, %96, %cst_133 {dimension_numbers = #tpu.dot_dimension_numbers<[1], [0], [0], [1], [0, 0, 1, 1], [], []>} : vector<128x32xf32>, vector<32x64xf32>, vector<128x64xf32> -> vector<128x64xf32>
      %98 = arith.addf %92, %97 : vector<128x64xf32>
      %c0_134 = arith.constant 0 : index
      %c0_135 = arith.constant 0 : index
      %c1_136 = arith.constant 1 : index
      %c0_137 = arith.constant 0 : index
      %99 = vector.load %arg9[%c0_134, %c0_135, %c1_136, %c0_137] : memref<2x10x10x32xf32, #tpu.memory_space<vmem>>, vector<2x8x8x32xf32>
      %100 = vector.shape_cast %99 : vector<2x8x8x32xf32> to vector<128x32xf32>
      %c1_138 = arith.constant 1 : index
      %c0_139 = arith.constant 0 : index
      %c0_140 = arith.constant 0 : index
      %101 = vector.load %arg3[%c1_138, %c0_139, %c0_140] : memref<9x32x64xf32, #tpu.memory_space<vmem>>, vector<1x32x64xf32>
      %102 = vector.shape_cast %101 : vector<1x32x64xf32> to vector<32x64xf32>
      %cst_141 = arith.constant dense<0.000000e+00> : vector<128x64xf32>
      %103 = tpu.matmul %100, %102, %cst_141 {dimension_numbers = #tpu.dot_dimension_numbers<[1], [0], [0], [1], [0, 0, 1, 1], [], []>} : vector<128x32xf32>, vector<32x64xf32>, vector<128x64xf32> -> vector<128x64xf32>
      %104 = arith.addf %98, %103 : vector<128x64xf32>
      %c0_142 = arith.constant 0 : index
      %c0_143 = arith.constant 0 : index
      %c2_144 = arith.constant 2 : index
      %c0_145 = arith.constant 0 : index
      %105 = vector.load %arg9[%c0_142, %c0_143, %c2_144, %c0_145] : memref<2x10x10x32xf32, #tpu.memory_space<vmem>>, vector<2x8x8x32xf32>
      %106 = vector.shape_cast %105 : vector<2x8x8x32xf32> to vector<128x32xf32>
      %c2_146 = arith.constant 2 : index
      %c0_147 = arith.constant 0 : index
      %c0_148 = arith.constant 0 : index
      %107 = vector.load %arg3[%c2_146, %c0_147, %c0_148] : memref<9x32x64xf32, #tpu.memory_space<vmem>>, vector<1x32x64xf32>
      %108 = vector.shape_cast %107 : vector<1x32x64xf32> to vector<32x64xf32>
      %cst_149 = arith.constant dense<0.000000e+00> : vector<128x64xf32>
      %109 = tpu.matmul %106, %108, %cst_149 {dimension_numbers = #tpu.dot_dimension_numbers<[1], [0], [0], [1], [0, 0, 1, 1], [], []>} : vector<128x32xf32>, vector<32x64xf32>, vector<128x64xf32> -> vector<128x64xf32>
      %110 = arith.addf %104, %109 : vector<128x64xf32>
      %c0_150 = arith.constant 0 : index
      %c1_151 = arith.constant 1 : index
      %c0_152 = arith.constant 0 : index
      %c0_153 = arith.constant 0 : index
      %111 = vector.load %arg9[%c0_150, %c1_151, %c0_152, %c0_153] : memref<2x10x10x32xf32, #tpu.memory_space<vmem>>, vector<2x8x8x32xf32>
      %112 = vector.shape_cast %111 : vector<2x8x8x32xf32> to vector<128x32xf32>
      %c3_154 = arith.constant 3 : index
      %c0_155 = arith.constant 0 : index
      %c0_156 = arith.constant 0 : index
      %113 = vector.load %arg3[%c3_154, %c0_155, %c0_156] : memref<9x32x64xf32, #tpu.memory_space<vmem>>, vector<1x32x64xf32>
      %114 = vector.shape_cast %113 : vector<1x32x64xf32> to vector<32x64xf32>
      %cst_157 = arith.constant dense<0.000000e+00> : vector<128x64xf32>
      %115 = tpu.matmul %112, %114, %cst_157 {dimension_numbers = #tpu.dot_dimension_numbers<[1], [0], [0], [1], [0, 0, 1, 1], [], []>} : vector<128x32xf32>, vector<32x64xf32>, vector<128x64xf32> -> vector<128x64xf32>
      %116 = arith.addf %110, %115 : vector<128x64xf32>
      %c0_158 = arith.constant 0 : index
      %c1_159 = arith.constant 1 : index
      %c1_160 = arith.constant 1 : index
      %c0_161 = arith.constant 0 : index
      %117 = vector.load %arg9[%c0_158, %c1_159, %c1_160, %c0_161] : memref<2x10x10x32xf32, #tpu.memory_space<vmem>>, vector<2x8x8x32xf32>
      %118 = vector.shape_cast %117 : vector<2x8x8x32xf32> to vector<128x32xf32>
      %c4_162 = arith.constant 4 : index
      %c0_163 = arith.constant 0 : index
      %c0_164 = arith.constant 0 : index
      %119 = vector.load %arg3[%c4_162, %c0_163, %c0_164] : memref<9x32x64xf32, #tpu.memory_space<vmem>>, vector<1x32x64xf32>
      %120 = vector.shape_cast %119 : vector<1x32x64xf32> to vector<32x64xf32>
      %cst_165 = arith.constant dense<0.000000e+00> : vector<128x64xf32>
      %121 = tpu.matmul %118, %120, %cst_165 {dimension_numbers = #tpu.dot_dimension_numbers<[1], [0], [0], [1], [0, 0, 1, 1], [], []>} : vector<128x32xf32>, vector<32x64xf32>, vector<128x64xf32> -> vector<128x64xf32>
      %122 = arith.addf %116, %121 : vector<128x64xf32>
      %c0_166 = arith.constant 0 : index
      %c1_167 = arith.constant 1 : index
      %c2_168 = arith.constant 2 : index
      %c0_169 = arith.constant 0 : index
      %123 = vector.load %arg9[%c0_166, %c1_167, %c2_168, %c0_169] : memref<2x10x10x32xf32, #tpu.memory_space<vmem>>, vector<2x8x8x32xf32>
      %124 = vector.shape_cast %123 : vector<2x8x8x32xf32> to vector<128x32xf32>
      %c5_170 = arith.constant 5 : index
      %c0_171 = arith.constant 0 : index
      %c0_172 = arith.constant 0 : index
      %125 = vector.load %arg3[%c5_170, %c0_171, %c0_172] : memref<9x32x64xf32, #tpu.memory_space<vmem>>, vector<1x32x64xf32>
      %126 = vector.shape_cast %125 : vector<1x32x64xf32> to vector<32x64xf32>
      %cst_173 = arith.constant dense<0.000000e+00> : vector<128x64xf32>
      %127 = tpu.matmul %124, %126, %cst_173 {dimension_numbers = #tpu.dot_dimension_numbers<[1], [0], [0], [1], [0, 0, 1, 1], [], []>} : vector<128x32xf32>, vector<32x64xf32>, vector<128x64xf32> -> vector<128x64xf32>
      %128 = arith.addf %122, %127 : vector<128x64xf32>
      %c0_174 = arith.constant 0 : index
      %c2_175 = arith.constant 2 : index
      %c0_176 = arith.constant 0 : index
      %c0_177 = arith.constant 0 : index
      %129 = vector.load %arg9[%c0_174, %c2_175, %c0_176, %c0_177] : memref<2x10x10x32xf32, #tpu.memory_space<vmem>>, vector<2x8x8x32xf32>
      %130 = vector.shape_cast %129 : vector<2x8x8x32xf32> to vector<128x32xf32>
      %c6_178 = arith.constant 6 : index
      %c0_179 = arith.constant 0 : index
      %c0_180 = arith.constant 0 : index
      %131 = vector.load %arg3[%c6_178, %c0_179, %c0_180] : memref<9x32x64xf32, #tpu.memory_space<vmem>>, vector<1x32x64xf32>
      %132 = vector.shape_cast %131 : vector<1x32x64xf32> to vector<32x64xf32>
      %cst_181 = arith.constant dense<0.000000e+00> : vector<128x64xf32>
      %133 = tpu.matmul %130, %132, %cst_181 {dimension_numbers = #tpu.dot_dimension_numbers<[1], [0], [0], [1], [0, 0, 1, 1], [], []>} : vector<128x32xf32>, vector<32x64xf32>, vector<128x64xf32> -> vector<128x64xf32>
      %134 = arith.addf %128, %133 : vector<128x64xf32>
      %c0_182 = arith.constant 0 : index
      %c2_183 = arith.constant 2 : index
      %c1_184 = arith.constant 1 : index
      %c0_185 = arith.constant 0 : index
      %135 = vector.load %arg9[%c0_182, %c2_183, %c1_184, %c0_185] : memref<2x10x10x32xf32, #tpu.memory_space<vmem>>, vector<2x8x8x32xf32>
      %136 = vector.shape_cast %135 : vector<2x8x8x32xf32> to vector<128x32xf32>
      %c7_186 = arith.constant 7 : index
      %c0_187 = arith.constant 0 : index
      %c0_188 = arith.constant 0 : index
      %137 = vector.load %arg3[%c7_186, %c0_187, %c0_188] : memref<9x32x64xf32, #tpu.memory_space<vmem>>, vector<1x32x64xf32>
      %138 = vector.shape_cast %137 : vector<1x32x64xf32> to vector<32x64xf32>
      %cst_189 = arith.constant dense<0.000000e+00> : vector<128x64xf32>
      %139 = tpu.matmul %136, %138, %cst_189 {dimension_numbers = #tpu.dot_dimension_numbers<[1], [0], [0], [1], [0, 0, 1, 1], [], []>} : vector<128x32xf32>, vector<32x64xf32>, vector<128x64xf32> -> vector<128x64xf32>
      %140 = arith.addf %134, %139 : vector<128x64xf32>
      %c0_190 = arith.constant 0 : index
      %c2_191 = arith.constant 2 : index
      %c2_192 = arith.constant 2 : index
      %c0_193 = arith.constant 0 : index
      %141 = vector.load %arg9[%c0_190, %c2_191, %c2_192, %c0_193] : memref<2x10x10x32xf32, #tpu.memory_space<vmem>>, vector<2x8x8x32xf32>
      %142 = vector.shape_cast %141 : vector<2x8x8x32xf32> to vector<128x32xf32>
      %c8_194 = arith.constant 8 : index
      %c0_195 = arith.constant 0 : index
      %c0_196 = arith.constant 0 : index
      %143 = vector.load %arg3[%c8_194, %c0_195, %c0_196] : memref<9x32x64xf32, #tpu.memory_space<vmem>>, vector<1x32x64xf32>
      %144 = vector.shape_cast %143 : vector<1x32x64xf32> to vector<32x64xf32>
      %cst_197 = arith.constant dense<0.000000e+00> : vector<128x64xf32>
      %145 = tpu.matmul %142, %144, %cst_197 {dimension_numbers = #tpu.dot_dimension_numbers<[1], [0], [0], [1], [0, 0, 1, 1], [], []>} : vector<128x32xf32>, vector<32x64xf32>, vector<128x64xf32> -> vector<128x64xf32>
      %146 = arith.addf %140, %145 : vector<128x64xf32>
      %147 = vector.broadcast %91 : vector<1x64xf32> to vector<128x64xf32>
      %148 = arith.addf %146, %147 : vector<128x64xf32>
      %cst_198 = arith.constant 0.000000e+00 : f32
      %149 = vector.broadcast %cst_198 : f32 to vector<128x64xf32>
      %150 = arith.maximumf %148, %149 : vector<128x64xf32>
      %c0_199 = arith.constant 0 : index
      %c0_200 = arith.constant 0 : index
      %151 = vector.load %arg10[%c0_199, %c0_200] : memref<128x64xf32, #tpu.memory_space<vmem>>, vector<128x64xf32>
      tpu.vector_store %arg10[%c0_199, %c0_200], %150 {strides = array<i32>} : memref<128x64xf32, #tpu.memory_space<vmem>>, vector<128x64xf32>,
      %c0_201 = arith.constant 0 : index
      %c0_202 = arith.constant 0 : index
      %152 = vector.load %arg10[%c0_201, %c0_202] : memref<128x64xf32, #tpu.memory_space<vmem>>, vector<1x64xf32>
      %c0_203 = arith.constant 0 : index
      %c0_204 = arith.constant 0 : index
      %c0_205 = arith.constant 0 : index
      %153 = vector.load %arg11[%c0_203, %c0_204, %c0_205] : memref<4x2x1024xf32, #tpu.memory_space<vmem>>, vector<1x1x64xf32>
      %154 = vector.shape_cast %153 : vector<1x1x64xf32> to vector<1x64xf32>
      %155 = vector.shape_cast %152 : vector<1x64xf32> to vector<1x1x64xf32>
      tpu.vector_store %arg11[%c0_203, %c0_204, %c0_205], %155 {strides = array<i32>} : memref<4x2x1024xf32, #tpu.memory_space<vmem>>, vector<1x1x64xf32>,
      %c64 = arith.constant 64 : index
      %c0_206 = arith.constant 0 : index
      %156 = vector.load %arg10[%c64, %c0_206] : memref<128x64xf32, #tpu.memory_space<vmem>>, vector<1x64xf32>
      %c0_207 = arith.constant 0 : index
      %c1_208 = arith.constant 1 : index
      %c0_209 = arith.constant 0 : index
      %157 = vector.load %arg11[%c0_207, %c1_208, %c0_209] : memref<4x2x1024xf32, #tpu.memory_space<vmem>>, vector<1x1x64xf32>
      %158 = vector.shape_cast %157 : vector<1x1x64xf32> to vector<1x64xf32>
      %159 = vector.shape_cast %156 : vector<1x64xf32> to vector<1x1x64xf32>
      tpu.vector_store %arg11[%c0_207, %c1_208, %c0_209], %159 {strides = array<i32>} : memref<4x2x1024xf32, #tpu.memory_space<vmem>>, vector<1x1x64xf32>,
      %c1_210 = arith.constant 1 : index
      %c0_211 = arith.constant 0 : index
      %160 = vector.load %arg10[%c1_210, %c0_211] : memref<128x64xf32, #tpu.memory_space<vmem>>, vector<1x64xf32>
      %c0_212 = arith.constant 0 : index
      %c0_213 = arith.constant 0 : index
      %c64_214 = arith.constant 64 : index
      %161 = vector.load %arg11[%c0_212, %c0_213, %c64_214] : memref<4x2x1024xf32, #tpu.memory_space<vmem>>, vector<1x1x64xf32>
      %162 = vector.shape_cast %161 : vector<1x1x64xf32> to vector<1x64xf32>
      %163 = vector.shape_cast %160 : vector<1x64xf32> to vector<1x1x64xf32>
      tpu.vector_store %arg11[%c0_212, %c0_213, %c64_214], %163 {strides = array<i32>} : memref<4x2x1024xf32, #tpu.memory_space<vmem>>, vector<1x1x64xf32>,
      %c65 = arith.constant 65 : index
      %c0_215 = arith.constant 0 : index
      %164 = vector.load %arg10[%c65, %c0_215] : memref<128x64xf32, #tpu.memory_space<vmem>>, vector<1x64xf32>
      %c0_216 = arith.constant 0 : index
      %c1_217 = arith.constant 1 : index
      %c64_218 = arith.constant 64 : index
      %165 = vector.load %arg11[%c0_216, %c1_217, %c64_218] : memref<4x2x1024xf32, #tpu.memory_space<vmem>>, vector<1x1x64xf32>
      %166 = vector.shape_cast %165 : vector<1x1x64xf32> to vector<1x64xf32>
      %167 = vector.shape_cast %164 : vector<1x64xf32> to vector<1x1x64xf32>
      tpu.vector_store %arg11[%c0_216, %c1_217, %c64_218], %167 {strides = array<i32>} : memref<4x2x1024xf32, #tpu.memory_space<vmem>>, vector<1x1x64xf32>,
      %c2_219 = arith.constant 2 : index
      %c0_220 = arith.constant 0 : index
      %168 = vector.load %arg10[%c2_219, %c0_220] : memref<128x64xf32, #tpu.memory_space<vmem>>, vector<1x64xf32>
      %c0_221 = arith.constant 0 : index
      %c0_222 = arith.constant 0 : index
      %c128_223 = arith.constant 128 : index
      %169 = vector.load %arg11[%c0_221, %c0_222, %c128_223] : memref<4x2x1024xf32, #tpu.memory_space<vmem>>, vector<1x1x64xf32>
      %170 = vector.shape_cast %169 : vector<1x1x64xf32> to vector<1x64xf32>
      %171 = vector.shape_cast %168 : vector<1x64xf32> to vector<1x1x64xf32>
      tpu.vector_store %arg11[%c0_221, %c0_222, %c128_223], %171 {strides = array<i32>} : memref<4x2x1024xf32, #tpu.memory_space<vmem>>, vector<1x1x64xf32>,
      %c66 = arith.constant 66 : index
      %c0_224 = arith.constant 0 : index
      %172 = vector.load %arg10[%c66, %c0_224] : memref<128x64xf32, #tpu.memory_space<vmem>>, vector<1x64xf32>
      %c0_225 = arith.constant 0 : index
      %c1_226 = arith.constant 1 : index
      %c128_227 = arith.constant 128 : index
      %173 = vector.load %arg11[%c0_225, %c1_226, %c128_227] : memref<4x2x1024xf32, #tpu.memory_space<vmem>>, vector<1x1x64xf32>
      %174 = vector.shape_cast %173 : vector<1x1x64xf32> to vector<1x64xf32>
      %175 = vector.shape_cast %172 : vector<1x64xf32> to vector<1x1x64xf32>
      tpu.vector_store %arg11[%c0_225, %c1_226, %c128_227], %175 {strides = array<i32>} : memref<4x2x1024xf32, #tpu.memory_space<vmem>>, vector<1x1x64xf32>,
      %c3_228 = arith.constant 3 : index
      %c0_229 = arith.constant 0 : index
      %176 = vector.load %arg10[%c3_228, %c0_229] : memref<128x64xf32, #tpu.memory_space<vmem>>, vector<1x64xf32>
      %c0_230 = arith.constant 0 : index
      %c0_231 = arith.constant 0 : index
      %c192 = arith.constant 192 : index
      %177 = vector.load %arg11[%c0_230, %c0_231, %c192] : memref<4x2x1024xf32, #tpu.memory_space<vmem>>, vector<1x1x64xf32>
      %178 = vector.shape_cast %177 : vector<1x1x64xf32> to vector<1x64xf32>
      %179 = vector.shape_cast %176 : vector<1x64xf32> to vector<1x1x64xf32>
      tpu.vector_store %arg11[%c0_230, %c0_231, %c192], %179 {strides = array<i32>} : memref<4x2x1024xf32, #tpu.memory_space<vmem>>, vector<1x1x64xf32>,
      %c67 = arith.constant 67 : index
      %c0_232 = arith.constant 0 : index
      %180 = vector.load %arg10[%c67, %c0_232] : memref<128x64xf32, #tpu.memory_space<vmem>>, vector<1x64xf32>
      %c0_233 = arith.constant 0 : index
      %c1_234 = arith.constant 1 : index
      %c192_235 = arith.constant 192 : index
      %181 = vector.load %arg11[%c0_233, %c1_234, %c192_235] : memref<4x2x1024xf32, #tpu.memory_space<vmem>>, vector<1x1x64xf32>
      %182 = vector.shape_cast %181 : vector<1x1x64xf32> to vector<1x64xf32>
      %183 = vector.shape_cast %180 : vector<1x64xf32> to vector<1x1x64xf32>
      tpu.vector_store %arg11[%c0_233, %c1_234, %c192_235], %183 {strides = array<i32>} : memref<4x2x1024xf32, #tpu.memory_space<vmem>>, vector<1x1x64xf32>,
      %c4_236 = arith.constant 4 : index
      %c0_237 = arith.constant 0 : index
      %184 = vector.load %arg10[%c4_236, %c0_237] : memref<128x64xf32, #tpu.memory_space<vmem>>, vector<1x64xf32>
      %c0_238 = arith.constant 0 : index
      %c0_239 = arith.constant 0 : index
      %c256 = arith.constant 256 : index
      %185 = vector.load %arg11[%c0_238, %c0_239, %c256] : memref<4x2x1024xf32, #tpu.memory_space<vmem>>, vector<1x1x64xf32>
      %186 = vector.shape_cast %185 : vector<1x1x64xf32> to vector<1x64xf32>
      %187 = vector.shape_cast %184 : vector<1x64xf32> to vector<1x1x64xf32>
      tpu.vector_store %arg11[%c0_238, %c0_239, %c256], %187 {strides = array<i32>} : memref<4x2x1024xf32, #tpu.memory_space<vmem>>, vector<1x1x64xf32>,
      %c68 = arith.constant 68 : index
      %c0_240 = arith.constant 0 : index
      %188 = vector.load %arg10[%c68, %c0_240] : memref<128x64xf32, #tpu.memory_space<vmem>>, vector<1x64xf32>
      %c0_241 = arith.constant 0 : index
      %c1_242 = arith.constant 1 : index
      %c256_243 = arith.constant 256 : index
      %189 = vector.load %arg11[%c0_241, %c1_242, %c256_243] : memref<4x2x1024xf32, #tpu.memory_space<vmem>>, vector<1x1x64xf32>
      %190 = vector.shape_cast %189 : vector<1x1x64xf32> to vector<1x64xf32>
      %191 = vector.shape_cast %188 : vector<1x64xf32> to vector<1x1x64xf32>
      tpu.vector_store %arg11[%c0_241, %c1_242, %c256_243], %191 {strides = array<i32>} : memref<4x2x1024xf32, #tpu.memory_space<vmem>>, vector<1x1x64xf32>,
      %c5_244 = arith.constant 5 : index
      %c0_245 = arith.constant 0 : index
      %192 = vector.load %arg10[%c5_244, %c0_245] : memref<128x64xf32, #tpu.memory_space<vmem>>, vector<1x64xf32>
      %c0_246 = arith.constant 0 : index
      %c0_247 = arith.constant 0 : index
      %c320 = arith.constant 320 : index
      %193 = vector.load %arg11[%c0_246, %c0_247, %c320] : memref<4x2x1024xf32, #tpu.memory_space<vmem>>, vector<1x1x64xf32>
      %194 = vector.shape_cast %193 : vector<1x1x64xf32> to vector<1x64xf32>
      %195 = vector.shape_cast %192 : vector<1x64xf32> to vector<1x1x64xf32>
      tpu.vector_store %arg11[%c0_246, %c0_247, %c320], %195 {strides = array<i32>} : memref<4x2x1024xf32, #tpu.memory_space<vmem>>, vector<1x1x64xf32>,
      %c69 = arith.constant 69 : index
      %c0_248 = arith.constant 0 : index
      %196 = vector.load %arg10[%c69, %c0_248] : memref<128x64xf32, #tpu.memory_space<vmem>>, vector<1x64xf32>
      %c0_249 = arith.constant 0 : index
      %c1_250 = arith.constant 1 : index
      %c320_251 = arith.constant 320 : index
      %197 = vector.load %arg11[%c0_249, %c1_250, %c320_251] : memref<4x2x1024xf32, #tpu.memory_space<vmem>>, vector<1x1x64xf32>
      %198 = vector.shape_cast %197 : vector<1x1x64xf32> to vector<1x64xf32>
      %199 = vector.shape_cast %196 : vector<1x64xf32> to vector<1x1x64xf32>
      tpu.vector_store %arg11[%c0_249, %c1_250, %c320_251], %199 {strides = array<i32>} : memref<4x2x1024xf32, #tpu.memory_space<vmem>>, vector<1x1x64xf32>,
      %c6_252 = arith.constant 6 : index
      %c0_253 = arith.constant 0 : index
      %200 = vector.load %arg10[%c6_252, %c0_253] : memref<128x64xf32, #tpu.memory_space<vmem>>, vector<1x64xf32>
      %c0_254 = arith.constant 0 : index
      %c0_255 = arith.constant 0 : index
      %c384 = arith.constant 384 : index
      %201 = vector.load %arg11[%c0_254, %c0_255, %c384] : memref<4x2x1024xf32, #tpu.memory_space<vmem>>, vector<1x1x64xf32>
      %202 = vector.shape_cast %201 : vector<1x1x64xf32> to vector<1x64xf32>
      %203 = vector.shape_cast %200 : vector<1x64xf32> to vector<1x1x64xf32>
      tpu.vector_store %arg11[%c0_254, %c0_255, %c384], %203 {strides = array<i32>} : memref<4x2x1024xf32, #tpu.memory_space<vmem>>, vector<1x1x64xf32>,
      %c70 = arith.constant 70 : index
      %c0_256 = arith.constant 0 : index
      %204 = vector.load %arg10[%c70, %c0_256] : memref<128x64xf32, #tpu.memory_space<vmem>>, vector<1x64xf32>
      %c0_257 = arith.constant 0 : index
      %c1_258 = arith.constant 1 : index
      %c384_259 = arith.constant 384 : index
      %205 = vector.load %arg11[%c0_257, %c1_258, %c384_259] : memref<4x2x1024xf32, #tpu.memory_space<vmem>>, vector<1x1x64xf32>
      %206 = vector.shape_cast %205 : vector<1x1x64xf32> to vector<1x64xf32>
      %207 = vector.shape_cast %204 : vector<1x64xf32> to vector<1x1x64xf32>
      tpu.vector_store %arg11[%c0_257, %c1_258, %c384_259], %207 {strides = array<i32>} : memref<4x2x1024xf32, #tpu.memory_space<vmem>>, vector<1x1x64xf32>,
      %c7_260 = arith.constant 7 : index
      %c0_261 = arith.constant 0 : index
      %208 = vector.load %arg10[%c7_260, %c0_261] : memref<128x64xf32, #tpu.memory_space<vmem>>, vector<1x64xf32>
      %c0_262 = arith.constant 0 : index
      %c0_263 = arith.constant 0 : index
      %c448 = arith.constant 448 : index
      %209 = vector.load %arg11[%c0_262, %c0_263, %c448] : memref<4x2x1024xf32, #tpu.memory_space<vmem>>, vector<1x1x64xf32>
      %210 = vector.shape_cast %209 : vector<1x1x64xf32> to vector<1x64xf32>
      %211 = vector.shape_cast %208 : vector<1x64xf32> to vector<1x1x64xf32>
      tpu.vector_store %arg11[%c0_262, %c0_263, %c448], %211 {strides = array<i32>} : memref<4x2x1024xf32, #tpu.memory_space<vmem>>, vector<1x1x64xf32>,
      %c71 = arith.constant 71 : index
      %c0_264 = arith.constant 0 : index
      %212 = vector.load %arg10[%c71, %c0_264] : memref<128x64xf32, #tpu.memory_space<vmem>>, vector<1x64xf32>
      %c0_265 = arith.constant 0 : index
      %c1_266 = arith.constant 1 : index
      %c448_267 = arith.constant 448 : index
      %213 = vector.load %arg11[%c0_265, %c1_266, %c448_267] : memref<4x2x1024xf32, #tpu.memory_space<vmem>>, vector<1x1x64xf32>
      %214 = vector.shape_cast %213 : vector<1x1x64xf32> to vector<1x64xf32>
      %215 = vector.shape_cast %212 : vector<1x64xf32> to vector<1x1x64xf32>
      tpu.vector_store %arg11[%c0_265, %c1_266, %c448_267], %215 {strides = array<i32>} : memref<4x2x1024xf32, #tpu.memory_space<vmem>>, vector<1x1x64xf32>,
      %c8_268 = arith.constant 8 : index
      %c0_269 = arith.constant 0 : index
      %216 = vector.load %arg10[%c8_268, %c0_269] : memref<128x64xf32, #tpu.memory_space<vmem>>, vector<1x64xf32>
      %c0_270 = arith.constant 0 : index
      %c0_271 = arith.constant 0 : index
      %c512 = arith.constant 512 : index
      %217 = vector.load %arg11[%c0_270, %c0_271, %c512] : memref<4x2x1024xf32, #tpu.memory_space<vmem>>, vector<1x1x64xf32>
      %218 = vector.shape_cast %217 : vector<1x1x64xf32> to vector<1x64xf32>
      %219 = vector.shape_cast %216 : vector<1x64xf32> to vector<1x1x64xf32>
      tpu.vector_store %arg11[%c0_270, %c0_271, %c512], %219 {strides = array<i32>} : memref<4x2x1024xf32, #tpu.memory_space<vmem>>, vector<1x1x64xf32>,
      %c72 = arith.constant 72 : index
      %c0_272 = arith.constant 0 : index
      %220 = vector.load %arg10[%c72, %c0_272] : memref<128x64xf32, #tpu.memory_space<vmem>>, vector<1x64xf32>
      %c0_273 = arith.constant 0 : index
      %c1_274 = arith.constant 1 : index
      %c512_275 = arith.constant 512 : index
      %221 = vector.load %arg11[%c0_273, %c1_274, %c512_275] : memref<4x2x1024xf32, #tpu.memory_space<vmem>>, vector<1x1x64xf32>
      %222 = vector.shape_cast %221 : vector<1x1x64xf32> to vector<1x64xf32>
      %223 = vector.shape_cast %220 : vector<1x64xf32> to vector<1x1x64xf32>
      tpu.vector_store %arg11[%c0_273, %c1_274, %c512_275], %223 {strides = array<i32>} : memref<4x2x1024xf32, #tpu.memory_space<vmem>>, vector<1x1x64xf32>,
      %c9_276 = arith.constant 9 : index
      %c0_277 = arith.constant 0 : index
      %224 = vector.load %arg10[%c9_276, %c0_277] : memref<128x64xf32, #tpu.memory_space<vmem>>, vector<1x64xf32>
      %c0_278 = arith.constant 0 : index
      %c0_279 = arith.constant 0 : index
      %c576 = arith.constant 576 : index
      %225 = vector.load %arg11[%c0_278, %c0_279, %c576] : memref<4x2x1024xf32, #tpu.memory_space<vmem>>, vector<1x1x64xf32>
      %226 = vector.shape_cast %225 : vector<1x1x64xf32> to vector<1x64xf32>
      %227 = vector.shape_cast %224 : vector<1x64xf32> to vector<1x1x64xf32>
      tpu.vector_store %arg11[%c0_278, %c0_279, %c576], %227 {strides = array<i32>} : memref<4x2x1024xf32, #tpu.memory_space<vmem>>, vector<1x1x64xf32>,
      %c73 = arith.constant 73 : index
      %c0_280 = arith.constant 0 : index
      %228 = vector.load %arg10[%c73, %c0_280] : memref<128x64xf32, #tpu.memory_space<vmem>>, vector<1x64xf32>
      %c0_281 = arith.constant 0 : index
      %c1_282 = arith.constant 1 : index
      %c576_283 = arith.constant 576 : index
      %229 = vector.load %arg11[%c0_281, %c1_282, %c576_283] : memref<4x2x1024xf32, #tpu.memory_space<vmem>>, vector<1x1x64xf32>
      %230 = vector.shape_cast %229 : vector<1x1x64xf32> to vector<1x64xf32>
      %231 = vector.shape_cast %228 : vector<1x64xf32> to vector<1x1x64xf32>
      tpu.vector_store %arg11[%c0_281, %c1_282, %c576_283], %231 {strides = array<i32>} : memref<4x2x1024xf32, #tpu.memory_space<vmem>>, vector<1x1x64xf32>,
      %c10 = arith.constant 10 : index
      %c0_284 = arith.constant 0 : index
      %232 = vector.load %arg10[%c10, %c0_284] : memref<128x64xf32, #tpu.memory_space<vmem>>, vector<1x64xf32>
      %c0_285 = arith.constant 0 : index
      %c0_286 = arith.constant 0 : index
      %c640 = arith.constant 640 : index
      %233 = vector.load %arg11[%c0_285, %c0_286, %c640] : memref<4x2x1024xf32, #tpu.memory_space<vmem>>, vector<1x1x64xf32>
      %234 = vector.shape_cast %233 : vector<1x1x64xf32> to vector<1x64xf32>
      %235 = vector.shape_cast %232 : vector<1x64xf32> to vector<1x1x64xf32>
      tpu.vector_store %arg11[%c0_285, %c0_286, %c640], %235 {strides = array<i32>} : memref<4x2x1024xf32, #tpu.memory_space<vmem>>, vector<1x1x64xf32>,
      %c74 = arith.constant 74 : index
      %c0_287 = arith.constant 0 : index
      %236 = vector.load %arg10[%c74, %c0_287] : memref<128x64xf32, #tpu.memory_space<vmem>>, vector<1x64xf32>
      %c0_288 = arith.constant 0 : index
      %c1_289 = arith.constant 1 : index
      %c640_290 = arith.constant 640 : index
      %237 = vector.load %arg11[%c0_288, %c1_289, %c640_290] : memref<4x2x1024xf32, #tpu.memory_space<vmem>>, vector<1x1x64xf32>
      %238 = vector.shape_cast %237 : vector<1x1x64xf32> to vector<1x64xf32>
      %239 = vector.shape_cast %236 : vector<1x64xf32> to vector<1x1x64xf32>
      tpu.vector_store %arg11[%c0_288, %c1_289, %c640_290], %239 {strides = array<i32>} : memref<4x2x1024xf32, #tpu.memory_space<vmem>>, vector<1x1x64xf32>,
      %c11 = arith.constant 11 : index
      %c0_291 = arith.constant 0 : index
      %240 = vector.load %arg10[%c11, %c0_291] : memref<128x64xf32, #tpu.memory_space<vmem>>, vector<1x64xf32>
      %c0_292 = arith.constant 0 : index
      %c0_293 = arith.constant 0 : index
      %c704 = arith.constant 704 : index
      %241 = vector.load %arg11[%c0_292, %c0_293, %c704] : memref<4x2x1024xf32, #tpu.memory_space<vmem>>, vector<1x1x64xf32>
      %242 = vector.shape_cast %241 : vector<1x1x64xf32> to vector<1x64xf32>
      %243 = vector.shape_cast %240 : vector<1x64xf32> to vector<1x1x64xf32>
      tpu.vector_store %arg11[%c0_292, %c0_293, %c704], %243 {strides = array<i32>} : memref<4x2x1024xf32, #tpu.memory_space<vmem>>, vector<1x1x64xf32>,
      %c75 = arith.constant 75 : index
      %c0_294 = arith.constant 0 : index
      %244 = vector.load %arg10[%c75, %c0_294] : memref<128x64xf32, #tpu.memory_space<vmem>>, vector<1x64xf32>
      %c0_295 = arith.constant 0 : index
      %c1_296 = arith.constant 1 : index
      %c704_297 = arith.constant 704 : index
      %245 = vector.load %arg11[%c0_295, %c1_296, %c704_297] : memref<4x2x1024xf32, #tpu.memory_space<vmem>>, vector<1x1x64xf32>
      %246 = vector.shape_cast %245 : vector<1x1x64xf32> to vector<1x64xf32>
      %247 = vector.shape_cast %244 : vector<1x64xf32> to vector<1x1x64xf32>
      tpu.vector_store %arg11[%c0_295, %c1_296, %c704_297], %247 {strides = array<i32>} : memref<4x2x1024xf32, #tpu.memory_space<vmem>>, vector<1x1x64xf32>,
      %c12 = arith.constant 12 : index
      %c0_298 = arith.constant 0 : index
      %248 = vector.load %arg10[%c12, %c0_298] : memref<128x64xf32, #tpu.memory_space<vmem>>, vector<1x64xf32>
      %c0_299 = arith.constant 0 : index
      %c0_300 = arith.constant 0 : index
      %c768 = arith.constant 768 : index
      %249 = vector.load %arg11[%c0_299, %c0_300, %c768] : memref<4x2x1024xf32, #tpu.memory_space<vmem>>, vector<1x1x64xf32>
      %250 = vector.shape_cast %249 : vector<1x1x64xf32> to vector<1x64xf32>
      %251 = vector.shape_cast %248 : vector<1x64xf32> to vector<1x1x64xf32>
      tpu.vector_store %arg11[%c0_299, %c0_300, %c768], %251 {strides = array<i32>} : memref<4x2x1024xf32, #tpu.memory_space<vmem>>, vector<1x1x64xf32>,
      %c76 = arith.constant 76 : index
      %c0_301 = arith.constant 0 : index
      %252 = vector.load %arg10[%c76, %c0_301] : memref<128x64xf32, #tpu.memory_space<vmem>>, vector<1x64xf32>
      %c0_302 = arith.constant 0 : index
      %c1_303 = arith.constant 1 : index
      %c768_304 = arith.constant 768 : index
      %253 = vector.load %arg11[%c0_302, %c1_303, %c768_304] : memref<4x2x1024xf32, #tpu.memory_space<vmem>>, vector<1x1x64xf32>
      %254 = vector.shape_cast %253 : vector<1x1x64xf32> to vector<1x64xf32>
      %255 = vector.shape_cast %252 : vector<1x64xf32> to vector<1x1x64xf32>
      tpu.vector_store %arg11[%c0_302, %c1_303, %c768_304], %255 {strides = array<i32>} : memref<4x2x1024xf32, #tpu.memory_space<vmem>>, vector<1x1x64xf32>,
      %c13 = arith.constant 13 : index
      %c0_305 = arith.constant 0 : index
      %256 = vector.load %arg10[%c13, %c0_305] : memref<128x64xf32, #tpu.memory_space<vmem>>, vector<1x64xf32>
      %c0_306 = arith.constant 0 : index
      %c0_307 = arith.constant 0 : index
      %c832 = arith.constant 832 : index
      %257 = vector.load %arg11[%c0_306, %c0_307, %c832] : memref<4x2x1024xf32, #tpu.memory_space<vmem>>, vector<1x1x64xf32>
      %258 = vector.shape_cast %257 : vector<1x1x64xf32> to vector<1x64xf32>
      %259 = vector.shape_cast %256 : vector<1x64xf32> to vector<1x1x64xf32>
      tpu.vector_store %arg11[%c0_306, %c0_307, %c832], %259 {strides = array<i32>} : memref<4x2x1024xf32, #tpu.memory_space<vmem>>, vector<1x1x64xf32>,
      %c77 = arith.constant 77 : index
      %c0_308 = arith.constant 0 : index
      %260 = vector.load %arg10[%c77, %c0_308] : memref<128x64xf32, #tpu.memory_space<vmem>>, vector<1x64xf32>
      %c0_309 = arith.constant 0 : index
      %c1_310 = arith.constant 1 : index
      %c832_311 = arith.constant 832 : index
      %261 = vector.load %arg11[%c0_309, %c1_310, %c832_311] : memref<4x2x1024xf32, #tpu.memory_space<vmem>>, vector<1x1x64xf32>
      %262 = vector.shape_cast %261 : vector<1x1x64xf32> to vector<1x64xf32>
      %263 = vector.shape_cast %260 : vector<1x64xf32> to vector<1x1x64xf32>
      tpu.vector_store %arg11[%c0_309, %c1_310, %c832_311], %263 {strides = array<i32>} : memref<4x2x1024xf32, #tpu.memory_space<vmem>>, vector<1x1x64xf32>,
      %c14 = arith.constant 14 : index
      %c0_312 = arith.constant 0 : index
      %264 = vector.load %arg10[%c14, %c0_312] : memref<128x64xf32, #tpu.memory_space<vmem>>, vector<1x64xf32>
      %c0_313 = arith.constant 0 : index
      %c0_314 = arith.constant 0 : index
      %c896 = arith.constant 896 : index
      %265 = vector.load %arg11[%c0_313, %c0_314, %c896] : memref<4x2x1024xf32, #tpu.memory_space<vmem>>, vector<1x1x64xf32>
      %266 = vector.shape_cast %265 : vector<1x1x64xf32> to vector<1x64xf32>
      %267 = vector.shape_cast %264 : vector<1x64xf32> to vector<1x1x64xf32>
      tpu.vector_store %arg11[%c0_313, %c0_314, %c896], %267 {strides = array<i32>} : memref<4x2x1024xf32, #tpu.memory_space<vmem>>, vector<1x1x64xf32>,
      %c78 = arith.constant 78 : index
      %c0_315 = arith.constant 0 : index
      %268 = vector.load %arg10[%c78, %c0_315] : memref<128x64xf32, #tpu.memory_space<vmem>>, vector<1x64xf32>
      %c0_316 = arith.constant 0 : index
      %c1_317 = arith.constant 1 : index
      %c896_318 = arith.constant 896 : index
      %269 = vector.load %arg11[%c0_316, %c1_317, %c896_318] : memref<4x2x1024xf32, #tpu.memory_space<vmem>>, vector<1x1x64xf32>
      %270 = vector.shape_cast %269 : vector<1x1x64xf32> to vector<1x64xf32>
      %271 = vector.shape_cast %268 : vector<1x64xf32> to vector<1x1x64xf32>
      tpu.vector_store %arg11[%c0_316, %c1_317, %c896_318], %271 {strides = array<i32>} : memref<4x2x1024xf32, #tpu.memory_space<vmem>>, vector<1x1x64xf32>,
      %c15 = arith.constant 15 : index
      %c0_319 = arith.constant 0 : index
      %272 = vector.load %arg10[%c15, %c0_319] : memref<128x64xf32, #tpu.memory_space<vmem>>, vector<1x64xf32>
      %c0_320 = arith.constant 0 : index
      %c0_321 = arith.constant 0 : index
      %c960 = arith.constant 960 : index
      %273 = vector.load %arg11[%c0_320, %c0_321, %c960] : memref<4x2x1024xf32, #tpu.memory_space<vmem>>, vector<1x1x64xf32>
      %274 = vector.shape_cast %273 : vector<1x1x64xf32> to vector<1x64xf32>
      %275 = vector.shape_cast %272 : vector<1x64xf32> to vector<1x1x64xf32>
      tpu.vector_store %arg11[%c0_320, %c0_321, %c960], %275 {strides = array<i32>} : memref<4x2x1024xf32, #tpu.memory_space<vmem>>, vector<1x1x64xf32>,
      %c79 = arith.constant 79 : index
      %c0_322 = arith.constant 0 : index
      %276 = vector.load %arg10[%c79, %c0_322] : memref<128x64xf32, #tpu.memory_space<vmem>>, vector<1x64xf32>
      %c0_323 = arith.constant 0 : index
      %c1_324 = arith.constant 1 : index
      %c960_325 = arith.constant 960 : index
      %277 = vector.load %arg11[%c0_323, %c1_324, %c960_325] : memref<4x2x1024xf32, #tpu.memory_space<vmem>>, vector<1x1x64xf32>
      %278 = vector.shape_cast %277 : vector<1x1x64xf32> to vector<1x64xf32>
      %279 = vector.shape_cast %276 : vector<1x64xf32> to vector<1x1x64xf32>
      tpu.vector_store %arg11[%c0_323, %c1_324, %c960_325], %279 {strides = array<i32>} : memref<4x2x1024xf32, #tpu.memory_space<vmem>>, vector<1x1x64xf32>,
      %c16 = arith.constant 16 : index
      %c0_326 = arith.constant 0 : index
      %280 = vector.load %arg10[%c16, %c0_326] : memref<128x64xf32, #tpu.memory_space<vmem>>, vector<1x64xf32>
      %c1_327 = arith.constant 1 : index
      %c0_328 = arith.constant 0 : index
      %c0_329 = arith.constant 0 : index
      %281 = vector.load %arg11[%c1_327, %c0_328, %c0_329] : memref<4x2x1024xf32, #tpu.memory_space<vmem>>, vector<1x1x64xf32>
      %282 = vector.shape_cast %281 : vector<1x1x64xf32> to vector<1x64xf32>
      %283 = vector.shape_cast %280 : vector<1x64xf32> to vector<1x1x64xf32>
      tpu.vector_store %arg11[%c1_327, %c0_328, %c0_329], %283 {strides = array<i32>} : memref<4x2x1024xf32, #tpu.memory_space<vmem>>, vector<1x1x64xf32>,
      %c80 = arith.constant 80 : index
      %c0_330 = arith.constant 0 : index
      %284 = vector.load %arg10[%c80, %c0_330] : memref<128x64xf32, #tpu.memory_space<vmem>>, vector<1x64xf32>
      %c1_331 = arith.constant 1 : index
      %c1_332 = arith.constant 1 : index
      %c0_333 = arith.constant 0 : index
      %285 = vector.load %arg11[%c1_331, %c1_332, %c0_333] : memref<4x2x1024xf32, #tpu.memory_space<vmem>>, vector<1x1x64xf32>
      %286 = vector.shape_cast %285 : vector<1x1x64xf32> to vector<1x64xf32>
      %287 = vector.shape_cast %284 : vector<1x64xf32> to vector<1x1x64xf32>
      tpu.vector_store %arg11[%c1_331, %c1_332, %c0_333], %287 {strides = array<i32>} : memref<4x2x1024xf32, #tpu.memory_space<vmem>>, vector<1x1x64xf32>,
      %c17 = arith.constant 17 : index
      %c0_334 = arith.constant 0 : index
      %288 = vector.load %arg10[%c17, %c0_334] : memref<128x64xf32, #tpu.memory_space<vmem>>, vector<1x64xf32>
      %c1_335 = arith.constant 1 : index
      %c0_336 = arith.constant 0 : index
      %c64_337 = arith.constant 64 : index
      %289 = vector.load %arg11[%c1_335, %c0_336, %c64_337] : memref<4x2x1024xf32, #tpu.memory_space<vmem>>, vector<1x1x64xf32>
      %290 = vector.shape_cast %289 : vector<1x1x64xf32> to vector<1x64xf32>
      %291 = vector.shape_cast %288 : vector<1x64xf32> to vector<1x1x64xf32>
      tpu.vector_store %arg11[%c1_335, %c0_336, %c64_337], %291 {strides = array<i32>} : memref<4x2x1024xf32, #tpu.memory_space<vmem>>, vector<1x1x64xf32>,
      %c81 = arith.constant 81 : index
      %c0_338 = arith.constant 0 : index
      %292 = vector.load %arg10[%c81, %c0_338] : memref<128x64xf32, #tpu.memory_space<vmem>>, vector<1x64xf32>
      %c1_339 = arith.constant 1 : index
      %c1_340 = arith.constant 1 : index
      %c64_341 = arith.constant 64 : index
      %293 = vector.load %arg11[%c1_339, %c1_340, %c64_341] : memref<4x2x1024xf32, #tpu.memory_space<vmem>>, vector<1x1x64xf32>
      %294 = vector.shape_cast %293 : vector<1x1x64xf32> to vector<1x64xf32>
      %295 = vector.shape_cast %292 : vector<1x64xf32> to vector<1x1x64xf32>
      tpu.vector_store %arg11[%c1_339, %c1_340, %c64_341], %295 {strides = array<i32>} : memref<4x2x1024xf32, #tpu.memory_space<vmem>>, vector<1x1x64xf32>,
      %c18 = arith.constant 18 : index
      %c0_342 = arith.constant 0 : index
      %296 = vector.load %arg10[%c18, %c0_342] : memref<128x64xf32, #tpu.memory_space<vmem>>, vector<1x64xf32>
      %c1_343 = arith.constant 1 : index
      %c0_344 = arith.constant 0 : index
      %c128_345 = arith.constant 128 : index
      %297 = vector.load %arg11[%c1_343, %c0_344, %c128_345] : memref<4x2x1024xf32, #tpu.memory_space<vmem>>, vector<1x1x64xf32>
      %298 = vector.shape_cast %297 : vector<1x1x64xf32> to vector<1x64xf32>
      %299 = vector.shape_cast %296 : vector<1x64xf32> to vector<1x1x64xf32>
      tpu.vector_store %arg11[%c1_343, %c0_344, %c128_345], %299 {strides = array<i32>} : memref<4x2x1024xf32, #tpu.memory_space<vmem>>, vector<1x1x64xf32>,
      %c82 = arith.constant 82 : index
      %c0_346 = arith.constant 0 : index
      %300 = vector.load %arg10[%c82, %c0_346] : memref<128x64xf32, #tpu.memory_space<vmem>>, vector<1x64xf32>
      %c1_347 = arith.constant 1 : index
      %c1_348 = arith.constant 1 : index
      %c128_349 = arith.constant 128 : index
      %301 = vector.load %arg11[%c1_347, %c1_348, %c128_349] : memref<4x2x1024xf32, #tpu.memory_space<vmem>>, vector<1x1x64xf32>
      %302 = vector.shape_cast %301 : vector<1x1x64xf32> to vector<1x64xf32>
      %303 = vector.shape_cast %300 : vector<1x64xf32> to vector<1x1x64xf32>
      tpu.vector_store %arg11[%c1_347, %c1_348, %c128_349], %303 {strides = array<i32>} : memref<4x2x1024xf32, #tpu.memory_space<vmem>>, vector<1x1x64xf32>,
      %c19 = arith.constant 19 : index
      %c0_350 = arith.constant 0 : index
      %304 = vector.load %arg10[%c19, %c0_350] : memref<128x64xf32, #tpu.memory_space<vmem>>, vector<1x64xf32>
      %c1_351 = arith.constant 1 : index
      %c0_352 = arith.constant 0 : index
      %c192_353 = arith.constant 192 : index
      %305 = vector.load %arg11[%c1_351, %c0_352, %c192_353] : memref<4x2x1024xf32, #tpu.memory_space<vmem>>, vector<1x1x64xf32>
      %306 = vector.shape_cast %305 : vector<1x1x64xf32> to vector<1x64xf32>
      %307 = vector.shape_cast %304 : vector<1x64xf32> to vector<1x1x64xf32>
      tpu.vector_store %arg11[%c1_351, %c0_352, %c192_353], %307 {strides = array<i32>} : memref<4x2x1024xf32, #tpu.memory_space<vmem>>, vector<1x1x64xf32>,
      %c83 = arith.constant 83 : index
      %c0_354 = arith.constant 0 : index
      %308 = vector.load %arg10[%c83, %c0_354] : memref<128x64xf32, #tpu.memory_space<vmem>>, vector<1x64xf32>
      %c1_355 = arith.constant 1 : index
      %c1_356 = arith.constant 1 : index
      %c192_357 = arith.constant 192 : index
      %309 = vector.load %arg11[%c1_355, %c1_356, %c192_357] : memref<4x2x1024xf32, #tpu.memory_space<vmem>>, vector<1x1x64xf32>
      %310 = vector.shape_cast %309 : vector<1x1x64xf32> to vector<1x64xf32>
      %311 = vector.shape_cast %308 : vector<1x64xf32> to vector<1x1x64xf32>
      tpu.vector_store %arg11[%c1_355, %c1_356, %c192_357], %311 {strides = array<i32>} : memref<4x2x1024xf32, #tpu.memory_space<vmem>>, vector<1x1x64xf32>,
      %c20 = arith.constant 20 : index
      %c0_358 = arith.constant 0 : index
      %312 = vector.load %arg10[%c20, %c0_358] : memref<128x64xf32, #tpu.memory_space<vmem>>, vector<1x64xf32>
      %c1_359 = arith.constant 1 : index
      %c0_360 = arith.constant 0 : index
      %c256_361 = arith.constant 256 : index
      %313 = vector.load %arg11[%c1_359, %c0_360, %c256_361] : memref<4x2x1024xf32, #tpu.memory_space<vmem>>, vector<1x1x64xf32>
      %314 = vector.shape_cast %313 : vector<1x1x64xf32> to vector<1x64xf32>
      %315 = vector.shape_cast %312 : vector<1x64xf32> to vector<1x1x64xf32>
      tpu.vector_store %arg11[%c1_359, %c0_360, %c256_361], %315 {strides = array<i32>} : memref<4x2x1024xf32, #tpu.memory_space<vmem>>, vector<1x1x64xf32>,
      %c84 = arith.constant 84 : index
      %c0_362 = arith.constant 0 : index
      %316 = vector.load %arg10[%c84, %c0_362] : memref<128x64xf32, #tpu.memory_space<vmem>>, vector<1x64xf32>
      %c1_363 = arith.constant 1 : index
      %c1_364 = arith.constant 1 : index
      %c256_365 = arith.constant 256 : index
      %317 = vector.load %arg11[%c1_363, %c1_364, %c256_365] : memref<4x2x1024xf32, #tpu.memory_space<vmem>>, vector<1x1x64xf32>
      %318 = vector.shape_cast %317 : vector<1x1x64xf32> to vector<1x64xf32>
      %319 = vector.shape_cast %316 : vector<1x64xf32> to vector<1x1x64xf32>
      tpu.vector_store %arg11[%c1_363, %c1_364, %c256_365], %319 {strides = array<i32>} : memref<4x2x1024xf32, #tpu.memory_space<vmem>>, vector<1x1x64xf32>,
      %c21 = arith.constant 21 : index
      %c0_366 = arith.constant 0 : index
      %320 = vector.load %arg10[%c21, %c0_366] : memref<128x64xf32, #tpu.memory_space<vmem>>, vector<1x64xf32>
      %c1_367 = arith.constant 1 : index
      %c0_368 = arith.constant 0 : index
      %c320_369 = arith.constant 320 : index
      %321 = vector.load %arg11[%c1_367, %c0_368, %c320_369] : memref<4x2x1024xf32, #tpu.memory_space<vmem>>, vector<1x1x64xf32>
      %322 = vector.shape_cast %321 : vector<1x1x64xf32> to vector<1x64xf32>
      %323 = vector.shape_cast %320 : vector<1x64xf32> to vector<1x1x64xf32>
      tpu.vector_store %arg11[%c1_367, %c0_368, %c320_369], %323 {strides = array<i32>} : memref<4x2x1024xf32, #tpu.memory_space<vmem>>, vector<1x1x64xf32>,
      %c85 = arith.constant 85 : index
      %c0_370 = arith.constant 0 : index
      %324 = vector.load %arg10[%c85, %c0_370] : memref<128x64xf32, #tpu.memory_space<vmem>>, vector<1x64xf32>
      %c1_371 = arith.constant 1 : index
      %c1_372 = arith.constant 1 : index
      %c320_373 = arith.constant 320 : index
      %325 = vector.load %arg11[%c1_371, %c1_372, %c320_373] : memref<4x2x1024xf32, #tpu.memory_space<vmem>>, vector<1x1x64xf32>
      %326 = vector.shape_cast %325 : vector<1x1x64xf32> to vector<1x64xf32>
      %327 = vector.shape_cast %324 : vector<1x64xf32> to vector<1x1x64xf32>
      tpu.vector_store %arg11[%c1_371, %c1_372, %c320_373], %327 {strides = array<i32>} : memref<4x2x1024xf32, #tpu.memory_space<vmem>>, vector<1x1x64xf32>,
      %c22 = arith.constant 22 : index
      %c0_374 = arith.constant 0 : index
      %328 = vector.load %arg10[%c22, %c0_374] : memref<128x64xf32, #tpu.memory_space<vmem>>, vector<1x64xf32>
      %c1_375 = arith.constant 1 : index
      %c0_376 = arith.constant 0 : index
      %c384_377 = arith.constant 384 : index
      %329 = vector.load %arg11[%c1_375, %c0_376, %c384_377] : memref<4x2x1024xf32, #tpu.memory_space<vmem>>, vector<1x1x64xf32>
      %330 = vector.shape_cast %329 : vector<1x1x64xf32> to vector<1x64xf32>
      %331 = vector.shape_cast %328 : vector<1x64xf32> to vector<1x1x64xf32>
      tpu.vector_store %arg11[%c1_375, %c0_376, %c384_377], %331 {strides = array<i32>} : memref<4x2x1024xf32, #tpu.memory_space<vmem>>, vector<1x1x64xf32>,
      %c86 = arith.constant 86 : index
      %c0_378 = arith.constant 0 : index
      %332 = vector.load %arg10[%c86, %c0_378] : memref<128x64xf32, #tpu.memory_space<vmem>>, vector<1x64xf32>
      %c1_379 = arith.constant 1 : index
      %c1_380 = arith.constant 1 : index
      %c384_381 = arith.constant 384 : index
      %333 = vector.load %arg11[%c1_379, %c1_380, %c384_381] : memref<4x2x1024xf32, #tpu.memory_space<vmem>>, vector<1x1x64xf32>
      %334 = vector.shape_cast %333 : vector<1x1x64xf32> to vector<1x64xf32>
      %335 = vector.shape_cast %332 : vector<1x64xf32> to vector<1x1x64xf32>
      tpu.vector_store %arg11[%c1_379, %c1_380, %c384_381], %335 {strides = array<i32>} : memref<4x2x1024xf32, #tpu.memory_space<vmem>>, vector<1x1x64xf32>,
      %c23 = arith.constant 23 : index
      %c0_382 = arith.constant 0 : index
      %336 = vector.load %arg10[%c23, %c0_382] : memref<128x64xf32, #tpu.memory_space<vmem>>, vector<1x64xf32>
      %c1_383 = arith.constant 1 : index
      %c0_384 = arith.constant 0 : index
      %c448_385 = arith.constant 448 : index
      %337 = vector.load %arg11[%c1_383, %c0_384, %c448_385] : memref<4x2x1024xf32, #tpu.memory_space<vmem>>, vector<1x1x64xf32>
      %338 = vector.shape_cast %337 : vector<1x1x64xf32> to vector<1x64xf32>
      %339 = vector.shape_cast %336 : vector<1x64xf32> to vector<1x1x64xf32>
      tpu.vector_store %arg11[%c1_383, %c0_384, %c448_385], %339 {strides = array<i32>} : memref<4x2x1024xf32, #tpu.memory_space<vmem>>, vector<1x1x64xf32>,
      %c87 = arith.constant 87 : index
      %c0_386 = arith.constant 0 : index
      %340 = vector.load %arg10[%c87, %c0_386] : memref<128x64xf32, #tpu.memory_space<vmem>>, vector<1x64xf32>
      %c1_387 = arith.constant 1 : index
      %c1_388 = arith.constant 1 : index
      %c448_389 = arith.constant 448 : index
      %341 = vector.load %arg11[%c1_387, %c1_388, %c448_389] : memref<4x2x1024xf32, #tpu.memory_space<vmem>>, vector<1x1x64xf32>
      %342 = vector.shape_cast %341 : vector<1x1x64xf32> to vector<1x64xf32>
      %343 = vector.shape_cast %340 : vector<1x64xf32> to vector<1x1x64xf32>
      tpu.vector_store %arg11[%c1_387, %c1_388, %c448_389], %343 {strides = array<i32>} : memref<4x2x1024xf32, #tpu.memory_space<vmem>>, vector<1x1x64xf32>,
      %c24 = arith.constant 24 : index
      %c0_390 = arith.constant 0 : index
      %344 = vector.load %arg10[%c24, %c0_390] : memref<128x64xf32, #tpu.memory_space<vmem>>, vector<1x64xf32>
      %c1_391 = arith.constant 1 : index
      %c0_392 = arith.constant 0 : index
      %c512_393 = arith.constant 512 : index
      %345 = vector.load %arg11[%c1_391, %c0_392, %c512_393] : memref<4x2x1024xf32, #tpu.memory_space<vmem>>, vector<1x1x64xf32>
      %346 = vector.shape_cast %345 : vector<1x1x64xf32> to vector<1x64xf32>
      %347 = vector.shape_cast %344 : vector<1x64xf32> to vector<1x1x64xf32>
      tpu.vector_store %arg11[%c1_391, %c0_392, %c512_393], %347 {strides = array<i32>} : memref<4x2x1024xf32, #tpu.memory_space<vmem>>, vector<1x1x64xf32>,
      %c88 = arith.constant 88 : index
      %c0_394 = arith.constant 0 : index
      %348 = vector.load %arg10[%c88, %c0_394] : memref<128x64xf32, #tpu.memory_space<vmem>>, vector<1x64xf32>
      %c1_395 = arith.constant 1 : index
      %c1_396 = arith.constant 1 : index
      %c512_397 = arith.constant 512 : index
      %349 = vector.load %arg11[%c1_395, %c1_396, %c512_397] : memref<4x2x1024xf32, #tpu.memory_space<vmem>>, vector<1x1x64xf32>
      %350 = vector.shape_cast %349 : vector<1x1x64xf32> to vector<1x64xf32>
      %351 = vector.shape_cast %348 : vector<1x64xf32> to vector<1x1x64xf32>
      tpu.vector_store %arg11[%c1_395, %c1_396, %c512_397], %351 {strides = array<i32>} : memref<4x2x1024xf32, #tpu.memory_space<vmem>>, vector<1x1x64xf32>,
      %c25 = arith.constant 25 : index
      %c0_398 = arith.constant 0 : index
      %352 = vector.load %arg10[%c25, %c0_398] : memref<128x64xf32, #tpu.memory_space<vmem>>, vector<1x64xf32>
      %c1_399 = arith.constant 1 : index
      %c0_400 = arith.constant 0 : index
      %c576_401 = arith.constant 576 : index
      %353 = vector.load %arg11[%c1_399, %c0_400, %c576_401] : memref<4x2x1024xf32, #tpu.memory_space<vmem>>, vector<1x1x64xf32>
      %354 = vector.shape_cast %353 : vector<1x1x64xf32> to vector<1x64xf32>
      %355 = vector.shape_cast %352 : vector<1x64xf32> to vector<1x1x64xf32>
      tpu.vector_store %arg11[%c1_399, %c0_400, %c576_401], %355 {strides = array<i32>} : memref<4x2x1024xf32, #tpu.memory_space<vmem>>, vector<1x1x64xf32>,
      %c89 = arith.constant 89 : index
      %c0_402 = arith.constant 0 : index
      %356 = vector.load %arg10[%c89, %c0_402] : memref<128x64xf32, #tpu.memory_space<vmem>>, vector<1x64xf32>
      %c1_403 = arith.constant 1 : index
      %c1_404 = arith.constant 1 : index
      %c576_405 = arith.constant 576 : index
      %357 = vector.load %arg11[%c1_403, %c1_404, %c576_405] : memref<4x2x1024xf32, #tpu.memory_space<vmem>>, vector<1x1x64xf32>
      %358 = vector.shape_cast %357 : vector<1x1x64xf32> to vector<1x64xf32>
      %359 = vector.shape_cast %356 : vector<1x64xf32> to vector<1x1x64xf32>
      tpu.vector_store %arg11[%c1_403, %c1_404, %c576_405], %359 {strides = array<i32>} : memref<4x2x1024xf32, #tpu.memory_space<vmem>>, vector<1x1x64xf32>,
      %c26 = arith.constant 26 : index
      %c0_406 = arith.constant 0 : index
      %360 = vector.load %arg10[%c26, %c0_406] : memref<128x64xf32, #tpu.memory_space<vmem>>, vector<1x64xf32>
      %c1_407 = arith.constant 1 : index
      %c0_408 = arith.constant 0 : index
      %c640_409 = arith.constant 640 : index
      %361 = vector.load %arg11[%c1_407, %c0_408, %c640_409] : memref<4x2x1024xf32, #tpu.memory_space<vmem>>, vector<1x1x64xf32>
      %362 = vector.shape_cast %361 : vector<1x1x64xf32> to vector<1x64xf32>
      %363 = vector.shape_cast %360 : vector<1x64xf32> to vector<1x1x64xf32>
      tpu.vector_store %arg11[%c1_407, %c0_408, %c640_409], %363 {strides = array<i32>} : memref<4x2x1024xf32, #tpu.memory_space<vmem>>, vector<1x1x64xf32>,
      %c90 = arith.constant 90 : index
      %c0_410 = arith.constant 0 : index
      %364 = vector.load %arg10[%c90, %c0_410] : memref<128x64xf32, #tpu.memory_space<vmem>>, vector<1x64xf32>
      %c1_411 = arith.constant 1 : index
      %c1_412 = arith.constant 1 : index
      %c640_413 = arith.constant 640 : index
      %365 = vector.load %arg11[%c1_411, %c1_412, %c640_413] : memref<4x2x1024xf32, #tpu.memory_space<vmem>>, vector<1x1x64xf32>
      %366 = vector.shape_cast %365 : vector<1x1x64xf32> to vector<1x64xf32>
      %367 = vector.shape_cast %364 : vector<1x64xf32> to vector<1x1x64xf32>
      tpu.vector_store %arg11[%c1_411, %c1_412, %c640_413], %367 {strides = array<i32>} : memref<4x2x1024xf32, #tpu.memory_space<vmem>>, vector<1x1x64xf32>,
      %c27 = arith.constant 27 : index
      %c0_414 = arith.constant 0 : index
      %368 = vector.load %arg10[%c27, %c0_414] : memref<128x64xf32, #tpu.memory_space<vmem>>, vector<1x64xf32>
      %c1_415 = arith.constant 1 : index
      %c0_416 = arith.constant 0 : index
      %c704_417 = arith.constant 704 : index
      %369 = vector.load %arg11[%c1_415, %c0_416, %c704_417] : memref<4x2x1024xf32, #tpu.memory_space<vmem>>, vector<1x1x64xf32>
      %370 = vector.shape_cast %369 : vector<1x1x64xf32> to vector<1x64xf32>
      %371 = vector.shape_cast %368 : vector<1x64xf32> to vector<1x1x64xf32>
      tpu.vector_store %arg11[%c1_415, %c0_416, %c704_417], %371 {strides = array<i32>} : memref<4x2x1024xf32, #tpu.memory_space<vmem>>, vector<1x1x64xf32>,
      %c91 = arith.constant 91 : index
      %c0_418 = arith.constant 0 : index
      %372 = vector.load %arg10[%c91, %c0_418] : memref<128x64xf32, #tpu.memory_space<vmem>>, vector<1x64xf32>
      %c1_419 = arith.constant 1 : index
      %c1_420 = arith.constant 1 : index
      %c704_421 = arith.constant 704 : index
      %373 = vector.load %arg11[%c1_419, %c1_420, %c704_421] : memref<4x2x1024xf32, #tpu.memory_space<vmem>>, vector<1x1x64xf32>
      %374 = vector.shape_cast %373 : vector<1x1x64xf32> to vector<1x64xf32>
      %375 = vector.shape_cast %372 : vector<1x64xf32> to vector<1x1x64xf32>
      tpu.vector_store %arg11[%c1_419, %c1_420, %c704_421], %375 {strides = array<i32>} : memref<4x2x1024xf32, #tpu.memory_space<vmem>>, vector<1x1x64xf32>,
      %c28 = arith.constant 28 : index
      %c0_422 = arith.constant 0 : index
      %376 = vector.load %arg10[%c28, %c0_422] : memref<128x64xf32, #tpu.memory_space<vmem>>, vector<1x64xf32>
      %c1_423 = arith.constant 1 : index
      %c0_424 = arith.constant 0 : index
      %c768_425 = arith.constant 768 : index
      %377 = vector.load %arg11[%c1_423, %c0_424, %c768_425] : memref<4x2x1024xf32, #tpu.memory_space<vmem>>, vector<1x1x64xf32>
      %378 = vector.shape_cast %377 : vector<1x1x64xf32> to vector<1x64xf32>
      %379 = vector.shape_cast %376 : vector<1x64xf32> to vector<1x1x64xf32>
      tpu.vector_store %arg11[%c1_423, %c0_424, %c768_425], %379 {strides = array<i32>} : memref<4x2x1024xf32, #tpu.memory_space<vmem>>, vector<1x1x64xf32>,
      %c92 = arith.constant 92 : index
      %c0_426 = arith.constant 0 : index
      %380 = vector.load %arg10[%c92, %c0_426] : memref<128x64xf32, #tpu.memory_space<vmem>>, vector<1x64xf32>
      %c1_427 = arith.constant 1 : index
      %c1_428 = arith.constant 1 : index
      %c768_429 = arith.constant 768 : index
      %381 = vector.load %arg11[%c1_427, %c1_428, %c768_429] : memref<4x2x1024xf32, #tpu.memory_space<vmem>>, vector<1x1x64xf32>
      %382 = vector.shape_cast %381 : vector<1x1x64xf32> to vector<1x64xf32>
      %383 = vector.shape_cast %380 : vector<1x64xf32> to vector<1x1x64xf32>
      tpu.vector_store %arg11[%c1_427, %c1_428, %c768_429], %383 {strides = array<i32>} : memref<4x2x1024xf32, #tpu.memory_space<vmem>>, vector<1x1x64xf32>,
      %c29 = arith.constant 29 : index
      %c0_430 = arith.constant 0 : index
      %384 = vector.load %arg10[%c29, %c0_430] : memref<128x64xf32, #tpu.memory_space<vmem>>, vector<1x64xf32>
      %c1_431 = arith.constant 1 : index
      %c0_432 = arith.constant 0 : index
      %c832_433 = arith.constant 832 : index
      %385 = vector.load %arg11[%c1_431, %c0_432, %c832_433] : memref<4x2x1024xf32, #tpu.memory_space<vmem>>, vector<1x1x64xf32>
      %386 = vector.shape_cast %385 : vector<1x1x64xf32> to vector<1x64xf32>
      %387 = vector.shape_cast %384 : vector<1x64xf32> to vector<1x1x64xf32>
      tpu.vector_store %arg11[%c1_431, %c0_432, %c832_433], %387 {strides = array<i32>} : memref<4x2x1024xf32, #tpu.memory_space<vmem>>, vector<1x1x64xf32>,
      %c93 = arith.constant 93 : index
      %c0_434 = arith.constant 0 : index
      %388 = vector.load %arg10[%c93, %c0_434] : memref<128x64xf32, #tpu.memory_space<vmem>>, vector<1x64xf32>
      %c1_435 = arith.constant 1 : index
      %c1_436 = arith.constant 1 : index
      %c832_437 = arith.constant 832 : index
      %389 = vector.load %arg11[%c1_435, %c1_436, %c832_437] : memref<4x2x1024xf32, #tpu.memory_space<vmem>>, vector<1x1x64xf32>
      %390 = vector.shape_cast %389 : vector<1x1x64xf32> to vector<1x64xf32>
      %391 = vector.shape_cast %388 : vector<1x64xf32> to vector<1x1x64xf32>
      tpu.vector_store %arg11[%c1_435, %c1_436, %c832_437], %391 {strides = array<i32>} : memref<4x2x1024xf32, #tpu.memory_space<vmem>>, vector<1x1x64xf32>,
      %c30 = arith.constant 30 : index
      %c0_438 = arith.constant 0 : index
      %392 = vector.load %arg10[%c30, %c0_438] : memref<128x64xf32, #tpu.memory_space<vmem>>, vector<1x64xf32>
      %c1_439 = arith.constant 1 : index
      %c0_440 = arith.constant 0 : index
      %c896_441 = arith.constant 896 : index
      %393 = vector.load %arg11[%c1_439, %c0_440, %c896_441] : memref<4x2x1024xf32, #tpu.memory_space<vmem>>, vector<1x1x64xf32>
      %394 = vector.shape_cast %393 : vector<1x1x64xf32> to vector<1x64xf32>
      %395 = vector.shape_cast %392 : vector<1x64xf32> to vector<1x1x64xf32>
      tpu.vector_store %arg11[%c1_439, %c0_440, %c896_441], %395 {strides = array<i32>} : memref<4x2x1024xf32, #tpu.memory_space<vmem>>, vector<1x1x64xf32>,
      %c94 = arith.constant 94 : index
      %c0_442 = arith.constant 0 : index
      %396 = vector.load %arg10[%c94, %c0_442] : memref<128x64xf32, #tpu.memory_space<vmem>>, vector<1x64xf32>
      %c1_443 = arith.constant 1 : index
      %c1_444 = arith.constant 1 : index
      %c896_445 = arith.constant 896 : index
      %397 = vector.load %arg11[%c1_443, %c1_444, %c896_445] : memref<4x2x1024xf32, #tpu.memory_space<vmem>>, vector<1x1x64xf32>
      %398 = vector.shape_cast %397 : vector<1x1x64xf32> to vector<1x64xf32>
      %399 = vector.shape_cast %396 : vector<1x64xf32> to vector<1x1x64xf32>
      tpu.vector_store %arg11[%c1_443, %c1_444, %c896_445], %399 {strides = array<i32>} : memref<4x2x1024xf32, #tpu.memory_space<vmem>>, vector<1x1x64xf32>,
      %c31 = arith.constant 31 : index
      %c0_446 = arith.constant 0 : index
      %400 = vector.load %arg10[%c31, %c0_446] : memref<128x64xf32, #tpu.memory_space<vmem>>, vector<1x64xf32>
      %c1_447 = arith.constant 1 : index
      %c0_448 = arith.constant 0 : index
      %c960_449 = arith.constant 960 : index
      %401 = vector.load %arg11[%c1_447, %c0_448, %c960_449] : memref<4x2x1024xf32, #tpu.memory_space<vmem>>, vector<1x1x64xf32>
      %402 = vector.shape_cast %401 : vector<1x1x64xf32> to vector<1x64xf32>
      %403 = vector.shape_cast %400 : vector<1x64xf32> to vector<1x1x64xf32>
      tpu.vector_store %arg11[%c1_447, %c0_448, %c960_449], %403 {strides = array<i32>} : memref<4x2x1024xf32, #tpu.memory_space<vmem>>, vector<1x1x64xf32>,
      %c95 = arith.constant 95 : index
      %c0_450 = arith.constant 0 : index
      %404 = vector.load %arg10[%c95, %c0_450] : memref<128x64xf32, #tpu.memory_space<vmem>>, vector<1x64xf32>
      %c1_451 = arith.constant 1 : index
      %c1_452 = arith.constant 1 : index
      %c960_453 = arith.constant 960 : index
      %405 = vector.load %arg11[%c1_451, %c1_452, %c960_453] : memref<4x2x1024xf32, #tpu.memory_space<vmem>>, vector<1x1x64xf32>
      %406 = vector.shape_cast %405 : vector<1x1x64xf32> to vector<1x64xf32>
      %407 = vector.shape_cast %404 : vector<1x64xf32> to vector<1x1x64xf32>
      tpu.vector_store %arg11[%c1_451, %c1_452, %c960_453], %407 {strides = array<i32>} : memref<4x2x1024xf32, #tpu.memory_space<vmem>>, vector<1x1x64xf32>,
      %c32 = arith.constant 32 : index
      %c0_454 = arith.constant 0 : index
      %408 = vector.load %arg10[%c32, %c0_454] : memref<128x64xf32, #tpu.memory_space<vmem>>, vector<1x64xf32>
      %c2_455 = arith.constant 2 : index
      %c0_456 = arith.constant 0 : index
      %c0_457 = arith.constant 0 : index
      %409 = vector.load %arg11[%c2_455, %c0_456, %c0_457] : memref<4x2x1024xf32, #tpu.memory_space<vmem>>, vector<1x1x64xf32>
      %410 = vector.shape_cast %409 : vector<1x1x64xf32> to vector<1x64xf32>
      %411 = vector.shape_cast %408 : vector<1x64xf32> to vector<1x1x64xf32>
      tpu.vector_store %arg11[%c2_455, %c0_456, %c0_457], %411 {strides = array<i32>} : memref<4x2x1024xf32, #tpu.memory_space<vmem>>, vector<1x1x64xf32>,
      %c96 = arith.constant 96 : index
      %c0_458 = arith.constant 0 : index
      %412 = vector.load %arg10[%c96, %c0_458] : memref<128x64xf32, #tpu.memory_space<vmem>>, vector<1x64xf32>
      %c2_459 = arith.constant 2 : index
      %c1_460 = arith.constant 1 : index
      %c0_461 = arith.constant 0 : index
      %413 = vector.load %arg11[%c2_459, %c1_460, %c0_461] : memref<4x2x1024xf32, #tpu.memory_space<vmem>>, vector<1x1x64xf32>
      %414 = vector.shape_cast %413 : vector<1x1x64xf32> to vector<1x64xf32>
      %415 = vector.shape_cast %412 : vector<1x64xf32> to vector<1x1x64xf32>
      tpu.vector_store %arg11[%c2_459, %c1_460, %c0_461], %415 {strides = array<i32>} : memref<4x2x1024xf32, #tpu.memory_space<vmem>>, vector<1x1x64xf32>,
      %c33 = arith.constant 33 : index
      %c0_462 = arith.constant 0 : index
      %416 = vector.load %arg10[%c33, %c0_462] : memref<128x64xf32, #tpu.memory_space<vmem>>, vector<1x64xf32>
      %c2_463 = arith.constant 2 : index
      %c0_464 = arith.constant 0 : index
      %c64_465 = arith.constant 64 : index
      %417 = vector.load %arg11[%c2_463, %c0_464, %c64_465] : memref<4x2x1024xf32, #tpu.memory_space<vmem>>, vector<1x1x64xf32>
      %418 = vector.shape_cast %417 : vector<1x1x64xf32> to vector<1x64xf32>
      %419 = vector.shape_cast %416 : vector<1x64xf32> to vector<1x1x64xf32>
      tpu.vector_store %arg11[%c2_463, %c0_464, %c64_465], %419 {strides = array<i32>} : memref<4x2x1024xf32, #tpu.memory_space<vmem>>, vector<1x1x64xf32>,
      %c97 = arith.constant 97 : index
      %c0_466 = arith.constant 0 : index
      %420 = vector.load %arg10[%c97, %c0_466] : memref<128x64xf32, #tpu.memory_space<vmem>>, vector<1x64xf32>
      %c2_467 = arith.constant 2 : index
      %c1_468 = arith.constant 1 : index
      %c64_469 = arith.constant 64 : index
      %421 = vector.load %arg11[%c2_467, %c1_468, %c64_469] : memref<4x2x1024xf32, #tpu.memory_space<vmem>>, vector<1x1x64xf32>
      %422 = vector.shape_cast %421 : vector<1x1x64xf32> to vector<1x64xf32>
      %423 = vector.shape_cast %420 : vector<1x64xf32> to vector<1x1x64xf32>
      tpu.vector_store %arg11[%c2_467, %c1_468, %c64_469], %423 {strides = array<i32>} : memref<4x2x1024xf32, #tpu.memory_space<vmem>>, vector<1x1x64xf32>,
      %c34 = arith.constant 34 : index
      %c0_470 = arith.constant 0 : index
      %424 = vector.load %arg10[%c34, %c0_470] : memref<128x64xf32, #tpu.memory_space<vmem>>, vector<1x64xf32>
      %c2_471 = arith.constant 2 : index
      %c0_472 = arith.constant 0 : index
      %c128_473 = arith.constant 128 : index
      %425 = vector.load %arg11[%c2_471, %c0_472, %c128_473] : memref<4x2x1024xf32, #tpu.memory_space<vmem>>, vector<1x1x64xf32>
      %426 = vector.shape_cast %425 : vector<1x1x64xf32> to vector<1x64xf32>
      %427 = vector.shape_cast %424 : vector<1x64xf32> to vector<1x1x64xf32>
      tpu.vector_store %arg11[%c2_471, %c0_472, %c128_473], %427 {strides = array<i32>} : memref<4x2x1024xf32, #tpu.memory_space<vmem>>, vector<1x1x64xf32>,
      %c98 = arith.constant 98 : index
      %c0_474 = arith.constant 0 : index
      %428 = vector.load %arg10[%c98, %c0_474] : memref<128x64xf32, #tpu.memory_space<vmem>>, vector<1x64xf32>
      %c2_475 = arith.constant 2 : index
      %c1_476 = arith.constant 1 : index
      %c128_477 = arith.constant 128 : index
      %429 = vector.load %arg11[%c2_475, %c1_476, %c128_477] : memref<4x2x1024xf32, #tpu.memory_space<vmem>>, vector<1x1x64xf32>
      %430 = vector.shape_cast %429 : vector<1x1x64xf32> to vector<1x64xf32>
      %431 = vector.shape_cast %428 : vector<1x64xf32> to vector<1x1x64xf32>
      tpu.vector_store %arg11[%c2_475, %c1_476, %c128_477], %431 {strides = array<i32>} : memref<4x2x1024xf32, #tpu.memory_space<vmem>>, vector<1x1x64xf32>,
      %c35 = arith.constant 35 : index
      %c0_478 = arith.constant 0 : index
      %432 = vector.load %arg10[%c35, %c0_478] : memref<128x64xf32, #tpu.memory_space<vmem>>, vector<1x64xf32>
      %c2_479 = arith.constant 2 : index
      %c0_480 = arith.constant 0 : index
      %c192_481 = arith.constant 192 : index
      %433 = vector.load %arg11[%c2_479, %c0_480, %c192_481] : memref<4x2x1024xf32, #tpu.memory_space<vmem>>, vector<1x1x64xf32>
      %434 = vector.shape_cast %433 : vector<1x1x64xf32> to vector<1x64xf32>
      %435 = vector.shape_cast %432 : vector<1x64xf32> to vector<1x1x64xf32>
      tpu.vector_store %arg11[%c2_479, %c0_480, %c192_481], %435 {strides = array<i32>} : memref<4x2x1024xf32, #tpu.memory_space<vmem>>, vector<1x1x64xf32>,
      %c99 = arith.constant 99 : index
      %c0_482 = arith.constant 0 : index
      %436 = vector.load %arg10[%c99, %c0_482] : memref<128x64xf32, #tpu.memory_space<vmem>>, vector<1x64xf32>
      %c2_483 = arith.constant 2 : index
      %c1_484 = arith.constant 1 : index
      %c192_485 = arith.constant 192 : index
      %437 = vector.load %arg11[%c2_483, %c1_484, %c192_485] : memref<4x2x1024xf32, #tpu.memory_space<vmem>>, vector<1x1x64xf32>
      %438 = vector.shape_cast %437 : vector<1x1x64xf32> to vector<1x64xf32>
      %439 = vector.shape_cast %436 : vector<1x64xf32> to vector<1x1x64xf32>
      tpu.vector_store %arg11[%c2_483, %c1_484, %c192_485], %439 {strides = array<i32>} : memref<4x2x1024xf32, #tpu.memory_space<vmem>>, vector<1x1x64xf32>,
      %c36 = arith.constant 36 : index
      %c0_486 = arith.constant 0 : index
      %440 = vector.load %arg10[%c36, %c0_486] : memref<128x64xf32, #tpu.memory_space<vmem>>, vector<1x64xf32>
      %c2_487 = arith.constant 2 : index
      %c0_488 = arith.constant 0 : index
      %c256_489 = arith.constant 256 : index
      %441 = vector.load %arg11[%c2_487, %c0_488, %c256_489] : memref<4x2x1024xf32, #tpu.memory_space<vmem>>, vector<1x1x64xf32>
      %442 = vector.shape_cast %441 : vector<1x1x64xf32> to vector<1x64xf32>
      %443 = vector.shape_cast %440 : vector<1x64xf32> to vector<1x1x64xf32>
      tpu.vector_store %arg11[%c2_487, %c0_488, %c256_489], %443 {strides = array<i32>} : memref<4x2x1024xf32, #tpu.memory_space<vmem>>, vector<1x1x64xf32>,
      %c100 = arith.constant 100 : index
      %c0_490 = arith.constant 0 : index
      %444 = vector.load %arg10[%c100, %c0_490] : memref<128x64xf32, #tpu.memory_space<vmem>>, vector<1x64xf32>
      %c2_491 = arith.constant 2 : index
      %c1_492 = arith.constant 1 : index
      %c256_493 = arith.constant 256 : index
      %445 = vector.load %arg11[%c2_491, %c1_492, %c256_493] : memref<4x2x1024xf32, #tpu.memory_space<vmem>>, vector<1x1x64xf32>
      %446 = vector.shape_cast %445 : vector<1x1x64xf32> to vector<1x64xf32>
      %447 = vector.shape_cast %444 : vector<1x64xf32> to vector<1x1x64xf32>
      tpu.vector_store %arg11[%c2_491, %c1_492, %c256_493], %447 {strides = array<i32>} : memref<4x2x1024xf32, #tpu.memory_space<vmem>>, vector<1x1x64xf32>,
      %c37 = arith.constant 37 : index
      %c0_494 = arith.constant 0 : index
      %448 = vector.load %arg10[%c37, %c0_494] : memref<128x64xf32, #tpu.memory_space<vmem>>, vector<1x64xf32>
      %c2_495 = arith.constant 2 : index
      %c0_496 = arith.constant 0 : index
      %c320_497 = arith.constant 320 : index
      %449 = vector.load %arg11[%c2_495, %c0_496, %c320_497] : memref<4x2x1024xf32, #tpu.memory_space<vmem>>, vector<1x1x64xf32>
      %450 = vector.shape_cast %449 : vector<1x1x64xf32> to vector<1x64xf32>
      %451 = vector.shape_cast %448 : vector<1x64xf32> to vector<1x1x64xf32>
      tpu.vector_store %arg11[%c2_495, %c0_496, %c320_497], %451 {strides = array<i32>} : memref<4x2x1024xf32, #tpu.memory_space<vmem>>, vector<1x1x64xf32>,
      %c101 = arith.constant 101 : index
      %c0_498 = arith.constant 0 : index
      %452 = vector.load %arg10[%c101, %c0_498] : memref<128x64xf32, #tpu.memory_space<vmem>>, vector<1x64xf32>
      %c2_499 = arith.constant 2 : index
      %c1_500 = arith.constant 1 : index
      %c320_501 = arith.constant 320 : index
      %453 = vector.load %arg11[%c2_499, %c1_500, %c320_501] : memref<4x2x1024xf32, #tpu.memory_space<vmem>>, vector<1x1x64xf32>
      %454 = vector.shape_cast %453 : vector<1x1x64xf32> to vector<1x64xf32>
      %455 = vector.shape_cast %452 : vector<1x64xf32> to vector<1x1x64xf32>
      tpu.vector_store %arg11[%c2_499, %c1_500, %c320_501], %455 {strides = array<i32>} : memref<4x2x1024xf32, #tpu.memory_space<vmem>>, vector<1x1x64xf32>,
      %c38 = arith.constant 38 : index
      %c0_502 = arith.constant 0 : index
      %456 = vector.load %arg10[%c38, %c0_502] : memref<128x64xf32, #tpu.memory_space<vmem>>, vector<1x64xf32>
      %c2_503 = arith.constant 2 : index
      %c0_504 = arith.constant 0 : index
      %c384_505 = arith.constant 384 : index
      %457 = vector.load %arg11[%c2_503, %c0_504, %c384_505] : memref<4x2x1024xf32, #tpu.memory_space<vmem>>, vector<1x1x64xf32>
      %458 = vector.shape_cast %457 : vector<1x1x64xf32> to vector<1x64xf32>
      %459 = vector.shape_cast %456 : vector<1x64xf32> to vector<1x1x64xf32>
      tpu.vector_store %arg11[%c2_503, %c0_504, %c384_505], %459 {strides = array<i32>} : memref<4x2x1024xf32, #tpu.memory_space<vmem>>, vector<1x1x64xf32>,
      %c102 = arith.constant 102 : index
      %c0_506 = arith.constant 0 : index
      %460 = vector.load %arg10[%c102, %c0_506] : memref<128x64xf32, #tpu.memory_space<vmem>>, vector<1x64xf32>
      %c2_507 = arith.constant 2 : index
      %c1_508 = arith.constant 1 : index
      %c384_509 = arith.constant 384 : index
      %461 = vector.load %arg11[%c2_507, %c1_508, %c384_509] : memref<4x2x1024xf32, #tpu.memory_space<vmem>>, vector<1x1x64xf32>
      %462 = vector.shape_cast %461 : vector<1x1x64xf32> to vector<1x64xf32>
      %463 = vector.shape_cast %460 : vector<1x64xf32> to vector<1x1x64xf32>
      tpu.vector_store %arg11[%c2_507, %c1_508, %c384_509], %463 {strides = array<i32>} : memref<4x2x1024xf32, #tpu.memory_space<vmem>>, vector<1x1x64xf32>,
      %c39 = arith.constant 39 : index
      %c0_510 = arith.constant 0 : index
      %464 = vector.load %arg10[%c39, %c0_510] : memref<128x64xf32, #tpu.memory_space<vmem>>, vector<1x64xf32>
      %c2_511 = arith.constant 2 : index
      %c0_512 = arith.constant 0 : index
      %c448_513 = arith.constant 448 : index
      %465 = vector.load %arg11[%c2_511, %c0_512, %c448_513] : memref<4x2x1024xf32, #tpu.memory_space<vmem>>, vector<1x1x64xf32>
      %466 = vector.shape_cast %465 : vector<1x1x64xf32> to vector<1x64xf32>
      %467 = vector.shape_cast %464 : vector<1x64xf32> to vector<1x1x64xf32>
      tpu.vector_store %arg11[%c2_511, %c0_512, %c448_513], %467 {strides = array<i32>} : memref<4x2x1024xf32, #tpu.memory_space<vmem>>, vector<1x1x64xf32>,
      %c103 = arith.constant 103 : index
      %c0_514 = arith.constant 0 : index
      %468 = vector.load %arg10[%c103, %c0_514] : memref<128x64xf32, #tpu.memory_space<vmem>>, vector<1x64xf32>
      %c2_515 = arith.constant 2 : index
      %c1_516 = arith.constant 1 : index
      %c448_517 = arith.constant 448 : index
      %469 = vector.load %arg11[%c2_515, %c1_516, %c448_517] : memref<4x2x1024xf32, #tpu.memory_space<vmem>>, vector<1x1x64xf32>
      %470 = vector.shape_cast %469 : vector<1x1x64xf32> to vector<1x64xf32>
      %471 = vector.shape_cast %468 : vector<1x64xf32> to vector<1x1x64xf32>
      tpu.vector_store %arg11[%c2_515, %c1_516, %c448_517], %471 {strides = array<i32>} : memref<4x2x1024xf32, #tpu.memory_space<vmem>>, vector<1x1x64xf32>,
      %c40 = arith.constant 40 : index
      %c0_518 = arith.constant 0 : index
      %472 = vector.load %arg10[%c40, %c0_518] : memref<128x64xf32, #tpu.memory_space<vmem>>, vector<1x64xf32>
      %c2_519 = arith.constant 2 : index
      %c0_520 = arith.constant 0 : index
      %c512_521 = arith.constant 512 : index
      %473 = vector.load %arg11[%c2_519, %c0_520, %c512_521] : memref<4x2x1024xf32, #tpu.memory_space<vmem>>, vector<1x1x64xf32>
      %474 = vector.shape_cast %473 : vector<1x1x64xf32> to vector<1x64xf32>
      %475 = vector.shape_cast %472 : vector<1x64xf32> to vector<1x1x64xf32>
      tpu.vector_store %arg11[%c2_519, %c0_520, %c512_521], %475 {strides = array<i32>} : memref<4x2x1024xf32, #tpu.memory_space<vmem>>, vector<1x1x64xf32>,
      %c104 = arith.constant 104 : index
      %c0_522 = arith.constant 0 : index
      %476 = vector.load %arg10[%c104, %c0_522] : memref<128x64xf32, #tpu.memory_space<vmem>>, vector<1x64xf32>
      %c2_523 = arith.constant 2 : index
      %c1_524 = arith.constant 1 : index
      %c512_525 = arith.constant 512 : index
      %477 = vector.load %arg11[%c2_523, %c1_524, %c512_525] : memref<4x2x1024xf32, #tpu.memory_space<vmem>>, vector<1x1x64xf32>
      %478 = vector.shape_cast %477 : vector<1x1x64xf32> to vector<1x64xf32>
      %479 = vector.shape_cast %476 : vector<1x64xf32> to vector<1x1x64xf32>
      tpu.vector_store %arg11[%c2_523, %c1_524, %c512_525], %479 {strides = array<i32>} : memref<4x2x1024xf32, #tpu.memory_space<vmem>>, vector<1x1x64xf32>,
      %c41 = arith.constant 41 : index
      %c0_526 = arith.constant 0 : index
      %480 = vector.load %arg10[%c41, %c0_526] : memref<128x64xf32, #tpu.memory_space<vmem>>, vector<1x64xf32>
      %c2_527 = arith.constant 2 : index
      %c0_528 = arith.constant 0 : index
      %c576_529 = arith.constant 576 : index
      %481 = vector.load %arg11[%c2_527, %c0_528, %c576_529] : memref<4x2x1024xf32, #tpu.memory_space<vmem>>, vector<1x1x64xf32>
      %482 = vector.shape_cast %481 : vector<1x1x64xf32> to vector<1x64xf32>
      %483 = vector.shape_cast %480 : vector<1x64xf32> to vector<1x1x64xf32>
      tpu.vector_store %arg11[%c2_527, %c0_528, %c576_529], %483 {strides = array<i32>} : memref<4x2x1024xf32, #tpu.memory_space<vmem>>, vector<1x1x64xf32>,
      %c105 = arith.constant 105 : index
      %c0_530 = arith.constant 0 : index
      %484 = vector.load %arg10[%c105, %c0_530] : memref<128x64xf32, #tpu.memory_space<vmem>>, vector<1x64xf32>
      %c2_531 = arith.constant 2 : index
      %c1_532 = arith.constant 1 : index
      %c576_533 = arith.constant 576 : index
      %485 = vector.load %arg11[%c2_531, %c1_532, %c576_533] : memref<4x2x1024xf32, #tpu.memory_space<vmem>>, vector<1x1x64xf32>
      %486 = vector.shape_cast %485 : vector<1x1x64xf32> to vector<1x64xf32>
      %487 = vector.shape_cast %484 : vector<1x64xf32> to vector<1x1x64xf32>
      tpu.vector_store %arg11[%c2_531, %c1_532, %c576_533], %487 {strides = array<i32>} : memref<4x2x1024xf32, #tpu.memory_space<vmem>>, vector<1x1x64xf32>,
      %c42 = arith.constant 42 : index
      %c0_534 = arith.constant 0 : index
      %488 = vector.load %arg10[%c42, %c0_534] : memref<128x64xf32, #tpu.memory_space<vmem>>, vector<1x64xf32>
      %c2_535 = arith.constant 2 : index
      %c0_536 = arith.constant 0 : index
      %c640_537 = arith.constant 640 : index
      %489 = vector.load %arg11[%c2_535, %c0_536, %c640_537] : memref<4x2x1024xf32, #tpu.memory_space<vmem>>, vector<1x1x64xf32>
      %490 = vector.shape_cast %489 : vector<1x1x64xf32> to vector<1x64xf32>
      %491 = vector.shape_cast %488 : vector<1x64xf32> to vector<1x1x64xf32>
      tpu.vector_store %arg11[%c2_535, %c0_536, %c640_537], %491 {strides = array<i32>} : memref<4x2x1024xf32, #tpu.memory_space<vmem>>, vector<1x1x64xf32>,
      %c106 = arith.constant 106 : index
      %c0_538 = arith.constant 0 : index
      %492 = vector.load %arg10[%c106, %c0_538] : memref<128x64xf32, #tpu.memory_space<vmem>>, vector<1x64xf32>
      %c2_539 = arith.constant 2 : index
      %c1_540 = arith.constant 1 : index
      %c640_541 = arith.constant 640 : index
      %493 = vector.load %arg11[%c2_539, %c1_540, %c640_541] : memref<4x2x1024xf32, #tpu.memory_space<vmem>>, vector<1x1x64xf32>
      %494 = vector.shape_cast %493 : vector<1x1x64xf32> to vector<1x64xf32>
      %495 = vector.shape_cast %492 : vector<1x64xf32> to vector<1x1x64xf32>
      tpu.vector_store %arg11[%c2_539, %c1_540, %c640_541], %495 {strides = array<i32>} : memref<4x2x1024xf32, #tpu.memory_space<vmem>>, vector<1x1x64xf32>,
      %c43 = arith.constant 43 : index
      %c0_542 = arith.constant 0 : index
      %496 = vector.load %arg10[%c43, %c0_542] : memref<128x64xf32, #tpu.memory_space<vmem>>, vector<1x64xf32>
      %c2_543 = arith.constant 2 : index
      %c0_544 = arith.constant 0 : index
      %c704_545 = arith.constant 704 : index
      %497 = vector.load %arg11[%c2_543, %c0_544, %c704_545] : memref<4x2x1024xf32, #tpu.memory_space<vmem>>, vector<1x1x64xf32>
      %498 = vector.shape_cast %497 : vector<1x1x64xf32> to vector<1x64xf32>
      %499 = vector.shape_cast %496 : vector<1x64xf32> to vector<1x1x64xf32>
      tpu.vector_store %arg11[%c2_543, %c0_544, %c704_545], %499 {strides = array<i32>} : memref<4x2x1024xf32, #tpu.memory_space<vmem>>, vector<1x1x64xf32>,
      %c107 = arith.constant 107 : index
      %c0_546 = arith.constant 0 : index
      %500 = vector.load %arg10[%c107, %c0_546] : memref<128x64xf32, #tpu.memory_space<vmem>>, vector<1x64xf32>
      %c2_547 = arith.constant 2 : index
      %c1_548 = arith.constant 1 : index
      %c704_549 = arith.constant 704 : index
      %501 = vector.load %arg11[%c2_547, %c1_548, %c704_549] : memref<4x2x1024xf32, #tpu.memory_space<vmem>>, vector<1x1x64xf32>
      %502 = vector.shape_cast %501 : vector<1x1x64xf32> to vector<1x64xf32>
      %503 = vector.shape_cast %500 : vector<1x64xf32> to vector<1x1x64xf32>
      tpu.vector_store %arg11[%c2_547, %c1_548, %c704_549], %503 {strides = array<i32>} : memref<4x2x1024xf32, #tpu.memory_space<vmem>>, vector<1x1x64xf32>,
      %c44 = arith.constant 44 : index
      %c0_550 = arith.constant 0 : index
      %504 = vector.load %arg10[%c44, %c0_550] : memref<128x64xf32, #tpu.memory_space<vmem>>, vector<1x64xf32>
      %c2_551 = arith.constant 2 : index
      %c0_552 = arith.constant 0 : index
      %c768_553 = arith.constant 768 : index
      %505 = vector.load %arg11[%c2_551, %c0_552, %c768_553] : memref<4x2x1024xf32, #tpu.memory_space<vmem>>, vector<1x1x64xf32>
      %506 = vector.shape_cast %505 : vector<1x1x64xf32> to vector<1x64xf32>
      %507 = vector.shape_cast %504 : vector<1x64xf32> to vector<1x1x64xf32>
      tpu.vector_store %arg11[%c2_551, %c0_552, %c768_553], %507 {strides = array<i32>} : memref<4x2x1024xf32, #tpu.memory_space<vmem>>, vector<1x1x64xf32>,
      %c108 = arith.constant 108 : index
      %c0_554 = arith.constant 0 : index
      %508 = vector.load %arg10[%c108, %c0_554] : memref<128x64xf32, #tpu.memory_space<vmem>>, vector<1x64xf32>
      %c2_555 = arith.constant 2 : index
      %c1_556 = arith.constant 1 : index
      %c768_557 = arith.constant 768 : index
      %509 = vector.load %arg11[%c2_555, %c1_556, %c768_557] : memref<4x2x1024xf32, #tpu.memory_space<vmem>>, vector<1x1x64xf32>
      %510 = vector.shape_cast %509 : vector<1x1x64xf32> to vector<1x64xf32>
      %511 = vector.shape_cast %508 : vector<1x64xf32> to vector<1x1x64xf32>
      tpu.vector_store %arg11[%c2_555, %c1_556, %c768_557], %511 {strides = array<i32>} : memref<4x2x1024xf32, #tpu.memory_space<vmem>>, vector<1x1x64xf32>,
      %c45 = arith.constant 45 : index
      %c0_558 = arith.constant 0 : index
      %512 = vector.load %arg10[%c45, %c0_558] : memref<128x64xf32, #tpu.memory_space<vmem>>, vector<1x64xf32>
      %c2_559 = arith.constant 2 : index
      %c0_560 = arith.constant 0 : index
      %c832_561 = arith.constant 832 : index
      %513 = vector.load %arg11[%c2_559, %c0_560, %c832_561] : memref<4x2x1024xf32, #tpu.memory_space<vmem>>, vector<1x1x64xf32>
      %514 = vector.shape_cast %513 : vector<1x1x64xf32> to vector<1x64xf32>
      %515 = vector.shape_cast %512 : vector<1x64xf32> to vector<1x1x64xf32>
      tpu.vector_store %arg11[%c2_559, %c0_560, %c832_561], %515 {strides = array<i32>} : memref<4x2x1024xf32, #tpu.memory_space<vmem>>, vector<1x1x64xf32>,
      %c109 = arith.constant 109 : index
      %c0_562 = arith.constant 0 : index
      %516 = vector.load %arg10[%c109, %c0_562] : memref<128x64xf32, #tpu.memory_space<vmem>>, vector<1x64xf32>
      %c2_563 = arith.constant 2 : index
      %c1_564 = arith.constant 1 : index
      %c832_565 = arith.constant 832 : index
      %517 = vector.load %arg11[%c2_563, %c1_564, %c832_565] : memref<4x2x1024xf32, #tpu.memory_space<vmem>>, vector<1x1x64xf32>
      %518 = vector.shape_cast %517 : vector<1x1x64xf32> to vector<1x64xf32>
      %519 = vector.shape_cast %516 : vector<1x64xf32> to vector<1x1x64xf32>
      tpu.vector_store %arg11[%c2_563, %c1_564, %c832_565], %519 {strides = array<i32>} : memref<4x2x1024xf32, #tpu.memory_space<vmem>>, vector<1x1x64xf32>,
      %c46 = arith.constant 46 : index
      %c0_566 = arith.constant 0 : index
      %520 = vector.load %arg10[%c46, %c0_566] : memref<128x64xf32, #tpu.memory_space<vmem>>, vector<1x64xf32>
      %c2_567 = arith.constant 2 : index
      %c0_568 = arith.constant 0 : index
      %c896_569 = arith.constant 896 : index
      %521 = vector.load %arg11[%c2_567, %c0_568, %c896_569] : memref<4x2x1024xf32, #tpu.memory_space<vmem>>, vector<1x1x64xf32>
      %522 = vector.shape_cast %521 : vector<1x1x64xf32> to vector<1x64xf32>
      %523 = vector.shape_cast %520 : vector<1x64xf32> to vector<1x1x64xf32>
      tpu.vector_store %arg11[%c2_567, %c0_568, %c896_569], %523 {strides = array<i32>} : memref<4x2x1024xf32, #tpu.memory_space<vmem>>, vector<1x1x64xf32>,
      %c110 = arith.constant 110 : index
      %c0_570 = arith.constant 0 : index
      %524 = vector.load %arg10[%c110, %c0_570] : memref<128x64xf32, #tpu.memory_space<vmem>>, vector<1x64xf32>
      %c2_571 = arith.constant 2 : index
      %c1_572 = arith.constant 1 : index
      %c896_573 = arith.constant 896 : index
      %525 = vector.load %arg11[%c2_571, %c1_572, %c896_573] : memref<4x2x1024xf32, #tpu.memory_space<vmem>>, vector<1x1x64xf32>
      %526 = vector.shape_cast %525 : vector<1x1x64xf32> to vector<1x64xf32>
      %527 = vector.shape_cast %524 : vector<1x64xf32> to vector<1x1x64xf32>
      tpu.vector_store %arg11[%c2_571, %c1_572, %c896_573], %527 {strides = array<i32>} : memref<4x2x1024xf32, #tpu.memory_space<vmem>>, vector<1x1x64xf32>,
      %c47 = arith.constant 47 : index
      %c0_574 = arith.constant 0 : index
      %528 = vector.load %arg10[%c47, %c0_574] : memref<128x64xf32, #tpu.memory_space<vmem>>, vector<1x64xf32>
      %c2_575 = arith.constant 2 : index
      %c0_576 = arith.constant 0 : index
      %c960_577 = arith.constant 960 : index
      %529 = vector.load %arg11[%c2_575, %c0_576, %c960_577] : memref<4x2x1024xf32, #tpu.memory_space<vmem>>, vector<1x1x64xf32>
      %530 = vector.shape_cast %529 : vector<1x1x64xf32> to vector<1x64xf32>
      %531 = vector.shape_cast %528 : vector<1x64xf32> to vector<1x1x64xf32>
      tpu.vector_store %arg11[%c2_575, %c0_576, %c960_577], %531 {strides = array<i32>} : memref<4x2x1024xf32, #tpu.memory_space<vmem>>, vector<1x1x64xf32>,
      %c111 = arith.constant 111 : index
      %c0_578 = arith.constant 0 : index
      %532 = vector.load %arg10[%c111, %c0_578] : memref<128x64xf32, #tpu.memory_space<vmem>>, vector<1x64xf32>
      %c2_579 = arith.constant 2 : index
      %c1_580 = arith.constant 1 : index
      %c960_581 = arith.constant 960 : index
      %533 = vector.load %arg11[%c2_579, %c1_580, %c960_581] : memref<4x2x1024xf32, #tpu.memory_space<vmem>>, vector<1x1x64xf32>
      %534 = vector.shape_cast %533 : vector<1x1x64xf32> to vector<1x64xf32>
      %535 = vector.shape_cast %532 : vector<1x64xf32> to vector<1x1x64xf32>
      tpu.vector_store %arg11[%c2_579, %c1_580, %c960_581], %535 {strides = array<i32>} : memref<4x2x1024xf32, #tpu.memory_space<vmem>>, vector<1x1x64xf32>,
      %c48 = arith.constant 48 : index
      %c0_582 = arith.constant 0 : index
      %536 = vector.load %arg10[%c48, %c0_582] : memref<128x64xf32, #tpu.memory_space<vmem>>, vector<1x64xf32>
      %c3_583 = arith.constant 3 : index
      %c0_584 = arith.constant 0 : index
      %c0_585 = arith.constant 0 : index
      %537 = vector.load %arg11[%c3_583, %c0_584, %c0_585] : memref<4x2x1024xf32, #tpu.memory_space<vmem>>, vector<1x1x64xf32>
      %538 = vector.shape_cast %537 : vector<1x1x64xf32> to vector<1x64xf32>
      %539 = vector.shape_cast %536 : vector<1x64xf32> to vector<1x1x64xf32>
      tpu.vector_store %arg11[%c3_583, %c0_584, %c0_585], %539 {strides = array<i32>} : memref<4x2x1024xf32, #tpu.memory_space<vmem>>, vector<1x1x64xf32>,
      %c112 = arith.constant 112 : index
      %c0_586 = arith.constant 0 : index
      %540 = vector.load %arg10[%c112, %c0_586] : memref<128x64xf32, #tpu.memory_space<vmem>>, vector<1x64xf32>
      %c3_587 = arith.constant 3 : index
      %c1_588 = arith.constant 1 : index
      %c0_589 = arith.constant 0 : index
      %541 = vector.load %arg11[%c3_587, %c1_588, %c0_589] : memref<4x2x1024xf32, #tpu.memory_space<vmem>>, vector<1x1x64xf32>
      %542 = vector.shape_cast %541 : vector<1x1x64xf32> to vector<1x64xf32>
      %543 = vector.shape_cast %540 : vector<1x64xf32> to vector<1x1x64xf32>
      tpu.vector_store %arg11[%c3_587, %c1_588, %c0_589], %543 {strides = array<i32>} : memref<4x2x1024xf32, #tpu.memory_space<vmem>>, vector<1x1x64xf32>,
      %c49 = arith.constant 49 : index
      %c0_590 = arith.constant 0 : index
      %544 = vector.load %arg10[%c49, %c0_590] : memref<128x64xf32, #tpu.memory_space<vmem>>, vector<1x64xf32>
      %c3_591 = arith.constant 3 : index
      %c0_592 = arith.constant 0 : index
      %c64_593 = arith.constant 64 : index
      %545 = vector.load %arg11[%c3_591, %c0_592, %c64_593] : memref<4x2x1024xf32, #tpu.memory_space<vmem>>, vector<1x1x64xf32>
      %546 = vector.shape_cast %545 : vector<1x1x64xf32> to vector<1x64xf32>
      %547 = vector.shape_cast %544 : vector<1x64xf32> to vector<1x1x64xf32>
      tpu.vector_store %arg11[%c3_591, %c0_592, %c64_593], %547 {strides = array<i32>} : memref<4x2x1024xf32, #tpu.memory_space<vmem>>, vector<1x1x64xf32>,
      %c113 = arith.constant 113 : index
      %c0_594 = arith.constant 0 : index
      %548 = vector.load %arg10[%c113, %c0_594] : memref<128x64xf32, #tpu.memory_space<vmem>>, vector<1x64xf32>
      %c3_595 = arith.constant 3 : index
      %c1_596 = arith.constant 1 : index
      %c64_597 = arith.constant 64 : index
      %549 = vector.load %arg11[%c3_595, %c1_596, %c64_597] : memref<4x2x1024xf32, #tpu.memory_space<vmem>>, vector<1x1x64xf32>
      %550 = vector.shape_cast %549 : vector<1x1x64xf32> to vector<1x64xf32>
      %551 = vector.shape_cast %548 : vector<1x64xf32> to vector<1x1x64xf32>
      tpu.vector_store %arg11[%c3_595, %c1_596, %c64_597], %551 {strides = array<i32>} : memref<4x2x1024xf32, #tpu.memory_space<vmem>>, vector<1x1x64xf32>,
      %c50 = arith.constant 50 : index
      %c0_598 = arith.constant 0 : index
      %552 = vector.load %arg10[%c50, %c0_598] : memref<128x64xf32, #tpu.memory_space<vmem>>, vector<1x64xf32>
      %c3_599 = arith.constant 3 : index
      %c0_600 = arith.constant 0 : index
      %c128_601 = arith.constant 128 : index
      %553 = vector.load %arg11[%c3_599, %c0_600, %c128_601] : memref<4x2x1024xf32, #tpu.memory_space<vmem>>, vector<1x1x64xf32>
      %554 = vector.shape_cast %553 : vector<1x1x64xf32> to vector<1x64xf32>
      %555 = vector.shape_cast %552 : vector<1x64xf32> to vector<1x1x64xf32>
      tpu.vector_store %arg11[%c3_599, %c0_600, %c128_601], %555 {strides = array<i32>} : memref<4x2x1024xf32, #tpu.memory_space<vmem>>, vector<1x1x64xf32>,
      %c114 = arith.constant 114 : index
      %c0_602 = arith.constant 0 : index
      %556 = vector.load %arg10[%c114, %c0_602] : memref<128x64xf32, #tpu.memory_space<vmem>>, vector<1x64xf32>
      %c3_603 = arith.constant 3 : index
      %c1_604 = arith.constant 1 : index
      %c128_605 = arith.constant 128 : index
      %557 = vector.load %arg11[%c3_603, %c1_604, %c128_605] : memref<4x2x1024xf32, #tpu.memory_space<vmem>>, vector<1x1x64xf32>
      %558 = vector.shape_cast %557 : vector<1x1x64xf32> to vector<1x64xf32>
      %559 = vector.shape_cast %556 : vector<1x64xf32> to vector<1x1x64xf32>
      tpu.vector_store %arg11[%c3_603, %c1_604, %c128_605], %559 {strides = array<i32>} : memref<4x2x1024xf32, #tpu.memory_space<vmem>>, vector<1x1x64xf32>,
      %c51 = arith.constant 51 : index
      %c0_606 = arith.constant 0 : index
      %560 = vector.load %arg10[%c51, %c0_606] : memref<128x64xf32, #tpu.memory_space<vmem>>, vector<1x64xf32>
      %c3_607 = arith.constant 3 : index
      %c0_608 = arith.constant 0 : index
      %c192_609 = arith.constant 192 : index
      %561 = vector.load %arg11[%c3_607, %c0_608, %c192_609] : memref<4x2x1024xf32, #tpu.memory_space<vmem>>, vector<1x1x64xf32>
      %562 = vector.shape_cast %561 : vector<1x1x64xf32> to vector<1x64xf32>
      %563 = vector.shape_cast %560 : vector<1x64xf32> to vector<1x1x64xf32>
      tpu.vector_store %arg11[%c3_607, %c0_608, %c192_609], %563 {strides = array<i32>} : memref<4x2x1024xf32, #tpu.memory_space<vmem>>, vector<1x1x64xf32>,
      %c115 = arith.constant 115 : index
      %c0_610 = arith.constant 0 : index
      %564 = vector.load %arg10[%c115, %c0_610] : memref<128x64xf32, #tpu.memory_space<vmem>>, vector<1x64xf32>
      %c3_611 = arith.constant 3 : index
      %c1_612 = arith.constant 1 : index
      %c192_613 = arith.constant 192 : index
      %565 = vector.load %arg11[%c3_611, %c1_612, %c192_613] : memref<4x2x1024xf32, #tpu.memory_space<vmem>>, vector<1x1x64xf32>
      %566 = vector.shape_cast %565 : vector<1x1x64xf32> to vector<1x64xf32>
      %567 = vector.shape_cast %564 : vector<1x64xf32> to vector<1x1x64xf32>
      tpu.vector_store %arg11[%c3_611, %c1_612, %c192_613], %567 {strides = array<i32>} : memref<4x2x1024xf32, #tpu.memory_space<vmem>>, vector<1x1x64xf32>,
      %c52 = arith.constant 52 : index
      %c0_614 = arith.constant 0 : index
      %568 = vector.load %arg10[%c52, %c0_614] : memref<128x64xf32, #tpu.memory_space<vmem>>, vector<1x64xf32>
      %c3_615 = arith.constant 3 : index
      %c0_616 = arith.constant 0 : index
      %c256_617 = arith.constant 256 : index
      %569 = vector.load %arg11[%c3_615, %c0_616, %c256_617] : memref<4x2x1024xf32, #tpu.memory_space<vmem>>, vector<1x1x64xf32>
      %570 = vector.shape_cast %569 : vector<1x1x64xf32> to vector<1x64xf32>
      %571 = vector.shape_cast %568 : vector<1x64xf32> to vector<1x1x64xf32>
      tpu.vector_store %arg11[%c3_615, %c0_616, %c256_617], %571 {strides = array<i32>} : memref<4x2x1024xf32, #tpu.memory_space<vmem>>, vector<1x1x64xf32>,
      %c116 = arith.constant 116 : index
      %c0_618 = arith.constant 0 : index
      %572 = vector.load %arg10[%c116, %c0_618] : memref<128x64xf32, #tpu.memory_space<vmem>>, vector<1x64xf32>
      %c3_619 = arith.constant 3 : index
      %c1_620 = arith.constant 1 : index
      %c256_621 = arith.constant 256 : index
      %573 = vector.load %arg11[%c3_619, %c1_620, %c256_621] : memref<4x2x1024xf32, #tpu.memory_space<vmem>>, vector<1x1x64xf32>
      %574 = vector.shape_cast %573 : vector<1x1x64xf32> to vector<1x64xf32>
      %575 = vector.shape_cast %572 : vector<1x64xf32> to vector<1x1x64xf32>
      tpu.vector_store %arg11[%c3_619, %c1_620, %c256_621], %575 {strides = array<i32>} : memref<4x2x1024xf32, #tpu.memory_space<vmem>>, vector<1x1x64xf32>,
      %c53 = arith.constant 53 : index
      %c0_622 = arith.constant 0 : index
      %576 = vector.load %arg10[%c53, %c0_622] : memref<128x64xf32, #tpu.memory_space<vmem>>, vector<1x64xf32>
      %c3_623 = arith.constant 3 : index
      %c0_624 = arith.constant 0 : index
      %c320_625 = arith.constant 320 : index
      %577 = vector.load %arg11[%c3_623, %c0_624, %c320_625] : memref<4x2x1024xf32, #tpu.memory_space<vmem>>, vector<1x1x64xf32>
      %578 = vector.shape_cast %577 : vector<1x1x64xf32> to vector<1x64xf32>
      %579 = vector.shape_cast %576 : vector<1x64xf32> to vector<1x1x64xf32>
      tpu.vector_store %arg11[%c3_623, %c0_624, %c320_625], %579 {strides = array<i32>} : memref<4x2x1024xf32, #tpu.memory_space<vmem>>, vector<1x1x64xf32>,
      %c117 = arith.constant 117 : index
      %c0_626 = arith.constant 0 : index
      %580 = vector.load %arg10[%c117, %c0_626] : memref<128x64xf32, #tpu.memory_space<vmem>>, vector<1x64xf32>
      %c3_627 = arith.constant 3 : index
      %c1_628 = arith.constant 1 : index
      %c320_629 = arith.constant 320 : index
      %581 = vector.load %arg11[%c3_627, %c1_628, %c320_629] : memref<4x2x1024xf32, #tpu.memory_space<vmem>>, vector<1x1x64xf32>
      %582 = vector.shape_cast %581 : vector<1x1x64xf32> to vector<1x64xf32>
      %583 = vector.shape_cast %580 : vector<1x64xf32> to vector<1x1x64xf32>
      tpu.vector_store %arg11[%c3_627, %c1_628, %c320_629], %583 {strides = array<i32>} : memref<4x2x1024xf32, #tpu.memory_space<vmem>>, vector<1x1x64xf32>,
      %c54 = arith.constant 54 : index
      %c0_630 = arith.constant 0 : index
      %584 = vector.load %arg10[%c54, %c0_630] : memref<128x64xf32, #tpu.memory_space<vmem>>, vector<1x64xf32>
      %c3_631 = arith.constant 3 : index
      %c0_632 = arith.constant 0 : index
      %c384_633 = arith.constant 384 : index
      %585 = vector.load %arg11[%c3_631, %c0_632, %c384_633] : memref<4x2x1024xf32, #tpu.memory_space<vmem>>, vector<1x1x64xf32>
      %586 = vector.shape_cast %585 : vector<1x1x64xf32> to vector<1x64xf32>
      %587 = vector.shape_cast %584 : vector<1x64xf32> to vector<1x1x64xf32>
      tpu.vector_store %arg11[%c3_631, %c0_632, %c384_633], %587 {strides = array<i32>} : memref<4x2x1024xf32, #tpu.memory_space<vmem>>, vector<1x1x64xf32>,
      %c118 = arith.constant 118 : index
      %c0_634 = arith.constant 0 : index
      %588 = vector.load %arg10[%c118, %c0_634] : memref<128x64xf32, #tpu.memory_space<vmem>>, vector<1x64xf32>
      %c3_635 = arith.constant 3 : index
      %c1_636 = arith.constant 1 : index
      %c384_637 = arith.constant 384 : index
      %589 = vector.load %arg11[%c3_635, %c1_636, %c384_637] : memref<4x2x1024xf32, #tpu.memory_space<vmem>>, vector<1x1x64xf32>
      %590 = vector.shape_cast %589 : vector<1x1x64xf32> to vector<1x64xf32>
      %591 = vector.shape_cast %588 : vector<1x64xf32> to vector<1x1x64xf32>
      tpu.vector_store %arg11[%c3_635, %c1_636, %c384_637], %591 {strides = array<i32>} : memref<4x2x1024xf32, #tpu.memory_space<vmem>>, vector<1x1x64xf32>,
      %c55 = arith.constant 55 : index
      %c0_638 = arith.constant 0 : index
      %592 = vector.load %arg10[%c55, %c0_638] : memref<128x64xf32, #tpu.memory_space<vmem>>, vector<1x64xf32>
      %c3_639 = arith.constant 3 : index
      %c0_640 = arith.constant 0 : index
      %c448_641 = arith.constant 448 : index
      %593 = vector.load %arg11[%c3_639, %c0_640, %c448_641] : memref<4x2x1024xf32, #tpu.memory_space<vmem>>, vector<1x1x64xf32>
      %594 = vector.shape_cast %593 : vector<1x1x64xf32> to vector<1x64xf32>
      %595 = vector.shape_cast %592 : vector<1x64xf32> to vector<1x1x64xf32>
      tpu.vector_store %arg11[%c3_639, %c0_640, %c448_641], %595 {strides = array<i32>} : memref<4x2x1024xf32, #tpu.memory_space<vmem>>, vector<1x1x64xf32>,
      %c119 = arith.constant 119 : index
      %c0_642 = arith.constant 0 : index
      %596 = vector.load %arg10[%c119, %c0_642] : memref<128x64xf32, #tpu.memory_space<vmem>>, vector<1x64xf32>
      %c3_643 = arith.constant 3 : index
      %c1_644 = arith.constant 1 : index
      %c448_645 = arith.constant 448 : index
      %597 = vector.load %arg11[%c3_643, %c1_644, %c448_645] : memref<4x2x1024xf32, #tpu.memory_space<vmem>>, vector<1x1x64xf32>
      %598 = vector.shape_cast %597 : vector<1x1x64xf32> to vector<1x64xf32>
      %599 = vector.shape_cast %596 : vector<1x64xf32> to vector<1x1x64xf32>
      tpu.vector_store %arg11[%c3_643, %c1_644, %c448_645], %599 {strides = array<i32>} : memref<4x2x1024xf32, #tpu.memory_space<vmem>>, vector<1x1x64xf32>,
      %c56 = arith.constant 56 : index
      %c0_646 = arith.constant 0 : index
      %600 = vector.load %arg10[%c56, %c0_646] : memref<128x64xf32, #tpu.memory_space<vmem>>, vector<1x64xf32>
      %c3_647 = arith.constant 3 : index
      %c0_648 = arith.constant 0 : index
      %c512_649 = arith.constant 512 : index
      %601 = vector.load %arg11[%c3_647, %c0_648, %c512_649] : memref<4x2x1024xf32, #tpu.memory_space<vmem>>, vector<1x1x64xf32>
      %602 = vector.shape_cast %601 : vector<1x1x64xf32> to vector<1x64xf32>
      %603 = vector.shape_cast %600 : vector<1x64xf32> to vector<1x1x64xf32>
      tpu.vector_store %arg11[%c3_647, %c0_648, %c512_649], %603 {strides = array<i32>} : memref<4x2x1024xf32, #tpu.memory_space<vmem>>, vector<1x1x64xf32>,
      %c120 = arith.constant 120 : index
      %c0_650 = arith.constant 0 : index
      %604 = vector.load %arg10[%c120, %c0_650] : memref<128x64xf32, #tpu.memory_space<vmem>>, vector<1x64xf32>
      %c3_651 = arith.constant 3 : index
      %c1_652 = arith.constant 1 : index
      %c512_653 = arith.constant 512 : index
      %605 = vector.load %arg11[%c3_651, %c1_652, %c512_653] : memref<4x2x1024xf32, #tpu.memory_space<vmem>>, vector<1x1x64xf32>
      %606 = vector.shape_cast %605 : vector<1x1x64xf32> to vector<1x64xf32>
      %607 = vector.shape_cast %604 : vector<1x64xf32> to vector<1x1x64xf32>
      tpu.vector_store %arg11[%c3_651, %c1_652, %c512_653], %607 {strides = array<i32>} : memref<4x2x1024xf32, #tpu.memory_space<vmem>>, vector<1x1x64xf32>,
      %c57 = arith.constant 57 : index
      %c0_654 = arith.constant 0 : index
      %608 = vector.load %arg10[%c57, %c0_654] : memref<128x64xf32, #tpu.memory_space<vmem>>, vector<1x64xf32>
      %c3_655 = arith.constant 3 : index
      %c0_656 = arith.constant 0 : index
      %c576_657 = arith.constant 576 : index
      %609 = vector.load %arg11[%c3_655, %c0_656, %c576_657] : memref<4x2x1024xf32, #tpu.memory_space<vmem>>, vector<1x1x64xf32>
      %610 = vector.shape_cast %609 : vector<1x1x64xf32> to vector<1x64xf32>
      %611 = vector.shape_cast %608 : vector<1x64xf32> to vector<1x1x64xf32>
      tpu.vector_store %arg11[%c3_655, %c0_656, %c576_657], %611 {strides = array<i32>} : memref<4x2x1024xf32, #tpu.memory_space<vmem>>, vector<1x1x64xf32>,
      %c121 = arith.constant 121 : index
      %c0_658 = arith.constant 0 : index
      %612 = vector.load %arg10[%c121, %c0_658] : memref<128x64xf32, #tpu.memory_space<vmem>>, vector<1x64xf32>
      %c3_659 = arith.constant 3 : index
      %c1_660 = arith.constant 1 : index
      %c576_661 = arith.constant 576 : index
      %613 = vector.load %arg11[%c3_659, %c1_660, %c576_661] : memref<4x2x1024xf32, #tpu.memory_space<vmem>>, vector<1x1x64xf32>
      %614 = vector.shape_cast %613 : vector<1x1x64xf32> to vector<1x64xf32>
      %615 = vector.shape_cast %612 : vector<1x64xf32> to vector<1x1x64xf32>
      tpu.vector_store %arg11[%c3_659, %c1_660, %c576_661], %615 {strides = array<i32>} : memref<4x2x1024xf32, #tpu.memory_space<vmem>>, vector<1x1x64xf32>,
      %c58 = arith.constant 58 : index
      %c0_662 = arith.constant 0 : index
      %616 = vector.load %arg10[%c58, %c0_662] : memref<128x64xf32, #tpu.memory_space<vmem>>, vector<1x64xf32>
      %c3_663 = arith.constant 3 : index
      %c0_664 = arith.constant 0 : index
      %c640_665 = arith.constant 640 : index
      %617 = vector.load %arg11[%c3_663, %c0_664, %c640_665] : memref<4x2x1024xf32, #tpu.memory_space<vmem>>, vector<1x1x64xf32>
      %618 = vector.shape_cast %617 : vector<1x1x64xf32> to vector<1x64xf32>
      %619 = vector.shape_cast %616 : vector<1x64xf32> to vector<1x1x64xf32>
      tpu.vector_store %arg11[%c3_663, %c0_664, %c640_665], %619 {strides = array<i32>} : memref<4x2x1024xf32, #tpu.memory_space<vmem>>, vector<1x1x64xf32>,
      %c122 = arith.constant 122 : index
      %c0_666 = arith.constant 0 : index
      %620 = vector.load %arg10[%c122, %c0_666] : memref<128x64xf32, #tpu.memory_space<vmem>>, vector<1x64xf32>
      %c3_667 = arith.constant 3 : index
      %c1_668 = arith.constant 1 : index
      %c640_669 = arith.constant 640 : index
      %621 = vector.load %arg11[%c3_667, %c1_668, %c640_669] : memref<4x2x1024xf32, #tpu.memory_space<vmem>>, vector<1x1x64xf32>
      %622 = vector.shape_cast %621 : vector<1x1x64xf32> to vector<1x64xf32>
      %623 = vector.shape_cast %620 : vector<1x64xf32> to vector<1x1x64xf32>
      tpu.vector_store %arg11[%c3_667, %c1_668, %c640_669], %623 {strides = array<i32>} : memref<4x2x1024xf32, #tpu.memory_space<vmem>>, vector<1x1x64xf32>,
      %c59 = arith.constant 59 : index
      %c0_670 = arith.constant 0 : index
      %624 = vector.load %arg10[%c59, %c0_670] : memref<128x64xf32, #tpu.memory_space<vmem>>, vector<1x64xf32>
      %c3_671 = arith.constant 3 : index
      %c0_672 = arith.constant 0 : index
      %c704_673 = arith.constant 704 : index
      %625 = vector.load %arg11[%c3_671, %c0_672, %c704_673] : memref<4x2x1024xf32, #tpu.memory_space<vmem>>, vector<1x1x64xf32>
      %626 = vector.shape_cast %625 : vector<1x1x64xf32> to vector<1x64xf32>
      %627 = vector.shape_cast %624 : vector<1x64xf32> to vector<1x1x64xf32>
      tpu.vector_store %arg11[%c3_671, %c0_672, %c704_673], %627 {strides = array<i32>} : memref<4x2x1024xf32, #tpu.memory_space<vmem>>, vector<1x1x64xf32>,
      %c123 = arith.constant 123 : index
      %c0_674 = arith.constant 0 : index
      %628 = vector.load %arg10[%c123, %c0_674] : memref<128x64xf32, #tpu.memory_space<vmem>>, vector<1x64xf32>
      %c3_675 = arith.constant 3 : index
      %c1_676 = arith.constant 1 : index
      %c704_677 = arith.constant 704 : index
      %629 = vector.load %arg11[%c3_675, %c1_676, %c704_677] : memref<4x2x1024xf32, #tpu.memory_space<vmem>>, vector<1x1x64xf32>
      %630 = vector.shape_cast %629 : vector<1x1x64xf32> to vector<1x64xf32>
      %631 = vector.shape_cast %628 : vector<1x64xf32> to vector<1x1x64xf32>
      tpu.vector_store %arg11[%c3_675, %c1_676, %c704_677], %631 {strides = array<i32>} : memref<4x2x1024xf32, #tpu.memory_space<vmem>>, vector<1x1x64xf32>,
      %c60 = arith.constant 60 : index
      %c0_678 = arith.constant 0 : index
      %632 = vector.load %arg10[%c60, %c0_678] : memref<128x64xf32, #tpu.memory_space<vmem>>, vector<1x64xf32>
      %c3_679 = arith.constant 3 : index
      %c0_680 = arith.constant 0 : index
      %c768_681 = arith.constant 768 : index
      %633 = vector.load %arg11[%c3_679, %c0_680, %c768_681] : memref<4x2x1024xf32, #tpu.memory_space<vmem>>, vector<1x1x64xf32>
      %634 = vector.shape_cast %633 : vector<1x1x64xf32> to vector<1x64xf32>
      %635 = vector.shape_cast %632 : vector<1x64xf32> to vector<1x1x64xf32>
      tpu.vector_store %arg11[%c3_679, %c0_680, %c768_681], %635 {strides = array<i32>} : memref<4x2x1024xf32, #tpu.memory_space<vmem>>, vector<1x1x64xf32>,
      %c124 = arith.constant 124 : index
      %c0_682 = arith.constant 0 : index
      %636 = vector.load %arg10[%c124, %c0_682] : memref<128x64xf32, #tpu.memory_space<vmem>>, vector<1x64xf32>
      %c3_683 = arith.constant 3 : index
      %c1_684 = arith.constant 1 : index
      %c768_685 = arith.constant 768 : index
      %637 = vector.load %arg11[%c3_683, %c1_684, %c768_685] : memref<4x2x1024xf32, #tpu.memory_space<vmem>>, vector<1x1x64xf32>
      %638 = vector.shape_cast %637 : vector<1x1x64xf32> to vector<1x64xf32>
      %639 = vector.shape_cast %636 : vector<1x64xf32> to vector<1x1x64xf32>
      tpu.vector_store %arg11[%c3_683, %c1_684, %c768_685], %639 {strides = array<i32>} : memref<4x2x1024xf32, #tpu.memory_space<vmem>>, vector<1x1x64xf32>,
      %c61 = arith.constant 61 : index
      %c0_686 = arith.constant 0 : index
      %640 = vector.load %arg10[%c61, %c0_686] : memref<128x64xf32, #tpu.memory_space<vmem>>, vector<1x64xf32>
      %c3_687 = arith.constant 3 : index
      %c0_688 = arith.constant 0 : index
      %c832_689 = arith.constant 832 : index
      %641 = vector.load %arg11[%c3_687, %c0_688, %c832_689] : memref<4x2x1024xf32, #tpu.memory_space<vmem>>, vector<1x1x64xf32>
      %642 = vector.shape_cast %641 : vector<1x1x64xf32> to vector<1x64xf32>
      %643 = vector.shape_cast %640 : vector<1x64xf32> to vector<1x1x64xf32>
      tpu.vector_store %arg11[%c3_687, %c0_688, %c832_689], %643 {strides = array<i32>} : memref<4x2x1024xf32, #tpu.memory_space<vmem>>, vector<1x1x64xf32>,
      %c125 = arith.constant 125 : index
      %c0_690 = arith.constant 0 : index
      %644 = vector.load %arg10[%c125, %c0_690] : memref<128x64xf32, #tpu.memory_space<vmem>>, vector<1x64xf32>
      %c3_691 = arith.constant 3 : index
      %c1_692 = arith.constant 1 : index
      %c832_693 = arith.constant 832 : index
      %645 = vector.load %arg11[%c3_691, %c1_692, %c832_693] : memref<4x2x1024xf32, #tpu.memory_space<vmem>>, vector<1x1x64xf32>
      %646 = vector.shape_cast %645 : vector<1x1x64xf32> to vector<1x64xf32>
      %647 = vector.shape_cast %644 : vector<1x64xf32> to vector<1x1x64xf32>
      tpu.vector_store %arg11[%c3_691, %c1_692, %c832_693], %647 {strides = array<i32>} : memref<4x2x1024xf32, #tpu.memory_space<vmem>>, vector<1x1x64xf32>,
      %c62 = arith.constant 62 : index
      %c0_694 = arith.constant 0 : index
      %648 = vector.load %arg10[%c62, %c0_694] : memref<128x64xf32, #tpu.memory_space<vmem>>, vector<1x64xf32>
      %c3_695 = arith.constant 3 : index
      %c0_696 = arith.constant 0 : index
      %c896_697 = arith.constant 896 : index
      %649 = vector.load %arg11[%c3_695, %c0_696, %c896_697] : memref<4x2x1024xf32, #tpu.memory_space<vmem>>, vector<1x1x64xf32>
      %650 = vector.shape_cast %649 : vector<1x1x64xf32> to vector<1x64xf32>
      %651 = vector.shape_cast %648 : vector<1x64xf32> to vector<1x1x64xf32>
      tpu.vector_store %arg11[%c3_695, %c0_696, %c896_697], %651 {strides = array<i32>} : memref<4x2x1024xf32, #tpu.memory_space<vmem>>, vector<1x1x64xf32>,
      %c126 = arith.constant 126 : index
      %c0_698 = arith.constant 0 : index
      %652 = vector.load %arg10[%c126, %c0_698] : memref<128x64xf32, #tpu.memory_space<vmem>>, vector<1x64xf32>
      %c3_699 = arith.constant 3 : index
      %c1_700 = arith.constant 1 : index
      %c896_701 = arith.constant 896 : index
      %653 = vector.load %arg11[%c3_699, %c1_700, %c896_701] : memref<4x2x1024xf32, #tpu.memory_space<vmem>>, vector<1x1x64xf32>
      %654 = vector.shape_cast %653 : vector<1x1x64xf32> to vector<1x64xf32>
      %655 = vector.shape_cast %652 : vector<1x64xf32> to vector<1x1x64xf32>
      tpu.vector_store %arg11[%c3_699, %c1_700, %c896_701], %655 {strides = array<i32>} : memref<4x2x1024xf32, #tpu.memory_space<vmem>>, vector<1x1x64xf32>,
      %c63 = arith.constant 63 : index
      %c0_702 = arith.constant 0 : index
      %656 = vector.load %arg10[%c63, %c0_702] : memref<128x64xf32, #tpu.memory_space<vmem>>, vector<1x64xf32>
      %c3_703 = arith.constant 3 : index
      %c0_704 = arith.constant 0 : index
      %c960_705 = arith.constant 960 : index
      %657 = vector.load %arg11[%c3_703, %c0_704, %c960_705] : memref<4x2x1024xf32, #tpu.memory_space<vmem>>, vector<1x1x64xf32>
      %658 = vector.shape_cast %657 : vector<1x1x64xf32> to vector<1x64xf32>
      %659 = vector.shape_cast %656 : vector<1x64xf32> to vector<1x1x64xf32>
      tpu.vector_store %arg11[%c3_703, %c0_704, %c960_705], %659 {strides = array<i32>} : memref<4x2x1024xf32, #tpu.memory_space<vmem>>, vector<1x1x64xf32>,
      %c127 = arith.constant 127 : index
      %c0_706 = arith.constant 0 : index
      %660 = vector.load %arg10[%c127, %c0_706] : memref<128x64xf32, #tpu.memory_space<vmem>>, vector<1x64xf32>
      %c3_707 = arith.constant 3 : index
      %c1_708 = arith.constant 1 : index
      %c960_709 = arith.constant 960 : index
      %661 = vector.load %arg11[%c3_707, %c1_708, %c960_709] : memref<4x2x1024xf32, #tpu.memory_space<vmem>>, vector<1x1x64xf32>
      %662 = vector.shape_cast %661 : vector<1x1x64xf32> to vector<1x64xf32>
      %663 = vector.shape_cast %660 : vector<1x64xf32> to vector<1x1x64xf32>
      tpu.vector_store %arg11[%c3_707, %c1_708, %c960_709], %663 {strides = array<i32>} : memref<4x2x1024xf32, #tpu.memory_space<vmem>>, vector<1x1x64xf32>,
      %cst_710 = arith.constant 0.000000e+00 : f32
      %664 = vector.broadcast %cst_710 : f32 to vector<2x256xf32>
      %c0_711 = arith.constant 0 : index
      %c0_712 = arith.constant 0 : index
      %665 = vector.load %arg12[%c0_711, %c0_712] : memref<2x256xf32, #tpu.memory_space<vmem>>, vector<2x256xf32>
      tpu.vector_store %arg12[%c0_711, %c0_712], %664 {strides = array<i32>} : memref<2x256xf32, #tpu.memory_space<vmem>>, vector<2x256xf32>,
    } else {
    }
    %3 = arith.index_cast %arg0 : i32 to index
    %c0 = arith.constant 0 : index
    %c0_1 = arith.constant 0 : index
    %4 = vector.load %arg11[%3, %c0, %c0_1] : memref<4x2x1024xf32, #tpu.memory_space<vmem>>, vector<1x2x1024xf32>
    %5 = vector.shape_cast %4 : vector<1x2x1024xf32> to vector<2x1024xf32>
    %6 = arith.truncf %5 : vector<2x1024xf32> to vector<2x1024xbf16>
    %c0_2 = arith.constant 0 : index
    %c0_3 = arith.constant 0 : index
    %7 = vector.load %arg12[%c0_2, %c0_3] : memref<2x256xf32, #tpu.memory_space<vmem>>, vector<2x256xf32>
    %c0_4 = arith.constant 0 : index
    %c0_5 = arith.constant 0 : index
    %8 = vector.load %arg4[%c0_4, %c0_5] : memref<1024x256xbf16, #tpu.memory_space<vmem>>, vector<1024x256xbf16>
    %cst = arith.constant dense<0.000000e+00> : vector<2x256xf32>
    %9 = tpu.matmul %6, %8, %cst {dimension_numbers = #tpu.dot_dimension_numbers<[1], [0], [0], [1], [0, 0, 1, 1], [], []>} : vector<2x1024xbf16>, vector<1024x256xbf16>, vector<2x256xf32> -> vector<2x256xf32>
    %10 = arith.addf %7, %9 : vector<2x256xf32>
    %c0_6 = arith.constant 0 : index
    %c0_7 = arith.constant 0 : index
    %11 = vector.load %arg12[%c0_6, %c0_7] : memref<2x256xf32, #tpu.memory_space<vmem>>, vector<2x256xf32>
    tpu.vector_store %arg12[%c0_6, %c0_7], %10 {strides = array<i32>} : memref<2x256xf32, #tpu.memory_space<vmem>>, vector<2x256xf32>,
    %c3_i32 = arith.constant 3 : i32
    %12 = arith.cmpi eq, %arg0, %c3_i32 : i32
    %13 = arith.extui %12 : i1 to i32
    %c0_i32_8 = arith.constant 0 : i32
    %14 = arith.cmpi ne, %13, %c0_i32_8 : i32
    scf.if %14 {
      %c0_9 = arith.constant 0 : index
      %c256 = arith.constant 256 : index
      %15 = vector.load %arg6[%c0_9, %c256] : memref<1x1024xf32, #tpu.memory_space<vmem>>, vector<1x256xf32>
      %c0_10 = arith.constant 0 : index
      %c512 = arith.constant 512 : index
      %16 = vector.load %arg6[%c0_10, %c512] : memref<1x1024xf32, #tpu.memory_space<vmem>>, vector<1x64xf32>
      %c0_11 = arith.constant 0 : index
      %c640 = arith.constant 640 : index
      %17 = vector.load %arg6[%c0_11, %c640] : memref<1x1024xf32, #tpu.memory_space<vmem>>, vector<1x128xf32>
      %c0_12 = arith.constant 0 : index
      %c768 = arith.constant 768 : index
      %18 = vector.load %arg6[%c0_12, %c768] : memref<1x1024xf32, #tpu.memory_space<vmem>>, vector<1x64xf32>
      %c0_13 = arith.constant 0 : index
      %c896 = arith.constant 896 : index
      %19 = vector.load %arg6[%c0_13, %c896] : memref<1x1024xf32, #tpu.memory_space<vmem>>, vector<1x4xf32>
      %c0_14 = arith.constant 0 : index
      %c0_15 = arith.constant 0 : index
      %20 = vector.load %arg5[%c0_14, %c0_15] : memref<512x128xbf16, #tpu.memory_space<vmem>>, vector<256x64xbf16>
      %c256_16 = arith.constant 256 : index
      %c0_17 = arith.constant 0 : index
      %21 = vector.load %arg5[%c256_16, %c0_17] : memref<512x128xbf16, #tpu.memory_space<vmem>>, vector<64x128xbf16>
      %c320 = arith.constant 320 : index
      %c0_18 = arith.constant 0 : index
      %22 = vector.load %arg5[%c320, %c0_18] : memref<512x128xbf16, #tpu.memory_space<vmem>>, vector<128x64xbf16>
      %c448 = arith.constant 448 : index
      %c0_19 = arith.constant 0 : index
      %23 = vector.load %arg5[%c448, %c0_19] : memref<512x128xbf16, #tpu.memory_space<vmem>>, vector<64x4xbf16>
      %c0_20 = arith.constant 0 : index
      %c0_21 = arith.constant 0 : index
      %24 = vector.load %arg12[%c0_20, %c0_21] : memref<2x256xf32, #tpu.memory_space<vmem>>, vector<2x256xf32>
      %25 = vector.broadcast %15 : vector<1x256xf32> to vector<2x256xf32>
      %26 = arith.addf %24, %25 : vector<2x256xf32>
      %cst_22 = arith.constant 0.000000e+00 : f32
      %27 = vector.broadcast %cst_22 : f32 to vector<2x256xf32>
      %28 = arith.maximumf %26, %27 : vector<2x256xf32>
      %29 = arith.truncf %28 : vector<2x256xf32> to vector<2x256xbf16>
      %cst_23 = arith.constant dense<0.000000e+00> : vector<2x64xf32>
      %30 = tpu.matmul %29, %20, %cst_23 {dimension_numbers = #tpu.dot_dimension_numbers<[1], [0], [0], [1], [0, 0, 1, 1], [], []>} : vector<2x256xbf16>, vector<256x64xbf16>, vector<2x64xf32> -> vector<2x64xf32>
      %31 = vector.broadcast %16 : vector<1x64xf32> to vector<2x64xf32>
      %32 = arith.addf %30, %31 : vector<2x64xf32>
      %33 = arith.truncf %32 : vector<2x64xf32> to vector<2x64xbf16>
      %cst_24 = arith.constant dense<0.000000e+00> : vector<2x128xf32>
      %34 = tpu.matmul %33, %21, %cst_24 {dimension_numbers = #tpu.dot_dimension_numbers<[1], [0], [0], [1], [0, 0, 1, 1], [], []>} : vector<2x64xbf16>, vector<64x128xbf16>, vector<2x128xf32> -> vector<2x128xf32>
      %35 = vector.broadcast %17 : vector<1x128xf32> to vector<2x128xf32>
      %36 = arith.addf %34, %35 : vector<2x128xf32>
      %cst_25 = arith.constant 0.000000e+00 : f32
      %37 = vector.broadcast %cst_25 : f32 to vector<2x128xf32>
      %38 = arith.maximumf %36, %37 : vector<2x128xf32>
      %39 = arith.truncf %38 : vector<2x128xf32> to vector<2x128xbf16>
      %cst_26 = arith.constant dense<0.000000e+00> : vector<2x64xf32>
      %40 = tpu.matmul %39, %22, %cst_26 {dimension_numbers = #tpu.dot_dimension_numbers<[1], [0], [0], [1], [0, 0, 1, 1], [], []>} : vector<2x128xbf16>, vector<128x64xbf16>, vector<2x64xf32> -> vector<2x64xf32>
      %41 = vector.broadcast %18 : vector<1x64xf32> to vector<2x64xf32>
      %42 = arith.addf %40, %41 : vector<2x64xf32>
      %cst_27 = arith.constant 0.000000e+00 : f32
      %43 = vector.broadcast %cst_27 : f32 to vector<2x64xf32>
      %44 = arith.maximumf %42, %43 : vector<2x64xf32>
      %45 = arith.truncf %44 : vector<2x64xf32> to vector<2x64xbf16>
      %cst_28 = arith.constant dense<0.000000e+00> : vector<2x4xf32>
      %46 = tpu.matmul %45, %23, %cst_28 {dimension_numbers = #tpu.dot_dimension_numbers<[1], [0], [0], [1], [0, 0, 1, 1], [], []>} : vector<2x64xbf16>, vector<64x4xbf16>, vector<2x4xf32> -> vector<2x4xf32>
      %47 = vector.broadcast %19 : vector<1x4xf32> to vector<2x4xf32>
      %48 = arith.addf %46, %47 : vector<2x4xf32>
      %cst_29 = arith.constant dense<0xFF800000> : vector<2xf32>
      %49 = vector.multi_reduction <maximumf>, %48, %cst_29 [1] : vector<2x4xf32> to vector<2xf32>
      %50 = vector.shape_cast %49 : vector<2xf32> to vector<2x1xf32>
      %51 = tpu.iota {dimensions = array<i32: 1>} : vector<2x4xi32>
      %52 = vector.broadcast %50 : vector<2x1xf32> to vector<2x4xf32>
      %53 = arith.cmpf oge, %48, %52 : vector<2x4xf32>
      %c4_i32 = arith.constant 4 : i32
      %54 = vector.broadcast %c4_i32 : i32 to vector<2x4xi32>
      %55 = arith.select %53, %51, %54 : vector<2x4xi1>, vector<2x4xi32>
      %cst_30 = arith.constant dense<2147483647> : vector<2xi32>
      %56 = vector.multi_reduction <minsi>, %55, %cst_30 [1] : vector<2x4xi32> to vector<2xi32>
      %57 = vector.shape_cast %56 : vector<2xi32> to vector<2x1xi32>
      %c3_i32_31 = arith.constant 3 : i32
      %58 = vector.broadcast %c3_i32_31 : i32 to vector<2x1xi32>
      %59 = arith.minsi %57, %58 : vector<2x1xi32>
      %60 = vector.shape_cast %59 : vector<2x1xi32> to vector<2x1xi32>
      %61 = vector.broadcast %60 : vector<2x1xi32> to vector<2x128xi32>
      %c0_32 = arith.constant 0 : index
      %c0_33 = arith.constant 0 : index
      %62 = vector.load %arg7[%c0_32, %c0_33] : memref<2x128xi32, #tpu.memory_space<vmem>>, vector<2x128xi32>
      tpu.vector_store %arg7[%c0_32, %c0_33], %61 {strides = array<i32>} : memref<2x128xi32, #tpu.memory_space<vmem>>, vector<2x128xi32>,
    } else {
    }
    return
  }
  func.func @transform_0(%arg0: i32) -> (i32, i32, i32, i32) {
    %c0_i32 = arith.constant 0 : i32
    %c0_i32_0 = arith.constant 0 : i32
    %c0_i32_1 = arith.constant 0 : i32
    %c0_i32_2 = arith.constant 0 : i32
    %c0_i32_3 = arith.constant 0 : i32
    return %c0_i32, %c0_i32_0, %c0_i32_1, %c0_i32_2 : i32, i32, i32, i32
  }
  func.func @transform_1(%arg0: i32) -> (i32, i32, i32) {
    %c0_i32 = arith.constant 0 : i32
    %c0_i32_0 = arith.constant 0 : i32
    %c0_i32_1 = arith.constant 0 : i32
    %c0_i32_2 = arith.constant 0 : i32
    return %c0_i32, %c0_i32_0, %c0_i32_1 : i32, i32, i32
  }
  func.func @transform_2(%arg0: i32) -> (i32, i32, i32) {
    %c0_i32 = arith.constant 0 : i32
    %c0_i32_0 = arith.constant 0 : i32
    %c0_i32_1 = arith.constant 0 : i32
    %c0_i32_2 = arith.constant 0 : i32
    return %c0_i32, %c0_i32_0, %c0_i32_1 : i32, i32, i32
  }
  func.func @transform_3(%arg0: i32) -> (i32, i32) {
    %c0_i32 = arith.constant 0 : i32
    %c0_i32_0 = arith.constant 0 : i32
    return %arg0, %c0_i32 : i32, i32
  }
  func.func @transform_4(%arg0: i32) -> (i32, i32) {
    %c0_i32 = arith.constant 0 : i32
    %c0_i32_0 = arith.constant 0 : i32
    %c0_i32_1 = arith.constant 0 : i32
    return %c0_i32, %c0_i32_0 : i32, i32
  }
  func.func @transform_5(%arg0: i32) -> (i32, i32) {
    %c0_i32 = arith.constant 0 : i32
    %c0_i32_0 = arith.constant 0 : i32
    %c0_i32_1 = arith.constant 0 : i32
    return %c0_i32, %c0_i32_0 : i32, i32
  }
  func.func @transform_6(%arg0: i32) -> (i32, i32) {
    %c0_i32 = arith.constant 0 : i32
    %c0_i32_0 = arith.constant 0 : i32
    %c0_i32_1 = arith.constant 0 : i32
    return %c0_i32, %c0_i32_0 : i32, i32
  }
}

</mosaic_0001>

<llo_original>
// kernel: custom_dqn_forward.1
$region0: #{custom_dqn_forward.1}
  #allocation0 [shape = 'u32[]', space=smem, size = 0x4, offset = 0x4, fixed_abs, tag = 'smem constant byte address 0x4 - core index']
  #allocation1 [shape = 'u32[144,128]{1,0:T(1,128)}', space=vmem, size = 0x12000, scoped, tag = 'internal scratch']
  #allocation2 [shape = 'f32[2,10,10,3]{3,2,1,0:T(8,128)}', space=vmem, size = 0x28000, scoped, tag = 'scratch operand']
  #allocation3 [shape = 'f32[2,10,10,32]{3,2,1,0:T(8,128)}', space=vmem, size = 0x28000, scoped, tag = 'scratch operand']
  #allocation4 [shape = 'f32[128,64]{1,0:T(8,128)}', space=vmem, size = 0x10000, scoped, tag = 'scratch operand']
  #allocation5 [shape = 'f32[4,2,1024]{2,1,0:T(2,128)}', space=vmem, size = 0x8000, scoped, tag = 'scratch operand']
  #allocation6 [shape = 'f32[2,256]{1,0:T(2,128)}', space=vmem, size = 0x800, scoped, tag = 'scratch operand']
  %s0 = inlined_call_operand.vmem [shape: f32[2,8,8,3], index: 0, kind: input, shape index: {}]
  %s1 = inlined_call_operand.hbm [shape: f32[9,3,32], index: 1, kind: input, shape index: {}]
  %s2 = inlined_call_operand.hbm [shape: f32[9,32,64], index: 2, kind: input, shape index: {}]
  %s3 = inlined_call_operand.hbm [shape: bf16[4096,256], index: 3, kind: input, shape index: {}]
  %s4 = inlined_call_operand.hbm [shape: bf16[512,128], index: 4, kind: input, shape index: {}]
  %s5 = inlined_call_operand.hbm [shape: f32[1,1024], index: 5, kind: input, shape index: {}]
  %s6 = inlined_call_operand.vmem [shape: s32[2,128], index: 6, kind: output, shape index: {}]
  %s7 = sld [smem:[#allocation0]]
  $region85: #{custom_dqn_forward.1} parent=0
    _
  %s9 = ssub.s32 1, %s7
  %s10 = scalar_select 0, %s9, %s7
  $region1: #{custom_dqn_forward.1} parent=0
    #allocation7 [shape = 'u8[18432]{0}', space=vmem, size = 0x4800, scoped, tag = 'input window, operand 1, single buffered']
    #allocation8 [shape = 's32[2]{0}', space=sflag, size = 0x8, scoped, tag = 'scoped memory for custom_dqn_forward.1']
    #allocation9 [shape = 'u8[147456]{0}', space=vmem, size = 0x24000, scoped, tag = 'input window, operand 2, single buffered']
    #allocation10 [shape = 's32[1]{0}', space=sflag, size = 0x4, scoped, tag = 'scoped memory for custom_dqn_forward.1']
    #allocation11 [shape = 'u8[1048576]{0}', space=vmem, size = 0x100000, scoped, tag = 'input window, operand 3']
    #allocation12 [shape = 'u8[131072]{0}', space=vmem, size = 0x20000, scoped, tag = 'input window, operand 4, single buffered']
    #allocation13 [shape = 'u8[4096]{0}', space=vmem, size = 0x1000, scoped, tag = 'input window, operand 5, single buffered']
    #allocation14 [shape = 's32[1]{0}', space=sflag, size = 0x4, scoped, tag = 'scoped memory for custom_dqn_forward.1']
    %11 = vsyncpa [#allocation8], 0
    %12 = vsyncpa [#allocation10], 0
    %13 = vsyncpa [#allocation14], 0
    loop: start=0, step=1, limit=6
    $region2: #{custom_dqn_forward.1} parent=1 // loop_pre_header
      _
    $region3: #{custom_dqn_forward.1} parent=1 // loop_header
      %s15 = sphi 0, %s19
      %p16 = scmp.ge.s32.totalorder %s15, 6
      %s23 = sphi 0, %s23
      %s25 = sphi 0, %s23
      %s26 = sphi 0, %s25
      %s40 = sphi 0, %s26
      %s44 = sphi 0, %s44
      %s46 = sphi 0, %s44
      %s47 = sphi 0, %s46
      %s61 = sphi 0, %s47
      %s65 = sphi 0, %s65
      %s67 = sphi 0, %s65
      %s68 = sphi 0, %s67
      %s82 = sphi 0, %s68
      %s88 = sphi 0, %s90
      %s91 = sphi 0, %s88
      %s92 = sphi 0, %s91
      %s108 = sphi 0, %s92
      %s112 = sphi 0, %s112
      %s114 = sphi 0, %s112
      %s115 = sphi 0, %s114
      %s129 = sphi 0, %s115
      %s133 = sphi 0, %s133
      %s135 = sphi 0, %s133
      %s136 = sphi 0, %s135
      %s150 = sphi 0, %s136
      %s154 = sphi 0, %s154
      %s156 = sphi 0, %s154
      %s157 = sphi 0, %s156
      %s171 = sphi 0, %s157
    $region4: #{custom_dqn_forward.1} parent=1 // loop_header_branch
      %18 = sbr.rel (%p16) target = $region8
    $region5: #{custom_dqn_forward.1} parent=1 // loop_body
      %s20 = ssub.s32 %s15, 1
      %s21 = ssub.s32 %s15, 2
      %s22 = sadd.s32 %s15, 1
      %s24 = sadd.s32 %s23, 1
      %p27 = scmp.eq.s32.totalorder %s15, 3
      %p28 = scmp.ne.s32.totalorder %s23, %s25
      %p29 = scmp.eq.s32.totalorder %s15, 0
      %p30 = por %p28, %p29
      %p31 = scmp.ne.s32.totalorder %s23, %s25
      %p32 = scmp.eq.s32.totalorder %s20, 3
      %p33 = por %p31, %p32
      %p34 = scmp.ne.s32.totalorder %s25, %s26
      %p35 = scmp.eq.s32.totalorder %s20, 0
      %p36 = por %p34, %p35
      %p37 = scmp.ne.s32.totalorder %s25, %s26
      %p38 = scmp.eq.s32.totalorder %s21, 3
      %p39 = por %p37, %p38
      %p41 = scmp.ne.s32.totalorder %s26, %s40
      %p42 = scmp.eq.s32.totalorder %s21, 0
      %p43 = por %p41, %p42
      %s45 = sadd.s32 %s44, 1
      %p48 = scmp.eq.s32.totalorder %s15, 3
      %p49 = scmp.ne.s32.totalorder %s44, %s46
      %p50 = scmp.eq.s32.totalorder %s15, 0
      %p51 = por %p49, %p50
      %p52 = scmp.ne.s32.totalorder %s44, %s46
      %p53 = scmp.eq.s32.totalorder %s20, 3
      %p54 = por %p52, %p53
      %p55 = scmp.ne.s32.totalorder %s46, %s47
      %p56 = scmp.eq.s32.totalorder %s20, 0
      %p57 = por %p55, %p56
      %p58 = scmp.ne.s32.totalorder %s46, %s47
      %p59 = scmp.eq.s32.totalorder %s21, 3
      %p60 = por %p58, %p59
      %p62 = scmp.ne.s32.totalorder %s47, %s61
      %p63 = scmp.eq.s32.totalorder %s21, 0
      %p64 = por %p62, %p63
      %s66 = sadd.s32 %s65, 1
      %p69 = scmp.eq.s32.totalorder %s15, 3
      %p70 = scmp.ne.s32.totalorder %s65, %s67
      %p71 = scmp.eq.s32.totalorder %s15, 0
      %p72 = por %p70, %p71
      %p73 = scmp.ne.s32.totalorder %s65, %s67
      %p74 = scmp.eq.s32.totalorder %s20, 3
      %p75 = por %p73, %p74
      %p76 = scmp.ne.s32.totalorder %s67, %s68
      %p77 = scmp.eq.s32.totalorder %s20, 0
      %p78 = por %p76, %p77
      %p79 = scmp.ne.s32.totalorder %s67, %s68
      %p80 = scmp.eq.s32.totalorder %s21, 3
      %p81 = por %p79, %p80
      %p83 = scmp.ne.s32.totalorder %s68, %s82
      %p84 = scmp.eq.s32.totalorder %s21, 0
      %p85 = por %p83, %p84
      %s86 = ssub.s32 %s15, %s22
      %p87 = scmp.eq.s32.totalorder %s86, 0
      %s89 = sadd.s32 %s88, 1
      %s90 = scalar_select %p87, %s88, %s89
      %p93 = pneg %p87
      %p94 = scmp.eq.s32.totalorder %s15, 3
      %p95 = por %p93, %p94
      %p96 = scmp.ne.s32.totalorder %s88, %s91
      %p97 = scmp.eq.s32.totalorder %s15, 0
      %p98 = por %p96, %p97
      %p99 = scmp.ne.s32.totalorder %s88, %s91
      %p100 = scmp.eq.s32.totalorder %s20, 3
      %p101 = por %p99, %p100
      %p102 = scmp.ne.s32.totalorder %s91, %s92
      %p103 = scmp.eq.s32.totalorder %s20, 0
      %p104 = por %p102, %p103
      %p105 = scmp.ne.s32.totalorder %s91, %s92
      %p106 = scmp.eq.s32.totalorder %s21, 3
      %p107 = por %p105, %p106
      %p109 = scmp.ne.s32.totalorder %s92, %s108
      %p110 = scmp.eq.s32.totalorder %s21, 0
      %p111 = por %p109, %p110
      %s113 = sadd.s32 %s112, 1
      %p116 = scmp.eq.s32.totalorder %s15, 3
      %p117 = scmp.ne.s32.totalorder %s112, %s114
      %p118 = scmp.eq.s32.totalorder %s15, 0
      %p119 = por %p117, %p118
      %p120 = scmp.ne.s32.totalorder %s112, %s114
      %p121 = scmp.eq.s32.totalorder %s20, 3
      %p122 = por %p120, %p121
      %p123 = scmp.ne.s32.totalorder %s114, %s115
      %p124 = scmp.eq.s32.totalorder %s20, 0
      %p125 = por %p123, %p124
      %p126 = scmp.ne.s32.totalorder %s114, %s115
      %p127 = scmp.eq.s32.totalorder %s21, 3
      %p128 = por %p126, %p127
      %p130 = scmp.ne.s32.totalorder %s115, %s129
      %p131 = scmp.eq.s32.totalorder %s21, 0
      %p132 = por %p130, %p131
      %s134 = sadd.s32 %s133, 1
      %p137 = scmp.eq.s32.totalorder %s15, 3
      %p138 = scmp.ne.s32.totalorder %s133, %s135
      %p139 = scmp.eq.s32.totalorder %s15, 0
      %p140 = por %p138, %p139
      %p141 = scmp.ne.s32.totalorder %s133, %s135
      %p142 = scmp.eq.s32.totalorder %s20, 3
      %p143 = por %p141, %p142
      %p144 = scmp.ne.s32.totalorder %s135, %s136
      %p145 = scmp.eq.s32.totalorder %s20, 0
      %p146 = por %p144, %p145
      %p147 = scmp.ne.s32.totalorder %s135, %s136
      %p148 = scmp.eq.s32.totalorder %s21, 3
      %p149 = por %p147, %p148
      %p151 = scmp.ne.s32.totalorder %s136, %s150
      %p152 = scmp.eq.s32.totalorder %s21, 0
      %p153 = por %p151, %p152
      %s155 = sadd.s32 %s154, 1
      %p158 = scmp.eq.s32.totalorder %s15, 3
      %p159 = scmp.ne.s32.totalorder %s154, %s156
      %p160 = scmp.eq.s32.totalorder %s15, 0
      %p161 = por %p159, %p160
      %p162 = scmp.ne.s32.totalorder %s154, %s156
      %p163 = scmp.eq.s32.totalorder %s20, 3
      %p164 = por %p162, %p163
      %p165 = scmp.ne.s32.totalorder %s156, %s157
      %p166 = scmp.eq.s32.totalorder %s20, 0
      %p167 = por %p165, %p166
      %p168 = scmp.ne.s32.totalorder %s156, %s157
      %p169 = scmp.eq.s32.totalorder %s21, 3
      %p170 = por %p168, %p169
      %p172 = scmp.ne.s32.totalorder %s157, %s171
      %p173 = scmp.eq.s32.totalorder %s21, 0
      %p174 = por %p172, %p173
      %p175 = scmp.le.s32.totalorder 1, %s15
      %p176 = scmp.lt.s32.totalorder %s15, 5
      %p177 = pnand %p175, %p176
      %p178 = pneg %p177
      // Predicated region
      $region9: #{custom_dqn_forward.1} parent=5 // pred_check
        _
      $region10: #{custom_dqn_forward.1} parent=5 // pred_check_branch
        %180 = sbr.rel (%p177) target = $region12
      $region11: #{custom_dqn_forward.1} parent=5 // pred_region
        %s181 = ssub.s32 %s15, 1
        // Predicated region
        $region13: #{custom_dqn_forward.1} parent=11 // pred_check
          %p182 = pneg %p36
        $region14: #{custom_dqn_forward.1} parent=11 // pred_check_branch
          %184 = sbr.rel (%p182) target = $region16
        $region15: #{custom_dqn_forward.1} parent=11 // pred_region
          _
        $region16: #{custom_dqn_forward.1} parent=11 // pred_fallthru
          _
        // Predicated region
        $region17: #{custom_dqn_forward.1} parent=11 // pred_check
          %p185 = pneg %p57
        $region18: #{custom_dqn_forward.1} parent=11 // pred_check_branch
          %187 = sbr.rel (%p185) target = $region20
        $region19: #{custom_dqn_forward.1} parent=11 // pred_region
          %s189 = ssub.s32 576, 576
          %190 = vsyncadd [#allocation8], %s189
          %s191 = sshll.u32 [#allocation7], 4
          %s192 = int_to_ptr.vmem [resolvable:$true] %s191
          %197 = dma.hbm_to_vmem [thread:$0]  %s1, 576, %s192, [#allocation8], 64, 64, 4
        $region20: #{custom_dqn_forward.1} parent=11 // pred_fallthru
          _
        // Predicated region
        $region21: #{custom_dqn_forward.1} parent=11 // pred_check
          %p198 = pneg %p78
        $region22: #{custom_dqn_forward.1} parent=11 // pred_check_branch
          %200 = sbr.rel (%p198) target = $region24
        $region23: #{custom_dqn_forward.1} parent=11 // pred_region
          %s202 = ssub.s32 4608, 4608
          %203 = vsyncadd [#allocation10], %s202
          %s204 = sshll.u32 [#allocation9], 4
          %s205 = int_to_ptr.vmem [resolvable:$true] %s204
          %210 = dma.hbm_to_vmem [thread:$0]  %s2, 4608, %s205, [#allocation10], 128, 128, 8
        $region24: #{custom_dqn_forward.1} parent=11 // pred_fallthru
          _
        // Predicated region
        $region25: #{custom_dqn_forward.1} parent=11 // pred_check
          %p211 = pneg %p125
        $region26: #{custom_dqn_forward.1} parent=11 // pred_check_branch
          %213 = sbr.rel (%p211) target = $region28
        $region27: #{custom_dqn_forward.1} parent=11 // pred_region
          %s215 = ssub.s32 4096, 4096
          %216 = vsyncadd [#allocation10], %s215
          %s217 = sshll.u32 [#allocation12], 4
          %s218 = int_to_ptr.vmem [resolvable:$true] %s217
          %223 = dma.hbm_to_vmem [thread:$0]  %s4, 4096, %s218, [#allocation10], 64, 64, 4
        $region28: #{custom_dqn_forward.1} parent=11 // pred_fallthru
          _
        // Predicated region
        $region29: #{custom_dqn_forward.1} parent=11 // pred_check
          %p224 = pneg %p146
        $region30: #{custom_dqn_forward.1} parent=11 // pred_check_branch
          %226 = sbr.rel (%p224) target = $region32
        $region31: #{custom_dqn_forward.1} parent=11 // pred_region
          %s228 = ssub.s32 128, 128
          %229 = vsyncadd [#allocation14], %s228
          %s231 = sshll.u32 [#allocation13], 4
          %s232 = int_to_ptr.vmem [resolvable:$true] %s231
          %234 = dma.hbm_to_vmem [thread:$0]  %s5, 128, %s232, [#allocation14]
        $region32: #{custom_dqn_forward.1} parent=11 // pred_fallthru
          _
      $region12: #{custom_dqn_forward.1} parent=5 // pred_fallthru
        _
      %p235 = scmp.lt.s32.totalorder %s15, 4
      // Predicated region
      $region33: #{custom_dqn_forward.1} parent=5 // pred_check
        %p236 = pneg %p235
      $region34: #{custom_dqn_forward.1} parent=5 // pred_check_branch
        %238 = sbr.rel (%p236) target = $region36
      $region35: #{custom_dqn_forward.1} parent=5 // pred_region
        // Predicated region
        $region37: #{custom_dqn_forward.1} parent=35 // pred_check
          %p239 = pneg %p98
        $region38: #{custom_dqn_forward.1} parent=35 // pred_check_branch
          %241 = sbr.rel (%p239) target = $region40
        $region39: #{custom_dqn_forward.1} parent=35 // pred_region
          %s242 = sand.u32 %s15, 1
          %s243 = scalar_lea.sflag [#allocation8], %s242
          %s244 = sand.u32 %s88, 1
          %s245 = smul.addr %s244, 1024
          %s246 = scalar_lea.vmem [#allocation11], %s245
          %s247 = smul.u32 128, %s15
          %s249 = ssub.s32 16384, 16384
          %250 = vsyncadd %s243, %s249
          %s251 = smul.addr %s247, 2
          %s252 = smul.addr %s251, 64
          %s253 = scalar_lea.hbm %s3, %s252
          %s254 = sshll.u32 %s246, 4
          %s255 = int_to_ptr.vmem [resolvable:$true] %s254
          %260 = dma.hbm_to_vmem [thread:$0]  %s253, 16384, %s255, %s243, 128, 128, 8
        $region40: #{custom_dqn_forward.1} parent=35 // pred_fallthru
          _
      $region36: #{custom_dqn_forward.1} parent=5 // pred_fallthru
        _
      %p261 = scmp.le.s32.totalorder 1, %s15
      %p262 = scmp.lt.s32.totalorder %s15, 5
      %p263 = pnand %p261, %p262
      %p264 = pneg %p263
      // Predicated region
      $region41: #{custom_dqn_forward.1} parent=5 // pred_check
        _
      $region42: #{custom_dqn_forward.1} parent=5 // pred_check_branch
        %266 = sbr.rel (%p263) target = $region44
      $region43: #{custom_dqn_forward.1} parent=5 // pred_region
        %s267 = ssub.s32 %s15, 1
        // Predicated region
        $region45: #{custom_dqn_forward.1} parent=43 // pred_check
          %p268 = pneg %p57
        $region46: #{custom_dqn_forward.1} parent=43 // pred_check_branch
          %270 = sbr.rel (%p268) target = $region48
        $region47: #{custom_dqn_forward.1} parent=43 // pred_region
          %271 = dma.done [#allocation8], 576
        $region48: #{custom_dqn_forward.1} parent=43 // pred_fallthru
          _
        // Predicated region
        $region49: #{custom_dqn_forward.1} parent=43 // pred_check
          %p272 = pneg %p78
        $region50: #{custom_dqn_forward.1} parent=43 // pred_check_branch
          %274 = sbr.rel (%p272) target = $region52
        $region51: #{custom_dqn_forward.1} parent=43 // pred_region
          %275 = dma.done [#allocation10], 4608
        $region52: #{custom_dqn_forward.1} parent=43 // pred_fallthru
          _
        %s276 = sand.u32 %s20, 1
        %s277 = scalar_lea.sflag [#allocation8], %s276
        %s278 = sand.u32 %s91, 1
        %s279 = smul.addr %s278, 1024
        %s280 = scalar_lea.vmem [#allocation11], %s279
        // Predicated region
        $region53: #{custom_dqn_forward.1} parent=43 // pred_check
          %p281 = pneg %p104
        $region54: #{custom_dqn_forward.1} parent=43 // pred_check_branch
          %283 = sbr.rel (%p281) target = $region56
        $region55: #{custom_dqn_forward.1} parent=43 // pred_region
          %284 = dma.done %s277, 16384
        $region56: #{custom_dqn_forward.1} parent=43 // pred_fallthru
          _
        // Predicated region
        $region57: #{custom_dqn_forward.1} parent=43 // pred_check
          %p285 = pneg %p125
        $region58: #{custom_dqn_forward.1} parent=43 // pred_check_branch
          %287 = sbr.rel (%p285) target = $region60
        $region59: #{custom_dqn_forward.1} parent=43 // pred_region
          %288 = dma.done [#allocation10], 4096
        $region60: #{custom_dqn_forward.1} parent=43 // pred_fallthru
          _
        // Predicated region
        $region61: #{custom_dqn_forward.1} parent=43 // pred_check
          %p289 = pneg %p146
        $region62: #{custom_dqn_forward.1} parent=43 // pred_check_branch
          %291 = sbr.rel (%p289) target = $region64
        $region63: #{custom_dqn_forward.1} parent=43 // pred_region
          %292 = dma.done [#allocation14], 128
        $region64: #{custom_dqn_forward.1} parent=43 // pred_fallthru
          _
        %p293 = pneg %p36
        %p294 = pneg %p33
        %p295 = pneg %p57
        %p296 = pneg %p54
        %p297 = pneg %p78
        %p298 = pneg %p75
        %s299 = sand.u32 %s20, 1
        %s300 = scalar_lea.sflag [#allocation8], %s299
        %s301 = sand.u32 %s91, 1
        %s302 = smul.addr %s301, 1024
        %s303 = scalar_lea.vmem [#allocation11], %s302
        %p304 = pneg %p104
        %p305 = pneg %p101
        %p306 = pneg %p125
        %p307 = pneg %p122
        %p308 = pneg %p146
        %p309 = pneg %p143
        %p310 = pneg %p167
        %p311 = pneg %p164
        %s312 = smul.u32 128, %s20
        %p314 = scmp.eq.s32.totalorder %s20, 0
        // Predicated region
        $region65: #{custom_dqn_forward.1} parent=43 // pred_check
          %p315 = pneg %p314
        $region66: #{custom_dqn_forward.1} parent=43 // pred_check_branch
          %317 = sbr.rel (%p315) target = $region68
        $region67: #{custom_dqn_forward.1} parent=43 // pred_region
          %vm318 = vcmask 23552
          %319 = vst.msk [vmem:[#allocation2] sm:$0xff] %vm318, 0.0
          %vm320 = vcmask 17408
          %321 = vst.msk [vmem:[#allocation2 + $0x8] sm:$0x3] %vm320, 0.0
          %322 = vst.msk [vmem:[#allocation2 + $0xa0] sm:$0xff] %vm318, 0.0
          %323 = vst.msk [vmem:[#allocation2 + $0xa8] sm:$0x3] %vm320, 0.0
          %s324 = scalar_lea.vmem [#allocation2], 144
          %325 = vst.msk [vmem:[%s324] sm:$0xff] %vm318, 0.0
          %326 = vst.msk [vmem:[%s324 + $0x8] sm:$0x3] %vm320, 0.0
          %327 = vst.msk [vmem:[%s324 + $0xa0] sm:$0xff] %vm318, 0.0
          %328 = vst.msk [vmem:[%s324 + $0xa8] sm:$0x3] %vm320, 0.0
          %vm329 = vcmask 16384
          %330 = vst.msk [vmem:[#allocation2] sm:$0x1] %vm329, 0.0
          %331 = vst.msk [vmem:[#allocation2 + $0x10] sm:$0x1] %vm329, 0.0
          %332 = vst.msk [vmem:[#allocation2 + $0x20] sm:$0x1] %vm329, 0.0
          %333 = vst.msk [vmem:[#allocation2 + $0x30] sm:$0x1] %vm329, 0.0
          %334 = vst.msk [vmem:[#allocation2 + $0x40] sm:$0x1] %vm329, 0.0
          %335 = vst.msk [vmem:[#allocation2 + $0x50] sm:$0x1] %vm329, 0.0
          %336 = vst.msk [vmem:[#allocation2 + $0x60] sm:$0x1] %vm329, 0.0
          %337 = vst.msk [vmem:[#allocation2 + $0x70] sm:$0x1] %vm329, 0.0
          %338 = vst.msk [vmem:[#allocation2 + $0x80] sm:$0x1] %vm329, 0.0
          %339 = vst.msk [vmem:[#allocation2 + $0x90] sm:$0x1] %vm329, 0.0
          %340 = vst.msk [vmem:[#allocation2 + $0xa0] sm:$0x1] %vm329, 0.0
          %341 = vst.msk [vmem:[#allocation2 + $0xb0] sm:$0x1] %vm329, 0.0
          %342 = vst.msk [vmem:[#allocation2 + $0xc0] sm:$0x1] %vm329, 0.0
          %343 = vst.msk [vmem:[#allocation2 + $0xd0] sm:$0x1] %vm329, 0.0
          %344 = vst.msk [vmem:[#allocation2 + $0xe0] sm:$0x1] %vm329, 0.0
          %345 = vst.msk [vmem:[#allocation2 + $0xf0] sm:$0x1] %vm329, 0.0
          %346 = vst.msk [vmem:[#allocation2 + $0x100] sm:$0x1] %vm329, 0.0
          %347 = vst.msk [vmem:[#allocation2 + $0x110] sm:$0x1] %vm329, 0.0
          %348 = vst.msk [vmem:[#allocation2 + $0x120] sm:$0x1] %vm329, 0.0
          %349 = vst.msk [vmem:[#allocation2 + $0x130] sm:$0x1] %vm329, 0.0
          %350 = vst.msk [vmem:[#allocation2 + $0x9] sm:$0x1] %vm329, 0.0
          %351 = vst.msk [vmem:[#allocation2 + $0x19] sm:$0x1] %vm329, 0.0
          %352 = vst.msk [vmem:[#allocation2 + $0x29] sm:$0x1] %vm329, 0.0
          %353 = vst.msk [vmem:[#allocation2 + $0x39] sm:$0x1] %vm329, 0.0
          %354 = vst.msk [vmem:[#allocation2 + $0x49] sm:$0x1] %vm329, 0.0
          %355 = vst.msk [vmem:[#allocation2 + $0x59] sm:$0x1] %vm329, 0.0
          %356 = vst.msk [vmem:[#allocation2 + $0x69] sm:$0x1] %vm329, 0.0
          %357 = vst.msk [vmem:[#allocation2 + $0x79] sm:$0x1] %vm329, 0.0
          %358 = vst.msk [vmem:[#allocation2 + $0x89] sm:$0x1] %vm329, 0.0
          %359 = vst.msk [vmem:[#allocation2 + $0x99] sm:$0x1] %vm329, 0.0
          %360 = vst.msk [vmem:[#allocation2 + $0xa9] sm:$0x1] %vm329, 0.0
          %361 = vst.msk [vmem:[#allocation2 + $0xb9] sm:$0x1] %vm329, 0.0
          %362 = vst.msk [vmem:[#allocation2 + $0xc9] sm:$0x1] %vm329, 0.0
          %363 = vst.msk [vmem:[#allocation2 + $0xd9] sm:$0x1] %vm329, 0.0
          %364 = vst.msk [vmem:[#allocation2 + $0xe9] sm:$0x1] %vm329, 0.0
          %365 = vst.msk [vmem:[#allocation2 + $0xf9] sm:$0x1] %vm329, 0.0
          %366 = vst.msk [vmem:[#allocation2 + $0x109] sm:$0x1] %vm329, 0.0
          %367 = vst.msk [vmem:[#allocation2 + $0x119] sm:$0x1] %vm329, 0.0
          %368 = vst.msk [vmem:[#allocation2 + $0x129] sm:$0x1] %vm329, 0.0
          %369 = vst.msk [vmem:[#allocation2 + $0x139] sm:$0x1] %vm329, 0.0
          %v370 = vld [vmem:[%s0] sm:$0xff]
          %v371 = vld [vmem:[%s0 + $0x8] sm:$0xff]
          %v372 = vld [vmem:[%s0 + $0x10] sm:$0xff]
          %v373 = vld [vmem:[%s0 + $0x18] sm:$0xff]
          %v374 = vld [vmem:[%s0 + $0x20] sm:$0xff]
          %v375 = vld [vmem:[%s0 + $0x28] sm:$0xff]
          %v376 = vld [vmem:[%s0 + $0x30] sm:$0xff]
          %v377 = vld [vmem:[%s0 + $0x38] sm:$0xff]
          %v378 = vld [vmem:[%s0 + $0x40] sm:$0xff]
          %v379 = vld [vmem:[%s0 + $0x48] sm:$0xff]
          %v380 = vld [vmem:[%s0 + $0x50] sm:$0xff]
          %v381 = vld [vmem:[%s0 + $0x58] sm:$0xff]
          %v382 = vld [vmem:[%s0 + $0x60] sm:$0xff]
          %v383 = vld [vmem:[%s0 + $0x68] sm:$0xff]
          %v384 = vld [vmem:[%s0 + $0x70] sm:$0xff]
          %v385 = vld [vmem:[%s0 + $0x78] sm:$0xff]
          %s386 = scalar_lea.vmem [#allocation2], 16
          %387 = vst.msk [vmem:[%s386 + $0x1] sm:$0xff] %vm318, %v370
          %388 = vst.msk [vmem:[%s386 + $0x11] sm:$0xff] %vm318, %v371
          %389 = vst.msk [vmem:[%s386 + $0x21] sm:$0xff] %vm318, %v372
          %390 = vst.msk [vmem:[%s386 + $0x31] sm:$0xff] %vm318, %v373
          %391 = vst.msk [vmem:[%s386 + $0x41] sm:$0xff] %vm318, %v374
          %392 = vst.msk [vmem:[%s386 + $0x51] sm:$0xff] %vm318, %v375
          %393 = vst.msk [vmem:[%s386 + $0x61] sm:$0xff] %vm318, %v376
          %394 = vst.msk [vmem:[%s386 + $0x71] sm:$0xff] %vm318, %v377
          %395 = vst.msk [vmem:[%s386 + $0xa1] sm:$0xff] %vm318, %v378
          %396 = vst.msk [vmem:[%s386 + $0xb1] sm:$0xff] %vm318, %v379
          %397 = vst.msk [vmem:[%s386 + $0xc1] sm:$0xff] %vm318, %v380
          %398 = vst.msk [vmem:[%s386 + $0xd1] sm:$0xff] %vm318, %v381
          %399 = vst.msk [vmem:[%s386 + $0xe1] sm:$0xff] %vm318, %v382
          %400 = vst.msk [vmem:[%s386 + $0xf1] sm:$0xff] %vm318, %v383
          %401 = vst.msk [vmem:[%s386 + $0x101] sm:$0xff] %vm318, %v384
          %402 = vst.msk [vmem:[%s386 + $0x111] sm:$0xff] %vm318, %v385
          %v403 = vld [vmem:[#allocation13] sm:$0x1]
          %v404 = vld [vmem:[#allocation2] sm:$0xff]
          %v405 = vld [vmem:[#allocation2 + $0x10] sm:$0xff]
          %v406 = vld [vmem:[#allocation2 + $0x20] sm:$0xff]
          %v407 = vld [vmem:[#allocation2 + $0x30] sm:$0xff]
          %v408 = vld [vmem:[#allocation2 + $0x40] sm:$0xff]
          %v409 = vld [vmem:[#allocation2 + $0x50] sm:$0xff]
          %v410 = vld [vmem:[#allocation2 + $0x60] sm:$0xff]
          %v411 = vld [vmem:[#allocation2 + $0x70] sm:$0xff]
          %v412 = vld [vmem:[#allocation2 + $0xa0] sm:$0xff]
          %v413 = vld [vmem:[#allocation2 + $0xb0] sm:$0xff]
          %v414 = vld [vmem:[#allocation2 + $0xc0] sm:$0xff]
          %v415 = vld [vmem:[#allocation2 + $0xd0] sm:$0xff]
          %v416 = vld [vmem:[#allocation2 + $0xe0] sm:$0xff]
          %v417 = vld [vmem:[#allocation2 + $0xf0] sm:$0xff]
          %v418 = vld [vmem:[#allocation2 + $0x100] sm:$0xff]
          %v419 = vld [vmem:[#allocation2 + $0x110] sm:$0xff]
          %v420 = vld [vmem:[#allocation7] sm:$0x7]
          %v421 = vld [vmem:[#allocation2 + $0x1] sm:$0xff]
          %v422 = vld [vmem:[#allocation2 + $0x11] sm:$0xff]
          %v423 = vld [vmem:[#allocation2 + $0x21] sm:$0xff]
          %v424 = vld [vmem:[#allocation2 + $0x31] sm:$0xff]
          %v425 = vld [vmem:[#allocation2 + $0x41] sm:$0xff]
          %v426 = vld [vmem:[#allocation2 + $0x51] sm:$0xff]
          %v427 = vld [vmem:[#allocation2 + $0x61] sm:$0xff]
          %v428 = vld [vmem:[#allocation2 + $0x71] sm:$0xff]
          %v429 = vld [vmem:[#allocation2 + $0xa1] sm:$0xff]
          %v430 = vld [vmem:[#allocation2 + $0xb1] sm:$0xff]
          %v431 = vld [vmem:[#allocation2 + $0xc1] sm:$0xff]
          %v432 = vld [vmem:[#allocation2 + $0xd1] sm:$0xff]
          %v433 = vld [vmem:[#allocation2 + $0xe1] sm:$0xff]
          %v434 = vld [vmem:[#allocation2 + $0xf1] sm:$0xff]
          %v435 = vld [vmem:[#allocation2 + $0x101] sm:$0xff]
          %v436 = vld [vmem:[#allocation2 + $0x111] sm:$0xff]
          %s437 = scalar_lea.vmem [#allocation7], 4
          %v438 = vld [vmem:[%s437] sm:$0x7]
          %v440 = vsel %vm318, %v421, 0
          %v443 = vsel %vm318, %v422, 0
          %v446 = vsel %vm318, %v423, 0
          %v449 = vsel %vm318, %v424, 0
          %v452 = vsel %vm318, %v425, 0
          %v455 = vsel %vm318, %v426, 0
          %v458 = vsel %vm318, %v427, 0
          %v461 = vsel %vm318, %v428, 0
          %v464 = vsel %vm318, %v429, 0
          %v467 = vsel %vm318, %v430, 0
          %v470 = vsel %vm318, %v431, 0
          %v473 = vsel %vm318, %v432, 0
          %v476 = vsel %vm318, %v433, 0
          %v479 = vsel %vm318, %v434, 0
          %v482 = vsel %vm318, %v435, 0
          %v485 = vsel %vm318, %v436, 0
          %vm487 = vcmask 1042432
          %v489 = vsel %vm487, %v438, 0
          %491 = vmatprep.subr.mxu0 0.0
          %492 = vmatpush1.msra.mxu0 %v489
          %493 = vmatprep.subr.mxu0 0.0
          %494 = vmatpush1.msra.mxu0 0.0
          %495 = vmatprep.subr.mxu0 0.0
          %496 = vmatpush1.msra.mxu0 0.0
          %497 = vmatprep.subr.mxu0 0.0
          %498 = vmatpush1.msra.mxu0 0.0
          %499 = vmatprep.subr.mxu0 0.0
          %500 = vmatpush1.msra.mxu0 0.0
          %501 = vmatprep.subr.mxu0 0.0
          %502 = vmatpush1.msra.mxu0 0.0
          %503 = vmatprep.subr.mxu0 0.0
          %504 = vmatpush1.msra.mxu0 0.0
          %505 = vmatprep.subr.mxu0 0.0
          %506 = vmatpush1.msra.mxu0 0.0
          %507 = vmatprep.subr.mxu0 0.0
          %508 = vmatpush1.msra.mxu0 0.0
          %509 = vmatprep.subr.mxu0 0.0
          %510 = vmatpush1.msra.mxu0 0.0
          %511 = vmatprep.subr.mxu0 0.0
          %512 = vmatpush1.msra.mxu0 0.0
          %513 = vmatprep.subr.mxu0 0.0
          %514 = vmatpush1.msra.mxu0 0.0
          %515 = vmatprep.subr.mxu0 0.0
          %516 = vmatpush1.msra.mxu0 0.0
          %517 = vmatprep.subr.mxu0 0.0
          %518 = vmatpush1.msra.mxu0 0.0
          %519 = vmatprep.subr.mxu0 0.0
          %520 = vmatpush1.msra.mxu0 0.0
          %521 = vmatprep.subr.mxu0 0.0
          %522 = vmatpush1.msra.mxu0 0.0
          %523 = vmatprep.subr.mxu0 0.0
          %524 = vmatpush1.msra.mxu0 0.0
          %525 = vmatprep.subr.mxu0 0.0
          %526 = vmatpush1.msra.mxu0 0.0
          %527 = vmatprep.subr.mxu0 0.0
          %528 = vmatpush1.msra.mxu0 0.0
          %529 = vmatprep.subr.mxu0 0.0
          %530 = vmatpush1.msra.mxu0 0.0
          %531 = vmatprep.subr.mxu0 0.0
          %532 = vmatpush1.msra.mxu0 0.0
          %533 = vmatprep.subr.mxu0 0.0
          %534 = vmatpush1.msra.mxu0 0.0
          %535 = vmatprep.subr.mxu0 0.0
          %536 = vmatpush1.msra.mxu0 0.0
          %537 = vmatprep.subr.mxu0 0.0
          %538 = vmatpush1.msra.mxu0 0.0
          %539 = vmatprep.subr.mxu0 0.0
          %540 = vmatpush1.msra.mxu0 0.0
          %541 = vmatprep.subr.mxu0 0.0
          %542 = vmatpush1.msra.mxu0 0.0
          %543 = vmatprep.subr.mxu0 0.0
          %544 = vmatpush1.msra.mxu0 0.0
          %545 = vmatprep.subr.mxu0 0.0
          %546 = vmatpush1.msra.mxu0 0.0
          %547 = vmatprep.subr.mxu0 0.0
          %548 = vmatpush1.msra.mxu0 0.0
          %549 = vmatprep.subr.mxu0 0.0
          %550 = vmatpush1.msra.mxu0 0.0
          %551 = vmatprep.subr.mxu0 0.0
          %552 = vmatpush1.msra.mxu0 0.0
          %553 = vmatprep.subr.mxu0 0.0
          %554 = vmatpush1.msra.mxu0 0.0
          %555 = vmatprep.mubr.f32.mxu0 0.0
          %556 = vmatmul.mubr.f32.gmra.mrb[0].mxu0 %v440
          %v557 = vpop.f32.mrb[0].mxu0
          %v558 = vadd.f32 0.0, %v557
          %v559 = vpop.f32.mrb[0].mxu0
          %560 = vmatprep.mubr.f32.mxu0 0.0
          %561 = vmatmul.mubr.f32.gmra.mrb[0].mxu0 %v443
          %v562 = vpop.f32.mrb[0].mxu0
          %v563 = vadd.f32 0.0, %v562
          %v564 = vpop.f32.mrb[0].mxu0
          %565 = vmatprep.mubr.f32.mxu0 0.0
          %566 = vmatmul.mubr.f32.gmra.mrb[0].mxu0 %v446
          %v567 = vpop.f32.mrb[0].mxu0
          %v568 = vadd.f32 0.0, %v567
          %v569 = vpop.f32.mrb[0].mxu0
          %570 = vmatprep.mubr.f32.mxu0 0.0
          %571 = vmatmul.mubr.f32.gmra.mrb[0].mxu0 %v449
          %v572 = vpop.f32.mrb[0].mxu0
          %v573 = vadd.f32 0.0, %v572
          %v574 = vpop.f32.mrb[0].mxu0
          %575 = vmatprep.mubr.f32.mxu0 0.0
          %576 = vmatmul.mubr.f32.gmra.mrb[0].mxu0 %v452
          %v577 = vpop.f32.mrb[0].mxu0
          %v578 = vadd.f32 0.0, %v577
          %v579 = vpop.f32.mrb[0].mxu0
          %580 = vmatprep.mubr.f32.mxu0 0.0
          %581 = vmatmul.mubr.f32.gmra.mrb[0].mxu0 %v455
          %v582 = vpop.f32.mrb[0].mxu0
          %v583 = vadd.f32 0.0, %v582
          %v584 = vpop.f32.mrb[0].mxu0
          %585 = vmatprep.mubr.f32.mxu0 0.0
          %586 = vmatmul.mubr.f32.gmra.mrb[0].mxu0 %v458
          %v587 = vpop.f32.mrb[0].mxu0
          %v588 = vadd.f32 0.0, %v587
          %v589 = vpop.f32.mrb[0].mxu0
          %590 = vmatprep.mubr.f32.mxu0 0.0
          %591 = vmatmul.mubr.f32.gmra.mrb[0].mxu0 %v461
          %v592 = vpop.f32.mrb[0].mxu0
          %v593 = vadd.f32 0.0, %v592
          %v594 = vpop.f32.mrb[0].mxu0
          %595 = vmatprep.mubr.f32.mxu0 0.0
          %596 = vmatmul.mubr.f32.gmra.mrb[0].mxu0 %v464
          %v597 = vpop.f32.mrb[0].mxu0
          %v598 = vadd.f32 0.0, %v597
          %v599 = vpop.f32.mrb[0].mxu0
          %600 = vmatprep.mubr.f32.mxu0 0.0
          %601 = vmatmul.mubr.f32.gmra.mrb[0].mxu0 %v467
          %v602 = vpop.f32.mrb[0].mxu0
          %v603 = vadd.f32 0.0, %v602
          %v604 = vpop.f32.mrb[0].mxu0
          %605 = vmatprep.mubr.f32.mxu0 0.0
          %606 = vmatmul.mubr.f32.gmra.mrb[0].mxu0 %v470
          %v607 = vpop.f32.mrb[0].mxu0
          %v608 = vadd.f32 0.0, %v607
          %v609 = vpop.f32.mrb[0].mxu0
          %610 = vmatprep.mubr.f32.mxu0 0.0
          %611 = vmatmul.mubr.f32.gmra.mrb[0].mxu0 %v473
          %v612 = vpop.f32.mrb[0].mxu0
          %v613 = vadd.f32 0.0, %v612
          %v614 = vpop.f32.mrb[0].mxu0
          %615 = vmatprep.mubr.f32.mxu0 0.0
          %616 = vmatmul.mubr.f32.gmra.mrb[0].mxu0 %v476
          %v617 = vpop.f32.mrb[0].mxu0
          %v618 = vadd.f32 0.0, %v617
          %v619 = vpop.f32.mrb[0].mxu0
          %620 = vmatprep.mubr.f32.mxu0 0.0
          %621 = vmatmul.mubr.f32.gmra.mrb[0].mxu0 %v479
          %v622 = vpop.f32.mrb[0].mxu0
          %v623 = vadd.f32 0.0, %v622
          %v624 = vpop.f32.mrb[0].mxu0
          %625 = vmatprep.mubr.f32.mxu0 0.0
          %626 = vmatmul.mubr.f32.gmra.mrb[0].mxu0 %v482
          %v627 = vpop.f32.mrb[0].mxu0
          %v628 = vadd.f32 0.0, %v627
          %v629 = vpop.f32.mrb[0].mxu0
          %630 = vmatprep.mubr.f32.mxu0 0.0
          %631 = vmatmul.mubr.f32.gmra.mrb[0].mxu0 %v485
          %v632 = vpop.f32.mrb[0].mxu0
          %v633 = vadd.f32 0.0, %v632
          %v634 = vpop.f32.mrb[0].mxu0
          %635 = vdwg.mxu0
          %v637 = vsel %vm318, %v404, 0
          %v640 = vsel %vm318, %v405, 0
          %v643 = vsel %vm318, %v406, 0
          %v646 = vsel %vm318, %v407, 0
          %v649 = vsel %vm318, %v408, 0
          %v652 = vsel %vm318, %v409, 0
          %v655 = vsel %vm318, %v410, 0
          %v658 = vsel %vm318, %v411, 0
          %v661 = vsel %vm318, %v412, 0
          %v664 = vsel %vm318, %v413, 0
          %v667 = vsel %vm318, %v414, 0
          %v670 = vsel %vm318, %v415, 0
          %v673 = vsel %vm318, %v416, 0
          %v676 = vsel %vm318, %v417, 0
          %v679 = vsel %vm318, %v418, 0
          %v682 = vsel %vm318, %v419, 0
          %v685 = vsel %vm487, %v420, 0
          %687 = vmatprep.subr.mxu0 0.0
          %688 = vmatpush1.msra.mxu0 %v685
          %689 = vmatprep.subr.mxu0 0.0
          %690 = vmatpush1.msra.mxu0 0.0
          %691 = vmatprep.subr.mxu0 0.0
          %692 = vmatpush1.msra.mxu0 0.0
          %693 = vmatprep.subr.mxu0 0.0
          %694 = vmatpush1.msra.mxu0 0.0
          %695 = vmatprep.subr.mxu0 0.0
          %696 = vmatpush1.msra.mxu0 0.0
          %697 = vmatprep.subr.mxu0 0.0
          %698 = vmatpush1.msra.mxu0 0.0
          %699 = vmatprep.subr.mxu0 0.0
          %700 = vmatpush1.msra.mxu0 0.0
          %701 = vmatprep.subr.mxu0 0.0
          %702 = vmatpush1.msra.mxu0 0.0
          %703 = vmatprep.subr.mxu0 0.0
          %704 = vmatpush1.msra.mxu0 0.0
          %705 = vmatprep.subr.mxu0 0.0
          %706 = vmatpush1.msra.mxu0 0.0
          %707 = vmatprep.subr.mxu0 0.0
          %708 = vmatpush1.msra.mxu0 0.0
          %709 = vmatprep.subr.mxu0 0.0
          %710 = vmatpush1.msra.mxu0 0.0
          %711 = vmatprep.subr.mxu0 0.0
          %712 = vmatpush1.msra.mxu0 0.0
          %713 = vmatprep.subr.mxu0 0.0
          %714 = vmatpush1.msra.mxu0 0.0
          %715 = vmatprep.subr.mxu0 0.0
          %716 = vmatpush1.msra.mxu0 0.0
          %717 = vmatprep.subr.mxu0 0.0
          %718 = vmatpush1.msra.mxu0 0.0
          %719 = vmatprep.subr.mxu0 0.0
          %720 = vmatpush1.msra.mxu0 0.0
          %721 = vmatprep.subr.mxu0 0.0
          %722 = vmatpush1.msra.mxu0 0.0
          %723 = vmatprep.subr.mxu0 0.0
          %724 = vmatpush1.msra.mxu0 0.0
          %725 = vmatprep.subr.mxu0 0.0
          %726 = vmatpush1.msra.mxu0 0.0
          %727 = vmatprep.subr.mxu0 0.0
          %728 = vmatpush1.msra.mxu0 0.0
          %729 = vmatprep.subr.mxu0 0.0
          %730 = vmatpush1.msra.mxu0 0.0
          %731 = vmatprep.subr.mxu0 0.0
          %732 = vmatpush1.msra.mxu0 0.0
          %733 = vmatprep.subr.mxu0 0.0
          %734 = vmatpush1.msra.mxu0 0.0
          %735 = vmatprep.subr.mxu0 0.0
          %736 = vmatpush1.msra.mxu0 0.0
          %737 = vmatprep.subr.mxu0 0.0
          %738 = vmatpush1.msra.mxu0 0.0
          %739 = vmatprep.subr.mxu0 0.0
          %740 = vmatpush1.msra.mxu0 0.0
          %741 = vmatprep.subr.mxu0 0.0
          %742 = vmatpush1.msra.mxu0 0.0
          %743 = vmatprep.subr.mxu0 0.0
          %744 = vmatpush1.msra.mxu0 0.0
          %745 = vmatprep.subr.mxu0 0.0
          %746 = vmatpush1.msra.mxu0 0.0
          %747 = vmatprep.subr.mxu0 0.0
          %748 = vmatpush1.msra.mxu0 0.0
          %749 = vmatprep.subr.mxu0 0.0
          %750 = vmatpush1.msra.mxu0 0.0
          %751 = vmatprep.mubr.f32.mxu0 0.0
          %752 = vmatmul.mubr.f32.gmra.mrb[0].mxu0 %v637
          %v753 = vpop.f32.mrb[0].mxu0
          %v754 = vadd.f32 %v558, %v753
          %v755 = vpop.f32.mrb[0].mxu0
          %756 = vmatprep.mubr.f32.mxu0 0.0
          %757 = vmatmul.mubr.f32.gmra.mrb[0].mxu0 %v640
          %v758 = vpop.f32.mrb[0].mxu0
          %v759 = vadd.f32 %v563, %v758
          %v760 = vpop.f32.mrb[0].mxu0
          %761 = vmatprep.mubr.f32.mxu0 0.0
          %762 = vmatmul.mubr.f32.gmra.mrb[0].mxu0 %v643
          %v763 = vpop.f32.mrb[0].mxu0
          %v764 = vadd.f32 %v568, %v763
          %v765 = vpop.f32.mrb[0].mxu0
          %766 = vmatprep.mubr.f32.mxu0 0.0
          %767 = vmatmul.mubr.f32.gmra.mrb[0].mxu0 %v646
          %v768 = vpop.f32.mrb[0].mxu0
          %v769 = vadd.f32 %v573, %v768
          %v770 = vpop.f32.mrb[0].mxu0
          %771 = vmatprep.mubr.f32.mxu0 0.0
          %772 = vmatmul.mubr.f32.gmra.mrb[0].mxu0 %v649
          %v773 = vpop.f32.mrb[0].mxu0
          %v774 = vadd.f32 %v578, %v773
          %v775 = vpop.f32.mrb[0].mxu0
          %776 = vmatprep.mubr.f32.mxu0 0.0
          %777 = vmatmul.mubr.f32.gmra.mrb[0].mxu0 %v652
          %v778 = vpop.f32.mrb[0].mxu0
          %v779 = vadd.f32 %v583, %v778
          %v780 = vpop.f32.mrb[0].mxu0
          %781 = vmatprep.mubr.f32.mxu0 0.0
          %782 = vmatmul.mubr.f32.gmra.mrb[0].mxu0 %v655
          %v783 = vpop.f32.mrb[0].mxu0
          %v784 = vadd.f32 %v588, %v783
          %v785 = vpop.f32.mrb[0].mxu0
          %786 = vmatprep.mubr.f32.mxu0 0.0
          %787 = vmatmul.mubr.f32.gmra.mrb[0].mxu0 %v658
          %v788 = vpop.f32.mrb[0].mxu0
          %v789 = vadd.f32 %v593, %v788
          %v790 = vpop.f32.mrb[0].mxu0
          %791 = vmatprep.mubr.f32.mxu0 0.0
          %792 = vmatmul.mubr.f32.gmra.mrb[0].mxu0 %v661
          %v793 = vpop.f32.mrb[0].mxu0
          %v794 = vadd.f32 %v598, %v793
          %v795 = vpop.f32.mrb[0].mxu0
          %796 = vmatprep.mubr.f32.mxu0 0.0
          %797 = vmatmul.mubr.f32.gmra.mrb[0].mxu0 %v664
          %v798 = vpop.f32.mrb[0].mxu0
          %v799 = vadd.f32 %v603, %v798
          %v800 = vpop.f32.mrb[0].mxu0
          %801 = vmatprep.mubr.f32.mxu0 0.0
          %802 = vmatmul.mubr.f32.gmra.mrb[0].mxu0 %v667
          %v803 = vpop.f32.mrb[0].mxu0
          %v804 = vadd.f32 %v608, %v803
          %v805 = vpop.f32.mrb[0].mxu0
          %806 = vmatprep.mubr.f32.mxu0 0.0
          %807 = vmatmul.mubr.f32.gmra.mrb[0].mxu0 %v670
          %v808 = vpop.f32.mrb[0].mxu0
          %v809 = vadd.f32 %v613, %v808
          %v810 = vpop.f32.mrb[0].mxu0
          %811 = vmatprep.mubr.f32.mxu0 0.0
          %812 = vmatmul.mubr.f32.gmra.mrb[0].mxu0 %v673
          %v813 = vpop.f32.mrb[0].mxu0
          %v814 = vadd.f32 %v618, %v813
          %v815 = vpop.f32.mrb[0].mxu0
          %816 = vmatprep.mubr.f32.mxu0 0.0
          %817 = vmatmul.mubr.f32.gmra.mrb[0].mxu0 %v676
          %v818 = vpop.f32.mrb[0].mxu0
          %v819 = vadd.f32 %v623, %v818
          %v820 = vpop.f32.mrb[0].mxu0
          %821 = vmatprep.mubr.f32.mxu0 0.0
          %822 = vmatmul.mubr.f32.gmra.mrb[0].mxu0 %v679
          %v823 = vpop.f32.mrb[0].mxu0
          %v824 = vadd.f32 %v628, %v823
          %v825 = vpop.f32.mrb[0].mxu0
          %826 = vmatprep.mubr.f32.mxu0 0.0
          %827 = vmatmul.mubr.f32.gmra.mrb[0].mxu0 %v682
          %v828 = vpop.f32.mrb[0].mxu0
          %v829 = vadd.f32 %v633, %v828
          %v830 = vpop.f32.mrb[0].mxu0
          %831 = vdwg.mxu0
          %v832 = vld [vmem:[#allocation2 + $0x2] sm:$0xff]
          %v833 = vld [vmem:[#allocation2 + $0x12] sm:$0xff]
          %v834 = vld [vmem:[#allocation2 + $0x22] sm:$0xff]
          %v835 = vld [vmem:[#allocation2 + $0x32] sm:$0xff]
          %v836 = vld [vmem:[#allocation2 + $0x42] sm:$0xff]
          %v837 = vld [vmem:[#allocation2 + $0x52] sm:$0xff]
          %v838 = vld [vmem:[#allocation2 + $0x62] sm:$0xff]
          %v839 = vld [vmem:[#allocation2 + $0x72] sm:$0xff]
          %v840 = vld [vmem:[#allocation2 + $0xa2] sm:$0xff]
          %v841 = vld [vmem:[#allocation2 + $0xb2] sm:$0xff]
          %v842 = vld [vmem:[#allocation2 + $0xc2] sm:$0xff]
          %v843 = vld [vmem:[#allocation2 + $0xd2] sm:$0xff]
          %v844 = vld [vmem:[#allocation2 + $0xe2] sm:$0xff]
          %v845 = vld [vmem:[#allocation2 + $0xf2] sm:$0xff]
          %v846 = vld [vmem:[#allocation2 + $0x102] sm:$0xff]
          %v847 = vld [vmem:[#allocation2 + $0x112] sm:$0xff]
          %s848 = scalar_lea.vmem [#allocation7], 8
          %v849 = vld [vmem:[%s848] sm:$0x7]
          %v851 = vsel %vm318, %v832, 0
          %v854 = vsel %vm318, %v833, 0
          %v857 = vsel %vm318, %v834, 0
          %v860 = vsel %vm318, %v835, 0
          %v863 = vsel %vm318, %v836, 0
          %v866 = vsel %vm318, %v837, 0
          %v869 = vsel %vm318, %v838, 0
          %v872 = vsel %vm318, %v839, 0
          %v875 = vsel %vm318, %v840, 0
          %v878 = vsel %vm318, %v841, 0
          %v881 = vsel %vm318, %v842, 0
          %v884 = vsel %vm318, %v843, 0
          %v887 = vsel %vm318, %v844, 0
          %v890 = vsel %vm318, %v845, 0
          %v893 = vsel %vm318, %v846, 0
          %v896 = vsel %vm318, %v847, 0
          %v899 = vsel %vm487, %v849, 0
          %901 = vmatprep.subr.mxu0 0.0
          %902 = vmatpush1.msra.mxu0 %v899
          %903 = vmatprep.subr.mxu0 0.0
          %904 = vmatpush1.msra.mxu0 0.0
          %905 = vmatprep.subr.mxu0 0.0
          %906 = vmatpush1.msra.mxu0 0.0
          %907 = vmatprep.subr.mxu0 0.0
          %908 = vmatpush1.msra.mxu0 0.0
          %909 = vmatprep.subr.mxu0 0.0
          %910 = vmatpush1.msra.mxu0 0.0
          %911 = vmatprep.subr.mxu0 0.0
          %912 = vmatpush1.msra.mxu0 0.0
          %913 = vmatprep.subr.mxu0 0.0
          %914 = vmatpush1.msra.mxu0 0.0
          %915 = vmatprep.subr.mxu0 0.0
          %916 = vmatpush1.msra.mxu0 0.0
          %917 = vmatprep.subr.mxu0 0.0
          %918 = vmatpush1.msra.mxu0 0.0
          %919 = vmatprep.subr.mxu0 0.0
          %920 = vmatpush1.msra.mxu0 0.0
          %921 = vmatprep.subr.mxu0 0.0
          %922 = vmatpush1.msra.mxu0 0.0
          %923 = vmatprep.subr.mxu0 0.0
          %924 = vmatpush1.msra.mxu0 0.0
          %925 = vmatprep.subr.mxu0 0.0
          %926 = vmatpush1.msra.mxu0 0.0
          %927 = vmatprep.subr.mxu0 0.0
          %928 = vmatpush1.msra.mxu0 0.0
          %929 = vmatprep.subr.mxu0 0.0
          %930 = vmatpush1.msra.mxu0 0.0
          %931 = vmatprep.subr.mxu0 0.0
          %932 = vmatpush1.msra.mxu0 0.0
          %933 = vmatprep.subr.mxu0 0.0
          %934 = vmatpush1.msra.mxu0 0.0
          %935 = vmatprep.subr.mxu0 0.0
          %936 = vmatpush1.msra.mxu0 0.0
          %937 = vmatprep.subr.mxu0 0.0
          %938 = vmatpush1.msra.mxu0 0.0
          %939 = vmatprep.subr.mxu0 0.0
          %940 = vmatpush1.msra.mxu0 0.0
          %941 = vmatprep.subr.mxu0 0.0
          %942 = vmatpush1.msra.mxu0 0.0
          %943 = vmatprep.subr.mxu0 0.0
          %944 = vmatpush1.msra.mxu0 0.0
          %945 = vmatprep.subr.mxu0 0.0
          %946 = vmatpush1.msra.mxu0 0.0
          %947 = vmatprep.subr.mxu0 0.0
          %948 = vmatpush1.msra.mxu0 0.0
          %949 = vmatprep.subr.mxu0 0.0
          %950 = vmatpush1.msra.mxu0 0.0
          %951 = vmatprep.subr.mxu0 0.0
          %952 = vmatpush1.msra.mxu0 0.0
          %953 = vmatprep.subr.mxu0 0.0
          %954 = vmatpush1.msra.mxu0 0.0
          %955 = vmatprep.subr.mxu0 0.0
          %956 = vmatpush1.msra.mxu0 0.0
          %957 = vmatprep.subr.mxu0 0.0
          %958 = vmatpush1.msra.mxu0 0.0
          %959 = vmatprep.subr.mxu0 0.0
          %960 = vmatpush1.msra.mxu0 0.0
          %961 = vmatprep.subr.mxu0 0.0
          %962 = vmatpush1.msra.mxu0 0.0
          %963 = vmatprep.subr.mxu0 0.0
          %964 = vmatpush1.msra.mxu0 0.0
          %965 = vmatprep.mubr.f32.mxu0 0.0
          %966 = vmatmul.mubr.f32.gmra.mrb[0].mxu0 %v851
          %v967 = vpop.f32.mrb[0].mxu0
          %v968 = vadd.f32 0.0, %v967
          %v969 = vpop.f32.mrb[0].mxu0
          %970 = vmatprep.mubr.f32.mxu0 0.0
          %971 = vmatmul.mubr.f32.gmra.mrb[0].mxu0 %v854
          %v972 = vpop.f32.mrb[0].mxu0
          %v973 = vadd.f32 0.0, %v972
          %v974 = vpop.f32.mrb[0].mxu0
          %975 = vmatprep.mubr.f32.mxu0 0.0
          %976 = vmatmul.mubr.f32.gmra.mrb[0].mxu0 %v857
          %v977 = vpop.f32.mrb[0].mxu0
          %v978 = vadd.f32 0.0, %v977
          %v979 = vpop.f32.mrb[0].mxu0
          %980 = vmatprep.mubr.f32.mxu0 0.0
          %981 = vmatmul.mubr.f32.gmra.mrb[0].mxu0 %v860
          %v982 = vpop.f32.mrb[0].mxu0
          %v983 = vadd.f32 0.0, %v982
          %v984 = vpop.f32.mrb[0].mxu0
          %985 = vmatprep.mubr.f32.mxu0 0.0
          %986 = vmatmul.mubr.f32.gmra.mrb[0].mxu0 %v863
          %v987 = vpop.f32.mrb[0].mxu0
          %v988 = vadd.f32 0.0, %v987
          %v989 = vpop.f32.mrb[0].mxu0
          %990 = vmatprep.mubr.f32.mxu0 0.0
          %991 = vmatmul.mubr.f32.gmra.mrb[0].mxu0 %v866
          %v992 = vpop.f32.mrb[0].mxu0
          %v993 = vadd.f32 0.0, %v992
          %v994 = vpop.f32.mrb[0].mxu0
          %995 = vmatprep.mubr.f32.mxu0 0.0
          %996 = vmatmul.mubr.f32.gmra.mrb[0].mxu0 %v869
          %v997 = vpop.f32.mrb[0].mxu0
          %v998 = vadd.f32 0.0, %v997
          %v999 = vpop.f32.mrb[0].mxu0
          %1000 = vmatprep.mubr.f32.mxu0 0.0
          %1001 = vmatmul.mubr.f32.gmra.mrb[0].mxu0 %v872
          %v1002 = vpop.f32.mrb[0].mxu0
          %v1003 = vadd.f32 0.0, %v1002
          %v1004 = vpop.f32.mrb[0].mxu0
          %1005 = vmatprep.mubr.f32.mxu0 0.0
          %1006 = vmatmul.mubr.f32.gmra.mrb[0].mxu0 %v875
          %v1007 = vpop.f32.mrb[0].mxu0
          %v1008 = vadd.f32 0.0, %v1007
          %v1009 = vpop.f32.mrb[0].mxu0
          %1010 = vmatprep.mubr.f32.mxu0 0.0
          %1011 = vmatmul.mubr.f32.gmra.mrb[0].mxu0 %v878
          %v1012 = vpop.f32.mrb[0].mxu0
          %v1013 = vadd.f32 0.0, %v1012
          %v1014 = vpop.f32.mrb[0].mxu0
          %1015 = vmatprep.mubr.f32.mxu0 0.0
          %1016 = vmatmul.mubr.f32.gmra.mrb[0].mxu0 %v881
          %v1017 = vpop.f32.mrb[0].mxu0
          %v1018 = vadd.f32 0.0, %v1017
          %v1019 = vpop.f32.mrb[0].mxu0
          %1020 = vmatprep.mubr.f32.mxu0 0.0
          %1021 = vmatmul.mubr.f32.gmra.mrb[0].mxu0 %v884
          %v1022 = vpop.f32.mrb[0].mxu0
          %v1023 = vadd.f32 0.0, %v1022
          %v1024 = vpop.f32.mrb[0].mxu0
          %1025 = vmatprep.mubr.f32.mxu0 0.0
          %1026 = vmatmul.mubr.f32.gmra.mrb[0].mxu0 %v887
          %v1027 = vpop.f32.mrb[0].mxu0
          %v1028 = vadd.f32 0.0, %v1027
          %v1029 = vpop.f32.mrb[0].mxu0
          %1030 = vmatprep.mubr.f32.mxu0 0.0
          %1031 = vmatmul.mubr.f32.gmra.mrb[0].mxu0 %v890
          %v1032 = vpop.f32.mrb[0].mxu0
          %v1033 = vadd.f32 0.0, %v1032
          %v1034 = vpop.f32.mrb[0].mxu0
          %1035 = vmatprep.mubr.f32.mxu0 0.0
          %1036 = vmatmul.mubr.f32.gmra.mrb[0].mxu0 %v893
          %v1037 = vpop.f32.mrb[0].mxu0
          %v1038 = vadd.f32 0.0, %v1037
          %v1039 = vpop.f32.mrb[0].mxu0
          %1040 = vmatprep.mubr.f32.mxu0 0.0
          %1041 = vmatmul.mubr.f32.gmra.mrb[0].mxu0 %v896
          %v1042 = vpop.f32.mrb[0].mxu0
          %v1043 = vadd.f32 0.0, %v1042
          %v1044 = vpop.f32.mrb[0].mxu0
          %1045 = vdwg.mxu0
          %v1046 = vadd.f32 %v754, %v968
          %v1047 = vadd.f32 %v759, %v973
          %v1048 = vadd.f32 %v764, %v978
          %v1049 = vadd.f32 %v769, %v983
          %v1050 = vadd.f32 %v774, %v988
          %v1051 = vadd.f32 %v779, %v993
          %v1052 = vadd.f32 %v784, %v998
          %v1053 = vadd.f32 %v789, %v1003
          %v1054 = vadd.f32 %v794, %v1008
          %v1055 = vadd.f32 %v799, %v1013
          %v1056 = vadd.f32 %v804, %v1018
          %v1057 = vadd.f32 %v809, %v1023
          %v1058 = vadd.f32 %v814, %v1028
          %v1059 = vadd.f32 %v819, %v1033
          %v1060 = vadd.f32 %v824, %v1038
          %v1061 = vadd.f32 %v829, %v1043
          %v1062 = vld [vmem:[%s386] sm:$0xff]
          %v1063 = vld [vmem:[%s386 + $0x10] sm:$0xff]
          %v1064 = vld [vmem:[%s386 + $0x20] sm:$0xff]
          %v1065 = vld [vmem:[%s386 + $0x30] sm:$0xff]
          %v1066 = vld [vmem:[%s386 + $0x40] sm:$0xff]
          %v1067 = vld [vmem:[%s386 + $0x50] sm:$0xff]
          %v1068 = vld [vmem:[%s386 + $0x60] sm:$0xff]
          %v1069 = vld [vmem:[%s386 + $0x70] sm:$0xff]
          %v1070 = vld [vmem:[%s386 + $0xa0] sm:$0xff]
          %v1071 = vld [vmem:[%s386 + $0xb0] sm:$0xff]
          %v1072 = vld [vmem:[%s386 + $0xc0] sm:$0xff]
          %v1073 = vld [vmem:[%s386 + $0xd0] sm:$0xff]
          %v1074 = vld [vmem:[%s386 + $0xe0] sm:$0xff]
          %v1075 = vld [vmem:[%s386 + $0xf0] sm:$0xff]
          %v1076 = vld [vmem:[%s386 + $0x100] sm:$0xff]
          %v1077 = vld [vmem:[%s386 + $0x110] sm:$0xff]
          %s1078 = scalar_lea.vmem [#allocation7], 12
          %v1079 = vld [vmem:[%s1078] sm:$0x7]
          %v1081 = vsel %vm318, %v1062, 0
          %v1084 = vsel %vm318, %v1063, 0
          %v1087 = vsel %vm318, %v1064, 0
          %v1090 = vsel %vm318, %v1065, 0
          %v1093 = vsel %vm318, %v1066, 0
          %v1096 = vsel %vm318, %v1067, 0
          %v1099 = vsel %vm318, %v1068, 0
          %v1102 = vsel %vm318, %v1069, 0
          %v1105 = vsel %vm318, %v1070, 0
          %v1108 = vsel %vm318, %v1071, 0
          %v1111 = vsel %vm318, %v1072, 0
          %v1114 = vsel %vm318, %v1073, 0
          %v1117 = vsel %vm318, %v1074, 0
          %v1120 = vsel %vm318, %v1075, 0
          %v1123 = vsel %vm318, %v1076, 0
          %v1126 = vsel %vm318, %v1077, 0
          %v1129 = vsel %vm487, %v1079, 0
          %1131 = vmatprep.subr.mxu0 0.0
          %1132 = vmatpush1.msra.mxu0 %v1129
          %1133 = vmatprep.subr.mxu0 0.0
          %1134 = vmatpush1.msra.mxu0 0.0
          %1135 = vmatprep.subr.mxu0 0.0
          %1136 = vmatpush1.msra.mxu0 0.0
          %1137 = vmatprep.subr.mxu0 0.0
          %1138 = vmatpush1.msra.mxu0 0.0
          %1139 = vmatprep.subr.mxu0 0.0
          %1140 = vmatpush1.msra.mxu0 0.0
          %1141 = vmatprep.subr.mxu0 0.0
          %1142 = vmatpush1.msra.mxu0 0.0
          %1143 = vmatprep.subr.mxu0 0.0
          %1144 = vmatpush1.msra.mxu0 0.0
          %1145 = vmatprep.subr.mxu0 0.0
          %1146 = vmatpush1.msra.mxu0 0.0
          %1147 = vmatprep.subr.mxu0 0.0
          %1148 = vmatpush1.msra.mxu0 0.0
          %1149 = vmatprep.subr.mxu0 0.0
          %1150 = vmatpush1.msra.mxu0 0.0
          %1151 = vmatprep.subr.mxu0 0.0
          %1152 = vmatpush1.msra.mxu0 0.0
          %1153 = vmatprep.subr.mxu0 0.0
          %1154 = vmatpush1.msra.mxu0 0.0
          %1155 = vmatprep.subr.mxu0 0.0
          %1156 = vmatpush1.msra.mxu0 0.0
          %1157 = vmatprep.subr.mxu0 0.0
          %1158 = vmatpush1.msra.mxu0 0.0
          %1159 = vmatprep.subr.mxu0 0.0
          %1160 = vmatpush1.msra.mxu0 0.0
          %1161 = vmatprep.subr.mxu0 0.0
          %1162 = vmatpush1.msra.mxu0 0.0
          %1163 = vmatprep.subr.mxu0 0.0
          %1164 = vmatpush1.msra.mxu0 0.0
          %1165 = vmatprep.subr.mxu0 0.0
          %1166 = vmatpush1.msra.mxu0 0.0
          %1167 = vmatprep.subr.mxu0 0.0
          %1168 = vmatpush1.msra.mxu0 0.0
          %1169 = vmatprep.subr.mxu0 0.0
          %1170 = vmatpush1.msra.mxu0 0.0
          %1171 = vmatprep.subr.mxu0 0.0
          %1172 = vmatpush1.msra.mxu0 0.0
          %1173 = vmatprep.subr.mxu0 0.0
          %1174 = vmatpush1.msra.mxu0 0.0
          %1175 = vmatprep.subr.mxu0 0.0
          %1176 = vmatpush1.msra.mxu0 0.0
          %1177 = vmatprep.subr.mxu0 0.0
          %1178 = vmatpush1.msra.mxu0 0.0
          %1179 = vmatprep.subr.mxu0 0.0
          %1180 = vmatpush1.msra.mxu0 0.0
          %1181 = vmatprep.subr.mxu0 0.0
          %1182 = vmatpush1.msra.mxu0 0.0
          %1183 = vmatprep.subr.mxu0 0.0
          %1184 = vmatpush1.msra.mxu0 0.0
          %1185 = vmatprep.subr.mxu0 0.0
          %1186 = vmatpush1.msra.mxu0 0.0
          %1187 = vmatprep.subr.mxu0 0.0
          %1188 = vmatpush1.msra.mxu0 0.0
          %1189 = vmatprep.subr.mxu0 0.0
          %1190 = vmatpush1.msra.mxu0 0.0
          %1191 = vmatprep.subr.mxu0 0.0
          %1192 = vmatpush1.msra.mxu0 0.0
          %1193 = vmatprep.subr.mxu0 0.0
          %1194 = vmatpush1.msra.mxu0 0.0
          %1195 = vmatprep.mubr.f32.mxu0 0.0
          %1196 = vmatmul.mubr.f32.gmra.mrb[0].mxu0 %v1081
          %v1197 = vpop.f32.mrb[0].mxu0
          %v1198 = vadd.f32 0.0, %v1197
          %v1199 = vpop.f32.mrb[0].mxu0
          %1200 = vmatprep.mubr.f32.mxu0 0.0
          %1201 = vmatmul.mubr.f32.gmra.mrb[0].mxu0 %v1084
          %v1202 = vpop.f32.mrb[0].mxu0
          %v1203 = vadd.f32 0.0, %v1202
          %v1204 = vpop.f32.mrb[0].mxu0
          %1205 = vmatprep.mubr.f32.mxu0 0.0
          %1206 = vmatmul.mubr.f32.gmra.mrb[0].mxu0 %v1087
          %v1207 = vpop.f32.mrb[0].mxu0
          %v1208 = vadd.f32 0.0, %v1207
          %v1209 = vpop.f32.mrb[0].mxu0
          %1210 = vmatprep.mubr.f32.mxu0 0.0
          %1211 = vmatmul.mubr.f32.gmra.mrb[0].mxu0 %v1090
          %v1212 = vpop.f32.mrb[0].mxu0
          %v1213 = vadd.f32 0.0, %v1212
          %v1214 = vpop.f32.mrb[0].mxu0
          %1215 = vmatprep.mubr.f32.mxu0 0.0
          %1216 = vmatmul.mubr.f32.gmra.mrb[0].mxu0 %v1093
          %v1217 = vpop.f32.mrb[0].mxu0
          %v1218 = vadd.f32 0.0, %v1217
          %v1219 = vpop.f32.mrb[0].mxu0
          %1220 = vmatprep.mubr.f32.mxu0 0.0
          %1221 = vmatmul.mubr.f32.gmra.mrb[0].mxu0 %v1096
          %v1222 = vpop.f32.mrb[0].mxu0
          %v1223 = vadd.f32 0.0, %v1222
          %v1224 = vpop.f32.mrb[0].mxu0
          %1225 = vmatprep.mubr.f32.mxu0 0.0
          %1226 = vmatmul.mubr.f32.gmra.mrb[0].mxu0 %v1099
          %v1227 = vpop.f32.mrb[0].mxu0
          %v1228 = vadd.f32 0.0, %v1227
          %v1229 = vpop.f32.mrb[0].mxu0
          %1230 = vmatprep.mubr.f32.mxu0 0.0
          %1231 = vmatmul.mubr.f32.gmra.mrb[0].mxu0 %v1102
          %v1232 = vpop.f32.mrb[0].mxu0
          %v1233 = vadd.f32 0.0, %v1232
          %v1234 = vpop.f32.mrb[0].mxu0
          %1235 = vmatprep.mubr.f32.mxu0 0.0
          %1236 = vmatmul.mubr.f32.gmra.mrb[0].mxu0 %v1105
          %v1237 = vpop.f32.mrb[0].mxu0
          %v1238 = vadd.f32 0.0, %v1237
          %v1239 = vpop.f32.mrb[0].mxu0
          %1240 = vmatprep.mubr.f32.mxu0 0.0
          %1241 = vmatmul.mubr.f32.gmra.mrb[0].mxu0 %v1108
          %v1242 = vpop.f32.mrb[0].mxu0
          %v1243 = vadd.f32 0.0, %v1242
          %v1244 = vpop.f32.mrb[0].mxu0
          %1245 = vmatprep.mubr.f32.mxu0 0.0
          %1246 = vmatmul.mubr.f32.gmra.mrb[0].mxu0 %v1111
          %v1247 = vpop.f32.mrb[0].mxu0
          %v1248 = vadd.f32 0.0, %v1247
          %v1249 = vpop.f32.mrb[0].mxu0
          %1250 = vmatprep.mubr.f32.mxu0 0.0
          %1251 = vmatmul.mubr.f32.gmra.mrb[0].mxu0 %v1114
          %v1252 = vpop.f32.mrb[0].mxu0
          %v1253 = vadd.f32 0.0, %v1252
          %v1254 = vpop.f32.mrb[0].mxu0
          %1255 = vmatprep.mubr.f32.mxu0 0.0
          %1256 = vmatmul.mubr.f32.gmra.mrb[0].mxu0 %v1117
          %v1257 = vpop.f32.mrb[0].mxu0
          %v1258 = vadd.f32 0.0, %v1257
          %v1259 = vpop.f32.mrb[0].mxu0
          %1260 = vmatprep.mubr.f32.mxu0 0.0
          %1261 = vmatmul.mubr.f32.gmra.mrb[0].mxu0 %v1120
          %v1262 = vpop.f32.mrb[0].mxu0
          %v1263 = vadd.f32 0.0, %v1262
          %v1264 = vpop.f32.mrb[0].mxu0
          %1265 = vmatprep.mubr.f32.mxu0 0.0
          %1266 = vmatmul.mubr.f32.gmra.mrb[0].mxu0 %v1123
          %v1267 = vpop.f32.mrb[0].mxu0
          %v1268 = vadd.f32 0.0, %v1267
          %v1269 = vpop.f32.mrb[0].mxu0
          %1270 = vmatprep.mubr.f32.mxu0 0.0
          %1271 = vmatmul.mubr.f32.gmra.mrb[0].mxu0 %v1126
          %v1272 = vpop.f32.mrb[0].mxu0
          %v1273 = vadd.f32 0.0, %v1272
          %v1274 = vpop.f32.mrb[0].mxu0
          %1275 = vdwg.mxu0
          %v1276 = vadd.f32 %v1046, %v1198
          %v1277 = vadd.f32 %v1047, %v1203
          %v1278 = vadd.f32 %v1048, %v1208
          %v1279 = vadd.f32 %v1049, %v1213
          %v1280 = vadd.f32 %v1050, %v1218
          %v1281 = vadd.f32 %v1051, %v1223
          %v1282 = vadd.f32 %v1052, %v1228
          %v1283 = vadd.f32 %v1053, %v1233
          %v1284 = vadd.f32 %v1054, %v1238
          %v1285 = vadd.f32 %v1055, %v1243
          %v1286 = vadd.f32 %v1056, %v1248
          %v1287 = vadd.f32 %v1057, %v1253
          %v1288 = vadd.f32 %v1058, %v1258
          %v1289 = vadd.f32 %v1059, %v1263
          %v1290 = vadd.f32 %v1060, %v1268
          %v1291 = vadd.f32 %v1061, %v1273
          %v1292 = vld [vmem:[%s386 + $0x1] sm:$0xff]
          %v1293 = vld [vmem:[%s386 + $0x11] sm:$0xff]
          %v1294 = vld [vmem:[%s386 + $0x21] sm:$0xff]
          %v1295 = vld [vmem:[%s386 + $0x31] sm:$0xff]
          %v1296 = vld [vmem:[%s386 + $0x41] sm:$0xff]
          %v1297 = vld [vmem:[%s386 + $0x51] sm:$0xff]
          %v1298 = vld [vmem:[%s386 + $0x61] sm:$0xff]
          %v1299 = vld [vmem:[%s386 + $0x71] sm:$0xff]
          %v1300 = vld [vmem:[%s386 + $0xa1] sm:$0xff]
          %v1301 = vld [vmem:[%s386 + $0xb1] sm:$0xff]
          %v1302 = vld [vmem:[%s386 + $0xc1] sm:$0xff]
          %v1303 = vld [vmem:[%s386 + $0xd1] sm:$0xff]
          %v1304 = vld [vmem:[%s386 + $0xe1] sm:$0xff]
          %v1305 = vld [vmem:[%s386 + $0xf1] sm:$0xff]
          %v1306 = vld [vmem:[%s386 + $0x101] sm:$0xff]
          %v1307 = vld [vmem:[%s386 + $0x111] sm:$0xff]
          %s1308 = scalar_lea.vmem [#allocation7], 16
          %v1309 = vld [vmem:[%s1308] sm:$0x7]
          %v1311 = vsel %vm318, %v1292, 0
          %v1314 = vsel %vm318, %v1293, 0
          %v1317 = vsel %vm318, %v1294, 0
          %v1320 = vsel %vm318, %v1295, 0
          %v1323 = vsel %vm318, %v1296, 0
          %v1326 = vsel %vm318, %v1297, 0
          %v1329 = vsel %vm318, %v1298, 0
          %v1332 = vsel %vm318, %v1299, 0
          %v1335 = vsel %vm318, %v1300, 0
          %v1338 = vsel %vm318, %v1301, 0
          %v1341 = vsel %vm318, %v1302, 0
          %v1344 = vsel %vm318, %v1303, 0
          %v1347 = vsel %vm318, %v1304, 0
          %v1350 = vsel %vm318, %v1305, 0
          %v1353 = vsel %vm318, %v1306, 0
          %v1356 = vsel %vm318, %v1307, 0
          %v1359 = vsel %vm487, %v1309, 0
          %1361 = vmatprep.subr.mxu0 0.0
          %1362 = vmatpush1.msra.mxu0 %v1359
          %1363 = vmatprep.subr.mxu0 0.0
          %1364 = vmatpush1.msra.mxu0 0.0
          %1365 = vmatprep.subr.mxu0 0.0
          %1366 = vmatpush1.msra.mxu0 0.0
          %1367 = vmatprep.subr.mxu0 0.0
          %1368 = vmatpush1.msra.mxu0 0.0
          %1369 = vmatprep.subr.mxu0 0.0
          %1370 = vmatpush1.msra.mxu0 0.0
          %1371 = vmatprep.subr.mxu0 0.0
          %1372 = vmatpush1.msra.mxu0 0.0
          %1373 = vmatprep.subr.mxu0 0.0
          %1374 = vmatpush1.msra.mxu0 0.0
          %1375 = vmatprep.subr.mxu0 0.0
          %1376 = vmatpush1.msra.mxu0 0.0
          %1377 = vmatprep.subr.mxu0 0.0
          %1378 = vmatpush1.msra.mxu0 0.0
          %1379 = vmatprep.subr.mxu0 0.0
          %1380 = vmatpush1.msra.mxu0 0.0
          %1381 = vmatprep.subr.mxu0 0.0
          %1382 = vmatpush1.msra.mxu0 0.0
          %1383 = vmatprep.subr.mxu0 0.0
          %1384 = vmatpush1.msra.mxu0 0.0
          %1385 = vmatprep.subr.mxu0 0.0
          %1386 = vmatpush1.msra.mxu0 0.0
          %1387 = vmatprep.subr.mxu0 0.0
          %1388 = vmatpush1.msra.mxu0 0.0
          %1389 = vmatprep.subr.mxu0 0.0
          %1390 = vmatpush1.msra.mxu0 0.0
          %1391 = vmatprep.subr.mxu0 0.0
          %1392 = vmatpush1.msra.mxu0 0.0
          %1393 = vmatprep.subr.mxu0 0.0
          %1394 = vmatpush1.msra.mxu0 0.0
          %1395 = vmatprep.subr.mxu0 0.0
          %1396 = vmatpush1.msra.mxu0 0.0
          %1397 = vmatprep.subr.mxu0 0.0
          %1398 = vmatpush1.msra.mxu0 0.0
          %1399 = vmatprep.subr.mxu0 0.0
          %1400 = vmatpush1.msra.mxu0 0.0
          %1401 = vmatprep.subr.mxu0 0.0
          %1402 = vmatpush1.msra.mxu0 0.0
          %1403 = vmatprep.subr.mxu0 0.0
          %1404 = vmatpush1.msra.mxu0 0.0
          %1405 = vmatprep.subr.mxu0 0.0
          %1406 = vmatpush1.msra.mxu0 0.0
          %1407 = vmatprep.subr.mxu0 0.0
          %1408 = vmatpush1.msra.mxu0 0.0
          %1409 = vmatprep.subr.mxu0 0.0
          %1410 = vmatpush1.msra.mxu0 0.0
          %1411 = vmatprep.subr.mxu0 0.0
          %1412 = vmatpush1.msra.mxu0 0.0
          %1413 = vmatprep.subr.mxu0 0.0
          %1414 = vmatpush1.msra.mxu0 0.0
          %1415 = vmatprep.subr.mxu0 0.0
          %1416 = vmatpush1.msra.mxu0 0.0
          %1417 = vmatprep.subr.mxu0 0.0
          %1418 = vmatpush1.msra.mxu0 0.0
          %1419 = vmatprep.subr.mxu0 0.0
          %1420 = vmatpush1.msra.mxu0 0.0
          %1421 = vmatprep.subr.mxu0 0.0
          %1422 = vmatpush1.msra.mxu0 0.0
          %1423 = vmatprep.subr.mxu0 0.0
          %1424 = vmatpush1.msra.mxu0 0.0
          %1425 = vmatprep.mubr.f32.mxu0 0.0
          %1426 = vmatmul.mubr.f32.gmra.mrb[0].mxu0 %v1311
          %v1427 = vpop.f32.mrb[0].mxu0
          %v1428 = vadd.f32 0.0, %v1427
          %v1429 = vpop.f32.mrb[0].mxu0
          %1430 = vmatprep.mubr.f32.mxu0 0.0
          %1431 = vmatmul.mubr.f32.gmra.mrb[0].mxu0 %v1314
          %v1432 = vpop.f32.mrb[0].mxu0
          %v1433 = vadd.f32 0.0, %v1432
          %v1434 = vpop.f32.mrb[0].mxu0
          %1435 = vmatprep.mubr.f32.mxu0 0.0
          %1436 = vmatmul.mubr.f32.gmra.mrb[0].mxu0 %v1317
          %v1437 = vpop.f32.mrb[0].mxu0
          %v1438 = vadd.f32 0.0, %v1437
          %v1439 = vpop.f32.mrb[0].mxu0
          %1440 = vmatprep.mubr.f32.mxu0 0.0
          %1441 = vmatmul.mubr.f32.gmra.mrb[0].mxu0 %v1320
          %v1442 = vpop.f32.mrb[0].mxu0
          %v1443 = vadd.f32 0.0, %v1442
          %v1444 = vpop.f32.mrb[0].mxu0
          %1445 = vmatprep.mubr.f32.mxu0 0.0
          %1446 = vmatmul.mubr.f32.gmra.mrb[0].mxu0 %v1323
          %v1447 = vpop.f32.mrb[0].mxu0
          %v1448 = vadd.f32 0.0, %v1447
          %v1449 = vpop.f32.mrb[0].mxu0
          %1450 = vmatprep.mubr.f32.mxu0 0.0
          %1451 = vmatmul.mubr.f32.gmra.mrb[0].mxu0 %v1326
          %v1452 = vpop.f32.mrb[0].mxu0
          %v1453 = vadd.f32 0.0, %v1452
          %v1454 = vpop.f32.mrb[0].mxu0
          %1455 = vmatprep.mubr.f32.mxu0 0.0
          %1456 = vmatmul.mubr.f32.gmra.mrb[0].mxu0 %v1329
          %v1457 = vpop.f32.mrb[0].mxu0
          %v1458 = vadd.f32 0.0, %v1457
          %v1459 = vpop.f32.mrb[0].mxu0
          %1460 = vmatprep.mubr.f32.mxu0 0.0
          %1461 = vmatmul.mubr.f32.gmra.mrb[0].mxu0 %v1332
          %v1462 = vpop.f32.mrb[0].mxu0
          %v1463 = vadd.f32 0.0, %v1462
          %v1464 = vpop.f32.mrb[0].mxu0
          %1465 = vmatprep.mubr.f32.mxu0 0.0
          %1466 = vmatmul.mubr.f32.gmra.mrb[0].mxu0 %v1335
          %v1467 = vpop.f32.mrb[0].mxu0
          %v1468 = vadd.f32 0.0, %v1467
          %v1469 = vpop.f32.mrb[0].mxu0
          %1470 = vmatprep.mubr.f32.mxu0 0.0
          %1471 = vmatmul.mubr.f32.gmra.mrb[0].mxu0 %v1338
          %v1472 = vpop.f32.mrb[0].mxu0
          %v1473 = vadd.f32 0.0, %v1472
          %v1474 = vpop.f32.mrb[0].mxu0
          %1475 = vmatprep.mubr.f32.mxu0 0.0
          %1476 = vmatmul.mubr.f32.gmra.mrb[0].mxu0 %v1341
          %v1477 = vpop.f32.mrb[0].mxu0
          %v1478 = vadd.f32 0.0, %v1477
          %v1479 = vpop.f32.mrb[0].mxu0
          %1480 = vmatprep.mubr.f32.mxu0 0.0
          %1481 = vmatmul.mubr.f32.gmra.mrb[0].mxu0 %v1344
          %v1482 = vpop.f32.mrb[0].mxu0
          %v1483 = vadd.f32 0.0, %v1482
          %v1484 = vpop.f32.mrb[0].mxu0
          %1485 = vmatprep.mubr.f32.mxu0 0.0
          %1486 = vmatmul.mubr.f32.gmra.mrb[0].mxu0 %v1347
          %v1487 = vpop.f32.mrb[0].mxu0
          %v1488 = vadd.f32 0.0, %v1487
          %v1489 = vpop.f32.mrb[0].mxu0
          %1490 = vmatprep.mubr.f32.mxu0 0.0
          %1491 = vmatmul.mubr.f32.gmra.mrb[0].mxu0 %v1350
          %v1492 = vpop.f32.mrb[0].mxu0
          %v1493 = vadd.f32 0.0, %v1492
          %v1494 = vpop.f32.mrb[0].mxu0
          %1495 = vmatprep.mubr.f32.mxu0 0.0
          %1496 = vmatmul.mubr.f32.gmra.mrb[0].mxu0 %v1353
          %v1497 = vpop.f32.mrb[0].mxu0
          %v1498 = vadd.f32 0.0, %v1497
          %v1499 = vpop.f32.mrb[0].mxu0
          %1500 = vmatprep.mubr.f32.mxu0 0.0
          %1501 = vmatmul.mubr.f32.gmra.mrb[0].mxu0 %v1356
          %v1502 = vpop.f32.mrb[0].mxu0
          %v1503 = vadd.f32 0.0, %v1502
          %v1504 = vpop.f32.mrb[0].mxu0
          %1505 = vdwg.mxu0
          %v1506 = vadd.f32 %v1276, %v1428
          %v1507 = vadd.f32 %v1277, %v1433
          %v1508 = vadd.f32 %v1278, %v1438
          %v1509 = vadd.f32 %v1279, %v1443
          %v1510 = vadd.f32 %v1280, %v1448
          %v1511 = vadd.f32 %v1281, %v1453
          %v1512 = vadd.f32 %v1282, %v1458
          %v1513 = vadd.f32 %v1283, %v1463
          %v1514 = vadd.f32 %v1284, %v1468
          %v1515 = vadd.f32 %v1285, %v1473
          %v1516 = vadd.f32 %v1286, %v1478
          %v1517 = vadd.f32 %v1287, %v1483
          %v1518 = vadd.f32 %v1288, %v1488
          %v1519 = vadd.f32 %v1289, %v1493
          %v1520 = vadd.f32 %v1290, %v1498
          %v1521 = vadd.f32 %v1291, %v1503
          %v1522 = vld [vmem:[%s386 + $0x2] sm:$0xff]
          %v1523 = vld [vmem:[%s386 + $0x12] sm:$0xff]
          %v1524 = vld [vmem:[%s386 + $0x22] sm:$0xff]
          %v1525 = vld [vmem:[%s386 + $0x32] sm:$0xff]
          %v1526 = vld [vmem:[%s386 + $0x42] sm:$0xff]
          %v1527 = vld [vmem:[%s386 + $0x52] sm:$0xff]
          %v1528 = vld [vmem:[%s386 + $0x62] sm:$0xff]
          %v1529 = vld [vmem:[%s386 + $0x72] sm:$0xff]
          %v1530 = vld [vmem:[%s386 + $0xa2] sm:$0xff]
          %v1531 = vld [vmem:[%s386 + $0xb2] sm:$0xff]
          %v1532 = vld [vmem:[%s386 + $0xc2] sm:$0xff]
          %v1533 = vld [vmem:[%s386 + $0xd2] sm:$0xff]
          %v1534 = vld [vmem:[%s386 + $0xe2] sm:$0xff]
          %v1535 = vld [vmem:[%s386 + $0xf2] sm:$0xff]
          %v1536 = vld [vmem:[%s386 + $0x102] sm:$0xff]
          %v1537 = vld [vmem:[%s386 + $0x112] sm:$0xff]
          %s1538 = scalar_lea.vmem [#allocation7], 20
          %v1539 = vld [vmem:[%s1538] sm:$0x7]
          %v1541 = vsel %vm318, %v1522, 0
          %v1544 = vsel %vm318, %v1523, 0
          %v1547 = vsel %vm318, %v1524, 0
          %v1550 = vsel %vm318, %v1525, 0
          %v1553 = vsel %vm318, %v1526, 0
          %v1556 = vsel %vm318, %v1527, 0
          %v1559 = vsel %vm318, %v1528, 0
          %v1562 = vsel %vm318, %v1529, 0
          %v1565 = vsel %vm318, %v1530, 0
          %v1568 = vsel %vm318, %v1531, 0
          %v1571 = vsel %vm318, %v1532, 0
          %v1574 = vsel %vm318, %v1533, 0
          %v1577 = vsel %vm318, %v1534, 0
          %v1580 = vsel %vm318, %v1535, 0
          %v1583 = vsel %vm318, %v1536, 0
          %v1586 = vsel %vm318, %v1537, 0
          %v1589 = vsel %vm487, %v1539, 0
          %1591 = vmatprep.subr.mxu0 0.0
          %1592 = vmatpush1.msra.mxu0 %v1589
          %1593 = vmatprep.subr.mxu0 0.0
          %1594 = vmatpush1.msra.mxu0 0.0
          %1595 = vmatprep.subr.mxu0 0.0
          %1596 = vmatpush1.msra.mxu0 0.0
          %1597 = vmatprep.subr.mxu0 0.0
          %1598 = vmatpush1.msra.mxu0 0.0
          %1599 = vmatprep.subr.mxu0 0.0
          %1600 = vmatpush1.msra.mxu0 0.0
          %1601 = vmatprep.subr.mxu0 0.0
          %1602 = vmatpush1.msra.mxu0 0.0
          %1603 = vmatprep.subr.mxu0 0.0
          %1604 = vmatpush1.msra.mxu0 0.0
          %1605 = vmatprep.subr.mxu0 0.0
          %1606 = vmatpush1.msra.mxu0 0.0
          %1607 = vmatprep.subr.mxu0 0.0
          %1608 = vmatpush1.msra.mxu0 0.0
          %1609 = vmatprep.subr.mxu0 0.0
          %1610 = vmatpush1.msra.mxu0 0.0
          %1611 = vmatprep.subr.mxu0 0.0
          %1612 = vmatpush1.msra.mxu0 0.0
          %1613 = vmatprep.subr.mxu0 0.0
          %1614 = vmatpush1.msra.mxu0 0.0
          %1615 = vmatprep.subr.mxu0 0.0
          %1616 = vmatpush1.msra.mxu0 0.0
          %1617 = vmatprep.subr.mxu0 0.0
          %1618 = vmatpush1.msra.mxu0 0.0
          %1619 = vmatprep.subr.mxu0 0.0
          %1620 = vmatpush1.msra.mxu0 0.0
          %1621 = vmatprep.subr.mxu0 0.0
          %1622 = vmatpush1.msra.mxu0 0.0
          %1623 = vmatprep.subr.mxu0 0.0
          %1624 = vmatpush1.msra.mxu0 0.0
          %1625 = vmatprep.subr.mxu0 0.0
          %1626 = vmatpush1.msra.mxu0 0.0
          %1627 = vmatprep.subr.mxu0 0.0
          %1628 = vmatpush1.msra.mxu0 0.0
          %1629 = vmatprep.subr.mxu0 0.0
          %1630 = vmatpush1.msra.mxu0 0.0
          %1631 = vmatprep.subr.mxu0 0.0
          %1632 = vmatpush1.msra.mxu0 0.0
          %1633 = vmatprep.subr.mxu0 0.0
          %1634 = vmatpush1.msra.mxu0 0.0
          %1635 = vmatprep.subr.mxu0 0.0
          %1636 = vmatpush1.msra.mxu0 0.0
          %1637 = vmatprep.subr.mxu0 0.0
          %1638 = vmatpush1.msra.mxu0 0.0
          %1639 = vmatprep.subr.mxu0 0.0
          %1640 = vmatpush1.msra.mxu0 0.0
          %1641 = vmatprep.subr.mxu0 0.0
          %1642 = vmatpush1.msra.mxu0 0.0
          %1643 = vmatprep.subr.mxu0 0.0
          %1644 = vmatpush1.msra.mxu0 0.0
          %1645 = vmatprep.subr.mxu0 0.0
          %1646 = vmatpush1.msra.mxu0 0.0
          %1647 = vmatprep.subr.mxu0 0.0
          %1648 = vmatpush1.msra.mxu0 0.0
          %1649 = vmatprep.subr.mxu0 0.0
          %1650 = vmatpush1.msra.mxu0 0.0
          %1651 = vmatprep.subr.mxu0 0.0
          %1652 = vmatpush1.msra.mxu0 0.0
          %1653 = vmatprep.subr.mxu0 0.0
          %1654 = vmatpush1.msra.mxu0 0.0
          %1655 = vmatprep.mubr.f32.mxu0 0.0
          %1656 = vmatmul.mubr.f32.gmra.mrb[0].mxu0 %v1541
          %v1657 = vpop.f32.mrb[0].mxu0
          %v1658 = vadd.f32 0.0, %v1657
          %v1659 = vpop.f32.mrb[0].mxu0
          %1660 = vmatprep.mubr.f32.mxu0 0.0
          %1661 = vmatmul.mubr.f32.gmra.mrb[0].mxu0 %v1544
          %v1662 = vpop.f32.mrb[0].mxu0
          %v1663 = vadd.f32 0.0, %v1662
          %v1664 = vpop.f32.mrb[0].mxu0
          %1665 = vmatprep.mubr.f32.mxu0 0.0
          %1666 = vmatmul.mubr.f32.gmra.mrb[0].mxu0 %v1547
          %v1667 = vpop.f32.mrb[0].mxu0
          %v1668 = vadd.f32 0.0, %v1667
          %v1669 = vpop.f32.mrb[0].mxu0
          %1670 = vmatprep.mubr.f32.mxu0 0.0
          %1671 = vmatmul.mubr.f32.gmra.mrb[0].mxu0 %v1550
          %v1672 = vpop.f32.mrb[0].mxu0
          %v1673 = vadd.f32 0.0, %v1672
          %v1674 = vpop.f32.mrb[0].mxu0
          %1675 = vmatprep.mubr.f32.mxu0 0.0
          %1676 = vmatmul.mubr.f32.gmra.mrb[0].mxu0 %v1553
          %v1677 = vpop.f32.mrb[0].mxu0
          %v1678 = vadd.f32 0.0, %v1677
          %v1679 = vpop.f32.mrb[0].mxu0
          %1680 = vmatprep.mubr.f32.mxu0 0.0
          %1681 = vmatmul.mubr.f32.gmra.mrb[0].mxu0 %v1556
          %v1682 = vpop.f32.mrb[0].mxu0
          %v1683 = vadd.f32 0.0, %v1682
          %v1684 = vpop.f32.mrb[0].mxu0
          %1685 = vmatprep.mubr.f32.mxu0 0.0
          %1686 = vmatmul.mubr.f32.gmra.mrb[0].mxu0 %v1559
          %v1687 = vpop.f32.mrb[0].mxu0
          %v1688 = vadd.f32 0.0, %v1687
          %v1689 = vpop.f32.mrb[0].mxu0
          %1690 = vmatprep.mubr.f32.mxu0 0.0
          %1691 = vmatmul.mubr.f32.gmra.mrb[0].mxu0 %v1562
          %v1692 = vpop.f32.mrb[0].mxu0
          %v1693 = vadd.f32 0.0, %v1692
          %v1694 = vpop.f32.mrb[0].mxu0
          %1695 = vmatprep.mubr.f32.mxu0 0.0
          %1696 = vmatmul.mubr.f32.gmra.mrb[0].mxu0 %v1565
          %v1697 = vpop.f32.mrb[0].mxu0
          %v1698 = vadd.f32 0.0, %v1697
          %v1699 = vpop.f32.mrb[0].mxu0
          %1700 = vmatprep.mubr.f32.mxu0 0.0
          %1701 = vmatmul.mubr.f32.gmra.mrb[0].mxu0 %v1568
          %v1702 = vpop.f32.mrb[0].mxu0
          %v1703 = vadd.f32 0.0, %v1702
          %v1704 = vpop.f32.mrb[0].mxu0
          %1705 = vmatprep.mubr.f32.mxu0 0.0
          %1706 = vmatmul.mubr.f32.gmra.mrb[0].mxu0 %v1571
          %v1707 = vpop.f32.mrb[0].mxu0
          %v1708 = vadd.f32 0.0, %v1707
          %v1709 = vpop.f32.mrb[0].mxu0
          %1710 = vmatprep.mubr.f32.mxu0 0.0
          %1711 = vmatmul.mubr.f32.gmra.mrb[0].mxu0 %v1574
          %v1712 = vpop.f32.mrb[0].mxu0
          %v1713 = vadd.f32 0.0, %v1712
          %v1714 = vpop.f32.mrb[0].mxu0
          %1715 = vmatprep.mubr.f32.mxu0 0.0
          %1716 = vmatmul.mubr.f32.gmra.mrb[0].mxu0 %v1577
          %v1717 = vpop.f32.mrb[0].mxu0
          %v1718 = vadd.f32 0.0, %v1717
          %v1719 = vpop.f32.mrb[0].mxu0
          %1720 = vmatprep.mubr.f32.mxu0 0.0
          %1721 = vmatmul.mubr.f32.gmra.mrb[0].mxu0 %v1580
          %v1722 = vpop.f32.mrb[0].mxu0
          %v1723 = vadd.f32 0.0, %v1722
          %v1724 = vpop.f32.mrb[0].mxu0
          %1725 = vmatprep.mubr.f32.mxu0 0.0
          %1726 = vmatmul.mubr.f32.gmra.mrb[0].mxu0 %v1583
          %v1727 = vpop.f32.mrb[0].mxu0
          %v1728 = vadd.f32 0.0, %v1727
          %v1729 = vpop.f32.mrb[0].mxu0
          %1730 = vmatprep.mubr.f32.mxu0 0.0
          %1731 = vmatmul.mubr.f32.gmra.mrb[0].mxu0 %v1586
          %v1732 = vpop.f32.mrb[0].mxu0
          %v1733 = vadd.f32 0.0, %v1732
          %v1734 = vpop.f32.mrb[0].mxu0
          %1735 = vdwg.mxu0
          %v1736 = vadd.f32 %v1506, %v1658
          %v1737 = vadd.f32 %v1507, %v1663
          %v1738 = vadd.f32 %v1508, %v1668
          %v1739 = vadd.f32 %v1509, %v1673
          %v1740 = vadd.f32 %v1510, %v1678
          %v1741 = vadd.f32 %v1511, %v1683
          %v1742 = vadd.f32 %v1512, %v1688
          %v1743 = vadd.f32 %v1513, %v1693
          %v1744 = vadd.f32 %v1514, %v1698
          %v1745 = vadd.f32 %v1515, %v1703
          %v1746 = vadd.f32 %v1516, %v1708
          %v1747 = vadd.f32 %v1517, %v1713
          %v1748 = vadd.f32 %v1518, %v1718
          %v1749 = vadd.f32 %v1519, %v1723
          %v1750 = vadd.f32 %v1520, %v1728
          %v1751 = vadd.f32 %v1521, %v1733
          %s1752 = scalar_lea.vmem [#allocation2], 32
          %v1753 = vld [vmem:[%s1752] sm:$0xff]
          %v1754 = vld [vmem:[%s1752 + $0x10] sm:$0xff]
          %v1755 = vld [vmem:[%s1752 + $0x20] sm:$0xff]
          %v1756 = vld [vmem:[%s1752 + $0x30] sm:$0xff]
          %v1757 = vld [vmem:[%s1752 + $0x40] sm:$0xff]
          %v1758 = vld [vmem:[%s1752 + $0x50] sm:$0xff]
          %v1759 = vld [vmem:[%s1752 + $0x60] sm:$0xff]
          %v1760 = vld [vmem:[%s1752 + $0x70] sm:$0xff]
          %v1761 = vld [vmem:[%s1752 + $0xa0] sm:$0xff]
          %v1762 = vld [vmem:[%s1752 + $0xb0] sm:$0xff]
          %v1763 = vld [vmem:[%s1752 + $0xc0] sm:$0xff]
          %v1764 = vld [vmem:[%s1752 + $0xd0] sm:$0xff]
          %v1765 = vld [vmem:[%s1752 + $0xe0] sm:$0xff]
          %v1766 = vld [vmem:[%s1752 + $0xf0] sm:$0xff]
          %v1767 = vld [vmem:[%s1752 + $0x100] sm:$0xff]
          %v1768 = vld [vmem:[%s1752 + $0x110] sm:$0xff]
          %s1769 = scalar_lea.vmem [#allocation7], 24
          %v1770 = vld [vmem:[%s1769] sm:$0x7]
          %v1772 = vsel %vm318, %v1753, 0
          %v1775 = vsel %vm318, %v1754, 0
          %v1778 = vsel %vm318, %v1755, 0
          %v1781 = vsel %vm318, %v1756, 0
          %v1784 = vsel %vm318, %v1757, 0
          %v1787 = vsel %vm318, %v1758, 0
          %v1790 = vsel %vm318, %v1759, 0
          %v1793 = vsel %vm318, %v1760, 0
          %v1796 = vsel %vm318, %v1761, 0
          %v1799 = vsel %vm318, %v1762, 0
          %v1802 = vsel %vm318, %v1763, 0
          %v1805 = vsel %vm318, %v1764, 0
          %v1808 = vsel %vm318, %v1765, 0
          %v1811 = vsel %vm318, %v1766, 0
          %v1814 = vsel %vm318, %v1767, 0
          %v1817 = vsel %vm318, %v1768, 0
          %v1820 = vsel %vm487, %v1770, 0
          %1822 = vmatprep.subr.mxu0 0.0
          %1823 = vmatpush1.msra.mxu0 %v1820
          %1824 = vmatprep.subr.mxu0 0.0
          %1825 = vmatpush1.msra.mxu0 0.0
          %1826 = vmatprep.subr.mxu0 0.0
          %1827 = vmatpush1.msra.mxu0 0.0
          %1828 = vmatprep.subr.mxu0 0.0
          %1829 = vmatpush1.msra.mxu0 0.0
          %1830 = vmatprep.subr.mxu0 0.0
          %1831 = vmatpush1.msra.mxu0 0.0
          %1832 = vmatprep.subr.mxu0 0.0
          %1833 = vmatpush1.msra.mxu0 0.0
          %1834 = vmatprep.subr.mxu0 0.0
          %1835 = vmatpush1.msra.mxu0 0.0
          %1836 = vmatprep.subr.mxu0 0.0
          %1837 = vmatpush1.msra.mxu0 0.0
          %1838 = vmatprep.subr.mxu0 0.0
          %1839 = vmatpush1.msra.mxu0 0.0
          %1840 = vmatprep.subr.mxu0 0.0
          %1841 = vmatpush1.msra.mxu0 0.0
          %1842 = vmatprep.subr.mxu0 0.0
          %1843 = vmatpush1.msra.mxu0 0.0
          %1844 = vmatprep.subr.mxu0 0.0
          %1845 = vmatpush1.msra.mxu0 0.0
          %1846 = vmatprep.subr.mxu0 0.0
          %1847 = vmatpush1.msra.mxu0 0.0
          %1848 = vmatprep.subr.mxu0 0.0
          %1849 = vmatpush1.msra.mxu0 0.0
          %1850 = vmatprep.subr.mxu0 0.0
          %1851 = vmatpush1.msra.mxu0 0.0
          %1852 = vmatprep.subr.mxu0 0.0
          %1853 = vmatpush1.msra.mxu0 0.0
          %1854 = vmatprep.subr.mxu0 0.0
          %1855 = vmatpush1.msra.mxu0 0.0
          %1856 = vmatprep.subr.mxu0 0.0
          %1857 = vmatpush1.msra.mxu0 0.0
          %1858 = vmatprep.subr.mxu0 0.0
          %1859 = vmatpush1.msra.mxu0 0.0
          %1860 = vmatprep.subr.mxu0 0.0
          %1861 = vmatpush1.msra.mxu0 0.0
          %1862 = vmatprep.subr.mxu0 0.0
          %1863 = vmatpush1.msra.mxu0 0.0
          %1864 = vmatprep.subr.mxu0 0.0
          %1865 = vmatpush1.msra.mxu0 0.0
          %1866 = vmatprep.subr.mxu0 0.0
          %1867 = vmatpush1.msra.mxu0 0.0
          %1868 = vmatprep.subr.mxu0 0.0
          %1869 = vmatpush1.msra.mxu0 0.0
          %1870 = vmatprep.subr.mxu0 0.0
          %1871 = vmatpush1.msra.mxu0 0.0
          %1872 = vmatprep.subr.mxu0 0.0
          %1873 = vmatpush1.msra.mxu0 0.0
          %1874 = vmatprep.subr.mxu0 0.0
          %1875 = vmatpush1.msra.mxu0 0.0
          %1876 = vmatprep.subr.mxu0 0.0
          %1877 = vmatpush1.msra.mxu0 0.0
          %1878 = vmatprep.subr.mxu0 0.0
          %1879 = vmatpush1.msra.mxu0 0.0
          %1880 = vmatprep.subr.mxu0 0.0
          %1881 = vmatpush1.msra.mxu0 0.0
          %1882 = vmatprep.subr.mxu0 0.0
          %1883 = vmatpush1.msra.mxu0 0.0
          %1884 = vmatprep.subr.mxu0 0.0
          %1885 = vmatpush1.msra.mxu0 0.0
          %1886 = vmatprep.mubr.f32.mxu0 0.0
          %1887 = vmatmul.mubr.f32.gmra.mrb[0].mxu0 %v1772
          %v1888 = vpop.f32.mrb[0].mxu0
          %v1889 = vadd.f32 0.0, %v1888
          %v1890 = vpop.f32.mrb[0].mxu0
          %1891 = vmatprep.mubr.f32.mxu0 0.0
          %1892 = vmatmul.mubr.f32.gmra.mrb[0].mxu0 %v1775
          %v1893 = vpop.f32.mrb[0].mxu0
          %v1894 = vadd.f32 0.0, %v1893
          %v1895 = vpop.f32.mrb[0].mxu0
          %1896 = vmatprep.mubr.f32.mxu0 0.0
          %1897 = vmatmul.mubr.f32.gmra.mrb[0].mxu0 %v1778
          %v1898 = vpop.f32.mrb[0].mxu0
          %v1899 = vadd.f32 0.0, %v1898
          %v1900 = vpop.f32.mrb[0].mxu0
          %1901 = vmatprep.mubr.f32.mxu0 0.0
          %1902 = vmatmul.mubr.f32.gmra.mrb[0].mxu0 %v1781
          %v1903 = vpop.f32.mrb[0].mxu0
          %v1904 = vadd.f32 0.0, %v1903
          %v1905 = vpop.f32.mrb[0].mxu0
          %1906 = vmatprep.mubr.f32.mxu0 0.0
          %1907 = vmatmul.mubr.f32.gmra.mrb[0].mxu0 %v1784
          %v1908 = vpop.f32.mrb[0].mxu0
          %v1909 = vadd.f32 0.0, %v1908
          %v1910 = vpop.f32.mrb[0].mxu0
          %1911 = vmatprep.mubr.f32.mxu0 0.0
          %1912 = vmatmul.mubr.f32.gmra.mrb[0].mxu0 %v1787
          %v1913 = vpop.f32.mrb[0].mxu0
          %v1914 = vadd.f32 0.0, %v1913
          %v1915 = vpop.f32.mrb[0].mxu0
          %1916 = vmatprep.mubr.f32.mxu0 0.0
          %1917 = vmatmul.mubr.f32.gmra.mrb[0].mxu0 %v1790
          %v1918 = vpop.f32.mrb[0].mxu0
          %v1919 = vadd.f32 0.0, %v1918
          %v1920 = vpop.f32.mrb[0].mxu0
          %1921 = vmatprep.mubr.f32.mxu0 0.0
          %1922 = vmatmul.mubr.f32.gmra.mrb[0].mxu0 %v1793
          %v1923 = vpop.f32.mrb[0].mxu0
          %v1924 = vadd.f32 0.0, %v1923
          %v1925 = vpop.f32.mrb[0].mxu0
          %1926 = vmatprep.mubr.f32.mxu0 0.0
          %1927 = vmatmul.mubr.f32.gmra.mrb[0].mxu0 %v1796
          %v1928 = vpop.f32.mrb[0].mxu0
          %v1929 = vadd.f32 0.0, %v1928
          %v1930 = vpop.f32.mrb[0].mxu0
          %1931 = vmatprep.mubr.f32.mxu0 0.0
          %1932 = vmatmul.mubr.f32.gmra.mrb[0].mxu0 %v1799
          %v1933 = vpop.f32.mrb[0].mxu0
          %v1934 = vadd.f32 0.0, %v1933
          %v1935 = vpop.f32.mrb[0].mxu0
          %1936 = vmatprep.mubr.f32.mxu0 0.0
          %1937 = vmatmul.mubr.f32.gmra.mrb[0].mxu0 %v1802
          %v1938 = vpop.f32.mrb[0].mxu0
          %v1939 = vadd.f32 0.0, %v1938
          %v1940 = vpop.f32.mrb[0].mxu0
          %1941 = vmatprep.mubr.f32.mxu0 0.0
          %1942 = vmatmul.mubr.f32.gmra.mrb[0].mxu0 %v1805
          %v1943 = vpop.f32.mrb[0].mxu0
          %v1944 = vadd.f32 0.0, %v1943
          %v1945 = vpop.f32.mrb[0].mxu0
          %1946 = vmatprep.mubr.f32.mxu0 0.0
          %1947 = vmatmul.mubr.f32.gmra.mrb[0].mxu0 %v1808
          %v1948 = vpop.f32.mrb[0].mxu0
          %v1949 = vadd.f32 0.0, %v1948
          %v1950 = vpop.f32.mrb[0].mxu0
          %1951 = vmatprep.mubr.f32.mxu0 0.0
          %1952 = vmatmul.mubr.f32.gmra.mrb[0].mxu0 %v1811
          %v1953 = vpop.f32.mrb[0].mxu0
          %v1954 = vadd.f32 0.0, %v1953
          %v1955 = vpop.f32.mrb[0].mxu0
          %1956 = vmatprep.mubr.f32.mxu0 0.0
          %1957 = vmatmul.mubr.f32.gmra.mrb[0].mxu0 %v1814
          %v1958 = vpop.f32.mrb[0].mxu0
          %v1959 = vadd.f32 0.0, %v1958
          %v1960 = vpop.f32.mrb[0].mxu0
          %1961 = vmatprep.mubr.f32.mxu0 0.0
          %1962 = vmatmul.mubr.f32.gmra.mrb[0].mxu0 %v1817
          %v1963 = vpop.f32.mrb[0].mxu0
          %v1964 = vadd.f32 0.0, %v1963
          %v1965 = vpop.f32.mrb[0].mxu0
          %1966 = vdwg.mxu0
          %v1967 = vadd.f32 %v1736, %v1889
          %v1968 = vadd.f32 %v1737, %v1894
          %v1969 = vadd.f32 %v1738, %v1899
          %v1970 = vadd.f32 %v1739, %v1904
          %v1971 = vadd.f32 %v1740, %v1909
          %v1972 = vadd.f32 %v1741, %v1914
          %v1973 = vadd.f32 %v1742, %v1919
          %v1974 = vadd.f32 %v1743, %v1924
          %v1975 = vadd.f32 %v1744, %v1929
          %v1976 = vadd.f32 %v1745, %v1934
          %v1977 = vadd.f32 %v1746, %v1939
          %v1978 = vadd.f32 %v1747, %v1944
          %v1979 = vadd.f32 %v1748, %v1949
          %v1980 = vadd.f32 %v1749, %v1954
          %v1981 = vadd.f32 %v1750, %v1959
          %v1982 = vadd.f32 %v1751, %v1964
          %v1983 = vld [vmem:[%s1752 + $0x1] sm:$0xff]
          %v1984 = vld [vmem:[%s1752 + $0x11] sm:$0xff]
          %v1985 = vld [vmem:[%s1752 + $0x21] sm:$0xff]
          %v1986 = vld [vmem:[%s1752 + $0x31] sm:$0xff]
          %v1987 = vld [vmem:[%s1752 + $0x41] sm:$0xff]
          %v1988 = vld [vmem:[%s1752 + $0x51] sm:$0xff]
          %v1989 = vld [vmem:[%s1752 + $0x61] sm:$0xff]
          %v1990 = vld [vmem:[%s1752 + $0x71] sm:$0xff]
          %v1991 = vld [vmem:[%s1752 + $0xa1] sm:$0xff]
          %v1992 = vld [vmem:[%s1752 + $0xb1] sm:$0xff]
          %v1993 = vld [vmem:[%s1752 + $0xc1] sm:$0xff]
          %v1994 = vld [vmem:[%s1752 + $0xd1] sm:$0xff]
          %v1995 = vld [vmem:[%s1752 + $0xe1] sm:$0xff]
          %v1996 = vld [vmem:[%s1752 + $0xf1] sm:$0xff]
          %v1997 = vld [vmem:[%s1752 + $0x101] sm:$0xff]
          %v1998 = vld [vmem:[%s1752 + $0x111] sm:$0xff]
          %s1999 = scalar_lea.vmem [#allocation7], 28
          %v2000 = vld [vmem:[%s1999] sm:$0x7]
          %v2002 = vsel %vm318, %v1983, 0
          %v2005 = vsel %vm318, %v1984, 0
          %v2008 = vsel %vm318, %v1985, 0
          %v2011 = vsel %vm318, %v1986, 0
          %v2014 = vsel %vm318, %v1987, 0
          %v2017 = vsel %vm318, %v1988, 0
          %v2020 = vsel %vm318, %v1989, 0
          %v2023 = vsel %vm318, %v1990, 0
          %v2026 = vsel %vm318, %v1991, 0
          %v2029 = vsel %vm318, %v1992, 0
          %v2032 = vsel %vm318, %v1993, 0
          %v2035 = vsel %vm318, %v1994, 0
          %v2038 = vsel %vm318, %v1995, 0
          %v2041 = vsel %vm318, %v1996, 0
          %v2044 = vsel %vm318, %v1997, 0
          %v2047 = vsel %vm318, %v1998, 0
          %v2050 = vsel %vm487, %v2000, 0
          %2052 = vmatprep.subr.mxu0 0.0
          %2053 = vmatpush1.msra.mxu0 %v2050
          %2054 = vmatprep.subr.mxu0 0.0
          %2055 = vmatpush1.msra.mxu0 0.0
          %2056 = vmatprep.subr.mxu0 0.0
          %2057 = vmatpush1.msra.mxu0 0.0
          %2058 = vmatprep.subr.mxu0 0.0
          %2059 = vmatpush1.msra.mxu0 0.0
          %2060 = vmatprep.subr.mxu0 0.0
          %2061 = vmatpush1.msra.mxu0 0.0
          %2062 = vmatprep.subr.mxu0 0.0
          %2063 = vmatpush1.msra.mxu0 0.0
          %2064 = vmatprep.subr.mxu0 0.0
          %2065 = vmatpush1.msra.mxu0 0.0
          %2066 = vmatprep.subr.mxu0 0.0
          %2067 = vmatpush1.msra.mxu0 0.0
          %2068 = vmatprep.subr.mxu0 0.0
          %2069 = vmatpush1.msra.mxu0 0.0
          %2070 = vmatprep.subr.mxu0 0.0
          %2071 = vmatpush1.msra.mxu0 0.0
          %2072 = vmatprep.subr.mxu0 0.0
          %2073 = vmatpush1.msra.mxu0 0.0
          %2074 = vmatprep.subr.mxu0 0.0
          %2075 = vmatpush1.msra.mxu0 0.0
          %2076 = vmatprep.subr.mxu0 0.0
          %2077 = vmatpush1.msra.mxu0 0.0
          %2078 = vmatprep.subr.mxu0 0.0
          %2079 = vmatpush1.msra.mxu0 0.0
          %2080 = vmatprep.subr.mxu0 0.0
          %2081 = vmatpush1.msra.mxu0 0.0
          %2082 = vmatprep.subr.mxu0 0.0
          %2083 = vmatpush1.msra.mxu0 0.0
          %2084 = vmatprep.subr.mxu0 0.0
          %2085 = vmatpush1.msra.mxu0 0.0
          %2086 = vmatprep.subr.mxu0 0.0
          %2087 = vmatpush1.msra.mxu0 0.0
          %2088 = vmatprep.subr.mxu0 0.0
          %2089 = vmatpush1.msra.mxu0 0.0
          %2090 = vmatprep.subr.mxu0 0.0
          %2091 = vmatpush1.msra.mxu0 0.0
          %2092 = vmatprep.subr.mxu0 0.0
          %2093 = vmatpush1.msra.mxu0 0.0
          %2094 = vmatprep.subr.mxu0 0.0
          %2095 = vmatpush1.msra.mxu0 0.0
          %2096 = vmatprep.subr.mxu0 0.0
          %2097 = vmatpush1.msra.mxu0 0.0
          %2098 = vmatprep.subr.mxu0 0.0
          %2099 = vmatpush1.msra.mxu0 0.0
          %2100 = vmatprep.subr.mxu0 0.0
          %2101 = vmatpush1.msra.mxu0 0.0
          %2102 = vmatprep.subr.mxu0 0.0
          %2103 = vmatpush1.msra.mxu0 0.0
          %2104 = vmatprep.subr.mxu0 0.0
          %2105 = vmatpush1.msra.mxu0 0.0
          %2106 = vmatprep.subr.mxu0 0.0
          %2107 = vmatpush1.msra.mxu0 0.0
          %2108 = vmatprep.subr.mxu0 0.0
          %2109 = vmatpush1.msra.mxu0 0.0
          %2110 = vmatprep.subr.mxu0 0.0
          %2111 = vmatpush1.msra.mxu0 0.0
          %2112 = vmatprep.subr.mxu0 0.0
          %2113 = vmatpush1.msra.mxu0 0.0
          %2114 = vmatprep.subr.mxu0 0.0
          %2115 = vmatpush1.msra.mxu0 0.0
          %2116 = vmatprep.mubr.f32.mxu0 0.0
          %2117 = vmatmul.mubr.f32.gmra.mrb[0].mxu0 %v2002
          %v2118 = vpop.f32.mrb[0].mxu0
          %v2119 = vadd.f32 0.0, %v2118
          %v2120 = vpop.f32.mrb[0].mxu0
          %2121 = vmatprep.mubr.f32.mxu0 0.0
          %2122 = vmatmul.mubr.f32.gmra.mrb[0].mxu0 %v2005
          %v2123 = vpop.f32.mrb[0].mxu0
          %v2124 = vadd.f32 0.0, %v2123
          %v2125 = vpop.f32.mrb[0].mxu0
          %2126 = vmatprep.mubr.f32.mxu0 0.0
          %2127 = vmatmul.mubr.f32.gmra.mrb[0].mxu0 %v2008
          %v2128 = vpop.f32.mrb[0].mxu0
          %v2129 = vadd.f32 0.0, %v2128
          %v2130 = vpop.f32.mrb[0].mxu0
          %2131 = vmatprep.mubr.f32.mxu0 0.0
          %2132 = vmatmul.mubr.f32.gmra.mrb[0].mxu0 %v2011
          %v2133 = vpop.f32.mrb[0].mxu0
          %v2134 = vadd.f32 0.0, %v2133
          %v2135 = vpop.f32.mrb[0].mxu0
          %2136 = vmatprep.mubr.f32.mxu0 0.0
          %2137 = vmatmul.mubr.f32.gmra.mrb[0].mxu0 %v2014
          %v2138 = vpop.f32.mrb[0].mxu0
          %v2139 = vadd.f32 0.0, %v2138
          %v2140 = vpop.f32.mrb[0].mxu0
          %2141 = vmatprep.mubr.f32.mxu0 0.0
          %2142 = vmatmul.mubr.f32.gmra.mrb[0].mxu0 %v2017
          %v2143 = vpop.f32.mrb[0].mxu0
          %v2144 = vadd.f32 0.0, %v2143
          %v2145 = vpop.f32.mrb[0].mxu0
          %2146 = vmatprep.mubr.f32.mxu0 0.0
          %2147 = vmatmul.mubr.f32.gmra.mrb[0].mxu0 %v2020
          %v2148 = vpop.f32.mrb[0].mxu0
          %v2149 = vadd.f32 0.0, %v2148
          %v2150 = vpop.f32.mrb[0].mxu0
          %2151 = vmatprep.mubr.f32.mxu0 0.0
          %2152 = vmatmul.mubr.f32.gmra.mrb[0].mxu0 %v2023
          %v2153 = vpop.f32.mrb[0].mxu0
          %v2154 = vadd.f32 0.0, %v2153
          %v2155 = vpop.f32.mrb[0].mxu0
          %2156 = vmatprep.mubr.f32.mxu0 0.0
          %2157 = vmatmul.mubr.f32.gmra.mrb[0].mxu0 %v2026
          %v2158 = vpop.f32.mrb[0].mxu0
          %v2159 = vadd.f32 0.0, %v2158
          %v2160 = vpop.f32.mrb[0].mxu0
          %2161 = vmatprep.mubr.f32.mxu0 0.0
          %2162 = vmatmul.mubr.f32.gmra.mrb[0].mxu0 %v2029
          %v2163 = vpop.f32.mrb[0].mxu0
          %v2164 = vadd.f32 0.0, %v2163
          %v2165 = vpop.f32.mrb[0].mxu0
          %2166 = vmatprep.mubr.f32.mxu0 0.0
          %2167 = vmatmul.mubr.f32.gmra.mrb[0].mxu0 %v2032
          %v2168 = vpop.f32.mrb[0].mxu0
          %v2169 = vadd.f32 0.0, %v2168
          %v2170 = vpop.f32.mrb[0].mxu0
          %2171 = vmatprep.mubr.f32.mxu0 0.0
          %2172 = vmatmul.mubr.f32.gmra.mrb[0].mxu0 %v2035
          %v2173 = vpop.f32.mrb[0].mxu0
          %v2174 = vadd.f32 0.0, %v2173
          %v2175 = vpop.f32.mrb[0].mxu0
          %2176 = vmatprep.mubr.f32.mxu0 0.0
          %2177 = vmatmul.mubr.f32.gmra.mrb[0].mxu0 %v2038
          %v2178 = vpop.f32.mrb[0].mxu0
          %v2179 = vadd.f32 0.0, %v2178
          %v2180 = vpop.f32.mrb[0].mxu0
          %2181 = vmatprep.mubr.f32.mxu0 0.0
          %2182 = vmatmul.mubr.f32.gmra.mrb[0].mxu0 %v2041
          %v2183 = vpop.f32.mrb[0].mxu0
          %v2184 = vadd.f32 0.0, %v2183
          %v2185 = vpop.f32.mrb[0].mxu0
          %2186 = vmatprep.mubr.f32.mxu0 0.0
          %2187 = vmatmul.mubr.f32.gmra.mrb[0].mxu0 %v2044
          %v2188 = vpop.f32.mrb[0].mxu0
          %v2189 = vadd.f32 0.0, %v2188
          %v2190 = vpop.f32.mrb[0].mxu0
          %2191 = vmatprep.mubr.f32.mxu0 0.0
          %2192 = vmatmul.mubr.f32.gmra.mrb[0].mxu0 %v2047
          %v2193 = vpop.f32.mrb[0].mxu0
          %v2194 = vadd.f32 0.0, %v2193
          %v2195 = vpop.f32.mrb[0].mxu0
          %2196 = vdwg.mxu0
          %v2197 = vadd.f32 %v1967, %v2119
          %v2198 = vadd.f32 %v1968, %v2124
          %v2199 = vadd.f32 %v1969, %v2129
          %v2200 = vadd.f32 %v1970, %v2134
          %v2201 = vadd.f32 %v1971, %v2139
          %v2202 = vadd.f32 %v1972, %v2144
          %v2203 = vadd.f32 %v1973, %v2149
          %v2204 = vadd.f32 %v1974, %v2154
          %v2205 = vadd.f32 %v1975, %v2159
          %v2206 = vadd.f32 %v1976, %v2164
          %v2207 = vadd.f32 %v1977, %v2169
          %v2208 = vadd.f32 %v1978, %v2174
          %v2209 = vadd.f32 %v1979, %v2179
          %v2210 = vadd.f32 %v1980, %v2184
          %v2211 = vadd.f32 %v1981, %v2189
          %v2212 = vadd.f32 %v1982, %v2194
          %v2213 = vld [vmem:[%s1752 + $0x2] sm:$0xff]
          %v2214 = vld [vmem:[%s1752 + $0x12] sm:$0xff]
          %v2215 = vld [vmem:[%s1752 + $0x22] sm:$0xff]
          %v2216 = vld [vmem:[%s1752 + $0x32] sm:$0xff]
          %v2217 = vld [vmem:[%s1752 + $0x42] sm:$0xff]
          %v2218 = vld [vmem:[%s1752 + $0x52] sm:$0xff]
          %v2219 = vld [vmem:[%s1752 + $0x62] sm:$0xff]
          %v2220 = vld [vmem:[%s1752 + $0x72] sm:$0xff]
          %v2221 = vld [vmem:[%s1752 + $0xa2] sm:$0xff]
          %v2222 = vld [vmem:[%s1752 + $0xb2] sm:$0xff]
          %v2223 = vld [vmem:[%s1752 + $0xc2] sm:$0xff]
          %v2224 = vld [vmem:[%s1752 + $0xd2] sm:$0xff]
          %v2225 = vld [vmem:[%s1752 + $0xe2] sm:$0xff]
          %v2226 = vld [vmem:[%s1752 + $0xf2] sm:$0xff]
          %v2227 = vld [vmem:[%s1752 + $0x102] sm:$0xff]
          %v2228 = vld [vmem:[%s1752 + $0x112] sm:$0xff]
          %s2229 = scalar_lea.vmem [#allocation7], 32
          %v2230 = vld [vmem:[%s2229] sm:$0x7]
          %v2232 = vsel %vm318, %v2213, 0
          %v2235 = vsel %vm318, %v2214, 0
          %v2238 = vsel %vm318, %v2215, 0
          %v2241 = vsel %vm318, %v2216, 0
          %v2244 = vsel %vm318, %v2217, 0
          %v2247 = vsel %vm318, %v2218, 0
          %v2250 = vsel %vm318, %v2219, 0
          %v2253 = vsel %vm318, %v2220, 0
          %v2256 = vsel %vm318, %v2221, 0
          %v2259 = vsel %vm318, %v2222, 0
          %v2262 = vsel %vm318, %v2223, 0
          %v2265 = vsel %vm318, %v2224, 0
          %v2268 = vsel %vm318, %v2225, 0
          %v2271 = vsel %vm318, %v2226, 0
          %v2274 = vsel %vm318, %v2227, 0
          %v2277 = vsel %vm318, %v2228, 0
          %v2280 = vsel %vm487, %v2230, 0
          %2282 = vmatprep.subr.mxu0 0.0
          %2283 = vmatpush1.msra.mxu0 %v2280
          %2284 = vmatprep.subr.mxu0 0.0
          %2285 = vmatpush1.msra.mxu0 0.0
          %2286 = vmatprep.subr.mxu0 0.0
          %2287 = vmatpush1.msra.mxu0 0.0
          %2288 = vmatprep.subr.mxu0 0.0
          %2289 = vmatpush1.msra.mxu0 0.0
          %2290 = vmatprep.subr.mxu0 0.0
          %2291 = vmatpush1.msra.mxu0 0.0
          %2292 = vmatprep.subr.mxu0 0.0
          %2293 = vmatpush1.msra.mxu0 0.0
          %2294 = vmatprep.subr.mxu0 0.0
          %2295 = vmatpush1.msra.mxu0 0.0
          %2296 = vmatprep.subr.mxu0 0.0
          %2297 = vmatpush1.msra.mxu0 0.0
          %2298 = vmatprep.subr.mxu0 0.0
          %2299 = vmatpush1.msra.mxu0 0.0
          %2300 = vmatprep.subr.mxu0 0.0
          %2301 = vmatpush1.msra.mxu0 0.0
          %2302 = vmatprep.subr.mxu0 0.0
          %2303 = vmatpush1.msra.mxu0 0.0
          %2304 = vmatprep.subr.mxu0 0.0
          %2305 = vmatpush1.msra.mxu0 0.0
          %2306 = vmatprep.subr.mxu0 0.0
          %2307 = vmatpush1.msra.mxu0 0.0
          %2308 = vmatprep.subr.mxu0 0.0
          %2309 = vmatpush1.msra.mxu0 0.0
          %2310 = vmatprep.subr.mxu0 0.0
          %2311 = vmatpush1.msra.mxu0 0.0
          %2312 = vmatprep.subr.mxu0 0.0
          %2313 = vmatpush1.msra.mxu0 0.0
          %2314 = vmatprep.subr.mxu0 0.0
          %2315 = vmatpush1.msra.mxu0 0.0
          %2316 = vmatprep.subr.mxu0 0.0
          %2317 = vmatpush1.msra.mxu0 0.0
          %2318 = vmatprep.subr.mxu0 0.0
          %2319 = vmatpush1.msra.mxu0 0.0
          %2320 = vmatprep.subr.mxu0 0.0
          %2321 = vmatpush1.msra.mxu0 0.0
          %2322 = vmatprep.subr.mxu0 0.0
          %2323 = vmatpush1.msra.mxu0 0.0
          %2324 = vmatprep.subr.mxu0 0.0
          %2325 = vmatpush1.msra.mxu0 0.0
          %2326 = vmatprep.subr.mxu0 0.0
          %2327 = vmatpush1.msra.mxu0 0.0
          %2328 = vmatprep.subr.mxu0 0.0
          %2329 = vmatpush1.msra.mxu0 0.0
          %2330 = vmatprep.subr.mxu0 0.0
          %2331 = vmatpush1.msra.mxu0 0.0
          %2332 = vmatprep.subr.mxu0 0.0
          %2333 = vmatpush1.msra.mxu0 0.0
          %2334 = vmatprep.subr.mxu0 0.0
          %2335 = vmatpush1.msra.mxu0 0.0
          %2336 = vmatprep.subr.mxu0 0.0
          %2337 = vmatpush1.msra.mxu0 0.0
          %2338 = vmatprep.subr.mxu0 0.0
          %2339 = vmatpush1.msra.mxu0 0.0
          %2340 = vmatprep.subr.mxu0 0.0
          %2341 = vmatpush1.msra.mxu0 0.0
          %2342 = vmatprep.subr.mxu0 0.0
          %2343 = vmatpush1.msra.mxu0 0.0
          %2344 = vmatprep.subr.mxu0 0.0
          %2345 = vmatpush1.msra.mxu0 0.0
          %2346 = vmatprep.mubr.f32.mxu0 0.0
          %2347 = vmatmul.mubr.f32.gmra.mrb[0].mxu0 %v2232
          %v2348 = vpop.f32.mrb[0].mxu0
          %v2349 = vadd.f32 0.0, %v2348
          %v2350 = vpop.f32.mrb[0].mxu0
          %2351 = vmatprep.mubr.f32.mxu0 0.0
          %2352 = vmatmul.mubr.f32.gmra.mrb[0].mxu0 %v2235
          %v2353 = vpop.f32.mrb[0].mxu0
          %v2354 = vadd.f32 0.0, %v2353
          %v2355 = vpop.f32.mrb[0].mxu0
          %2356 = vmatprep.mubr.f32.mxu0 0.0
          %2357 = vmatmul.mubr.f32.gmra.mrb[0].mxu0 %v2238
          %v2358 = vpop.f32.mrb[0].mxu0
          %v2359 = vadd.f32 0.0, %v2358
          %v2360 = vpop.f32.mrb[0].mxu0
          %2361 = vmatprep.mubr.f32.mxu0 0.0
          %2362 = vmatmul.mubr.f32.gmra.mrb[0].mxu0 %v2241
          %v2363 = vpop.f32.mrb[0].mxu0
          %v2364 = vadd.f32 0.0, %v2363
          %v2365 = vpop.f32.mrb[0].mxu0
          %2366 = vmatprep.mubr.f32.mxu0 0.0
          %2367 = vmatmul.mubr.f32.gmra.mrb[0].mxu0 %v2244
          %v2368 = vpop.f32.mrb[0].mxu0
          %v2369 = vadd.f32 0.0, %v2368
          %v2370 = vpop.f32.mrb[0].mxu0
          %2371 = vmatprep.mubr.f32.mxu0 0.0
          %2372 = vmatmul.mubr.f32.gmra.mrb[0].mxu0 %v2247
          %v2373 = vpop.f32.mrb[0].mxu0
          %v2374 = vadd.f32 0.0, %v2373
          %v2375 = vpop.f32.mrb[0].mxu0
          %2376 = vmatprep.mubr.f32.mxu0 0.0
          %2377 = vmatmul.mubr.f32.gmra.mrb[0].mxu0 %v2250
          %v2378 = vpop.f32.mrb[0].mxu0
          %v2379 = vadd.f32 0.0, %v2378
          %v2380 = vpop.f32.mrb[0].mxu0
          %2381 = vmatprep.mubr.f32.mxu0 0.0
          %2382 = vmatmul.mubr.f32.gmra.mrb[0].mxu0 %v2253
          %v2383 = vpop.f32.mrb[0].mxu0
          %v2384 = vadd.f32 0.0, %v2383
          %v2385 = vpop.f32.mrb[0].mxu0
          %2386 = vmatprep.mubr.f32.mxu0 0.0
          %2387 = vmatmul.mubr.f32.gmra.mrb[0].mxu0 %v2256
          %v2388 = vpop.f32.mrb[0].mxu0
          %v2389 = vadd.f32 0.0, %v2388
          %v2390 = vpop.f32.mrb[0].mxu0
          %2391 = vmatprep.mubr.f32.mxu0 0.0
          %2392 = vmatmul.mubr.f32.gmra.mrb[0].mxu0 %v2259
          %v2393 = vpop.f32.mrb[0].mxu0
          %v2394 = vadd.f32 0.0, %v2393
          %v2395 = vpop.f32.mrb[0].mxu0
          %2396 = vmatprep.mubr.f32.mxu0 0.0
          %2397 = vmatmul.mubr.f32.gmra.mrb[0].mxu0 %v2262
          %v2398 = vpop.f32.mrb[0].mxu0
          %v2399 = vadd.f32 0.0, %v2398
          %v2400 = vpop.f32.mrb[0].mxu0
          %2401 = vmatprep.mubr.f32.mxu0 0.0
          %2402 = vmatmul.mubr.f32.gmra.mrb[0].mxu0 %v2265
          %v2403 = vpop.f32.mrb[0].mxu0
          %v2404 = vadd.f32 0.0, %v2403
          %v2405 = vpop.f32.mrb[0].mxu0
          %2406 = vmatprep.mubr.f32.mxu0 0.0
          %2407 = vmatmul.mubr.f32.gmra.mrb[0].mxu0 %v2268
          %v2408 = vpop.f32.mrb[0].mxu0
          %v2409 = vadd.f32 0.0, %v2408
          %v2410 = vpop.f32.mrb[0].mxu0
          %2411 = vmatprep.mubr.f32.mxu0 0.0
          %2412 = vmatmul.mubr.f32.gmra.mrb[0].mxu0 %v2271
          %v2413 = vpop.f32.mrb[0].mxu0
          %v2414 = vadd.f32 0.0, %v2413
          %v2415 = vpop.f32.mrb[0].mxu0
          %2416 = vmatprep.mubr.f32.mxu0 0.0
          %2417 = vmatmul.mubr.f32.gmra.mrb[0].mxu0 %v2274
          %v2418 = vpop.f32.mrb[0].mxu0
          %v2419 = vadd.f32 0.0, %v2418
          %v2420 = vpop.f32.mrb[0].mxu0
          %2421 = vmatprep.mubr.f32.mxu0 0.0
          %2422 = vmatmul.mubr.f32.gmra.mrb[0].mxu0 %v2277
          %v2423 = vpop.f32.mrb[0].mxu0
          %v2424 = vadd.f32 0.0, %v2423
          %v2425 = vpop.f32.mrb[0].mxu0
          %2426 = vdwg.mxu0
          %v2427 = vadd.f32 %v2197, %v2349
          %v2428 = vadd.f32 %v2198, %v2354
          %v2429 = vadd.f32 %v2199, %v2359
          %v2430 = vadd.f32 %v2200, %v2364
          %v2431 = vadd.f32 %v2201, %v2369
          %v2432 = vadd.f32 %v2202, %v2374
          %v2433 = vadd.f32 %v2203, %v2379
          %v2434 = vadd.f32 %v2204, %v2384
          %v2435 = vadd.f32 %v2205, %v2389
          %v2436 = vadd.f32 %v2206, %v2394
          %v2437 = vadd.f32 %v2207, %v2399
          %v2438 = vadd.f32 %v2208, %v2404
          %v2439 = vadd.f32 %v2209, %v2409
          %v2440 = vadd.f32 %v2210, %v2414
          %v2441 = vadd.f32 %v2211, %v2419
          %v2442 = vadd.f32 %v2212, %v2424
          %v2444 = vlaneseq
          %v2445 = vshrl.u32 %v2444, 7
          %v2446 = vsub.s32 0, %v2445
          %v2447 = vrot.slane %v403, %v2446
          %v2449 = vadd.f32 %v2427, %v2447
          %v2450 = vadd.f32 %v2428, %v2447
          %v2451 = vadd.f32 %v2429, %v2447
          %v2452 = vadd.f32 %v2430, %v2447
          %v2453 = vadd.f32 %v2431, %v2447
          %v2454 = vadd.f32 %v2432, %v2447
          %v2455 = vadd.f32 %v2433, %v2447
          %v2456 = vadd.f32 %v2434, %v2447
          %v2457 = vadd.f32 %v2435, %v2447
          %v2458 = vadd.f32 %v2436, %v2447
          %v2459 = vadd.f32 %v2437, %v2447
          %v2460 = vadd.f32 %v2438, %v2447
          %v2461 = vadd.f32 %v2439, %v2447
          %v2462 = vadd.f32 %v2440, %v2447
          %v2463 = vadd.f32 %v2441, %v2447
          %v2464 = vadd.f32 %v2442, %v2447
          %v2465 = vmax.f32 %v2449, 0.0
          %v2466 = vmax.f32 %v2450, 0.0
          %v2467 = vmax.f32 %v2451, 0.0
          %v2468 = vmax.f32 %v2452, 0.0
          %v2469 = vmax.f32 %v2453, 0.0
          %v2470 = vmax.f32 %v2454, 0.0
          %v2471 = vmax.f32 %v2455, 0.0
          %v2472 = vmax.f32 %v2456, 0.0
          %v2473 = vmax.f32 %v2457, 0.0
          %v2474 = vmax.f32 %v2458, 0.0
          %v2475 = vmax.f32 %v2459, 0.0
          %v2476 = vmax.f32 %v2460, 0.0
          %v2477 = vmax.f32 %v2461, 0.0
          %v2478 = vmax.f32 %v2462, 0.0
          %v2479 = vmax.f32 %v2463, 0.0
          %v2480 = vmax.f32 %v2464, 0.0
          %vm2481 = vcmask 261120
          %2482 = vst.msk [vmem:[#allocation3] sm:$0xff] %vm2481, 0.0
          %vm2483 = vcmask 254976
          %2484 = vst.msk [vmem:[#allocation3 + $0x8] sm:$0x3] %vm2483, 0.0
          %2485 = vst.msk [vmem:[#allocation3 + $0xa0] sm:$0xff] %vm2481, 0.0
          %2486 = vst.msk [vmem:[#allocation3 + $0xa8] sm:$0x3] %vm2483, 0.0
          %s2487 = scalar_lea.vmem [#allocation3], 144
          %2488 = vst.msk [vmem:[%s2487] sm:$0xff] %vm2481, 0.0
          %2489 = vst.msk [vmem:[%s2487 + $0x8] sm:$0x3] %vm2483, 0.0
          %2490 = vst.msk [vmem:[%s2487 + $0xa0] sm:$0xff] %vm2481, 0.0
          %2491 = vst.msk [vmem:[%s2487 + $0xa8] sm:$0x3] %vm2483, 0.0
          %vm2492 = vcmask 253952
          %2493 = vst.msk [vmem:[#allocation3] sm:$0x1] %vm2492, 0.0
          %2494 = vst.msk [vmem:[#allocation3 + $0x10] sm:$0x1] %vm2492, 0.0
          %2495 = vst.msk [vmem:[#allocation3 + $0x20] sm:$0x1] %vm2492, 0.0
          %2496 = vst.msk [vmem:[#allocation3 + $0x30] sm:$0x1] %vm2492, 0.0
          %2497 = vst.msk [vmem:[#allocation3 + $0x40] sm:$0x1] %vm2492, 0.0
          %2498 = vst.msk [vmem:[#allocation3 + $0x50] sm:$0x1] %vm2492, 0.0
          %2499 = vst.msk [vmem:[#allocation3 + $0x60] sm:$0x1] %vm2492, 0.0
          %2500 = vst.msk [vmem:[#allocation3 + $0x70] sm:$0x1] %vm2492, 0.0
          %2501 = vst.msk [vmem:[#allocation3 + $0x80] sm:$0x1] %vm2492, 0.0
          %2502 = vst.msk [vmem:[#allocation3 + $0x90] sm:$0x1] %vm2492, 0.0
          %2503 = vst.msk [vmem:[#allocation3 + $0xa0] sm:$0x1] %vm2492, 0.0
          %2504 = vst.msk [vmem:[#allocation3 + $0xb0] sm:$0x1] %vm2492, 0.0
          %2505 = vst.msk [vmem:[#allocation3 + $0xc0] sm:$0x1] %vm2492, 0.0
          %2506 = vst.msk [vmem:[#allocation3 + $0xd0] sm:$0x1] %vm2492, 0.0
          %2507 = vst.msk [vmem:[#allocation3 + $0xe0] sm:$0x1] %vm2492, 0.0
          %2508 = vst.msk [vmem:[#allocation3 + $0xf0] sm:$0x1] %vm2492, 0.0
          %2509 = vst.msk [vmem:[#allocation3 + $0x100] sm:$0x1] %vm2492, 0.0
          %2510 = vst.msk [vmem:[#allocation3 + $0x110] sm:$0x1] %vm2492, 0.0
          %2511 = vst.msk [vmem:[#allocation3 + $0x120] sm:$0x1] %vm2492, 0.0
          %2512 = vst.msk [vmem:[#allocation3 + $0x130] sm:$0x1] %vm2492, 0.0
          %2513 = vst.msk [vmem:[#allocation3 + $0x9] sm:$0x1] %vm2492, 0.0
          %2514 = vst.msk [vmem:[#allocation3 + $0x19] sm:$0x1] %vm2492, 0.0
          %2515 = vst.msk [vmem:[#allocation3 + $0x29] sm:$0x1] %vm2492, 0.0
          %2516 = vst.msk [vmem:[#allocation3 + $0x39] sm:$0x1] %vm2492, 0.0
          %2517 = vst.msk [vmem:[#allocation3 + $0x49] sm:$0x1] %vm2492, 0.0
          %2518 = vst.msk [vmem:[#allocation3 + $0x59] sm:$0x1] %vm2492, 0.0
          %2519 = vst.msk [vmem:[#allocation3 + $0x69] sm:$0x1] %vm2492, 0.0
          %2520 = vst.msk [vmem:[#allocation3 + $0x79] sm:$0x1] %vm2492, 0.0
          %2521 = vst.msk [vmem:[#allocation3 + $0x89] sm:$0x1] %vm2492, 0.0
          %2522 = vst.msk [vmem:[#allocation3 + $0x99] sm:$0x1] %vm2492, 0.0
          %2523 = vst.msk [vmem:[#allocation3 + $0xa9] sm:$0x1] %vm2492, 0.0
          %2524 = vst.msk [vmem:[#allocation3 + $0xb9] sm:$0x1] %vm2492, 0.0
          %2525 = vst.msk [vmem:[#allocation3 + $0xc9] sm:$0x1] %vm2492, 0.0
          %2526 = vst.msk [vmem:[#allocation3 + $0xd9] sm:$0x1] %vm2492, 0.0
          %2527 = vst.msk [vmem:[#allocation3 + $0xe9] sm:$0x1] %vm2492, 0.0
          %2528 = vst.msk [vmem:[#allocation3 + $0xf9] sm:$0x1] %vm2492, 0.0
          %2529 = vst.msk [vmem:[#allocation3 + $0x109] sm:$0x1] %vm2492, 0.0
          %2530 = vst.msk [vmem:[#allocation3 + $0x119] sm:$0x1] %vm2492, 0.0
          %2531 = vst.msk [vmem:[#allocation3 + $0x129] sm:$0x1] %vm2492, 0.0
          %2532 = vst.msk [vmem:[#allocation3 + $0x139] sm:$0x1] %vm2492, 0.0
          %s2533 = scalar_lea.vmem [#allocation3], 16
          %2534 = vst.msk [vmem:[%s2533 + $0x1] sm:$0xff] %vm2481, %v2465
          %2535 = vst.msk [vmem:[%s2533 + $0x11] sm:$0xff] %vm2481, %v2466
          %2536 = vst.msk [vmem:[%s2533 + $0x21] sm:$0xff] %vm2481, %v2467
          %2537 = vst.msk [vmem:[%s2533 + $0x31] sm:$0xff] %vm2481, %v2468
          %2538 = vst.msk [vmem:[%s2533 + $0x41] sm:$0xff] %vm2481, %v2469
          %2539 = vst.msk [vmem:[%s2533 + $0x51] sm:$0xff] %vm2481, %v2470
          %2540 = vst.msk [vmem:[%s2533 + $0x61] sm:$0xff] %vm2481, %v2471
          %2541 = vst.msk [vmem:[%s2533 + $0x71] sm:$0xff] %vm2481, %v2472
          %2542 = vst.msk [vmem:[%s2533 + $0xa1] sm:$0xff] %vm2481, %v2473
          %2543 = vst.msk [vmem:[%s2533 + $0xb1] sm:$0xff] %vm2481, %v2474
          %2544 = vst.msk [vmem:[%s2533 + $0xc1] sm:$0xff] %vm2481, %v2475
          %2545 = vst.msk [vmem:[%s2533 + $0xd1] sm:$0xff] %vm2481, %v2476
          %2546 = vst.msk [vmem:[%s2533 + $0xe1] sm:$0xff] %vm2481, %v2477
          %2547 = vst.msk [vmem:[%s2533 + $0xf1] sm:$0xff] %vm2481, %v2478
          %2548 = vst.msk [vmem:[%s2533 + $0x101] sm:$0xff] %vm2481, %v2479
          %2549 = vst.msk [vmem:[%s2533 + $0x111] sm:$0xff] %vm2481, %v2480
          %v2550 = vld [vmem:[#allocation13 + $0x1] sm:$0x1]
          %v2551 = vld [vmem:[#allocation3] sm:$0xff]
          %v2552 = vld [vmem:[#allocation3 + $0x10] sm:$0xff]
          %v2553 = vld [vmem:[#allocation3 + $0x20] sm:$0xff]
          %v2554 = vld [vmem:[#allocation3 + $0x30] sm:$0xff]
          %v2555 = vld [vmem:[#allocation3 + $0x40] sm:$0xff]
          %v2556 = vld [vmem:[#allocation3 + $0x50] sm:$0xff]
          %v2557 = vld [vmem:[#allocation3 + $0x60] sm:$0xff]
          %v2558 = vld [vmem:[#allocation3 + $0x70] sm:$0xff]
          %v2559 = vld [vmem:[#allocation3 + $0xa0] sm:$0xff]
          %v2560 = vld [vmem:[#allocation3 + $0xb0] sm:$0xff]
          %v2561 = vld [vmem:[#allocation3 + $0xc0] sm:$0xff]
          %v2562 = vld [vmem:[#allocation3 + $0xd0] sm:$0xff]
          %v2563 = vld [vmem:[#allocation3 + $0xe0] sm:$0xff]
          %v2564 = vld [vmem:[#allocation3 + $0xf0] sm:$0xff]
          %v2565 = vld [vmem:[#allocation3 + $0x100] sm:$0xff]
          %v2566 = vld [vmem:[#allocation3 + $0x110] sm:$0xff]
          %v2567 = vld [vmem:[#allocation9] sm:$0xff]
          %v2568 = vld [vmem:[#allocation9 + $0x8] sm:$0xff]
          %v2569 = vld [vmem:[#allocation9 + $0x10] sm:$0xff]
          %v2570 = vld [vmem:[#allocation9 + $0x18] sm:$0xff]
          %v2571 = vld [vmem:[#allocation3 + $0x1] sm:$0xff]
          %v2572 = vld [vmem:[#allocation3 + $0x11] sm:$0xff]
          %v2573 = vld [vmem:[#allocation3 + $0x21] sm:$0xff]
          %v2574 = vld [vmem:[#allocation3 + $0x31] sm:$0xff]
          %v2575 = vld [vmem:[#allocation3 + $0x41] sm:$0xff]
          %v2576 = vld [vmem:[#allocation3 + $0x51] sm:$0xff]
          %v2577 = vld [vmem:[#allocation3 + $0x61] sm:$0xff]
          %v2578 = vld [vmem:[#allocation3 + $0x71] sm:$0xff]
          %v2579 = vld [vmem:[#allocation3 + $0xa1] sm:$0xff]
          %v2580 = vld [vmem:[#allocation3 + $0xb1] sm:$0xff]
          %v2581 = vld [vmem:[#allocation3 + $0xc1] sm:$0xff]
          %v2582 = vld [vmem:[#allocation3 + $0xd1] sm:$0xff]
          %v2583 = vld [vmem:[#allocation3 + $0xe1] sm:$0xff]
          %v2584 = vld [vmem:[#allocation3 + $0xf1] sm:$0xff]
          %v2585 = vld [vmem:[#allocation3 + $0x101] sm:$0xff]
          %v2586 = vld [vmem:[#allocation3 + $0x111] sm:$0xff]
          %s2587 = scalar_lea.vmem [#allocation9], 32
          %v2588 = vld [vmem:[%s2587] sm:$0xff]
          %v2589 = vld [vmem:[%s2587 + $0x8] sm:$0xff]
          %v2590 = vld [vmem:[%s2587 + $0x10] sm:$0xff]
          %v2591 = vld [vmem:[%s2587 + $0x18] sm:$0xff]
          %v2593 = vsel %vm2481, %v2571, 0
          %v2596 = vsel %vm2481, %v2572, 0
          %v2599 = vsel %vm2481, %v2573, 0
          %v2602 = vsel %vm2481, %v2574, 0
          %v2605 = vsel %vm2481, %v2575, 0
          %v2608 = vsel %vm2481, %v2576, 0
          %v2611 = vsel %vm2481, %v2577, 0
          %v2614 = vsel %vm2481, %v2578, 0
          %v2617 = vsel %vm2481, %v2579, 0
          %v2620 = vsel %vm2481, %v2580, 0
          %v2623 = vsel %vm2481, %v2581, 0
          %v2626 = vsel %vm2481, %v2582, 0
          %v2629 = vsel %vm2481, %v2583, 0
          %v2632 = vsel %vm2481, %v2584, 0
          %v2635 = vsel %vm2481, %v2585, 0
          %v2638 = vsel %vm2481, %v2586, 0
          %2640 = vmatprep.subr.mxu0 0.0
          %2641 = vmatpush1.msra.mxu0 %v2588
          %2642 = vmatprep.subr.mxu0 0.0
          %2643 = vmatpush1.msra.mxu0 %v2589
          %2644 = vmatprep.subr.mxu0 0.0
          %2645 = vmatpush1.msra.mxu0 %v2590
          %2646 = vmatprep.subr.mxu0 0.0
          %2647 = vmatpush1.msra.mxu0 %v2591
          %2648 = vmatprep.subr.mxu0 0.0
          %2649 = vmatpush1.msra.mxu0 0.0
          %2650 = vmatprep.subr.mxu0 0.0
          %2651 = vmatpush1.msra.mxu0 0.0
          %2652 = vmatprep.subr.mxu0 0.0
          %2653 = vmatpush1.msra.mxu0 0.0
          %2654 = vmatprep.subr.mxu0 0.0
          %2655 = vmatpush1.msra.mxu0 0.0
          %2656 = vmatprep.subr.mxu0 0.0
          %2657 = vmatpush1.msra.mxu0 0.0
          %2658 = vmatprep.subr.mxu0 0.0
          %2659 = vmatpush1.msra.mxu0 0.0
          %2660 = vmatprep.subr.mxu0 0.0
          %2661 = vmatpush1.msra.mxu0 0.0
          %2662 = vmatprep.subr.mxu0 0.0
          %2663 = vmatpush1.msra.mxu0 0.0
          %2664 = vmatprep.subr.mxu0 0.0
          %2665 = vmatpush1.msra.mxu0 0.0
          %2666 = vmatprep.subr.mxu0 0.0
          %2667 = vmatpush1.msra.mxu0 0.0
          %2668 = vmatprep.subr.mxu0 0.0
          %2669 = vmatpush1.msra.mxu0 0.0
          %2670 = vmatprep.subr.mxu0 0.0
          %2671 = vmatpush1.msra.mxu0 0.0
          %2672 = vmatprep.subr.mxu0 0.0
          %2673 = vmatpush1.msra.mxu0 0.0
          %2674 = vmatprep.subr.mxu0 0.0
          %2675 = vmatpush1.msra.mxu0 0.0
          %2676 = vmatprep.subr.mxu0 0.0
          %2677 = vmatpush1.msra.mxu0 0.0
          %2678 = vmatprep.subr.mxu0 0.0
          %2679 = vmatpush1.msra.mxu0 0.0
          %2680 = vmatprep.subr.mxu0 0.0
          %2681 = vmatpush1.msra.mxu0 0.0
          %2682 = vmatprep.subr.mxu0 0.0
          %2683 = vmatpush1.msra.mxu0 0.0
          %2684 = vmatprep.subr.mxu0 0.0
          %2685 = vmatpush1.msra.mxu0 0.0
          %2686 = vmatprep.subr.mxu0 0.0
          %2687 = vmatpush1.msra.mxu0 0.0
          %2688 = vmatprep.subr.mxu0 0.0
          %2689 = vmatpush1.msra.mxu0 0.0
          %2690 = vmatprep.subr.mxu0 0.0
          %2691 = vmatpush1.msra.mxu0 0.0
          %2692 = vmatprep.subr.mxu0 0.0
          %2693 = vmatpush1.msra.mxu0 0.0
          %2694 = vmatprep.subr.mxu0 0.0
          %2695 = vmatpush1.msra.mxu0 0.0
          %2696 = vmatprep.subr.mxu0 0.0
          %2697 = vmatpush1.msra.mxu0 0.0
          %2698 = vmatprep.subr.mxu0 0.0
          %2699 = vmatpush1.msra.mxu0 0.0
          %2700 = vmatprep.subr.mxu0 0.0
          %2701 = vmatpush1.msra.mxu0 0.0
          %2702 = vmatprep.subr.mxu0 0.0
          %2703 = vmatpush1.msra.mxu0 0.0
          %2704 = vmatprep.mubr.f32.mxu0 0.0
          %2705 = vmatmul.mubr.f32.gmra.mrb[0].mxu0 %v2593
          %v2706 = vpop.f32.mrb[0].mxu0
          %v2707 = vadd.f32 0.0, %v2706
          %v2708 = vpop.f32.mrb[0].mxu0
          %2709 = vmatprep.mubr.f32.mxu0 0.0
          %2710 = vmatmul.mubr.f32.gmra.mrb[0].mxu0 %v2596
          %v2711 = vpop.f32.mrb[0].mxu0
          %v2712 = vadd.f32 0.0, %v2711
          %v2713 = vpop.f32.mrb[0].mxu0
          %2714 = vmatprep.mubr.f32.mxu0 0.0
          %2715 = vmatmul.mubr.f32.gmra.mrb[0].mxu0 %v2599
          %v2716 = vpop.f32.mrb[0].mxu0
          %v2717 = vadd.f32 0.0, %v2716
          %v2718 = vpop.f32.mrb[0].mxu0
          %2719 = vmatprep.mubr.f32.mxu0 0.0
          %2720 = vmatmul.mubr.f32.gmra.mrb[0].mxu0 %v2602
          %v2721 = vpop.f32.mrb[0].mxu0
          %v2722 = vadd.f32 0.0, %v2721
          %v2723 = vpop.f32.mrb[0].mxu0
          %2724 = vmatprep.mubr.f32.mxu0 0.0
          %2725 = vmatmul.mubr.f32.gmra.mrb[0].mxu0 %v2605
          %v2726 = vpop.f32.mrb[0].mxu0
          %v2727 = vadd.f32 0.0, %v2726
          %v2728 = vpop.f32.mrb[0].mxu0
          %2729 = vmatprep.mubr.f32.mxu0 0.0
          %2730 = vmatmul.mubr.f32.gmra.mrb[0].mxu0 %v2608
          %v2731 = vpop.f32.mrb[0].mxu0
          %v2732 = vadd.f32 0.0, %v2731
          %v2733 = vpop.f32.mrb[0].mxu0
          %2734 = vmatprep.mubr.f32.mxu0 0.0
          %2735 = vmatmul.mubr.f32.gmra.mrb[0].mxu0 %v2611
          %v2736 = vpop.f32.mrb[0].mxu0
          %v2737 = vadd.f32 0.0, %v2736
          %v2738 = vpop.f32.mrb[0].mxu0
          %2739 = vmatprep.mubr.f32.mxu0 0.0
          %2740 = vmatmul.mubr.f32.gmra.mrb[0].mxu0 %v2614
          %v2741 = vpop.f32.mrb[0].mxu0
          %v2742 = vadd.f32 0.0, %v2741
          %v2743 = vpop.f32.mrb[0].mxu0
          %2744 = vmatprep.mubr.f32.mxu0 0.0
          %2745 = vmatmul.mubr.f32.gmra.mrb[0].mxu0 %v2617
          %v2746 = vpop.f32.mrb[0].mxu0
          %v2747 = vadd.f32 0.0, %v2746
          %v2748 = vpop.f32.mrb[0].mxu0
          %2749 = vmatprep.mubr.f32.mxu0 0.0
          %2750 = vmatmul.mubr.f32.gmra.mrb[0].mxu0 %v2620
          %v2751 = vpop.f32.mrb[0].mxu0
          %v2752 = vadd.f32 0.0, %v2751
          %v2753 = vpop.f32.mrb[0].mxu0
          %2754 = vmatprep.mubr.f32.mxu0 0.0
          %2755 = vmatmul.mubr.f32.gmra.mrb[0].mxu0 %v2623
          %v2756 = vpop.f32.mrb[0].mxu0
          %v2757 = vadd.f32 0.0, %v2756
          %v2758 = vpop.f32.mrb[0].mxu0
          %2759 = vmatprep.mubr.f32.mxu0 0.0
          %2760 = vmatmul.mubr.f32.gmra.mrb[0].mxu0 %v2626
          %v2761 = vpop.f32.mrb[0].mxu0
          %v2762 = vadd.f32 0.0, %v2761
          %v2763 = vpop.f32.mrb[0].mxu0
          %2764 = vmatprep.mubr.f32.mxu0 0.0
          %2765 = vmatmul.mubr.f32.gmra.mrb[0].mxu0 %v2629
          %v2766 = vpop.f32.mrb[0].mxu0
          %v2767 = vadd.f32 0.0, %v2766
          %v2768 = vpop.f32.mrb[0].mxu0
          %2769 = vmatprep.mubr.f32.mxu0 0.0
          %2770 = vmatmul.mubr.f32.gmra.mrb[0].mxu0 %v2632
          %v2771 = vpop.f32.mrb[0].mxu0
          %v2772 = vadd.f32 0.0, %v2771
          %v2773 = vpop.f32.mrb[0].mxu0
          %2774 = vmatprep.mubr.f32.mxu0 0.0
          %2775 = vmatmul.mubr.f32.gmra.mrb[0].mxu0 %v2635
          %v2776 = vpop.f32.mrb[0].mxu0
          %v2777 = vadd.f32 0.0, %v2776
          %v2778 = vpop.f32.mrb[0].mxu0
          %2779 = vmatprep.mubr.f32.mxu0 0.0
          %2780 = vmatmul.mubr.f32.gmra.mrb[0].mxu0 %v2638
          %v2781 = vpop.f32.mrb[0].mxu0
          %v2782 = vadd.f32 0.0, %v2781
          %v2783 = vpop.f32.mrb[0].mxu0
          %2784 = vdwg.mxu0
          %v2786 = vsel %vm2481, %v2551, 0
          %v2789 = vsel %vm2481, %v2552, 0
          %v2792 = vsel %vm2481, %v2553, 0
          %v2795 = vsel %vm2481, %v2554, 0
          %v2798 = vsel %vm2481, %v2555, 0
          %v2801 = vsel %vm2481, %v2556, 0
          %v2804 = vsel %vm2481, %v2557, 0
          %v2807 = vsel %vm2481, %v2558, 0
          %v2810 = vsel %vm2481, %v2559, 0
          %v2813 = vsel %vm2481, %v2560, 0
          %v2816 = vsel %vm2481, %v2561, 0
          %v2819 = vsel %vm2481, %v2562, 0
          %v2822 = vsel %vm2481, %v2563, 0
          %v2825 = vsel %vm2481, %v2564, 0
          %v2828 = vsel %vm2481, %v2565, 0
          %v2831 = vsel %vm2481, %v2566, 0
          %2833 = vmatprep.subr.mxu0 0.0
          %2834 = vmatpush1.msra.mxu0 %v2567
          %2835 = vmatprep.subr.mxu0 0.0
          %2836 = vmatpush1.msra.mxu0 %v2568
          %2837 = vmatprep.subr.mxu0 0.0
          %2838 = vmatpush1.msra.mxu0 %v2569
          %2839 = vmatprep.subr.mxu0 0.0
          %2840 = vmatpush1.msra.mxu0 %v2570
          %2841 = vmatprep.subr.mxu0 0.0
          %2842 = vmatpush1.msra.mxu0 0.0
          %2843 = vmatprep.subr.mxu0 0.0
          %2844 = vmatpush1.msra.mxu0 0.0
          %2845 = vmatprep.subr.mxu0 0.0
          %2846 = vmatpush1.msra.mxu0 0.0
          %2847 = vmatprep.subr.mxu0 0.0
          %2848 = vmatpush1.msra.mxu0 0.0
          %2849 = vmatprep.subr.mxu0 0.0
          %2850 = vmatpush1.msra.mxu0 0.0
          %2851 = vmatprep.subr.mxu0 0.0
          %2852 = vmatpush1.msra.mxu0 0.0
          %2853 = vmatprep.subr.mxu0 0.0
          %2854 = vmatpush1.msra.mxu0 0.0
          %2855 = vmatprep.subr.mxu0 0.0
          %2856 = vmatpush1.msra.mxu0 0.0
          %2857 = vmatprep.subr.mxu0 0.0
          %2858 = vmatpush1.msra.mxu0 0.0
          %2859 = vmatprep.subr.mxu0 0.0
          %2860 = vmatpush1.msra.mxu0 0.0
          %2861 = vmatprep.subr.mxu0 0.0
          %2862 = vmatpush1.msra.mxu0 0.0
          %2863 = vmatprep.subr.mxu0 0.0
          %2864 = vmatpush1.msra.mxu0 0.0
          %2865 = vmatprep.subr.mxu0 0.0
          %2866 = vmatpush1.msra.mxu0 0.0
          %2867 = vmatprep.subr.mxu0 0.0
          %2868 = vmatpush1.msra.mxu0 0.0
          %2869 = vmatprep.subr.mxu0 0.0
          %2870 = vmatpush1.msra.mxu0 0.0
          %2871 = vmatprep.subr.mxu0 0.0
          %2872 = vmatpush1.msra.mxu0 0.0
          %2873 = vmatprep.subr.mxu0 0.0
          %2874 = vmatpush1.msra.mxu0 0.0
          %2875 = vmatprep.subr.mxu0 0.0
          %2876 = vmatpush1.msra.mxu0 0.0
          %2877 = vmatprep.subr.mxu0 0.0
          %2878 = vmatpush1.msra.mxu0 0.0
          %2879 = vmatprep.subr.mxu0 0.0
          %2880 = vmatpush1.msra.mxu0 0.0
          %2881 = vmatprep.subr.mxu0 0.0
          %2882 = vmatpush1.msra.mxu0 0.0
          %2883 = vmatprep.subr.mxu0 0.0
          %2884 = vmatpush1.msra.mxu0 0.0
          %2885 = vmatprep.subr.mxu0 0.0
          %2886 = vmatpush1.msra.mxu0 0.0
          %2887 = vmatprep.subr.mxu0 0.0
          %2888 = vmatpush1.msra.mxu0 0.0
          %2889 = vmatprep.subr.mxu0 0.0
          %2890 = vmatpush1.msra.mxu0 0.0
          %2891 = vmatprep.subr.mxu0 0.0
          %2892 = vmatpush1.msra.mxu0 0.0
          %2893 = vmatprep.subr.mxu0 0.0
          %2894 = vmatpush1.msra.mxu0 0.0
          %2895 = vmatprep.subr.mxu0 0.0
          %2896 = vmatpush1.msra.mxu0 0.0
          %2897 = vmatprep.mubr.f32.mxu0 0.0
          %2898 = vmatmul.mubr.f32.gmra.mrb[0].mxu0 %v2786
          %v2899 = vpop.f32.mrb[0].mxu0
          %v2900 = vadd.f32 %v2707, %v2899
          %v2901 = vpop.f32.mrb[0].mxu0
          %2902 = vmatprep.mubr.f32.mxu0 0.0
          %2903 = vmatmul.mubr.f32.gmra.mrb[0].mxu0 %v2789
          %v2904 = vpop.f32.mrb[0].mxu0
          %v2905 = vadd.f32 %v2712, %v2904
          %v2906 = vpop.f32.mrb[0].mxu0
          %2907 = vmatprep.mubr.f32.mxu0 0.0
          %2908 = vmatmul.mubr.f32.gmra.mrb[0].mxu0 %v2792
          %v2909 = vpop.f32.mrb[0].mxu0
          %v2910 = vadd.f32 %v2717, %v2909
          %v2911 = vpop.f32.mrb[0].mxu0
          %2912 = vmatprep.mubr.f32.mxu0 0.0
          %2913 = vmatmul.mubr.f32.gmra.mrb[0].mxu0 %v2795
          %v2914 = vpop.f32.mrb[0].mxu0
          %v2915 = vadd.f32 %v2722, %v2914
          %v2916 = vpop.f32.mrb[0].mxu0
          %2917 = vmatprep.mubr.f32.mxu0 0.0
          %2918 = vmatmul.mubr.f32.gmra.mrb[0].mxu0 %v2798
          %v2919 = vpop.f32.mrb[0].mxu0
          %v2920 = vadd.f32 %v2727, %v2919
          %v2921 = vpop.f32.mrb[0].mxu0
          %2922 = vmatprep.mubr.f32.mxu0 0.0
          %2923 = vmatmul.mubr.f32.gmra.mrb[0].mxu0 %v2801
          %v2924 = vpop.f32.mrb[0].mxu0
          %v2925 = vadd.f32 %v2732, %v2924
          %v2926 = vpop.f32.mrb[0].mxu0
          %2927 = vmatprep.mubr.f32.mxu0 0.0
          %2928 = vmatmul.mubr.f32.gmra.mrb[0].mxu0 %v2804
          %v2929 = vpop.f32.mrb[0].mxu0
          %v2930 = vadd.f32 %v2737, %v2929
          %v2931 = vpop.f32.mrb[0].mxu0
          %2932 = vmatprep.mubr.f32.mxu0 0.0
          %2933 = vmatmul.mubr.f32.gmra.mrb[0].mxu0 %v2807
          %v2934 = vpop.f32.mrb[0].mxu0
          %v2935 = vadd.f32 %v2742, %v2934
          %v2936 = vpop.f32.mrb[0].mxu0
          %2937 = vmatprep.mubr.f32.mxu0 0.0
          %2938 = vmatmul.mubr.f32.gmra.mrb[0].mxu0 %v2810
          %v2939 = vpop.f32.mrb[0].mxu0
          %v2940 = vadd.f32 %v2747, %v2939
          %v2941 = vpop.f32.mrb[0].mxu0
          %2942 = vmatprep.mubr.f32.mxu0 0.0
          %2943 = vmatmul.mubr.f32.gmra.mrb[0].mxu0 %v2813
          %v2944 = vpop.f32.mrb[0].mxu0
          %v2945 = vadd.f32 %v2752, %v2944
          %v2946 = vpop.f32.mrb[0].mxu0
          %2947 = vmatprep.mubr.f32.mxu0 0.0
          %2948 = vmatmul.mubr.f32.gmra.mrb[0].mxu0 %v2816
          %v2949 = vpop.f32.mrb[0].mxu0
          %v2950 = vadd.f32 %v2757, %v2949
          %v2951 = vpop.f32.mrb[0].mxu0
          %2952 = vmatprep.mubr.f32.mxu0 0.0
          %2953 = vmatmul.mubr.f32.gmra.mrb[0].mxu0 %v2819
          %v2954 = vpop.f32.mrb[0].mxu0
          %v2955 = vadd.f32 %v2762, %v2954
          %v2956 = vpop.f32.mrb[0].mxu0
          %2957 = vmatprep.mubr.f32.mxu0 0.0
          %2958 = vmatmul.mubr.f32.gmra.mrb[0].mxu0 %v2822
          %v2959 = vpop.f32.mrb[0].mxu0
          %v2960 = vadd.f32 %v2767, %v2959
          %v2961 = vpop.f32.mrb[0].mxu0
          %2962 = vmatprep.mubr.f32.mxu0 0.0
          %2963 = vmatmul.mubr.f32.gmra.mrb[0].mxu0 %v2825
          %v2964 = vpop.f32.mrb[0].mxu0
          %v2965 = vadd.f32 %v2772, %v2964
          %v2966 = vpop.f32.mrb[0].mxu0
          %2967 = vmatprep.mubr.f32.mxu0 0.0
          %2968 = vmatmul.mubr.f32.gmra.mrb[0].mxu0 %v2828
          %v2969 = vpop.f32.mrb[0].mxu0
          %v2970 = vadd.f32 %v2777, %v2969
          %v2971 = vpop.f32.mrb[0].mxu0
          %2972 = vmatprep.mubr.f32.mxu0 0.0
          %2973 = vmatmul.mubr.f32.gmra.mrb[0].mxu0 %v2831
          %v2974 = vpop.f32.mrb[0].mxu0
          %v2975 = vadd.f32 %v2782, %v2974
          %v2976 = vpop.f32.mrb[0].mxu0
          %2977 = vdwg.mxu0
          %v2978 = vld [vmem:[#allocation3 + $0x2] sm:$0xff]
          %v2979 = vld [vmem:[#allocation3 + $0x12] sm:$0xff]
          %v2980 = vld [vmem:[#allocation3 + $0x22] sm:$0xff]
          %v2981 = vld [vmem:[#allocation3 + $0x32] sm:$0xff]
          %v2982 = vld [vmem:[#allocation3 + $0x42] sm:$0xff]
          %v2983 = vld [vmem:[#allocation3 + $0x52] sm:$0xff]
          %v2984 = vld [vmem:[#allocation3 + $0x62] sm:$0xff]
          %v2985 = vld [vmem:[#allocation3 + $0x72] sm:$0xff]
          %v2986 = vld [vmem:[#allocation3 + $0xa2] sm:$0xff]
          %v2987 = vld [vmem:[#allocation3 + $0xb2] sm:$0xff]
          %v2988 = vld [vmem:[#allocation3 + $0xc2] sm:$0xff]
          %v2989 = vld [vmem:[#allocation3 + $0xd2] sm:$0xff]
          %v2990 = vld [vmem:[#allocation3 + $0xe2] sm:$0xff]
          %v2991 = vld [vmem:[#allocation3 + $0xf2] sm:$0xff]
          %v2992 = vld [vmem:[#allocation3 + $0x102] sm:$0xff]
          %v2993 = vld [vmem:[#allocation3 + $0x112] sm:$0xff]
          %s2994 = scalar_lea.vmem [#allocation9], 64
          %v2995 = vld [vmem:[%s2994] sm:$0xff]
          %v2996 = vld [vmem:[%s2994 + $0x8] sm:$0xff]
          %v2997 = vld [vmem:[%s2994 + $0x10] sm:$0xff]
          %v2998 = vld [vmem:[%s2994 + $0x18] sm:$0xff]
          %v3000 = vsel %vm2481, %v2978, 0
          %v3003 = vsel %vm2481, %v2979, 0
          %v3006 = vsel %vm2481, %v2980, 0
          %v3009 = vsel %vm2481, %v2981, 0
          %v3012 = vsel %vm2481, %v2982, 0
          %v3015 = vsel %vm2481, %v2983, 0
          %v3018 = vsel %vm2481, %v2984, 0
          %v3021 = vsel %vm2481, %v2985, 0
          %v3024 = vsel %vm2481, %v2986, 0
          %v3027 = vsel %vm2481, %v2987, 0
          %v3030 = vsel %vm2481, %v2988, 0
          %v3033 = vsel %vm2481, %v2989, 0
          %v3036 = vsel %vm2481, %v2990, 0
          %v3039 = vsel %vm2481, %v2991, 0
          %v3042 = vsel %vm2481, %v2992, 0
          %v3045 = vsel %vm2481, %v2993, 0
          %3047 = vmatprep.subr.mxu0 0.0
          %3048 = vmatpush1.msra.mxu0 %v2995
          %3049 = vmatprep.subr.mxu0 0.0
          %3050 = vmatpush1.msra.mxu0 %v2996
          %3051 = vmatprep.subr.mxu0 0.0
          %3052 = vmatpush1.msra.mxu0 %v2997
          %3053 = vmatprep.subr.mxu0 0.0
          %3054 = vmatpush1.msra.mxu0 %v2998
          %3055 = vmatprep.subr.mxu0 0.0
          %3056 = vmatpush1.msra.mxu0 0.0
          %3057 = vmatprep.subr.mxu0 0.0
          %3058 = vmatpush1.msra.mxu0 0.0
          %3059 = vmatprep.subr.mxu0 0.0
          %3060 = vmatpush1.msra.mxu0 0.0
          %3061 = vmatprep.subr.mxu0 0.0
          %3062 = vmatpush1.msra.mxu0 0.0
          %3063 = vmatprep.subr.mxu0 0.0
          %3064 = vmatpush1.msra.mxu0 0.0
          %3065 = vmatprep.subr.mxu0 0.0
          %3066 = vmatpush1.msra.mxu0 0.0
          %3067 = vmatprep.subr.mxu0 0.0
          %3068 = vmatpush1.msra.mxu0 0.0
          %3069 = vmatprep.subr.mxu0 0.0
          %3070 = vmatpush1.msra.mxu0 0.0
          %3071 = vmatprep.subr.mxu0 0.0
          %3072 = vmatpush1.msra.mxu0 0.0
          %3073 = vmatprep.subr.mxu0 0.0
          %3074 = vmatpush1.msra.mxu0 0.0
          %3075 = vmatprep.subr.mxu0 0.0
          %3076 = vmatpush1.msra.mxu0 0.0
          %3077 = vmatprep.subr.mxu0 0.0
          %3078 = vmatpush1.msra.mxu0 0.0
          %3079 = vmatprep.subr.mxu0 0.0
          %3080 = vmatpush1.msra.mxu0 0.0
          %3081 = vmatprep.subr.mxu0 0.0
          %3082 = vmatpush1.msra.mxu0 0.0
          %3083 = vmatprep.subr.mxu0 0.0
          %3084 = vmatpush1.msra.mxu0 0.0
          %3085 = vmatprep.subr.mxu0 0.0
          %3086 = vmatpush1.msra.mxu0 0.0
          %3087 = vmatprep.subr.mxu0 0.0
          %3088 = vmatpush1.msra.mxu0 0.0
          %3089 = vmatprep.subr.mxu0 0.0
          %3090 = vmatpush1.msra.mxu0 0.0
          %3091 = vmatprep.subr.mxu0 0.0
          %3092 = vmatpush1.msra.mxu0 0.0
          %3093 = vmatprep.subr.mxu0 0.0
          %3094 = vmatpush1.msra.mxu0 0.0
          %3095 = vmatprep.subr.mxu0 0.0
          %3096 = vmatpush1.msra.mxu0 0.0
          %3097 = vmatprep.subr.mxu0 0.0
          %3098 = vmatpush1.msra.mxu0 0.0
          %3099 = vmatprep.subr.mxu0 0.0
          %3100 = vmatpush1.msra.mxu0 0.0
          %3101 = vmatprep.subr.mxu0 0.0
          %3102 = vmatpush1.msra.mxu0 0.0
          %3103 = vmatprep.subr.mxu0 0.0
          %3104 = vmatpush1.msra.mxu0 0.0
          %3105 = vmatprep.subr.mxu0 0.0
          %3106 = vmatpush1.msra.mxu0 0.0
          %3107 = vmatprep.subr.mxu0 0.0
          %3108 = vmatpush1.msra.mxu0 0.0
          %3109 = vmatprep.subr.mxu0 0.0
          %3110 = vmatpush1.msra.mxu0 0.0
          %3111 = vmatprep.mubr.f32.mxu0 0.0
          %3112 = vmatmul.mubr.f32.gmra.mrb[0].mxu0 %v3000
          %v3113 = vpop.f32.mrb[0].mxu0
          %v3114 = vadd.f32 0.0, %v3113
          %v3115 = vpop.f32.mrb[0].mxu0
          %3116 = vmatprep.mubr.f32.mxu0 0.0
          %3117 = vmatmul.mubr.f32.gmra.mrb[0].mxu0 %v3003
          %v3118 = vpop.f32.mrb[0].mxu0
          %v3119 = vadd.f32 0.0, %v3118
          %v3120 = vpop.f32.mrb[0].mxu0
          %3121 = vmatprep.mubr.f32.mxu0 0.0
          %3122 = vmatmul.mubr.f32.gmra.mrb[0].mxu0 %v3006
          %v3123 = vpop.f32.mrb[0].mxu0
          %v3124 = vadd.f32 0.0, %v3123
          %v3125 = vpop.f32.mrb[0].mxu0
          %3126 = vmatprep.mubr.f32.mxu0 0.0
          %3127 = vmatmul.mubr.f32.gmra.mrb[0].mxu0 %v3009
          %v3128 = vpop.f32.mrb[0].mxu0
          %v3129 = vadd.f32 0.0, %v3128
          %v3130 = vpop.f32.mrb[0].mxu0
          %3131 = vmatprep.mubr.f32.mxu0 0.0
          %3132 = vmatmul.mubr.f32.gmra.mrb[0].mxu0 %v3012
          %v3133 = vpop.f32.mrb[0].mxu0
          %v3134 = vadd.f32 0.0, %v3133
          %v3135 = vpop.f32.mrb[0].mxu0
          %3136 = vmatprep.mubr.f32.mxu0 0.0
          %3137 = vmatmul.mubr.f32.gmra.mrb[0].mxu0 %v3015
          %v3138 = vpop.f32.mrb[0].mxu0
          %v3139 = vadd.f32 0.0, %v3138
          %v3140 = vpop.f32.mrb[0].mxu0
          %3141 = vmatprep.mubr.f32.mxu0 0.0
          %3142 = vmatmul.mubr.f32.gmra.mrb[0].mxu0 %v3018
          %v3143 = vpop.f32.mrb[0].mxu0
          %v3144 = vadd.f32 0.0, %v3143
          %v3145 = vpop.f32.mrb[0].mxu0
          %3146 = vmatprep.mubr.f32.mxu0 0.0
          %3147 = vmatmul.mubr.f32.gmra.mrb[0].mxu0 %v3021
          %v3148 = vpop.f32.mrb[0].mxu0
          %v3149 = vadd.f32 0.0, %v3148
          %v3150 = vpop.f32.mrb[0].mxu0
          %3151 = vmatprep.mubr.f32.mxu0 0.0
          %3152 = vmatmul.mubr.f32.gmra.mrb[0].mxu0 %v3024
          %v3153 = vpop.f32.mrb[0].mxu0
          %v3154 = vadd.f32 0.0, %v3153
          %v3155 = vpop.f32.mrb[0].mxu0
          %3156 = vmatprep.mubr.f32.mxu0 0.0
          %3157 = vmatmul.mubr.f32.gmra.mrb[0].mxu0 %v3027
          %v3158 = vpop.f32.mrb[0].mxu0
          %v3159 = vadd.f32 0.0, %v3158
          %v3160 = vpop.f32.mrb[0].mxu0
          %3161 = vmatprep.mubr.f32.mxu0 0.0
          %3162 = vmatmul.mubr.f32.gmra.mrb[0].mxu0 %v3030
          %v3163 = vpop.f32.mrb[0].mxu0
          %v3164 = vadd.f32 0.0, %v3163
          %v3165 = vpop.f32.mrb[0].mxu0
          %3166 = vmatprep.mubr.f32.mxu0 0.0
          %3167 = vmatmul.mubr.f32.gmra.mrb[0].mxu0 %v3033
          %v3168 = vpop.f32.mrb[0].mxu0
          %v3169 = vadd.f32 0.0, %v3168
          %v3170 = vpop.f32.mrb[0].mxu0
          %3171 = vmatprep.mubr.f32.mxu0 0.0
          %3172 = vmatmul.mubr.f32.gmra.mrb[0].mxu0 %v3036
          %v3173 = vpop.f32.mrb[0].mxu0
          %v3174 = vadd.f32 0.0, %v3173
          %v3175 = vpop.f32.mrb[0].mxu0
          %3176 = vmatprep.mubr.f32.mxu0 0.0
          %3177 = vmatmul.mubr.f32.gmra.mrb[0].mxu0 %v3039
          %v3178 = vpop.f32.mrb[0].mxu0
          %v3179 = vadd.f32 0.0, %v3178
          %v3180 = vpop.f32.mrb[0].mxu0
          %3181 = vmatprep.mubr.f32.mxu0 0.0
          %3182 = vmatmul.mubr.f32.gmra.mrb[0].mxu0 %v3042
          %v3183 = vpop.f32.mrb[0].mxu0
          %v3184 = vadd.f32 0.0, %v3183
          %v3185 = vpop.f32.mrb[0].mxu0
          %3186 = vmatprep.mubr.f32.mxu0 0.0
          %3187 = vmatmul.mubr.f32.gmra.mrb[0].mxu0 %v3045
          %v3188 = vpop.f32.mrb[0].mxu0
          %v3189 = vadd.f32 0.0, %v3188
          %v3190 = vpop.f32.mrb[0].mxu0
          %3191 = vdwg.mxu0
          %v3192 = vadd.f32 %v2900, %v3114
          %v3193 = vadd.f32 %v2905, %v3119
          %v3194 = vadd.f32 %v2910, %v3124
          %v3195 = vadd.f32 %v2915, %v3129
          %v3196 = vadd.f32 %v2920, %v3134
          %v3197 = vadd.f32 %v2925, %v3139
          %v3198 = vadd.f32 %v2930, %v3144
          %v3199 = vadd.f32 %v2935, %v3149
          %v3200 = vadd.f32 %v2940, %v3154
          %v3201 = vadd.f32 %v2945, %v3159
          %v3202 = vadd.f32 %v2950, %v3164
          %v3203 = vadd.f32 %v2955, %v3169
          %v3204 = vadd.f32 %v2960, %v3174
          %v3205 = vadd.f32 %v2965, %v3179
          %v3206 = vadd.f32 %v2970, %v3184
          %v3207 = vadd.f32 %v2975, %v3189
          %v3208 = vld [vmem:[%s2533] sm:$0xff]
          %v3209 = vld [vmem:[%s2533 + $0x10] sm:$0xff]
          %v3210 = vld [vmem:[%s2533 + $0x20] sm:$0xff]
          %v3211 = vld [vmem:[%s2533 + $0x30] sm:$0xff]
          %v3212 = vld [vmem:[%s2533 + $0x40] sm:$0xff]
          %v3213 = vld [vmem:[%s2533 + $0x50] sm:$0xff]
          %v3214 = vld [vmem:[%s2533 + $0x60] sm:$0xff]
          %v3215 = vld [vmem:[%s2533 + $0x70] sm:$0xff]
          %v3216 = vld [vmem:[%s2533 + $0xa0] sm:$0xff]
          %v3217 = vld [vmem:[%s2533 + $0xb0] sm:$0xff]
          %v3218 = vld [vmem:[%s2533 + $0xc0] sm:$0xff]
          %v3219 = vld [vmem:[%s2533 + $0xd0] sm:$0xff]
          %v3220 = vld [vmem:[%s2533 + $0xe0] sm:$0xff]
          %v3221 = vld [vmem:[%s2533 + $0xf0] sm:$0xff]
          %v3222 = vld [vmem:[%s2533 + $0x100] sm:$0xff]
          %v3223 = vld [vmem:[%s2533 + $0x110] sm:$0xff]
          %s3224 = scalar_lea.vmem [#allocation9], 96
          %v3225 = vld [vmem:[%s3224] sm:$0xff]
          %v3226 = vld [vmem:[%s3224 + $0x8] sm:$0xff]
          %v3227 = vld [vmem:[%s3224 + $0x10] sm:$0xff]
          %v3228 = vld [vmem:[%s3224 + $0x18] sm:$0xff]
          %v3230 = vsel %vm2481, %v3208, 0
          %v3233 = vsel %vm2481, %v3209, 0
          %v3236 = vsel %vm2481, %v3210, 0
          %v3239 = vsel %vm2481, %v3211, 0
          %v3242 = vsel %vm2481, %v3212, 0
          %v3245 = vsel %vm2481, %v3213, 0
          %v3248 = vsel %vm2481, %v3214, 0
          %v3251 = vsel %vm2481, %v3215, 0
          %v3254 = vsel %vm2481, %v3216, 0
          %v3257 = vsel %vm2481, %v3217, 0
          %v3260 = vsel %vm2481, %v3218, 0
          %v3263 = vsel %vm2481, %v3219, 0
          %v3266 = vsel %vm2481, %v3220, 0
          %v3269 = vsel %vm2481, %v3221, 0
          %v3272 = vsel %vm2481, %v3222, 0
          %v3275 = vsel %vm2481, %v3223, 0
          %3277 = vmatprep.subr.mxu0 0.0
          %3278 = vmatpush1.msra.mxu0 %v3225
          %3279 = vmatprep.subr.mxu0 0.0
          %3280 = vmatpush1.msra.mxu0 %v3226
          %3281 = vmatprep.subr.mxu0 0.0
          %3282 = vmatpush1.msra.mxu0 %v3227
          %3283 = vmatprep.subr.mxu0 0.0
          %3284 = vmatpush1.msra.mxu0 %v3228
          %3285 = vmatprep.subr.mxu0 0.0
          %3286 = vmatpush1.msra.mxu0 0.0
          %3287 = vmatprep.subr.mxu0 0.0
          %3288 = vmatpush1.msra.mxu0 0.0
          %3289 = vmatprep.subr.mxu0 0.0
          %3290 = vmatpush1.msra.mxu0 0.0
          %3291 = vmatprep.subr.mxu0 0.0
          %3292 = vmatpush1.msra.mxu0 0.0
          %3293 = vmatprep.subr.mxu0 0.0
          %3294 = vmatpush1.msra.mxu0 0.0
          %3295 = vmatprep.subr.mxu0 0.0
          %3296 = vmatpush1.msra.mxu0 0.0
          %3297 = vmatprep.subr.mxu0 0.0
          %3298 = vmatpush1.msra.mxu0 0.0
          %3299 = vmatprep.subr.mxu0 0.0
          %3300 = vmatpush1.msra.mxu0 0.0
          %3301 = vmatprep.subr.mxu0 0.0
          %3302 = vmatpush1.msra.mxu0 0.0
          %3303 = vmatprep.subr.mxu0 0.0
          %3304 = vmatpush1.msra.mxu0 0.0
          %3305 = vmatprep.subr.mxu0 0.0
          %3306 = vmatpush1.msra.mxu0 0.0
          %3307 = vmatprep.subr.mxu0 0.0
          %3308 = vmatpush1.msra.mxu0 0.0
          %3309 = vmatprep.subr.mxu0 0.0
          %3310 = vmatpush1.msra.mxu0 0.0
          %3311 = vmatprep.subr.mxu0 0.0
          %3312 = vmatpush1.msra.mxu0 0.0
          %3313 = vmatprep.subr.mxu0 0.0
          %3314 = vmatpush1.msra.mxu0 0.0
          %3315 = vmatprep.subr.mxu0 0.0
          %3316 = vmatpush1.msra.mxu0 0.0
          %3317 = vmatprep.subr.mxu0 0.0
          %3318 = vmatpush1.msra.mxu0 0.0
          %3319 = vmatprep.subr.mxu0 0.0
          %3320 = vmatpush1.msra.mxu0 0.0
          %3321 = vmatprep.subr.mxu0 0.0
          %3322 = vmatpush1.msra.mxu0 0.0
          %3323 = vmatprep.subr.mxu0 0.0
          %3324 = vmatpush1.msra.mxu0 0.0
          %3325 = vmatprep.subr.mxu0 0.0
          %3326 = vmatpush1.msra.mxu0 0.0
          %3327 = vmatprep.subr.mxu0 0.0
          %3328 = vmatpush1.msra.mxu0 0.0
          %3329 = vmatprep.subr.mxu0 0.0
          %3330 = vmatpush1.msra.mxu0 0.0
          %3331 = vmatprep.subr.mxu0 0.0
          %3332 = vmatpush1.msra.mxu0 0.0
          %3333 = vmatprep.subr.mxu0 0.0
          %3334 = vmatpush1.msra.mxu0 0.0
          %3335 = vmatprep.subr.mxu0 0.0
          %3336 = vmatpush1.msra.mxu0 0.0
          %3337 = vmatprep.subr.mxu0 0.0
          %3338 = vmatpush1.msra.mxu0 0.0
          %3339 = vmatprep.subr.mxu0 0.0
          %3340 = vmatpush1.msra.mxu0 0.0
          %3341 = vmatprep.mubr.f32.mxu0 0.0
          %3342 = vmatmul.mubr.f32.gmra.mrb[0].mxu0 %v3230
          %v3343 = vpop.f32.mrb[0].mxu0
          %v3344 = vadd.f32 0.0, %v3343
          %v3345 = vpop.f32.mrb[0].mxu0
          %3346 = vmatprep.mubr.f32.mxu0 0.0
          %3347 = vmatmul.mubr.f32.gmra.mrb[0].mxu0 %v3233
          %v3348 = vpop.f32.mrb[0].mxu0
          %v3349 = vadd.f32 0.0, %v3348
          %v3350 = vpop.f32.mrb[0].mxu0
          %3351 = vmatprep.mubr.f32.mxu0 0.0
          %3352 = vmatmul.mubr.f32.gmra.mrb[0].mxu0 %v3236
          %v3353 = vpop.f32.mrb[0].mxu0
          %v3354 = vadd.f32 0.0, %v3353
          %v3355 = vpop.f32.mrb[0].mxu0
          %3356 = vmatprep.mubr.f32.mxu0 0.0
          %3357 = vmatmul.mubr.f32.gmra.mrb[0].mxu0 %v3239
          %v3358 = vpop.f32.mrb[0].mxu0
          %v3359 = vadd.f32 0.0, %v3358
          %v3360 = vpop.f32.mrb[0].mxu0
          %3361 = vmatprep.mubr.f32.mxu0 0.0
          %3362 = vmatmul.mubr.f32.gmra.mrb[0].mxu0 %v3242
          %v3363 = vpop.f32.mrb[0].mxu0
          %v3364 = vadd.f32 0.0, %v3363
          %v3365 = vpop.f32.mrb[0].mxu0
          %3366 = vmatprep.mubr.f32.mxu0 0.0
          %3367 = vmatmul.mubr.f32.gmra.mrb[0].mxu0 %v3245
          %v3368 = vpop.f32.mrb[0].mxu0
          %v3369 = vadd.f32 0.0, %v3368
          %v3370 = vpop.f32.mrb[0].mxu0
          %3371 = vmatprep.mubr.f32.mxu0 0.0
          %3372 = vmatmul.mubr.f32.gmra.mrb[0].mxu0 %v3248
          %v3373 = vpop.f32.mrb[0].mxu0
          %v3374 = vadd.f32 0.0, %v3373
          %v3375 = vpop.f32.mrb[0].mxu0
          %3376 = vmatprep.mubr.f32.mxu0 0.0
          %3377 = vmatmul.mubr.f32.gmra.mrb[0].mxu0 %v3251
          %v3378 = vpop.f32.mrb[0].mxu0
          %v3379 = vadd.f32 0.0, %v3378
          %v3380 = vpop.f32.mrb[0].mxu0
          %3381 = vmatprep.mubr.f32.mxu0 0.0
          %3382 = vmatmul.mubr.f32.gmra.mrb[0].mxu0 %v3254
          %v3383 = vpop.f32.mrb[0].mxu0
          %v3384 = vadd.f32 0.0, %v3383
          %v3385 = vpop.f32.mrb[0].mxu0
          %3386 = vmatprep.mubr.f32.mxu0 0.0
          %3387 = vmatmul.mubr.f32.gmra.mrb[0].mxu0 %v3257
          %v3388 = vpop.f32.mrb[0].mxu0
          %v3389 = vadd.f32 0.0, %v3388
          %v3390 = vpop.f32.mrb[0].mxu0
          %3391 = vmatprep.mubr.f32.mxu0 0.0
          %3392 = vmatmul.mubr.f32.gmra.mrb[0].mxu0 %v3260
          %v3393 = vpop.f32.mrb[0].mxu0
          %v3394 = vadd.f32 0.0, %v3393
          %v3395 = vpop.f32.mrb[0].mxu0
          %3396 = vmatprep.mubr.f32.mxu0 0.0
          %3397 = vmatmul.mubr.f32.gmra.mrb[0].mxu0 %v3263
          %v3398 = vpop.f32.mrb[0].mxu0
          %v3399 = vadd.f32 0.0, %v3398
          %v3400 = vpop.f32.mrb[0].mxu0
          %3401 = vmatprep.mubr.f32.mxu0 0.0
          %3402 = vmatmul.mubr.f32.gmra.mrb[0].mxu0 %v3266
          %v3403 = vpop.f32.mrb[0].mxu0
          %v3404 = vadd.f32 0.0, %v3403
          %v3405 = vpop.f32.mrb[0].mxu0
          %3406 = vmatprep.mubr.f32.mxu0 0.0
          %3407 = vmatmul.mubr.f32.gmra.mrb[0].mxu0 %v3269
          %v3408 = vpop.f32.mrb[0].mxu0
          %v3409 = vadd.f32 0.0, %v3408
          %v3410 = vpop.f32.mrb[0].mxu0
          %3411 = vmatprep.mubr.f32.mxu0 0.0
          %3412 = vmatmul.mubr.f32.gmra.mrb[0].mxu0 %v3272
          %v3413 = vpop.f32.mrb[0].mxu0
          %v3414 = vadd.f32 0.0, %v3413
          %v3415 = vpop.f32.mrb[0].mxu0
          %3416 = vmatprep.mubr.f32.mxu0 0.0
          %3417 = vmatmul.mubr.f32.gmra.mrb[0].mxu0 %v3275
          %v3418 = vpop.f32.mrb[0].mxu0
          %v3419 = vadd.f32 0.0, %v3418
          %v3420 = vpop.f32.mrb[0].mxu0
          %3421 = vdwg.mxu0
          %v3422 = vadd.f32 %v3192, %v3344
          %v3423 = vadd.f32 %v3193, %v3349
          %v3424 = vadd.f32 %v3194, %v3354
          %v3425 = vadd.f32 %v3195, %v3359
          %v3426 = vadd.f32 %v3196, %v3364
          %v3427 = vadd.f32 %v3197, %v3369
          %v3428 = vadd.f32 %v3198, %v3374
          %v3429 = vadd.f32 %v3199, %v3379
          %v3430 = vadd.f32 %v3200, %v3384
          %v3431 = vadd.f32 %v3201, %v3389
          %v3432 = vadd.f32 %v3202, %v3394
          %v3433 = vadd.f32 %v3203, %v3399
          %v3434 = vadd.f32 %v3204, %v3404
          %v3435 = vadd.f32 %v3205, %v3409
          %v3436 = vadd.f32 %v3206, %v3414
          %v3437 = vadd.f32 %v3207, %v3419
          %v3438 = vld [vmem:[%s2533 + $0x1] sm:$0xff]
          %v3439 = vld [vmem:[%s2533 + $0x11] sm:$0xff]
          %v3440 = vld [vmem:[%s2533 + $0x21] sm:$0xff]
          %v3441 = vld [vmem:[%s2533 + $0x31] sm:$0xff]
          %v3442 = vld [vmem:[%s2533 + $0x41] sm:$0xff]
          %v3443 = vld [vmem:[%s2533 + $0x51] sm:$0xff]
          %v3444 = vld [vmem:[%s2533 + $0x61] sm:$0xff]
          %v3445 = vld [vmem:[%s2533 + $0x71] sm:$0xff]
          %v3446 = vld [vmem:[%s2533 + $0xa1] sm:$0xff]
          %v3447 = vld [vmem:[%s2533 + $0xb1] sm:$0xff]
          %v3448 = vld [vmem:[%s2533 + $0xc1] sm:$0xff]
          %v3449 = vld [vmem:[%s2533 + $0xd1] sm:$0xff]
          %v3450 = vld [vmem:[%s2533 + $0xe1] sm:$0xff]
          %v3451 = vld [vmem:[%s2533 + $0xf1] sm:$0xff]
          %v3452 = vld [vmem:[%s2533 + $0x101] sm:$0xff]
          %v3453 = vld [vmem:[%s2533 + $0x111] sm:$0xff]
          %s3454 = scalar_lea.vmem [#allocation9], 128
          %v3455 = vld [vmem:[%s3454] sm:$0xff]
          %v3456 = vld [vmem:[%s3454 + $0x8] sm:$0xff]
          %v3457 = vld [vmem:[%s3454 + $0x10] sm:$0xff]
          %v3458 = vld [vmem:[%s3454 + $0x18] sm:$0xff]
          %v3460 = vsel %vm2481, %v3438, 0
          %v3463 = vsel %vm2481, %v3439, 0
          %v3466 = vsel %vm2481, %v3440, 0
          %v3469 = vsel %vm2481, %v3441, 0
          %v3472 = vsel %vm2481, %v3442, 0
          %v3475 = vsel %vm2481, %v3443, 0
          %v3478 = vsel %vm2481, %v3444, 0
          %v3481 = vsel %vm2481, %v3445, 0
          %v3484 = vsel %vm2481, %v3446, 0
          %v3487 = vsel %vm2481, %v3447, 0
          %v3490 = vsel %vm2481, %v3448, 0
          %v3493 = vsel %vm2481, %v3449, 0
          %v3496 = vsel %vm2481, %v3450, 0
          %v3499 = vsel %vm2481, %v3451, 0
          %v3502 = vsel %vm2481, %v3452, 0
          %v3505 = vsel %vm2481, %v3453, 0
          %3507 = vmatprep.subr.mxu0 0.0
          %3508 = vmatpush1.msra.mxu0 %v3455
          %3509 = vmatprep.subr.mxu0 0.0
          %3510 = vmatpush1.msra.mxu0 %v3456
          %3511 = vmatprep.subr.mxu0 0.0
          %3512 = vmatpush1.msra.mxu0 %v3457
          %3513 = vmatprep.subr.mxu0 0.0
          %3514 = vmatpush1.msra.mxu0 %v3458
          %3515 = vmatprep.subr.mxu0 0.0
          %3516 = vmatpush1.msra.mxu0 0.0
          %3517 = vmatprep.subr.mxu0 0.0
          %3518 = vmatpush1.msra.mxu0 0.0
          %3519 = vmatprep.subr.mxu0 0.0
          %3520 = vmatpush1.msra.mxu0 0.0
          %3521 = vmatprep.subr.mxu0 0.0
          %3522 = vmatpush1.msra.mxu0 0.0
          %3523 = vmatprep.subr.mxu0 0.0
          %3524 = vmatpush1.msra.mxu0 0.0
          %3525 = vmatprep.subr.mxu0 0.0
          %3526 = vmatpush1.msra.mxu0 0.0
          %3527 = vmatprep.subr.mxu0 0.0
          %3528 = vmatpush1.msra.mxu0 0.0
          %3529 = vmatprep.subr.mxu0 0.0
          %3530 = vmatpush1.msra.mxu0 0.0
          %3531 = vmatprep.subr.mxu0 0.0
          %3532 = vmatpush1.msra.mxu0 0.0
          %3533 = vmatprep.subr.mxu0 0.0
          %3534 = vmatpush1.msra.mxu0 0.0
          %3535 = vmatprep.subr.mxu0 0.0
          %3536 = vmatpush1.msra.mxu0 0.0
          %3537 = vmatprep.subr.mxu0 0.0
          %3538 = vmatpush1.msra.mxu0 0.0
          %3539 = vmatprep.subr.mxu0 0.0
          %3540 = vmatpush1.msra.mxu0 0.0
          %3541 = vmatprep.subr.mxu0 0.0
          %3542 = vmatpush1.msra.mxu0 0.0
          %3543 = vmatprep.subr.mxu0 0.0
          %3544 = vmatpush1.msra.mxu0 0.0
          %3545 = vmatprep.subr.mxu0 0.0
          %3546 = vmatpush1.msra.mxu0 0.0
          %3547 = vmatprep.subr.mxu0 0.0
          %3548 = vmatpush1.msra.mxu0 0.0
          %3549 = vmatprep.subr.mxu0 0.0
          %3550 = vmatpush1.msra.mxu0 0.0
          %3551 = vmatprep.subr.mxu0 0.0
          %3552 = vmatpush1.msra.mxu0 0.0
          %3553 = vmatprep.subr.mxu0 0.0
          %3554 = vmatpush1.msra.mxu0 0.0
          %3555 = vmatprep.subr.mxu0 0.0
          %3556 = vmatpush1.msra.mxu0 0.0
          %3557 = vmatprep.subr.mxu0 0.0
          %3558 = vmatpush1.msra.mxu0 0.0
          %3559 = vmatprep.subr.mxu0 0.0
          %3560 = vmatpush1.msra.mxu0 0.0
          %3561 = vmatprep.subr.mxu0 0.0
          %3562 = vmatpush1.msra.mxu0 0.0
          %3563 = vmatprep.subr.mxu0 0.0
          %3564 = vmatpush1.msra.mxu0 0.0
          %3565 = vmatprep.subr.mxu0 0.0
          %3566 = vmatpush1.msra.mxu0 0.0
          %3567 = vmatprep.subr.mxu0 0.0
          %3568 = vmatpush1.msra.mxu0 0.0
          %3569 = vmatprep.subr.mxu0 0.0
          %3570 = vmatpush1.msra.mxu0 0.0
          %3571 = vmatprep.mubr.f32.mxu0 0.0
          %3572 = vmatmul.mubr.f32.gmra.mrb[0].mxu0 %v3460
          %v3573 = vpop.f32.mrb[0].mxu0
          %v3574 = vadd.f32 0.0, %v3573
          %v3575 = vpop.f32.mrb[0].mxu0
          %3576 = vmatprep.mubr.f32.mxu0 0.0
          %3577 = vmatmul.mubr.f32.gmra.mrb[0].mxu0 %v3463
          %v3578 = vpop.f32.mrb[0].mxu0
          %v3579 = vadd.f32 0.0, %v3578
          %v3580 = vpop.f32.mrb[0].mxu0
          %3581 = vmatprep.mubr.f32.mxu0 0.0
          %3582 = vmatmul.mubr.f32.gmra.mrb[0].mxu0 %v3466
          %v3583 = vpop.f32.mrb[0].mxu0
          %v3584 = vadd.f32 0.0, %v3583
          %v3585 = vpop.f32.mrb[0].mxu0
          %3586 = vmatprep.mubr.f32.mxu0 0.0
          %3587 = vmatmul.mubr.f32.gmra.mrb[0].mxu0 %v3469
          %v3588 = vpop.f32.mrb[0].mxu0
          %v3589 = vadd.f32 0.0, %v3588
          %v3590 = vpop.f32.mrb[0].mxu0
          %3591 = vmatprep.mubr.f32.mxu0 0.0
          %3592 = vmatmul.mubr.f32.gmra.mrb[0].mxu0 %v3472
          %v3593 = vpop.f32.mrb[0].mxu0
          %v3594 = vadd.f32 0.0, %v3593
          %v3595 = vpop.f32.mrb[0].mxu0
          %3596 = vmatprep.mubr.f32.mxu0 0.0
          %3597 = vmatmul.mubr.f32.gmra.mrb[0].mxu0 %v3475
          %v3598 = vpop.f32.mrb[0].mxu0
          %v3599 = vadd.f32 0.0, %v3598
          %v3600 = vpop.f32.mrb[0].mxu0
          %3601 = vmatprep.mubr.f32.mxu0 0.0
          %3602 = vmatmul.mubr.f32.gmra.mrb[0].mxu0 %v3478
          %v3603 = vpop.f32.mrb[0].mxu0
          %v3604 = vadd.f32 0.0, %v3603
          %v3605 = vpop.f32.mrb[0].mxu0
          %3606 = vmatprep.mubr.f32.mxu0 0.0
          %3607 = vmatmul.mubr.f32.gmra.mrb[0].mxu0 %v3481
          %v3608 = vpop.f32.mrb[0].mxu0
          %v3609 = vadd.f32 0.0, %v3608
          %v3610 = vpop.f32.mrb[0].mxu0
          %3611 = vmatprep.mubr.f32.mxu0 0.0
          %3612 = vmatmul.mubr.f32.gmra.mrb[0].mxu0 %v3484
          %v3613 = vpop.f32.mrb[0].mxu0
          %v3614 = vadd.f32 0.0, %v3613
          %v3615 = vpop.f32.mrb[0].mxu0
          %3616 = vmatprep.mubr.f32.mxu0 0.0
          %3617 = vmatmul.mubr.f32.gmra.mrb[0].mxu0 %v3487
          %v3618 = vpop.f32.mrb[0].mxu0
          %v3619 = vadd.f32 0.0, %v3618
          %v3620 = vpop.f32.mrb[0].mxu0
          %3621 = vmatprep.mubr.f32.mxu0 0.0
          %3622 = vmatmul.mubr.f32.gmra.mrb[0].mxu0 %v3490
          %v3623 = vpop.f32.mrb[0].mxu0
          %v3624 = vadd.f32 0.0, %v3623
          %v3625 = vpop.f32.mrb[0].mxu0
          %3626 = vmatprep.mubr.f32.mxu0 0.0
          %3627 = vmatmul.mubr.f32.gmra.mrb[0].mxu0 %v3493
          %v3628 = vpop.f32.mrb[0].mxu0
          %v3629 = vadd.f32 0.0, %v3628
          %v3630 = vpop.f32.mrb[0].mxu0
          %3631 = vmatprep.mubr.f32.mxu0 0.0
          %3632 = vmatmul.mubr.f32.gmra.mrb[0].mxu0 %v3496
          %v3633 = vpop.f32.mrb[0].mxu0
          %v3634 = vadd.f32 0.0, %v3633
          %v3635 = vpop.f32.mrb[0].mxu0
          %3636 = vmatprep.mubr.f32.mxu0 0.0
          %3637 = vmatmul.mubr.f32.gmra.mrb[0].mxu0 %v3499
          %v3638 = vpop.f32.mrb[0].mxu0
          %v3639 = vadd.f32 0.0, %v3638
          %v3640 = vpop.f32.mrb[0].mxu0
          %3641 = vmatprep.mubr.f32.mxu0 0.0
          %3642 = vmatmul.mubr.f32.gmra.mrb[0].mxu0 %v3502
          %v3643 = vpop.f32.mrb[0].mxu0
          %v3644 = vadd.f32 0.0, %v3643
          %v3645 = vpop.f32.mrb[0].mxu0
          %3646 = vmatprep.mubr.f32.mxu0 0.0
          %3647 = vmatmul.mubr.f32.gmra.mrb[0].mxu0 %v3505
          %v3648 = vpop.f32.mrb[0].mxu0
          %v3649 = vadd.f32 0.0, %v3648
          %v3650 = vpop.f32.mrb[0].mxu0
          %3651 = vdwg.mxu0
          %v3652 = vadd.f32 %v3422, %v3574
          %v3653 = vadd.f32 %v3423, %v3579
          %v3654 = vadd.f32 %v3424, %v3584
          %v3655 = vadd.f32 %v3425, %v3589
          %v3656 = vadd.f32 %v3426, %v3594
          %v3657 = vadd.f32 %v3427, %v3599
          %v3658 = vadd.f32 %v3428, %v3604
          %v3659 = vadd.f32 %v3429, %v3609
          %v3660 = vadd.f32 %v3430, %v3614
          %v3661 = vadd.f32 %v3431, %v3619
          %v3662 = vadd.f32 %v3432, %v3624
          %v3663 = vadd.f32 %v3433, %v3629
          %v3664 = vadd.f32 %v3434, %v3634
          %v3665 = vadd.f32 %v3435, %v3639
          %v3666 = vadd.f32 %v3436, %v3644
          %v3667 = vadd.f32 %v3437, %v3649
          %v3668 = vld [vmem:[%s2533 + $0x2] sm:$0xff]
          %v3669 = vld [vmem:[%s2533 + $0x12] sm:$0xff]
          %v3670 = vld [vmem:[%s2533 + $0x22] sm:$0xff]
          %v3671 = vld [vmem:[%s2533 + $0x32] sm:$0xff]
          %v3672 = vld [vmem:[%s2533 + $0x42] sm:$0xff]
          %v3673 = vld [vmem:[%s2533 + $0x52] sm:$0xff]
          %v3674 = vld [vmem:[%s2533 + $0x62] sm:$0xff]
          %v3675 = vld [vmem:[%s2533 + $0x72] sm:$0xff]
          %v3676 = vld [vmem:[%s2533 + $0xa2] sm:$0xff]
          %v3677 = vld [vmem:[%s2533 + $0xb2] sm:$0xff]
          %v3678 = vld [vmem:[%s2533 + $0xc2] sm:$0xff]
          %v3679 = vld [vmem:[%s2533 + $0xd2] sm:$0xff]
          %v3680 = vld [vmem:[%s2533 + $0xe2] sm:$0xff]
          %v3681 = vld [vmem:[%s2533 + $0xf2] sm:$0xff]
          %v3682 = vld [vmem:[%s2533 + $0x102] sm:$0xff]
          %v3683 = vld [vmem:[%s2533 + $0x112] sm:$0xff]
          %s3684 = scalar_lea.vmem [#allocation9], 160
          %v3685 = vld [vmem:[%s3684] sm:$0xff]
          %v3686 = vld [vmem:[%s3684 + $0x8] sm:$0xff]
          %v3687 = vld [vmem:[%s3684 + $0x10] sm:$0xff]
          %v3688 = vld [vmem:[%s3684 + $0x18] sm:$0xff]
          %v3690 = vsel %vm2481, %v3668, 0
          %v3693 = vsel %vm2481, %v3669, 0
          %v3696 = vsel %vm2481, %v3670, 0
          %v3699 = vsel %vm2481, %v3671, 0
          %v3702 = vsel %vm2481, %v3672, 0
          %v3705 = vsel %vm2481, %v3673, 0
          %v3708 = vsel %vm2481, %v3674, 0
          %v3711 = vsel %vm2481, %v3675, 0
          %v3714 = vsel %vm2481, %v3676, 0
          %v3717 = vsel %vm2481, %v3677, 0
          %v3720 = vsel %vm2481, %v3678, 0
          %v3723 = vsel %vm2481, %v3679, 0
          %v3726 = vsel %vm2481, %v3680, 0
          %v3729 = vsel %vm2481, %v3681, 0
          %v3732 = vsel %vm2481, %v3682, 0
          %v3735 = vsel %vm2481, %v3683, 0
          %3737 = vmatprep.subr.mxu0 0.0
          %3738 = vmatpush1.msra.mxu0 %v3685
          %3739 = vmatprep.subr.mxu0 0.0
          %3740 = vmatpush1.msra.mxu0 %v3686
          %3741 = vmatprep.subr.mxu0 0.0
          %3742 = vmatpush1.msra.mxu0 %v3687
          %3743 = vmatprep.subr.mxu0 0.0
          %3744 = vmatpush1.msra.mxu0 %v3688
          %3745 = vmatprep.subr.mxu0 0.0
          %3746 = vmatpush1.msra.mxu0 0.0
          %3747 = vmatprep.subr.mxu0 0.0
          %3748 = vmatpush1.msra.mxu0 0.0
          %3749 = vmatprep.subr.mxu0 0.0
          %3750 = vmatpush1.msra.mxu0 0.0
          %3751 = vmatprep.subr.mxu0 0.0
          %3752 = vmatpush1.msra.mxu0 0.0
          %3753 = vmatprep.subr.mxu0 0.0
          %3754 = vmatpush1.msra.mxu0 0.0
          %3755 = vmatprep.subr.mxu0 0.0
          %3756 = vmatpush1.msra.mxu0 0.0
          %3757 = vmatprep.subr.mxu0 0.0
          %3758 = vmatpush1.msra.mxu0 0.0
          %3759 = vmatprep.subr.mxu0 0.0
          %3760 = vmatpush1.msra.mxu0 0.0
          %3761 = vmatprep.subr.mxu0 0.0
          %3762 = vmatpush1.msra.mxu0 0.0
          %3763 = vmatprep.subr.mxu0 0.0
          %3764 = vmatpush1.msra.mxu0 0.0
          %3765 = vmatprep.subr.mxu0 0.0
          %3766 = vmatpush1.msra.mxu0 0.0
          %3767 = vmatprep.subr.mxu0 0.0
          %3768 = vmatpush1.msra.mxu0 0.0
          %3769 = vmatprep.subr.mxu0 0.0
          %3770 = vmatpush1.msra.mxu0 0.0
          %3771 = vmatprep.subr.mxu0 0.0
          %3772 = vmatpush1.msra.mxu0 0.0
          %3773 = vmatprep.subr.mxu0 0.0
          %3774 = vmatpush1.msra.mxu0 0.0
          %3775 = vmatprep.subr.mxu0 0.0
          %3776 = vmatpush1.msra.mxu0 0.0
          %3777 = vmatprep.subr.mxu0 0.0
          %3778 = vmatpush1.msra.mxu0 0.0
          %3779 = vmatprep.subr.mxu0 0.0
          %3780 = vmatpush1.msra.mxu0 0.0
          %3781 = vmatprep.subr.mxu0 0.0
          %3782 = vmatpush1.msra.mxu0 0.0
          %3783 = vmatprep.subr.mxu0 0.0
          %3784 = vmatpush1.msra.mxu0 0.0
          %3785 = vmatprep.subr.mxu0 0.0
          %3786 = vmatpush1.msra.mxu0 0.0
          %3787 = vmatprep.subr.mxu0 0.0
          %3788 = vmatpush1.msra.mxu0 0.0
          %3789 = vmatprep.subr.mxu0 0.0
          %3790 = vmatpush1.msra.mxu0 0.0
          %3791 = vmatprep.subr.mxu0 0.0
          %3792 = vmatpush1.msra.mxu0 0.0
          %3793 = vmatprep.subr.mxu0 0.0
          %3794 = vmatpush1.msra.mxu0 0.0
          %3795 = vmatprep.subr.mxu0 0.0
          %3796 = vmatpush1.msra.mxu0 0.0
          %3797 = vmatprep.subr.mxu0 0.0
          %3798 = vmatpush1.msra.mxu0 0.0
          %3799 = vmatprep.subr.mxu0 0.0
          %3800 = vmatpush1.msra.mxu0 0.0
          %3801 = vmatprep.mubr.f32.mxu0 0.0
          %3802 = vmatmul.mubr.f32.gmra.mrb[0].mxu0 %v3690
          %v3803 = vpop.f32.mrb[0].mxu0
          %v3804 = vadd.f32 0.0, %v3803
          %v3805 = vpop.f32.mrb[0].mxu0
          %3806 = vmatprep.mubr.f32.mxu0 0.0
          %3807 = vmatmul.mubr.f32.gmra.mrb[0].mxu0 %v3693
          %v3808 = vpop.f32.mrb[0].mxu0
          %v3809 = vadd.f32 0.0, %v3808
          %v3810 = vpop.f32.mrb[0].mxu0
          %3811 = vmatprep.mubr.f32.mxu0 0.0
          %3812 = vmatmul.mubr.f32.gmra.mrb[0].mxu0 %v3696
          %v3813 = vpop.f32.mrb[0].mxu0
          %v3814 = vadd.f32 0.0, %v3813
          %v3815 = vpop.f32.mrb[0].mxu0
          %3816 = vmatprep.mubr.f32.mxu0 0.0
          %3817 = vmatmul.mubr.f32.gmra.mrb[0].mxu0 %v3699
          %v3818 = vpop.f32.mrb[0].mxu0
          %v3819 = vadd.f32 0.0, %v3818
          %v3820 = vpop.f32.mrb[0].mxu0
          %3821 = vmatprep.mubr.f32.mxu0 0.0
          %3822 = vmatmul.mubr.f32.gmra.mrb[0].mxu0 %v3702
          %v3823 = vpop.f32.mrb[0].mxu0
          %v3824 = vadd.f32 0.0, %v3823
          %v3825 = vpop.f32.mrb[0].mxu0
          %3826 = vmatprep.mubr.f32.mxu0 0.0
          %3827 = vmatmul.mubr.f32.gmra.mrb[0].mxu0 %v3705
          %v3828 = vpop.f32.mrb[0].mxu0
          %v3829 = vadd.f32 0.0, %v3828
          %v3830 = vpop.f32.mrb[0].mxu0
          %3831 = vmatprep.mubr.f32.mxu0 0.0
          %3832 = vmatmul.mubr.f32.gmra.mrb[0].mxu0 %v3708
          %v3833 = vpop.f32.mrb[0].mxu0
          %v3834 = vadd.f32 0.0, %v3833
          %v3835 = vpop.f32.mrb[0].mxu0
          %3836 = vmatprep.mubr.f32.mxu0 0.0
          %3837 = vmatmul.mubr.f32.gmra.mrb[0].mxu0 %v3711
          %v3838 = vpop.f32.mrb[0].mxu0
          %v3839 = vadd.f32 0.0, %v3838
          %v3840 = vpop.f32.mrb[0].mxu0
          %3841 = vmatprep.mubr.f32.mxu0 0.0
          %3842 = vmatmul.mubr.f32.gmra.mrb[0].mxu0 %v3714
          %v3843 = vpop.f32.mrb[0].mxu0
          %v3844 = vadd.f32 0.0, %v3843
          %v3845 = vpop.f32.mrb[0].mxu0
          %3846 = vmatprep.mubr.f32.mxu0 0.0
          %3847 = vmatmul.mubr.f32.gmra.mrb[0].mxu0 %v3717
          %v3848 = vpop.f32.mrb[0].mxu0
          %v3849 = vadd.f32 0.0, %v3848
          %v3850 = vpop.f32.mrb[0].mxu0
          %3851 = vmatprep.mubr.f32.mxu0 0.0
          %3852 = vmatmul.mubr.f32.gmra.mrb[0].mxu0 %v3720
          %v3853 = vpop.f32.mrb[0].mxu0
          %v3854 = vadd.f32 0.0, %v3853
          %v3855 = vpop.f32.mrb[0].mxu0
          %3856 = vmatprep.mubr.f32.mxu0 0.0
          %3857 = vmatmul.mubr.f32.gmra.mrb[0].mxu0 %v3723
          %v3858 = vpop.f32.mrb[0].mxu0
          %v3859 = vadd.f32 0.0, %v3858
          %v3860 = vpop.f32.mrb[0].mxu0
          %3861 = vmatprep.mubr.f32.mxu0 0.0
          %3862 = vmatmul.mubr.f32.gmra.mrb[0].mxu0 %v3726
          %v3863 = vpop.f32.mrb[0].mxu0
          %v3864 = vadd.f32 0.0, %v3863
          %v3865 = vpop.f32.mrb[0].mxu0
          %3866 = vmatprep.mubr.f32.mxu0 0.0
          %3867 = vmatmul.mubr.f32.gmra.mrb[0].mxu0 %v3729
          %v3868 = vpop.f32.mrb[0].mxu0
          %v3869 = vadd.f32 0.0, %v3868
          %v3870 = vpop.f32.mrb[0].mxu0
          %3871 = vmatprep.mubr.f32.mxu0 0.0
          %3872 = vmatmul.mubr.f32.gmra.mrb[0].mxu0 %v3732
          %v3873 = vpop.f32.mrb[0].mxu0
          %v3874 = vadd.f32 0.0, %v3873
          %v3875 = vpop.f32.mrb[0].mxu0
          %3876 = vmatprep.mubr.f32.mxu0 0.0
          %3877 = vmatmul.mubr.f32.gmra.mrb[0].mxu0 %v3735
          %v3878 = vpop.f32.mrb[0].mxu0
          %v3879 = vadd.f32 0.0, %v3878
          %v3880 = vpop.f32.mrb[0].mxu0
          %3881 = vdwg.mxu0
          %v3882 = vadd.f32 %v3652, %v3804
          %v3883 = vadd.f32 %v3653, %v3809
          %v3884 = vadd.f32 %v3654, %v3814
          %v3885 = vadd.f32 %v3655, %v3819
          %v3886 = vadd.f32 %v3656, %v3824
          %v3887 = vadd.f32 %v3657, %v3829
          %v3888 = vadd.f32 %v3658, %v3834
          %v3889 = vadd.f32 %v3659, %v3839
          %v3890 = vadd.f32 %v3660, %v3844
          %v3891 = vadd.f32 %v3661, %v3849
          %v3892 = vadd.f32 %v3662, %v3854
          %v3893 = vadd.f32 %v3663, %v3859
          %v3894 = vadd.f32 %v3664, %v3864
          %v3895 = vadd.f32 %v3665, %v3869
          %v3896 = vadd.f32 %v3666, %v3874
          %v3897 = vadd.f32 %v3667, %v3879
          %s3898 = scalar_lea.vmem [#allocation3], 32
          %v3899 = vld [vmem:[%s3898] sm:$0xff]
          %v3900 = vld [vmem:[%s3898 + $0x10] sm:$0xff]
          %v3901 = vld [vmem:[%s3898 + $0x20] sm:$0xff]
          %v3902 = vld [vmem:[%s3898 + $0x30] sm:$0xff]
          %v3903 = vld [vmem:[%s3898 + $0x40] sm:$0xff]
          %v3904 = vld [vmem:[%s3898 + $0x50] sm:$0xff]
          %v3905 = vld [vmem:[%s3898 + $0x60] sm:$0xff]
          %v3906 = vld [vmem:[%s3898 + $0x70] sm:$0xff]
          %v3907 = vld [vmem:[%s3898 + $0xa0] sm:$0xff]
          %v3908 = vld [vmem:[%s3898 + $0xb0] sm:$0xff]
          %v3909 = vld [vmem:[%s3898 + $0xc0] sm:$0xff]
          %v3910 = vld [vmem:[%s3898 + $0xd0] sm:$0xff]
          %v3911 = vld [vmem:[%s3898 + $0xe0] sm:$0xff]
          %v3912 = vld [vmem:[%s3898 + $0xf0] sm:$0xff]
          %v3913 = vld [vmem:[%s3898 + $0x100] sm:$0xff]
          %v3914 = vld [vmem:[%s3898 + $0x110] sm:$0xff]
          %s3915 = scalar_lea.vmem [#allocation9], 192
          %v3916 = vld [vmem:[%s3915] sm:$0xff]
          %v3917 = vld [vmem:[%s3915 + $0x8] sm:$0xff]
          %v3918 = vld [vmem:[%s3915 + $0x10] sm:$0xff]
          %v3919 = vld [vmem:[%s3915 + $0x18] sm:$0xff]
          %v3921 = vsel %vm2481, %v3899, 0
          %v3924 = vsel %vm2481, %v3900, 0
          %v3927 = vsel %vm2481, %v3901, 0
          %v3930 = vsel %vm2481, %v3902, 0
          %v3933 = vsel %vm2481, %v3903, 0
          %v3936 = vsel %vm2481, %v3904, 0
          %v3939 = vsel %vm2481, %v3905, 0
          %v3942 = vsel %vm2481, %v3906, 0
          %v3945 = vsel %vm2481, %v3907, 0
          %v3948 = vsel %vm2481, %v3908, 0
          %v3951 = vsel %vm2481, %v3909, 0
          %v3954 = vsel %vm2481, %v3910, 0
          %v3957 = vsel %vm2481, %v3911, 0
          %v3960 = vsel %vm2481, %v3912, 0
          %v3963 = vsel %vm2481, %v3913, 0
          %v3966 = vsel %vm2481, %v3914, 0
          %3968 = vmatprep.subr.mxu0 0.0
          %3969 = vmatpush1.msra.mxu0 %v3916
          %3970 = vmatprep.subr.mxu0 0.0
          %3971 = vmatpush1.msra.mxu0 %v3917
          %3972 = vmatprep.subr.mxu0 0.0
          %3973 = vmatpush1.msra.mxu0 %v3918
          %3974 = vmatprep.subr.mxu0 0.0
          %3975 = vmatpush1.msra.mxu0 %v3919
          %3976 = vmatprep.subr.mxu0 0.0
          %3977 = vmatpush1.msra.mxu0 0.0
          %3978 = vmatprep.subr.mxu0 0.0
          %3979 = vmatpush1.msra.mxu0 0.0
          %3980 = vmatprep.subr.mxu0 0.0
          %3981 = vmatpush1.msra.mxu0 0.0
          %3982 = vmatprep.subr.mxu0 0.0
          %3983 = vmatpush1.msra.mxu0 0.0
          %3984 = vmatprep.subr.mxu0 0.0
          %3985 = vmatpush1.msra.mxu0 0.0
          %3986 = vmatprep.subr.mxu0 0.0
          %3987 = vmatpush1.msra.mxu0 0.0
          %3988 = vmatprep.subr.mxu0 0.0
          %3989 = vmatpush1.msra.mxu0 0.0
          %3990 = vmatprep.subr.mxu0 0.0
          %3991 = vmatpush1.msra.mxu0 0.0
          %3992 = vmatprep.subr.mxu0 0.0
          %3993 = vmatpush1.msra.mxu0 0.0
          %3994 = vmatprep.subr.mxu0 0.0
          %3995 = vmatpush1.msra.mxu0 0.0
          %3996 = vmatprep.subr.mxu0 0.0
          %3997 = vmatpush1.msra.mxu0 0.0
          %3998 = vmatprep.subr.mxu0 0.0
          %3999 = vmatpush1.msra.mxu0 0.0
          %4000 = vmatprep.subr.mxu0 0.0
          %4001 = vmatpush1.msra.mxu0 0.0
          %4002 = vmatprep.subr.mxu0 0.0
          %4003 = vmatpush1.msra.mxu0 0.0
          %4004 = vmatprep.subr.mxu0 0.0
          %4005 = vmatpush1.msra.mxu0 0.0
          %4006 = vmatprep.subr.mxu0 0.0
          %4007 = vmatpush1.msra.mxu0 0.0
          %4008 = vmatprep.subr.mxu0 0.0
          %4009 = vmatpush1.msra.mxu0 0.0
          %4010 = vmatprep.subr.mxu0 0.0
          %4011 = vmatpush1.msra.mxu0 0.0
          %4012 = vmatprep.subr.mxu0 0.0
          %4013 = vmatpush1.msra.mxu0 0.0
          %4014 = vmatprep.subr.mxu0 0.0
          %4015 = vmatpush1.msra.mxu0 0.0
          %4016 = vmatprep.subr.mxu0 0.0
          %4017 = vmatpush1.msra.mxu0 0.0
          %4018 = vmatprep.subr.mxu0 0.0
          %4019 = vmatpush1.msra.mxu0 0.0
          %4020 = vmatprep.subr.mxu0 0.0
          %4021 = vmatpush1.msra.mxu0 0.0
          %4022 = vmatprep.subr.mxu0 0.0
          %4023 = vmatpush1.msra.mxu0 0.0
          %4024 = vmatprep.subr.mxu0 0.0
          %4025 = vmatpush1.msra.mxu0 0.0
          %4026 = vmatprep.subr.mxu0 0.0
          %4027 = vmatpush1.msra.mxu0 0.0
          %4028 = vmatprep.subr.mxu0 0.0
          %4029 = vmatpush1.msra.mxu0 0.0
          %4030 = vmatprep.subr.mxu0 0.0
          %4031 = vmatpush1.msra.mxu0 0.0
          %4032 = vmatprep.mubr.f32.mxu0 0.0
          %4033 = vmatmul.mubr.f32.gmra.mrb[0].mxu0 %v3921
          %v4034 = vpop.f32.mrb[0].mxu0
          %v4035 = vadd.f32 0.0, %v4034
          %v4036 = vpop.f32.mrb[0].mxu0
          %4037 = vmatprep.mubr.f32.mxu0 0.0
          %4038 = vmatmul.mubr.f32.gmra.mrb[0].mxu0 %v3924
          %v4039 = vpop.f32.mrb[0].mxu0
          %v4040 = vadd.f32 0.0, %v4039
          %v4041 = vpop.f32.mrb[0].mxu0
          %4042 = vmatprep.mubr.f32.mxu0 0.0
          %4043 = vmatmul.mubr.f32.gmra.mrb[0].mxu0 %v3927
          %v4044 = vpop.f32.mrb[0].mxu0
          %v4045 = vadd.f32 0.0, %v4044
          %v4046 = vpop.f32.mrb[0].mxu0
          %4047 = vmatprep.mubr.f32.mxu0 0.0
          %4048 = vmatmul.mubr.f32.gmra.mrb[0].mxu0 %v3930
          %v4049 = vpop.f32.mrb[0].mxu0
          %v4050 = vadd.f32 0.0, %v4049
          %v4051 = vpop.f32.mrb[0].mxu0
          %4052 = vmatprep.mubr.f32.mxu0 0.0
          %4053 = vmatmul.mubr.f32.gmra.mrb[0].mxu0 %v3933
          %v4054 = vpop.f32.mrb[0].mxu0
          %v4055 = vadd.f32 0.0, %v4054
          %v4056 = vpop.f32.mrb[0].mxu0
          %4057 = vmatprep.mubr.f32.mxu0 0.0
          %4058 = vmatmul.mubr.f32.gmra.mrb[0].mxu0 %v3936
          %v4059 = vpop.f32.mrb[0].mxu0
          %v4060 = vadd.f32 0.0, %v4059
          %v4061 = vpop.f32.mrb[0].mxu0
          %4062 = vmatprep.mubr.f32.mxu0 0.0
          %4063 = vmatmul.mubr.f32.gmra.mrb[0].mxu0 %v3939
          %v4064 = vpop.f32.mrb[0].mxu0
          %v4065 = vadd.f32 0.0, %v4064
          %v4066 = vpop.f32.mrb[0].mxu0
          %4067 = vmatprep.mubr.f32.mxu0 0.0
          %4068 = vmatmul.mubr.f32.gmra.mrb[0].mxu0 %v3942
          %v4069 = vpop.f32.mrb[0].mxu0
          %v4070 = vadd.f32 0.0, %v4069
          %v4071 = vpop.f32.mrb[0].mxu0
          %4072 = vmatprep.mubr.f32.mxu0 0.0
          %4073 = vmatmul.mubr.f32.gmra.mrb[0].mxu0 %v3945
          %v4074 = vpop.f32.mrb[0].mxu0
          %v4075 = vadd.f32 0.0, %v4074
          %v4076 = vpop.f32.mrb[0].mxu0
          %4077 = vmatprep.mubr.f32.mxu0 0.0
          %4078 = vmatmul.mubr.f32.gmra.mrb[0].mxu0 %v3948
          %v4079 = vpop.f32.mrb[0].mxu0
          %v4080 = vadd.f32 0.0, %v4079
          %v4081 = vpop.f32.mrb[0].mxu0
          %4082 = vmatprep.mubr.f32.mxu0 0.0
          %4083 = vmatmul.mubr.f32.gmra.mrb[0].mxu0 %v3951
          %v4084 = vpop.f32.mrb[0].mxu0
          %v4085 = vadd.f32 0.0, %v4084
          %v4086 = vpop.f32.mrb[0].mxu0
          %4087 = vmatprep.mubr.f32.mxu0 0.0
          %4088 = vmatmul.mubr.f32.gmra.mrb[0].mxu0 %v3954
          %v4089 = vpop.f32.mrb[0].mxu0
          %v4090 = vadd.f32 0.0, %v4089
          %v4091 = vpop.f32.mrb[0].mxu0
          %4092 = vmatprep.mubr.f32.mxu0 0.0
          %4093 = vmatmul.mubr.f32.gmra.mrb[0].mxu0 %v3957
          %v4094 = vpop.f32.mrb[0].mxu0
          %v4095 = vadd.f32 0.0, %v4094
          %v4096 = vpop.f32.mrb[0].mxu0
          %4097 = vmatprep.mubr.f32.mxu0 0.0
          %4098 = vmatmul.mubr.f32.gmra.mrb[0].mxu0 %v3960
          %v4099 = vpop.f32.mrb[0].mxu0
          %v4100 = vadd.f32 0.0, %v4099
          %v4101 = vpop.f32.mrb[0].mxu0
          %4102 = vmatprep.mubr.f32.mxu0 0.0
          %4103 = vmatmul.mubr.f32.gmra.mrb[0].mxu0 %v3963
          %v4104 = vpop.f32.mrb[0].mxu0
          %v4105 = vadd.f32 0.0, %v4104
          %v4106 = vpop.f32.mrb[0].mxu0
          %4107 = vmatprep.mubr.f32.mxu0 0.0
          %4108 = vmatmul.mubr.f32.gmra.mrb[0].mxu0 %v3966
          %v4109 = vpop.f32.mrb[0].mxu0
          %v4110 = vadd.f32 0.0, %v4109
          %v4111 = vpop.f32.mrb[0].mxu0
          %4112 = vdwg.mxu0
          %v4113 = vadd.f32 %v3882, %v4035
          %v4114 = vadd.f32 %v3883, %v4040
          %v4115 = vadd.f32 %v3884, %v4045
          %v4116 = vadd.f32 %v3885, %v4050
          %v4117 = vadd.f32 %v3886, %v4055
          %v4118 = vadd.f32 %v3887, %v4060
          %v4119 = vadd.f32 %v3888, %v4065
          %v4120 = vadd.f32 %v3889, %v4070
          %v4121 = vadd.f32 %v3890, %v4075
          %v4122 = vadd.f32 %v3891, %v4080
          %v4123 = vadd.f32 %v3892, %v4085
          %v4124 = vadd.f32 %v3893, %v4090
          %v4125 = vadd.f32 %v3894, %v4095
          %v4126 = vadd.f32 %v3895, %v4100
          %v4127 = vadd.f32 %v3896, %v4105
          %v4128 = vadd.f32 %v3897, %v4110
          %v4129 = vld [vmem:[%s3898 + $0x1] sm:$0xff]
          %v4130 = vld [vmem:[%s3898 + $0x11] sm:$0xff]
          %v4131 = vld [vmem:[%s3898 + $0x21] sm:$0xff]
          %v4132 = vld [vmem:[%s3898 + $0x31] sm:$0xff]
          %v4133 = vld [vmem:[%s3898 + $0x41] sm:$0xff]
          %v4134 = vld [vmem:[%s3898 + $0x51] sm:$0xff]
          %v4135 = vld [vmem:[%s3898 + $0x61] sm:$0xff]
          %v4136 = vld [vmem:[%s3898 + $0x71] sm:$0xff]
          %v4137 = vld [vmem:[%s3898 + $0xa1] sm:$0xff]
          %v4138 = vld [vmem:[%s3898 + $0xb1] sm:$0xff]
          %v4139 = vld [vmem:[%s3898 + $0xc1] sm:$0xff]
          %v4140 = vld [vmem:[%s3898 + $0xd1] sm:$0xff]
          %v4141 = vld [vmem:[%s3898 + $0xe1] sm:$0xff]
          %v4142 = vld [vmem:[%s3898 + $0xf1] sm:$0xff]
          %v4143 = vld [vmem:[%s3898 + $0x101] sm:$0xff]
          %v4144 = vld [vmem:[%s3898 + $0x111] sm:$0xff]
          %s4145 = scalar_lea.vmem [#allocation9], 224
          %v4146 = vld [vmem:[%s4145] sm:$0xff]
          %v4147 = vld [vmem:[%s4145 + $0x8] sm:$0xff]
          %v4148 = vld [vmem:[%s4145 + $0x10] sm:$0xff]
          %v4149 = vld [vmem:[%s4145 + $0x18] sm:$0xff]
          %v4151 = vsel %vm2481, %v4129, 0
          %v4154 = vsel %vm2481, %v4130, 0
          %v4157 = vsel %vm2481, %v4131, 0
          %v4160 = vsel %vm2481, %v4132, 0
          %v4163 = vsel %vm2481, %v4133, 0
          %v4166 = vsel %vm2481, %v4134, 0
          %v4169 = vsel %vm2481, %v4135, 0
          %v4172 = vsel %vm2481, %v4136, 0
          %v4175 = vsel %vm2481, %v4137, 0
          %v4178 = vsel %vm2481, %v4138, 0
          %v4181 = vsel %vm2481, %v4139, 0
          %v4184 = vsel %vm2481, %v4140, 0
          %v4187 = vsel %vm2481, %v4141, 0
          %v4190 = vsel %vm2481, %v4142, 0
          %v4193 = vsel %vm2481, %v4143, 0
          %v4196 = vsel %vm2481, %v4144, 0
          %4198 = vmatprep.subr.mxu0 0.0
          %4199 = vmatpush1.msra.mxu0 %v4146
          %4200 = vmatprep.subr.mxu0 0.0
          %4201 = vmatpush1.msra.mxu0 %v4147
          %4202 = vmatprep.subr.mxu0 0.0
          %4203 = vmatpush1.msra.mxu0 %v4148
          %4204 = vmatprep.subr.mxu0 0.0
          %4205 = vmatpush1.msra.mxu0 %v4149
          %4206 = vmatprep.subr.mxu0 0.0
          %4207 = vmatpush1.msra.mxu0 0.0
          %4208 = vmatprep.subr.mxu0 0.0
          %4209 = vmatpush1.msra.mxu0 0.0
          %4210 = vmatprep.subr.mxu0 0.0
          %4211 = vmatpush1.msra.mxu0 0.0
          %4212 = vmatprep.subr.mxu0 0.0
          %4213 = vmatpush1.msra.mxu0 0.0
          %4214 = vmatprep.subr.mxu0 0.0
          %4215 = vmatpush1.msra.mxu0 0.0
          %4216 = vmatprep.subr.mxu0 0.0
          %4217 = vmatpush1.msra.mxu0 0.0
          %4218 = vmatprep.subr.mxu0 0.0
          %4219 = vmatpush1.msra.mxu0 0.0
          %4220 = vmatprep.subr.mxu0 0.0
          %4221 = vmatpush1.msra.mxu0 0.0
          %4222 = vmatprep.subr.mxu0 0.0
          %4223 = vmatpush1.msra.mxu0 0.0
          %4224 = vmatprep.subr.mxu0 0.0
          %4225 = vmatpush1.msra.mxu0 0.0
          %4226 = vmatprep.subr.mxu0 0.0
          %4227 = vmatpush1.msra.mxu0 0.0
          %4228 = vmatprep.subr.mxu0 0.0
          %4229 = vmatpush1.msra.mxu0 0.0
          %4230 = vmatprep.subr.mxu0 0.0
          %4231 = vmatpush1.msra.mxu0 0.0
          %4232 = vmatprep.subr.mxu0 0.0
          %4233 = vmatpush1.msra.mxu0 0.0
          %4234 = vmatprep.subr.mxu0 0.0
          %4235 = vmatpush1.msra.mxu0 0.0
          %4236 = vmatprep.subr.mxu0 0.0
          %4237 = vmatpush1.msra.mxu0 0.0
          %4238 = vmatprep.subr.mxu0 0.0
          %4239 = vmatpush1.msra.mxu0 0.0
          %4240 = vmatprep.subr.mxu0 0.0
          %4241 = vmatpush1.msra.mxu0 0.0
          %4242 = vmatprep.subr.mxu0 0.0
          %4243 = vmatpush1.msra.mxu0 0.0
          %4244 = vmatprep.subr.mxu0 0.0
          %4245 = vmatpush1.msra.mxu0 0.0
          %4246 = vmatprep.subr.mxu0 0.0
          %4247 = vmatpush1.msra.mxu0 0.0
          %4248 = vmatprep.subr.mxu0 0.0
          %4249 = vmatpush1.msra.mxu0 0.0
          %4250 = vmatprep.subr.mxu0 0.0
          %4251 = vmatpush1.msra.mxu0 0.0
          %4252 = vmatprep.subr.mxu0 0.0
          %4253 = vmatpush1.msra.mxu0 0.0
          %4254 = vmatprep.subr.mxu0 0.0
          %4255 = vmatpush1.msra.mxu0 0.0
          %4256 = vmatprep.subr.mxu0 0.0
          %4257 = vmatpush1.msra.mxu0 0.0
          %4258 = vmatprep.subr.mxu0 0.0
          %4259 = vmatpush1.msra.mxu0 0.0
          %4260 = vmatprep.subr.mxu0 0.0
          %4261 = vmatpush1.msra.mxu0 0.0
          %4262 = vmatprep.mubr.f32.mxu0 0.0
          %4263 = vmatmul.mubr.f32.gmra.mrb[0].mxu0 %v4151
          %v4264 = vpop.f32.mrb[0].mxu0
          %v4265 = vadd.f32 0.0, %v4264
          %v4266 = vpop.f32.mrb[0].mxu0
          %4267 = vmatprep.mubr.f32.mxu0 0.0
          %4268 = vmatmul.mubr.f32.gmra.mrb[0].mxu0 %v4154
          %v4269 = vpop.f32.mrb[0].mxu0
          %v4270 = vadd.f32 0.0, %v4269
          %v4271 = vpop.f32.mrb[0].mxu0
          %4272 = vmatprep.mubr.f32.mxu0 0.0
          %4273 = vmatmul.mubr.f32.gmra.mrb[0].mxu0 %v4157
          %v4274 = vpop.f32.mrb[0].mxu0
          %v4275 = vadd.f32 0.0, %v4274
          %v4276 = vpop.f32.mrb[0].mxu0
          %4277 = vmatprep.mubr.f32.mxu0 0.0
          %4278 = vmatmul.mubr.f32.gmra.mrb[0].mxu0 %v4160
          %v4279 = vpop.f32.mrb[0].mxu0
          %v4280 = vadd.f32 0.0, %v4279
          %v4281 = vpop.f32.mrb[0].mxu0
          %4282 = vmatprep.mubr.f32.mxu0 0.0
          %4283 = vmatmul.mubr.f32.gmra.mrb[0].mxu0 %v4163
          %v4284 = vpop.f32.mrb[0].mxu0
          %v4285 = vadd.f32 0.0, %v4284
          %v4286 = vpop.f32.mrb[0].mxu0
          %4287 = vmatprep.mubr.f32.mxu0 0.0
          %4288 = vmatmul.mubr.f32.gmra.mrb[0].mxu0 %v4166
          %v4289 = vpop.f32.mrb[0].mxu0
          %v4290 = vadd.f32 0.0, %v4289
          %v4291 = vpop.f32.mrb[0].mxu0
          %4292 = vmatprep.mubr.f32.mxu0 0.0
          %4293 = vmatmul.mubr.f32.gmra.mrb[0].mxu0 %v4169
          %v4294 = vpop.f32.mrb[0].mxu0
          %v4295 = vadd.f32 0.0, %v4294
          %v4296 = vpop.f32.mrb[0].mxu0
          %4297 = vmatprep.mubr.f32.mxu0 0.0
          %4298 = vmatmul.mubr.f32.gmra.mrb[0].mxu0 %v4172
          %v4299 = vpop.f32.mrb[0].mxu0
          %v4300 = vadd.f32 0.0, %v4299
          %v4301 = vpop.f32.mrb[0].mxu0
          %4302 = vmatprep.mubr.f32.mxu0 0.0
          %4303 = vmatmul.mubr.f32.gmra.mrb[0].mxu0 %v4175
          %v4304 = vpop.f32.mrb[0].mxu0
          %v4305 = vadd.f32 0.0, %v4304
          %v4306 = vpop.f32.mrb[0].mxu0
          %4307 = vmatprep.mubr.f32.mxu0 0.0
          %4308 = vmatmul.mubr.f32.gmra.mrb[0].mxu0 %v4178
          %v4309 = vpop.f32.mrb[0].mxu0
          %v4310 = vadd.f32 0.0, %v4309
          %v4311 = vpop.f32.mrb[0].mxu0
          %4312 = vmatprep.mubr.f32.mxu0 0.0
          %4313 = vmatmul.mubr.f32.gmra.mrb[0].mxu0 %v4181
          %v4314 = vpop.f32.mrb[0].mxu0
          %v4315 = vadd.f32 0.0, %v4314
          %v4316 = vpop.f32.mrb[0].mxu0
          %4317 = vmatprep.mubr.f32.mxu0 0.0
          %4318 = vmatmul.mubr.f32.gmra.mrb[0].mxu0 %v4184
          %v4319 = vpop.f32.mrb[0].mxu0
          %v4320 = vadd.f32 0.0, %v4319
          %v4321 = vpop.f32.mrb[0].mxu0
          %4322 = vmatprep.mubr.f32.mxu0 0.0
          %4323 = vmatmul.mubr.f32.gmra.mrb[0].mxu0 %v4187
          %v4324 = vpop.f32.mrb[0].mxu0
          %v4325 = vadd.f32 0.0, %v4324
          %v4326 = vpop.f32.mrb[0].mxu0
          %4327 = vmatprep.mubr.f32.mxu0 0.0
          %4328 = vmatmul.mubr.f32.gmra.mrb[0].mxu0 %v4190
          %v4329 = vpop.f32.mrb[0].mxu0
          %v4330 = vadd.f32 0.0, %v4329
          %v4331 = vpop.f32.mrb[0].mxu0
          %4332 = vmatprep.mubr.f32.mxu0 0.0
          %4333 = vmatmul.mubr.f32.gmra.mrb[0].mxu0 %v4193
          %v4334 = vpop.f32.mrb[0].mxu0
          %v4335 = vadd.f32 0.0, %v4334
          %v4336 = vpop.f32.mrb[0].mxu0
          %4337 = vmatprep.mubr.f32.mxu0 0.0
          %4338 = vmatmul.mubr.f32.gmra.mrb[0].mxu0 %v4196
          %v4339 = vpop.f32.mrb[0].mxu0
          %v4340 = vadd.f32 0.0, %v4339
          %v4341 = vpop.f32.mrb[0].mxu0
          %4342 = vdwg.mxu0
          %v4343 = vadd.f32 %v4113, %v4265
          %v4344 = vadd.f32 %v4114, %v4270
          %v4345 = vadd.f32 %v4115, %v4275
          %v4346 = vadd.f32 %v4116, %v4280
          %v4347 = vadd.f32 %v4117, %v4285
          %v4348 = vadd.f32 %v4118, %v4290
          %v4349 = vadd.f32 %v4119, %v4295
          %v4350 = vadd.f32 %v4120, %v4300
          %v4351 = vadd.f32 %v4121, %v4305
          %v4352 = vadd.f32 %v4122, %v4310
          %v4353 = vadd.f32 %v4123, %v4315
          %v4354 = vadd.f32 %v4124, %v4320
          %v4355 = vadd.f32 %v4125, %v4325
          %v4356 = vadd.f32 %v4126, %v4330
          %v4357 = vadd.f32 %v4127, %v4335
          %v4358 = vadd.f32 %v4128, %v4340
          %v4359 = vld [vmem:[%s3898 + $0x2] sm:$0xff]
          %v4360 = vld [vmem:[%s3898 + $0x12] sm:$0xff]
          %v4361 = vld [vmem:[%s3898 + $0x22] sm:$0xff]
          %v4362 = vld [vmem:[%s3898 + $0x32] sm:$0xff]
          %v4363 = vld [vmem:[%s3898 + $0x42] sm:$0xff]
          %v4364 = vld [vmem:[%s3898 + $0x52] sm:$0xff]
          %v4365 = vld [vmem:[%s3898 + $0x62] sm:$0xff]
          %v4366 = vld [vmem:[%s3898 + $0x72] sm:$0xff]
          %v4367 = vld [vmem:[%s3898 + $0xa2] sm:$0xff]
          %v4368 = vld [vmem:[%s3898 + $0xb2] sm:$0xff]
          %v4369 = vld [vmem:[%s3898 + $0xc2] sm:$0xff]
          %v4370 = vld [vmem:[%s3898 + $0xd2] sm:$0xff]
          %v4371 = vld [vmem:[%s3898 + $0xe2] sm:$0xff]
          %v4372 = vld [vmem:[%s3898 + $0xf2] sm:$0xff]
          %v4373 = vld [vmem:[%s3898 + $0x102] sm:$0xff]
          %v4374 = vld [vmem:[%s3898 + $0x112] sm:$0xff]
          %s4375 = scalar_lea.vmem [#allocation9], 256
          %v4376 = vld [vmem:[%s4375] sm:$0xff]
          %v4377 = vld [vmem:[%s4375 + $0x8] sm:$0xff]
          %v4378 = vld [vmem:[%s4375 + $0x10] sm:$0xff]
          %v4379 = vld [vmem:[%s4375 + $0x18] sm:$0xff]
          %v4381 = vsel %vm2481, %v4359, 0
          %v4384 = vsel %vm2481, %v4360, 0
          %v4387 = vsel %vm2481, %v4361, 0
          %v4390 = vsel %vm2481, %v4362, 0
          %v4393 = vsel %vm2481, %v4363, 0
          %v4396 = vsel %vm2481, %v4364, 0
          %v4399 = vsel %vm2481, %v4365, 0
          %v4402 = vsel %vm2481, %v4366, 0
          %v4405 = vsel %vm2481, %v4367, 0
          %v4408 = vsel %vm2481, %v4368, 0
          %v4411 = vsel %vm2481, %v4369, 0
          %v4414 = vsel %vm2481, %v4370, 0
          %v4417 = vsel %vm2481, %v4371, 0
          %v4420 = vsel %vm2481, %v4372, 0
          %v4423 = vsel %vm2481, %v4373, 0
          %v4426 = vsel %vm2481, %v4374, 0
          %4428 = vmatprep.subr.mxu0 0.0
          %4429 = vmatpush1.msra.mxu0 %v4376
          %4430 = vmatprep.subr.mxu0 0.0
          %4431 = vmatpush1.msra.mxu0 %v4377
          %4432 = vmatprep.subr.mxu0 0.0
          %4433 = vmatpush1.msra.mxu0 %v4378
          %4434 = vmatprep.subr.mxu0 0.0
          %4435 = vmatpush1.msra.mxu0 %v4379
          %4436 = vmatprep.subr.mxu0 0.0
          %4437 = vmatpush1.msra.mxu0 0.0
          %4438 = vmatprep.subr.mxu0 0.0
          %4439 = vmatpush1.msra.mxu0 0.0
          %4440 = vmatprep.subr.mxu0 0.0
          %4441 = vmatpush1.msra.mxu0 0.0
          %4442 = vmatprep.subr.mxu0 0.0
          %4443 = vmatpush1.msra.mxu0 0.0
          %4444 = vmatprep.subr.mxu0 0.0
          %4445 = vmatpush1.msra.mxu0 0.0
          %4446 = vmatprep.subr.mxu0 0.0
          %4447 = vmatpush1.msra.mxu0 0.0
          %4448 = vmatprep.subr.mxu0 0.0
          %4449 = vmatpush1.msra.mxu0 0.0
          %4450 = vmatprep.subr.mxu0 0.0
          %4451 = vmatpush1.msra.mxu0 0.0
          %4452 = vmatprep.subr.mxu0 0.0
          %4453 = vmatpush1.msra.mxu0 0.0
          %4454 = vmatprep.subr.mxu0 0.0
          %4455 = vmatpush1.msra.mxu0 0.0
          %4456 = vmatprep.subr.mxu0 0.0
          %4457 = vmatpush1.msra.mxu0 0.0
          %4458 = vmatprep.subr.mxu0 0.0
          %4459 = vmatpush1.msra.mxu0 0.0
          %4460 = vmatprep.subr.mxu0 0.0
          %4461 = vmatpush1.msra.mxu0 0.0
          %4462 = vmatprep.subr.mxu0 0.0
          %4463 = vmatpush1.msra.mxu0 0.0
          %4464 = vmatprep.subr.mxu0 0.0
          %4465 = vmatpush1.msra.mxu0 0.0
          %4466 = vmatprep.subr.mxu0 0.0
          %4467 = vmatpush1.msra.mxu0 0.0
          %4468 = vmatprep.subr.mxu0 0.0
          %4469 = vmatpush1.msra.mxu0 0.0
          %4470 = vmatprep.subr.mxu0 0.0
          %4471 = vmatpush1.msra.mxu0 0.0
          %4472 = vmatprep.subr.mxu0 0.0
          %4473 = vmatpush1.msra.mxu0 0.0
          %4474 = vmatprep.subr.mxu0 0.0
          %4475 = vmatpush1.msra.mxu0 0.0
          %4476 = vmatprep.subr.mxu0 0.0
          %4477 = vmatpush1.msra.mxu0 0.0
          %4478 = vmatprep.subr.mxu0 0.0
          %4479 = vmatpush1.msra.mxu0 0.0
          %4480 = vmatprep.subr.mxu0 0.0
          %4481 = vmatpush1.msra.mxu0 0.0
          %4482 = vmatprep.subr.mxu0 0.0
          %4483 = vmatpush1.msra.mxu0 0.0
          %4484 = vmatprep.subr.mxu0 0.0
          %4485 = vmatpush1.msra.mxu0 0.0
          %4486 = vmatprep.subr.mxu0 0.0
          %4487 = vmatpush1.msra.mxu0 0.0
          %4488 = vmatprep.subr.mxu0 0.0
          %4489 = vmatpush1.msra.mxu0 0.0
          %4490 = vmatprep.subr.mxu0 0.0
          %4491 = vmatpush1.msra.mxu0 0.0
          %4492 = vmatprep.mubr.f32.mxu0 0.0
          %4493 = vmatmul.mubr.f32.gmra.mrb[0].mxu0 %v4381
          %v4494 = vpop.f32.mrb[0].mxu0
          %v4495 = vadd.f32 0.0, %v4494
          %v4496 = vpop.f32.mrb[0].mxu0
          %4497 = vmatprep.mubr.f32.mxu0 0.0
          %4498 = vmatmul.mubr.f32.gmra.mrb[0].mxu0 %v4384
          %v4499 = vpop.f32.mrb[0].mxu0
          %v4500 = vadd.f32 0.0, %v4499
          %v4501 = vpop.f32.mrb[0].mxu0
          %4502 = vmatprep.mubr.f32.mxu0 0.0
          %4503 = vmatmul.mubr.f32.gmra.mrb[0].mxu0 %v4387
          %v4504 = vpop.f32.mrb[0].mxu0
          %v4505 = vadd.f32 0.0, %v4504
          %v4506 = vpop.f32.mrb[0].mxu0
          %4507 = vmatprep.mubr.f32.mxu0 0.0
          %4508 = vmatmul.mubr.f32.gmra.mrb[0].mxu0 %v4390
          %v4509 = vpop.f32.mrb[0].mxu0
          %v4510 = vadd.f32 0.0, %v4509
          %v4511 = vpop.f32.mrb[0].mxu0
          %4512 = vmatprep.mubr.f32.mxu0 0.0
          %4513 = vmatmul.mubr.f32.gmra.mrb[0].mxu0 %v4393
          %v4514 = vpop.f32.mrb[0].mxu0
          %v4515 = vadd.f32 0.0, %v4514
          %v4516 = vpop.f32.mrb[0].mxu0
          %4517 = vmatprep.mubr.f32.mxu0 0.0
          %4518 = vmatmul.mubr.f32.gmra.mrb[0].mxu0 %v4396
          %v4519 = vpop.f32.mrb[0].mxu0
          %v4520 = vadd.f32 0.0, %v4519
          %v4521 = vpop.f32.mrb[0].mxu0
          %4522 = vmatprep.mubr.f32.mxu0 0.0
          %4523 = vmatmul.mubr.f32.gmra.mrb[0].mxu0 %v4399
          %v4524 = vpop.f32.mrb[0].mxu0
          %v4525 = vadd.f32 0.0, %v4524
          %v4526 = vpop.f32.mrb[0].mxu0
          %4527 = vmatprep.mubr.f32.mxu0 0.0
          %4528 = vmatmul.mubr.f32.gmra.mrb[0].mxu0 %v4402
          %v4529 = vpop.f32.mrb[0].mxu0
          %v4530 = vadd.f32 0.0, %v4529
          %v4531 = vpop.f32.mrb[0].mxu0
          %4532 = vmatprep.mubr.f32.mxu0 0.0
          %4533 = vmatmul.mubr.f32.gmra.mrb[0].mxu0 %v4405
          %v4534 = vpop.f32.mrb[0].mxu0
          %v4535 = vadd.f32 0.0, %v4534
          %v4536 = vpop.f32.mrb[0].mxu0
          %4537 = vmatprep.mubr.f32.mxu0 0.0
          %4538 = vmatmul.mubr.f32.gmra.mrb[0].mxu0 %v4408
          %v4539 = vpop.f32.mrb[0].mxu0
          %v4540 = vadd.f32 0.0, %v4539
          %v4541 = vpop.f32.mrb[0].mxu0
          %4542 = vmatprep.mubr.f32.mxu0 0.0
          %4543 = vmatmul.mubr.f32.gmra.mrb[0].mxu0 %v4411
          %v4544 = vpop.f32.mrb[0].mxu0
          %v4545 = vadd.f32 0.0, %v4544
          %v4546 = vpop.f32.mrb[0].mxu0
          %4547 = vmatprep.mubr.f32.mxu0 0.0
          %4548 = vmatmul.mubr.f32.gmra.mrb[0].mxu0 %v4414
          %v4549 = vpop.f32.mrb[0].mxu0
          %v4550 = vadd.f32 0.0, %v4549
          %v4551 = vpop.f32.mrb[0].mxu0
          %4552 = vmatprep.mubr.f32.mxu0 0.0
          %4553 = vmatmul.mubr.f32.gmra.mrb[0].mxu0 %v4417
          %v4554 = vpop.f32.mrb[0].mxu0
          %v4555 = vadd.f32 0.0, %v4554
          %v4556 = vpop.f32.mrb[0].mxu0
          %4557 = vmatprep.mubr.f32.mxu0 0.0
          %4558 = vmatmul.mubr.f32.gmra.mrb[0].mxu0 %v4420
          %v4559 = vpop.f32.mrb[0].mxu0
          %v4560 = vadd.f32 0.0, %v4559
          %v4561 = vpop.f32.mrb[0].mxu0
          %4562 = vmatprep.mubr.f32.mxu0 0.0
          %4563 = vmatmul.mubr.f32.gmra.mrb[0].mxu0 %v4423
          %v4564 = vpop.f32.mrb[0].mxu0
          %v4565 = vadd.f32 0.0, %v4564
          %v4566 = vpop.f32.mrb[0].mxu0
          %4567 = vmatprep.mubr.f32.mxu0 0.0
          %4568 = vmatmul.mubr.f32.gmra.mrb[0].mxu0 %v4426
          %v4569 = vpop.f32.mrb[0].mxu0
          %v4570 = vadd.f32 0.0, %v4569
          %v4571 = vpop.f32.mrb[0].mxu0
          %4572 = vdwg.mxu0
          %v4573 = vadd.f32 %v4343, %v4495
          %v4574 = vadd.f32 %v4344, %v4500
          %v4575 = vadd.f32 %v4345, %v4505
          %v4576 = vadd.f32 %v4346, %v4510
          %v4577 = vadd.f32 %v4347, %v4515
          %v4578 = vadd.f32 %v4348, %v4520
          %v4579 = vadd.f32 %v4349, %v4525
          %v4580 = vadd.f32 %v4350, %v4530
          %v4581 = vadd.f32 %v4351, %v4535
          %v4582 = vadd.f32 %v4352, %v4540
          %v4583 = vadd.f32 %v4353, %v4545
          %v4584 = vadd.f32 %v4354, %v4550
          %v4585 = vadd.f32 %v4355, %v4555
          %v4586 = vadd.f32 %v4356, %v4560
          %v4587 = vadd.f32 %v4357, %v4565
          %v4588 = vadd.f32 %v4358, %v4570
          %v4590 = vlaneseq
          %v4591 = vshrl.u32 %v4590, 7
          %v4592 = vsub.s32 0, %v4591
          %v4593 = vrot.slane %v2550, %v4592
          %v4595 = vadd.f32 %v4573, %v4593
          %v4596 = vadd.f32 %v4574, %v4593
          %v4597 = vadd.f32 %v4575, %v4593
          %v4598 = vadd.f32 %v4576, %v4593
          %v4599 = vadd.f32 %v4577, %v4593
          %v4600 = vadd.f32 %v4578, %v4593
          %v4601 = vadd.f32 %v4579, %v4593
          %v4602 = vadd.f32 %v4580, %v4593
          %v4603 = vadd.f32 %v4581, %v4593
          %v4604 = vadd.f32 %v4582, %v4593
          %v4605 = vadd.f32 %v4583, %v4593
          %v4606 = vadd.f32 %v4584, %v4593
          %v4607 = vadd.f32 %v4585, %v4593
          %v4608 = vadd.f32 %v4586, %v4593
          %v4609 = vadd.f32 %v4587, %v4593
          %v4610 = vadd.f32 %v4588, %v4593
          %v4611 = vmax.f32 %v4595, 0.0
          %v4612 = vmax.f32 %v4596, 0.0
          %v4613 = vmax.f32 %v4597, 0.0
          %v4614 = vmax.f32 %v4598, 0.0
          %v4615 = vmax.f32 %v4599, 0.0
          %v4616 = vmax.f32 %v4600, 0.0
          %v4617 = vmax.f32 %v4601, 0.0
          %v4618 = vmax.f32 %v4602, 0.0
          %v4619 = vmax.f32 %v4603, 0.0
          %v4620 = vmax.f32 %v4604, 0.0
          %v4621 = vmax.f32 %v4605, 0.0
          %v4622 = vmax.f32 %v4606, 0.0
          %v4623 = vmax.f32 %v4607, 0.0
          %v4624 = vmax.f32 %v4608, 0.0
          %v4625 = vmax.f32 %v4609, 0.0
          %v4626 = vmax.f32 %v4610, 0.0
          %vm4627 = vcmask 523264
          %4628 = vst.msk [vmem:[#allocation4] sm:$0xff] %vm4627, %v4611
          %4629 = vst.msk [vmem:[#allocation4 + $0x8] sm:$0xff] %vm4627, %v4612
          %4630 = vst.msk [vmem:[#allocation4 + $0x10] sm:$0xff] %vm4627, %v4613
          %4631 = vst.msk [vmem:[#allocation4 + $0x18] sm:$0xff] %vm4627, %v4614
          %4632 = vst.msk [vmem:[#allocation4 + $0x20] sm:$0xff] %vm4627, %v4615
          %4633 = vst.msk [vmem:[#allocation4 + $0x28] sm:$0xff] %vm4627, %v4616
          %4634 = vst.msk [vmem:[#allocation4 + $0x30] sm:$0xff] %vm4627, %v4617
          %4635 = vst.msk [vmem:[#allocation4 + $0x38] sm:$0xff] %vm4627, %v4618
          %4636 = vst.msk [vmem:[#allocation4 + $0x40] sm:$0xff] %vm4627, %v4619
          %4637 = vst.msk [vmem:[#allocation4 + $0x48] sm:$0xff] %vm4627, %v4620
          %4638 = vst.msk [vmem:[#allocation4 + $0x50] sm:$0xff] %vm4627, %v4621
          %4639 = vst.msk [vmem:[#allocation4 + $0x58] sm:$0xff] %vm4627, %v4622
          %4640 = vst.msk [vmem:[#allocation4 + $0x60] sm:$0xff] %vm4627, %v4623
          %4641 = vst.msk [vmem:[#allocation4 + $0x68] sm:$0xff] %vm4627, %v4624
          %4642 = vst.msk [vmem:[#allocation4 + $0x70] sm:$0xff] %vm4627, %v4625
          %4643 = vst.msk [vmem:[#allocation4 + $0x78] sm:$0xff] %vm4627, %v4626
          %v4644 = vld [vmem:[#allocation4] sm:$0x1]
          %vm4645 = vcmask 516096
          %4646 = vst.msk [vmem:[#allocation5] sm:$0x1] %vm4645, %v4644
          %v4647 = vld [vmem:[#allocation4 + $0x40] sm:$0x1]
          %4648 = vst.msk [vmem:[#allocation5 + $0x1] sm:$0x1] %vm4645, %v4647
          %v4649 = vld [vmem:[#allocation4 + $0x1] sm:$0x1]
          %v4652 = vunpack.c.l.s4 1983009808
          %v4653 = vunpack.c.0.s8 %v4652
          %v4654 = vlaneseq
          %v4655 = vshrl.u32 %v4654, 7
          %v4656 = vsub.s32 %v4653, %v4655
          %v4657 = vrot.slane %v4649, %v4656
          %4658 = vrot.lane.b32.xlu0 %v4657, 64
          %v4659 = vpop.permute.xlu0 %4658
          %vm4661 = vcmask 1040896
          %4662 = vst.msk [vmem:[#allocation5] sm:$0x1] %vm4661, %v4659
          %v4663 = vld [vmem:[#allocation4 + $0x41] sm:$0x1]
          %v4666 = vunpack.c.l.s4 1983009808
          %v4667 = vunpack.c.0.s8 %v4666
          %v4668 = vlaneseq
          %v4669 = vshrl.u32 %v4668, 7
          %v4670 = vsub.s32 %v4667, %v4669
          %v4671 = vrot.slane %v4663, %v4670
          %4672 = vrot.lane.b32.xlu0 %v4671, 64
          %v4673 = vpop.permute.xlu0 %4672
          %4675 = vst.msk [vmem:[#allocation5 + $0x1] sm:$0x1] %vm4661, %v4673
          %v4676 = vld [vmem:[#allocation4 + $0x2] sm:$0x1]
          %4677 = vst.msk [vmem:[#allocation5 + $0x2] sm:$0x1] %vm4645, %v4676
          %v4678 = vld [vmem:[#allocation4 + $0x42] sm:$0x1]
          %4679 = vst.msk [vmem:[#allocation5 + $0x3] sm:$0x1] %vm4645, %v4678
          %v4680 = vld [vmem:[#allocation4 + $0x3] sm:$0x1]
          %v4683 = vunpack.c.l.s4 1983009808
          %v4684 = vunpack.c.0.s8 %v4683
          %v4685 = vlaneseq
          %v4686 = vshrl.u32 %v4685, 7
          %v4687 = vsub.s32 %v4684, %v4686
          %v4688 = vrot.slane %v4680, %v4687
          %4689 = vrot.lane.b32.xlu0 %v4688, 64
          %v4690 = vpop.permute.xlu0 %4689
          %4692 = vst.msk [vmem:[#allocation5 + $0x2] sm:$0x1] %vm4661, %v4690
          %v4693 = vld [vmem:[#allocation4 + $0x43] sm:$0x1]
          %v4696 = vunpack.c.l.s4 1983009808
          %v4697 = vunpack.c.0.s8 %v4696
          %v4698 = vlaneseq
          %v4699 = vshrl.u32 %v4698, 7
          %v4700 = vsub.s32 %v4697, %v4699
          %v4701 = vrot.slane %v4693, %v4700
          %4702 = vrot.lane.b32.xlu0 %v4701, 64
          %v4703 = vpop.permute.xlu0 %4702
          %4705 = vst.msk [vmem:[#allocation5 + $0x3] sm:$0x1] %vm4661, %v4703
          %v4706 = vld [vmem:[#allocation4 + $0x4] sm:$0x1]
          %4707 = vst.msk [vmem:[#allocation5 + $0x4] sm:$0x1] %vm4645, %v4706
          %v4708 = vld [vmem:[#allocation4 + $0x44] sm:$0x1]
          %4709 = vst.msk [vmem:[#allocation5 + $0x5] sm:$0x1] %vm4645, %v4708
          %v4710 = vld [vmem:[#allocation4 + $0x5] sm:$0x1]
          %v4713 = vunpack.c.l.s4 1983009808
          %v4714 = vunpack.c.0.s8 %v4713
          %v4715 = vlaneseq
          %v4716 = vshrl.u32 %v4715, 7
          %v4717 = vsub.s32 %v4714, %v4716
          %v4718 = vrot.slane %v4710, %v4717
          %4719 = vrot.lane.b32.xlu0 %v4718, 64
          %v4720 = vpop.permute.xlu0 %4719
          %4722 = vst.msk [vmem:[#allocation5 + $0x4] sm:$0x1] %vm4661, %v4720
          %v4723 = vld [vmem:[#allocation4 + $0x45] sm:$0x1]
          %v4726 = vunpack.c.l.s4 1983009808
          %v4727 = vunpack.c.0.s8 %v4726
          %v4728 = vlaneseq
          %v4729 = vshrl.u32 %v4728, 7
          %v4730 = vsub.s32 %v4727, %v4729
          %v4731 = vrot.slane %v4723, %v4730
          %4732 = vrot.lane.b32.xlu0 %v4731, 64
          %v4733 = vpop.permute.xlu0 %4732
          %4735 = vst.msk [vmem:[#allocation5 + $0x5] sm:$0x1] %vm4661, %v4733
          %v4736 = vld [vmem:[#allocation4 + $0x6] sm:$0x1]
          %4737 = vst.msk [vmem:[#allocation5 + $0x6] sm:$0x1] %vm4645, %v4736
          %v4738 = vld [vmem:[#allocation4 + $0x46] sm:$0x1]
          %4739 = vst.msk [vmem:[#allocation5 + $0x7] sm:$0x1] %vm4645, %v4738
          %v4740 = vld [vmem:[#allocation4 + $0x7] sm:$0x1]
          %v4743 = vunpack.c.l.s4 1983009808
          %v4744 = vunpack.c.0.s8 %v4743
          %v4745 = vlaneseq
          %v4746 = vshrl.u32 %v4745, 7
          %v4747 = vsub.s32 %v4744, %v4746
          %v4748 = vrot.slane %v4740, %v4747
          %4749 = vrot.lane.b32.xlu0 %v4748, 64
          %v4750 = vpop.permute.xlu0 %4749
          %4752 = vst.msk [vmem:[#allocation5 + $0x6] sm:$0x1] %vm4661, %v4750
          %v4753 = vld [vmem:[#allocation4 + $0x47] sm:$0x1]
          %v4756 = vunpack.c.l.s4 1983009808
          %v4757 = vunpack.c.0.s8 %v4756
          %v4758 = vlaneseq
          %v4759 = vshrl.u32 %v4758, 7
          %v4760 = vsub.s32 %v4757, %v4759
          %v4761 = vrot.slane %v4753, %v4760
          %4762 = vrot.lane.b32.xlu0 %v4761, 64
          %v4763 = vpop.permute.xlu0 %4762
          %4765 = vst.msk [vmem:[#allocation5 + $0x7] sm:$0x1] %vm4661, %v4763
          %v4766 = vld [vmem:[#allocation4 + $0x8] sm:$0x1]
          %4767 = vst.msk [vmem:[#allocation5 + $0x8] sm:$0x1] %vm4645, %v4766
          %v4768 = vld [vmem:[#allocation4 + $0x48] sm:$0x1]
          %4769 = vst.msk [vmem:[#allocation5 + $0x9] sm:$0x1] %vm4645, %v4768
          %v4770 = vld [vmem:[#allocation4 + $0x9] sm:$0x1]
          %v4773 = vunpack.c.l.s4 1983009808
          %v4774 = vunpack.c.0.s8 %v4773
          %v4775 = vlaneseq
          %v4776 = vshrl.u32 %v4775, 7
          %v4777 = vsub.s32 %v4774, %v4776
          %v4778 = vrot.slane %v4770, %v4777
          %4779 = vrot.lane.b32.xlu0 %v4778, 64
          %v4780 = vpop.permute.xlu0 %4779
          %4782 = vst.msk [vmem:[#allocation5 + $0x8] sm:$0x1] %vm4661, %v4780
          %v4783 = vld [vmem:[#allocation4 + $0x49] sm:$0x1]
          %v4786 = vunpack.c.l.s4 1983009808
          %v4787 = vunpack.c.0.s8 %v4786
          %v4788 = vlaneseq
          %v4789 = vshrl.u32 %v4788, 7
          %v4790 = vsub.s32 %v4787, %v4789
          %v4791 = vrot.slane %v4783, %v4790
          %4792 = vrot.lane.b32.xlu0 %v4791, 64
          %v4793 = vpop.permute.xlu0 %4792
          %4795 = vst.msk [vmem:[#allocation5 + $0x9] sm:$0x1] %vm4661, %v4793
          %v4796 = vld [vmem:[#allocation4 + $0xa] sm:$0x1]
          %4797 = vst.msk [vmem:[#allocation5 + $0xa] sm:$0x1] %vm4645, %v4796
          %v4798 = vld [vmem:[#allocation4 + $0x4a] sm:$0x1]
          %4799 = vst.msk [vmem:[#allocation5 + $0xb] sm:$0x1] %vm4645, %v4798
          %v4800 = vld [vmem:[#allocation4 + $0xb] sm:$0x1]
          %v4803 = vunpack.c.l.s4 1983009808
          %v4804 = vunpack.c.0.s8 %v4803
          %v4805 = vlaneseq
          %v4806 = vshrl.u32 %v4805, 7
          %v4807 = vsub.s32 %v4804, %v4806
          %v4808 = vrot.slane %v4800, %v4807
          %4809 = vrot.lane.b32.xlu0 %v4808, 64
          %v4810 = vpop.permute.xlu0 %4809
          %4812 = vst.msk [vmem:[#allocation5 + $0xa] sm:$0x1] %vm4661, %v4810
          %v4813 = vld [vmem:[#allocation4 + $0x4b] sm:$0x1]
          %v4816 = vunpack.c.l.s4 1983009808
          %v4817 = vunpack.c.0.s8 %v4816
          %v4818 = vlaneseq
          %v4819 = vshrl.u32 %v4818, 7
          %v4820 = vsub.s32 %v4817, %v4819
          %v4821 = vrot.slane %v4813, %v4820
          %4822 = vrot.lane.b32.xlu0 %v4821, 64
          %v4823 = vpop.permute.xlu0 %4822
          %4825 = vst.msk [vmem:[#allocation5 + $0xb] sm:$0x1] %vm4661, %v4823
          %v4826 = vld [vmem:[#allocation4 + $0xc] sm:$0x1]
          %4827 = vst.msk [vmem:[#allocation5 + $0xc] sm:$0x1] %vm4645, %v4826
          %v4828 = vld [vmem:[#allocation4 + $0x4c] sm:$0x1]
          %4829 = vst.msk [vmem:[#allocation5 + $0xd] sm:$0x1] %vm4645, %v4828
          %v4830 = vld [vmem:[#allocation4 + $0xd] sm:$0x1]
          %v4833 = vunpack.c.l.s4 1983009808
          %v4834 = vunpack.c.0.s8 %v4833
          %v4835 = vlaneseq
          %v4836 = vshrl.u32 %v4835, 7
          %v4837 = vsub.s32 %v4834, %v4836
          %v4838 = vrot.slane %v4830, %v4837
          %4839 = vrot.lane.b32.xlu0 %v4838, 64
          %v4840 = vpop.permute.xlu0 %4839
          %4842 = vst.msk [vmem:[#allocation5 + $0xc] sm:$0x1] %vm4661, %v4840
          %v4843 = vld [vmem:[#allocation4 + $0x4d] sm:$0x1]
          %v4846 = vunpack.c.l.s4 1983009808
          %v4847 = vunpack.c.0.s8 %v4846
          %v4848 = vlaneseq
          %v4849 = vshrl.u32 %v4848, 7
          %v4850 = vsub.s32 %v4847, %v4849
          %v4851 = vrot.slane %v4843, %v4850
          %4852 = vrot.lane.b32.xlu0 %v4851, 64
          %v4853 = vpop.permute.xlu0 %4852
          %4855 = vst.msk [vmem:[#allocation5 + $0xd] sm:$0x1] %vm4661, %v4853
          %v4856 = vld [vmem:[#allocation4 + $0xe] sm:$0x1]
          %4857 = vst.msk [vmem:[#allocation5 + $0xe] sm:$0x1] %vm4645, %v4856
          %v4858 = vld [vmem:[#allocation4 + $0x4e] sm:$0x1]
          %4859 = vst.msk [vmem:[#allocation5 + $0xf] sm:$0x1] %vm4645, %v4858
          %v4860 = vld [vmem:[#allocation4 + $0xf] sm:$0x1]
          %v4863 = vunpack.c.l.s4 1983009808
          %v4864 = vunpack.c.0.s8 %v4863
          %v4865 = vlaneseq
          %v4866 = vshrl.u32 %v4865, 7
          %v4867 = vsub.s32 %v4864, %v4866
          %v4868 = vrot.slane %v4860, %v4867
          %4869 = vrot.lane.b32.xlu0 %v4868, 64
          %v4870 = vpop.permute.xlu0 %4869
          %4872 = vst.msk [vmem:[#allocation5 + $0xe] sm:$0x1] %vm4661, %v4870
          %v4873 = vld [vmem:[#allocation4 + $0x4f] sm:$0x1]
          %v4876 = vunpack.c.l.s4 1983009808
          %v4877 = vunpack.c.0.s8 %v4876
          %v4878 = vlaneseq
          %v4879 = vshrl.u32 %v4878, 7
          %v4880 = vsub.s32 %v4877, %v4879
          %v4881 = vrot.slane %v4873, %v4880
          %4882 = vrot.lane.b32.xlu0 %v4881, 64
          %v4883 = vpop.permute.xlu0 %4882
          %4885 = vst.msk [vmem:[#allocation5 + $0xf] sm:$0x1] %vm4661, %v4883
          %v4886 = vld [vmem:[#allocation4 + $0x10] sm:$0x1]
          %s4887 = scalar_lea.vmem [#allocation5], 16
          %4888 = vst.msk [vmem:[%s4887] sm:$0x1] %vm4645, %v4886
          %v4889 = vld [vmem:[#allocation4 + $0x50] sm:$0x1]
          %4890 = vst.msk [vmem:[%s4887 + $0x1] sm:$0x1] %vm4645, %v4889
          %v4891 = vld [vmem:[#allocation4 + $0x11] sm:$0x1]
          %v4894 = vunpack.c.l.s4 1983009808
          %v4895 = vunpack.c.0.s8 %v4894
          %v4896 = vlaneseq
          %v4897 = vshrl.u32 %v4896, 7
          %v4898 = vsub.s32 %v4895, %v4897
          %v4899 = vrot.slane %v4891, %v4898
          %4900 = vrot.lane.b32.xlu0 %v4899, 64
          %v4901 = vpop.permute.xlu0 %4900
          %4903 = vst.msk [vmem:[%s4887] sm:$0x1] %vm4661, %v4901
          %v4904 = vld [vmem:[#allocation4 + $0x51] sm:$0x1]
          %v4907 = vunpack.c.l.s4 1983009808
          %v4908 = vunpack.c.0.s8 %v4907
          %v4909 = vlaneseq
          %v4910 = vshrl.u32 %v4909, 7
          %v4911 = vsub.s32 %v4908, %v4910
          %v4912 = vrot.slane %v4904, %v4911
          %4913 = vrot.lane.b32.xlu0 %v4912, 64
          %v4914 = vpop.permute.xlu0 %4913
          %4916 = vst.msk [vmem:[%s4887 + $0x1] sm:$0x1] %vm4661, %v4914
          %v4917 = vld [vmem:[#allocation4 + $0x12] sm:$0x1]
          %4918 = vst.msk [vmem:[%s4887 + $0x2] sm:$0x1] %vm4645, %v4917
          %v4919 = vld [vmem:[#allocation4 + $0x52] sm:$0x1]
          %4920 = vst.msk [vmem:[%s4887 + $0x3] sm:$0x1] %vm4645, %v4919
          %v4921 = vld [vmem:[#allocation4 + $0x13] sm:$0x1]
          %v4924 = vunpack.c.l.s4 1983009808
          %v4925 = vunpack.c.0.s8 %v4924
          %v4926 = vlaneseq
          %v4927 = vshrl.u32 %v4926, 7
          %v4928 = vsub.s32 %v4925, %v4927
          %v4929 = vrot.slane %v4921, %v4928
          %4930 = vrot.lane.b32.xlu0 %v4929, 64
          %v4931 = vpop.permute.xlu0 %4930
          %4933 = vst.msk [vmem:[%s4887 + $0x2] sm:$0x1] %vm4661, %v4931
          %v4934 = vld [vmem:[#allocation4 + $0x53] sm:$0x1]
          %v4937 = vunpack.c.l.s4 1983009808
          %v4938 = vunpack.c.0.s8 %v4937
          %v4939 = vlaneseq
          %v4940 = vshrl.u32 %v4939, 7
          %v4941 = vsub.s32 %v4938, %v4940
          %v4942 = vrot.slane %v4934, %v4941
          %4943 = vrot.lane.b32.xlu0 %v4942, 64
          %v4944 = vpop.permute.xlu0 %4943
          %4946 = vst.msk [vmem:[%s4887 + $0x3] sm:$0x1] %vm4661, %v4944
          %v4947 = vld [vmem:[#allocation4 + $0x14] sm:$0x1]
          %4948 = vst.msk [vmem:[%s4887 + $0x4] sm:$0x1] %vm4645, %v4947
          %v4949 = vld [vmem:[#allocation4 + $0x54] sm:$0x1]
          %4950 = vst.msk [vmem:[%s4887 + $0x5] sm:$0x1] %vm4645, %v4949
          %v4951 = vld [vmem:[#allocation4 + $0x15] sm:$0x1]
          %v4954 = vunpack.c.l.s4 1983009808
          %v4955 = vunpack.c.0.s8 %v4954
          %v4956 = vlaneseq
          %v4957 = vshrl.u32 %v4956, 7
          %v4958 = vsub.s32 %v4955, %v4957
          %v4959 = vrot.slane %v4951, %v4958
          %4960 = vrot.lane.b32.xlu0 %v4959, 64
          %v4961 = vpop.permute.xlu0 %4960
          %4963 = vst.msk [vmem:[%s4887 + $0x4] sm:$0x1] %vm4661, %v4961
          %v4964 = vld [vmem:[#allocation4 + $0x55] sm:$0x1]
          %v4967 = vunpack.c.l.s4 1983009808
          %v4968 = vunpack.c.0.s8 %v4967
          %v4969 = vlaneseq
          %v4970 = vshrl.u32 %v4969, 7
          %v4971 = vsub.s32 %v4968, %v4970
          %v4972 = vrot.slane %v4964, %v4971
          %4973 = vrot.lane.b32.xlu0 %v4972, 64
          %v4974 = vpop.permute.xlu0 %4973
          %4976 = vst.msk [vmem:[%s4887 + $0x5] sm:$0x1] %vm4661, %v4974
          %v4977 = vld [vmem:[#allocation4 + $0x16] sm:$0x1]
          %4978 = vst.msk [vmem:[%s4887 + $0x6] sm:$0x1] %vm4645, %v4977
          %v4979 = vld [vmem:[#allocation4 + $0x56] sm:$0x1]
          %4980 = vst.msk [vmem:[%s4887 + $0x7] sm:$0x1] %vm4645, %v4979
          %v4981 = vld [vmem:[#allocation4 + $0x17] sm:$0x1]
          %v4984 = vunpack.c.l.s4 1983009808
          %v4985 = vunpack.c.0.s8 %v4984
          %v4986 = vlaneseq
          %v4987 = vshrl.u32 %v4986, 7
          %v4988 = vsub.s32 %v4985, %v4987
          %v4989 = vrot.slane %v4981, %v4988
          %4990 = vrot.lane.b32.xlu0 %v4989, 64
          %v4991 = vpop.permute.xlu0 %4990
          %4993 = vst.msk [vmem:[%s4887 + $0x6] sm:$0x1] %vm4661, %v4991
          %v4994 = vld [vmem:[#allocation4 + $0x57] sm:$0x1]
          %v4997 = vunpack.c.l.s4 1983009808
          %v4998 = vunpack.c.0.s8 %v4997
          %v4999 = vlaneseq
          %v5000 = vshrl.u32 %v4999, 7
          %v5001 = vsub.s32 %v4998, %v5000
          %v5002 = vrot.slane %v4994, %v5001
          %5003 = vrot.lane.b32.xlu0 %v5002, 64
          %v5004 = vpop.permute.xlu0 %5003
          %5006 = vst.msk [vmem:[%s4887 + $0x7] sm:$0x1] %vm4661, %v5004
          %v5007 = vld [vmem:[#allocation4 + $0x18] sm:$0x1]
          %5008 = vst.msk [vmem:[%s4887 + $0x8] sm:$0x1] %vm4645, %v5007
          %v5009 = vld [vmem:[#allocation4 + $0x58] sm:$0x1]
          %5010 = vst.msk [vmem:[%s4887 + $0x9] sm:$0x1] %vm4645, %v5009
          %v5011 = vld [vmem:[#allocation4 + $0x19] sm:$0x1]
          %v5014 = vunpack.c.l.s4 1983009808
          %v5015 = vunpack.c.0.s8 %v5014
          %v5016 = vlaneseq
          %v5017 = vshrl.u32 %v5016, 7
          %v5018 = vsub.s32 %v5015, %v5017
          %v5019 = vrot.slane %v5011, %v5018
          %5020 = vrot.lane.b32.xlu0 %v5019, 64
          %v5021 = vpop.permute.xlu0 %5020
          %5023 = vst.msk [vmem:[%s4887 + $0x8] sm:$0x1] %vm4661, %v5021
          %v5024 = vld [vmem:[#allocation4 + $0x59] sm:$0x1]
          %v5027 = vunpack.c.l.s4 1983009808
          %v5028 = vunpack.c.0.s8 %v5027
          %v5029 = vlaneseq
          %v5030 = vshrl.u32 %v5029, 7
          %v5031 = vsub.s32 %v5028, %v5030
          %v5032 = vrot.slane %v5024, %v5031
          %5033 = vrot.lane.b32.xlu0 %v5032, 64
          %v5034 = vpop.permute.xlu0 %5033
          %5036 = vst.msk [vmem:[%s4887 + $0x9] sm:$0x1] %vm4661, %v5034
          %v5037 = vld [vmem:[#allocation4 + $0x1a] sm:$0x1]
          %5038 = vst.msk [vmem:[%s4887 + $0xa] sm:$0x1] %vm4645, %v5037
          %v5039 = vld [vmem:[#allocation4 + $0x5a] sm:$0x1]
          %5040 = vst.msk [vmem:[%s4887 + $0xb] sm:$0x1] %vm4645, %v5039
          %v5041 = vld [vmem:[#allocation4 + $0x1b] sm:$0x1]
          %v5044 = vunpack.c.l.s4 1983009808
          %v5045 = vunpack.c.0.s8 %v5044
          %v5046 = vlaneseq
          %v5047 = vshrl.u32 %v5046, 7
          %v5048 = vsub.s32 %v5045, %v5047
          %v5049 = vrot.slane %v5041, %v5048
          %5050 = vrot.lane.b32.xlu0 %v5049, 64
          %v5051 = vpop.permute.xlu0 %5050
          %5053 = vst.msk [vmem:[%s4887 + $0xa] sm:$0x1] %vm4661, %v5051
          %v5054 = vld [vmem:[#allocation4 + $0x5b] sm:$0x1]
          %v5057 = vunpack.c.l.s4 1983009808
          %v5058 = vunpack.c.0.s8 %v5057
          %v5059 = vlaneseq
          %v5060 = vshrl.u32 %v5059, 7
          %v5061 = vsub.s32 %v5058, %v5060
          %v5062 = vrot.slane %v5054, %v5061
          %5063 = vrot.lane.b32.xlu0 %v5062, 64
          %v5064 = vpop.permute.xlu0 %5063
          %5066 = vst.msk [vmem:[%s4887 + $0xb] sm:$0x1] %vm4661, %v5064
          %v5067 = vld [vmem:[#allocation4 + $0x1c] sm:$0x1]
          %5068 = vst.msk [vmem:[%s4887 + $0xc] sm:$0x1] %vm4645, %v5067
          %v5069 = vld [vmem:[#allocation4 + $0x5c] sm:$0x1]
          %5070 = vst.msk [vmem:[%s4887 + $0xd] sm:$0x1] %vm4645, %v5069
          %v5071 = vld [vmem:[#allocation4 + $0x1d] sm:$0x1]
          %v5074 = vunpack.c.l.s4 1983009808
          %v5075 = vunpack.c.0.s8 %v5074
          %v5076 = vlaneseq
          %v5077 = vshrl.u32 %v5076, 7
          %v5078 = vsub.s32 %v5075, %v5077
          %v5079 = vrot.slane %v5071, %v5078
          %5080 = vrot.lane.b32.xlu0 %v5079, 64
          %v5081 = vpop.permute.xlu0 %5080
          %5083 = vst.msk [vmem:[%s4887 + $0xc] sm:$0x1] %vm4661, %v5081
          %v5084 = vld [vmem:[#allocation4 + $0x5d] sm:$0x1]
          %v5087 = vunpack.c.l.s4 1983009808
          %v5088 = vunpack.c.0.s8 %v5087
          %v5089 = vlaneseq
          %v5090 = vshrl.u32 %v5089, 7
          %v5091 = vsub.s32 %v5088, %v5090
          %v5092 = vrot.slane %v5084, %v5091
          %5093 = vrot.lane.b32.xlu0 %v5092, 64
          %v5094 = vpop.permute.xlu0 %5093
          %5096 = vst.msk [vmem:[%s4887 + $0xd] sm:$0x1] %vm4661, %v5094
          %v5097 = vld [vmem:[#allocation4 + $0x1e] sm:$0x1]
          %5098 = vst.msk [vmem:[%s4887 + $0xe] sm:$0x1] %vm4645, %v5097
          %v5099 = vld [vmem:[#allocation4 + $0x5e] sm:$0x1]
          %5100 = vst.msk [vmem:[%s4887 + $0xf] sm:$0x1] %vm4645, %v5099
          %v5101 = vld [vmem:[#allocation4 + $0x1f] sm:$0x1]
          %v5104 = vunpack.c.l.s4 1983009808
          %v5105 = vunpack.c.0.s8 %v5104
          %v5106 = vlaneseq
          %v5107 = vshrl.u32 %v5106, 7
          %v5108 = vsub.s32 %v5105, %v5107
          %v5109 = vrot.slane %v5101, %v5108
          %5110 = vrot.lane.b32.xlu0 %v5109, 64
          %v5111 = vpop.permute.xlu0 %5110
          %5113 = vst.msk [vmem:[%s4887 + $0xe] sm:$0x1] %vm4661, %v5111
          %v5114 = vld [vmem:[#allocation4 + $0x5f] sm:$0x1]
          %v5117 = vunpack.c.l.s4 1983009808
          %v5118 = vunpack.c.0.s8 %v5117
          %v5119 = vlaneseq
          %v5120 = vshrl.u32 %v5119, 7
          %v5121 = vsub.s32 %v5118, %v5120
          %v5122 = vrot.slane %v5114, %v5121
          %5123 = vrot.lane.b32.xlu0 %v5122, 64
          %v5124 = vpop.permute.xlu0 %5123
          %5126 = vst.msk [vmem:[%s4887 + $0xf] sm:$0x1] %vm4661, %v5124
          %v5127 = vld [vmem:[#allocation4 + $0x20] sm:$0x1]
          %s5128 = scalar_lea.vmem [#allocation5], 32
          %5129 = vst.msk [vmem:[%s5128] sm:$0x1] %vm4645, %v5127
          %v5130 = vld [vmem:[#allocation4 + $0x60] sm:$0x1]
          %5131 = vst.msk [vmem:[%s5128 + $0x1] sm:$0x1] %vm4645, %v5130
          %v5132 = vld [vmem:[#allocation4 + $0x21] sm:$0x1]
          %v5135 = vunpack.c.l.s4 1983009808
          %v5136 = vunpack.c.0.s8 %v5135
          %v5137 = vlaneseq
          %v5138 = vshrl.u32 %v5137, 7
          %v5139 = vsub.s32 %v5136, %v5138
          %v5140 = vrot.slane %v5132, %v5139
          %5141 = vrot.lane.b32.xlu0 %v5140, 64
          %v5142 = vpop.permute.xlu0 %5141
          %5144 = vst.msk [vmem:[%s5128] sm:$0x1] %vm4661, %v5142
          %v5145 = vld [vmem:[#allocation4 + $0x61] sm:$0x1]
          %v5148 = vunpack.c.l.s4 1983009808
          %v5149 = vunpack.c.0.s8 %v5148
          %v5150 = vlaneseq
          %v5151 = vshrl.u32 %v5150, 7
          %v5152 = vsub.s32 %v5149, %v5151
          %v5153 = vrot.slane %v5145, %v5152
          %5154 = vrot.lane.b32.xlu0 %v5153, 64
          %v5155 = vpop.permute.xlu0 %5154
          %5157 = vst.msk [vmem:[%s5128 + $0x1] sm:$0x1] %vm4661, %v5155
          %v5158 = vld [vmem:[#allocation4 + $0x22] sm:$0x1]
          %5159 = vst.msk [vmem:[%s5128 + $0x2] sm:$0x1] %vm4645, %v5158
          %v5160 = vld [vmem:[#allocation4 + $0x62] sm:$0x1]
          %5161 = vst.msk [vmem:[%s5128 + $0x3] sm:$0x1] %vm4645, %v5160
          %v5162 = vld [vmem:[#allocation4 + $0x23] sm:$0x1]
          %v5165 = vunpack.c.l.s4 1983009808
          %v5166 = vunpack.c.0.s8 %v5165
          %v5167 = vlaneseq
          %v5168 = vshrl.u32 %v5167, 7
          %v5169 = vsub.s32 %v5166, %v5168
          %v5170 = vrot.slane %v5162, %v5169
          %5171 = vrot.lane.b32.xlu0 %v5170, 64
          %v5172 = vpop.permute.xlu0 %5171
          %5174 = vst.msk [vmem:[%s5128 + $0x2] sm:$0x1] %vm4661, %v5172
          %v5175 = vld [vmem:[#allocation4 + $0x63] sm:$0x1]
          %v5178 = vunpack.c.l.s4 1983009808
          %v5179 = vunpack.c.0.s8 %v5178
          %v5180 = vlaneseq
          %v5181 = vshrl.u32 %v5180, 7
          %v5182 = vsub.s32 %v5179, %v5181
          %v5183 = vrot.slane %v5175, %v5182
          %5184 = vrot.lane.b32.xlu0 %v5183, 64
          %v5185 = vpop.permute.xlu0 %5184
          %5187 = vst.msk [vmem:[%s5128 + $0x3] sm:$0x1] %vm4661, %v5185
          %v5188 = vld [vmem:[#allocation4 + $0x24] sm:$0x1]
          %5189 = vst.msk [vmem:[%s5128 + $0x4] sm:$0x1] %vm4645, %v5188
          %v5190 = vld [vmem:[#allocation4 + $0x64] sm:$0x1]
          %5191 = vst.msk [vmem:[%s5128 + $0x5] sm:$0x1] %vm4645, %v5190
          %v5192 = vld [vmem:[#allocation4 + $0x25] sm:$0x1]
          %v5195 = vunpack.c.l.s4 1983009808
          %v5196 = vunpack.c.0.s8 %v5195
          %v5197 = vlaneseq
          %v5198 = vshrl.u32 %v5197, 7
          %v5199 = vsub.s32 %v5196, %v5198
          %v5200 = vrot.slane %v5192, %v5199
          %5201 = vrot.lane.b32.xlu0 %v5200, 64
          %v5202 = vpop.permute.xlu0 %5201
          %5204 = vst.msk [vmem:[%s5128 + $0x4] sm:$0x1] %vm4661, %v5202
          %v5205 = vld [vmem:[#allocation4 + $0x65] sm:$0x1]
          %v5208 = vunpack.c.l.s4 1983009808
          %v5209 = vunpack.c.0.s8 %v5208
          %v5210 = vlaneseq
          %v5211 = vshrl.u32 %v5210, 7
          %v5212 = vsub.s32 %v5209, %v5211
          %v5213 = vrot.slane %v5205, %v5212
          %5214 = vrot.lane.b32.xlu0 %v5213, 64
          %v5215 = vpop.permute.xlu0 %5214
          %5217 = vst.msk [vmem:[%s5128 + $0x5] sm:$0x1] %vm4661, %v5215
          %v5218 = vld [vmem:[#allocation4 + $0x26] sm:$0x1]
          %5219 = vst.msk [vmem:[%s5128 + $0x6] sm:$0x1] %vm4645, %v5218
          %v5220 = vld [vmem:[#allocation4 + $0x66] sm:$0x1]
          %5221 = vst.msk [vmem:[%s5128 + $0x7] sm:$0x1] %vm4645, %v5220
          %v5222 = vld [vmem:[#allocation4 + $0x27] sm:$0x1]
          %v5225 = vunpack.c.l.s4 1983009808
          %v5226 = vunpack.c.0.s8 %v5225
          %v5227 = vlaneseq
          %v5228 = vshrl.u32 %v5227, 7
          %v5229 = vsub.s32 %v5226, %v5228
          %v5230 = vrot.slane %v5222, %v5229
          %5231 = vrot.lane.b32.xlu0 %v5230, 64
          %v5232 = vpop.permute.xlu0 %5231
          %5234 = vst.msk [vmem:[%s5128 + $0x6] sm:$0x1] %vm4661, %v5232
          %v5235 = vld [vmem:[#allocation4 + $0x67] sm:$0x1]
          %v5238 = vunpack.c.l.s4 1983009808
          %v5239 = vunpack.c.0.s8 %v5238
          %v5240 = vlaneseq
          %v5241 = vshrl.u32 %v5240, 7
          %v5242 = vsub.s32 %v5239, %v5241
          %v5243 = vrot.slane %v5235, %v5242
          %5244 = vrot.lane.b32.xlu0 %v5243, 64
          %v5245 = vpop.permute.xlu0 %5244
          %5247 = vst.msk [vmem:[%s5128 + $0x7] sm:$0x1] %vm4661, %v5245
          %v5248 = vld [vmem:[#allocation4 + $0x28] sm:$0x1]
          %5249 = vst.msk [vmem:[%s5128 + $0x8] sm:$0x1] %vm4645, %v5248
          %v5250 = vld [vmem:[#allocation4 + $0x68] sm:$0x1]
          %5251 = vst.msk [vmem:[%s5128 + $0x9] sm:$0x1] %vm4645, %v5250
          %v5252 = vld [vmem:[#allocation4 + $0x29] sm:$0x1]
          %v5255 = vunpack.c.l.s4 1983009808
          %v5256 = vunpack.c.0.s8 %v5255
          %v5257 = vlaneseq
          %v5258 = vshrl.u32 %v5257, 7
          %v5259 = vsub.s32 %v5256, %v5258
          %v5260 = vrot.slane %v5252, %v5259
          %5261 = vrot.lane.b32.xlu0 %v5260, 64
          %v5262 = vpop.permute.xlu0 %5261
          %5264 = vst.msk [vmem:[%s5128 + $0x8] sm:$0x1] %vm4661, %v5262
          %v5265 = vld [vmem:[#allocation4 + $0x69] sm:$0x1]
          %v5268 = vunpack.c.l.s4 1983009808
          %v5269 = vunpack.c.0.s8 %v5268
          %v5270 = vlaneseq
          %v5271 = vshrl.u32 %v5270, 7
          %v5272 = vsub.s32 %v5269, %v5271
          %v5273 = vrot.slane %v5265, %v5272
          %5274 = vrot.lane.b32.xlu0 %v5273, 64
          %v5275 = vpop.permute.xlu0 %5274
          %5277 = vst.msk [vmem:[%s5128 + $0x9] sm:$0x1] %vm4661, %v5275
          %v5278 = vld [vmem:[#allocation4 + $0x2a] sm:$0x1]
          %5279 = vst.msk [vmem:[%s5128 + $0xa] sm:$0x1] %vm4645, %v5278
          %v5280 = vld [vmem:[#allocation4 + $0x6a] sm:$0x1]
          %5281 = vst.msk [vmem:[%s5128 + $0xb] sm:$0x1] %vm4645, %v5280
          %v5282 = vld [vmem:[#allocation4 + $0x2b] sm:$0x1]
          %v5285 = vunpack.c.l.s4 1983009808
          %v5286 = vunpack.c.0.s8 %v5285
          %v5287 = vlaneseq
          %v5288 = vshrl.u32 %v5287, 7
          %v5289 = vsub.s32 %v5286, %v5288
          %v5290 = vrot.slane %v5282, %v5289
          %5291 = vrot.lane.b32.xlu0 %v5290, 64
          %v5292 = vpop.permute.xlu0 %5291
          %5294 = vst.msk [vmem:[%s5128 + $0xa] sm:$0x1] %vm4661, %v5292
          %v5295 = vld [vmem:[#allocation4 + $0x6b] sm:$0x1]
          %v5298 = vunpack.c.l.s4 1983009808
          %v5299 = vunpack.c.0.s8 %v5298
          %v5300 = vlaneseq
          %v5301 = vshrl.u32 %v5300, 7
          %v5302 = vsub.s32 %v5299, %v5301
          %v5303 = vrot.slane %v5295, %v5302
          %5304 = vrot.lane.b32.xlu0 %v5303, 64
          %v5305 = vpop.permute.xlu0 %5304
          %5307 = vst.msk [vmem:[%s5128 + $0xb] sm:$0x1] %vm4661, %v5305
          %v5308 = vld [vmem:[#allocation4 + $0x2c] sm:$0x1]
          %5309 = vst.msk [vmem:[%s5128 + $0xc] sm:$0x1] %vm4645, %v5308
          %v5310 = vld [vmem:[#allocation4 + $0x6c] sm:$0x1]
          %5311 = vst.msk [vmem:[%s5128 + $0xd] sm:$0x1] %vm4645, %v5310
          %v5312 = vld [vmem:[#allocation4 + $0x2d] sm:$0x1]
          %v5315 = vunpack.c.l.s4 1983009808
          %v5316 = vunpack.c.0.s8 %v5315
          %v5317 = vlaneseq
          %v5318 = vshrl.u32 %v5317, 7
          %v5319 = vsub.s32 %v5316, %v5318
          %v5320 = vrot.slane %v5312, %v5319
          %5321 = vrot.lane.b32.xlu0 %v5320, 64
          %v5322 = vpop.permute.xlu0 %5321
          %5324 = vst.msk [vmem:[%s5128 + $0xc] sm:$0x1] %vm4661, %v5322
          %v5325 = vld [vmem:[#allocation4 + $0x6d] sm:$0x1]
          %v5328 = vunpack.c.l.s4 1983009808
          %v5329 = vunpack.c.0.s8 %v5328
          %v5330 = vlaneseq
          %v5331 = vshrl.u32 %v5330, 7
          %v5332 = vsub.s32 %v5329, %v5331
          %v5333 = vrot.slane %v5325, %v5332
          %5334 = vrot.lane.b32.xlu0 %v5333, 64
          %v5335 = vpop.permute.xlu0 %5334
          %5337 = vst.msk [vmem:[%s5128 + $0xd] sm:$0x1] %vm4661, %v5335
          %v5338 = vld [vmem:[#allocation4 + $0x2e] sm:$0x1]
          %5339 = vst.msk [vmem:[%s5128 + $0xe] sm:$0x1] %vm4645, %v5338
          %v5340 = vld [vmem:[#allocation4 + $0x6e] sm:$0x1]
          %5341 = vst.msk [vmem:[%s5128 + $0xf] sm:$0x1] %vm4645, %v5340
          %v5342 = vld [vmem:[#allocation4 + $0x2f] sm:$0x1]
          %v5345 = vunpack.c.l.s4 1983009808
          %v5346 = vunpack.c.0.s8 %v5345
          %v5347 = vlaneseq
          %v5348 = vshrl.u32 %v5347, 7
          %v5349 = vsub.s32 %v5346, %v5348
          %v5350 = vrot.slane %v5342, %v5349
          %5351 = vrot.lane.b32.xlu0 %v5350, 64
          %v5352 = vpop.permute.xlu0 %5351
          %5354 = vst.msk [vmem:[%s5128 + $0xe] sm:$0x1] %vm4661, %v5352
          %v5355 = vld [vmem:[#allocation4 + $0x6f] sm:$0x1]
          %v5358 = vunpack.c.l.s4 1983009808
          %v5359 = vunpack.c.0.s8 %v5358
          %v5360 = vlaneseq
          %v5361 = vshrl.u32 %v5360, 7
          %v5362 = vsub.s32 %v5359, %v5361
          %v5363 = vrot.slane %v5355, %v5362
          %5364 = vrot.lane.b32.xlu0 %v5363, 64
          %v5365 = vpop.permute.xlu0 %5364
          %5367 = vst.msk [vmem:[%s5128 + $0xf] sm:$0x1] %vm4661, %v5365
          %v5368 = vld [vmem:[#allocation4 + $0x30] sm:$0x1]
          %s5369 = scalar_lea.vmem [#allocation5], 48
          %5370 = vst.msk [vmem:[%s5369] sm:$0x1] %vm4645, %v5368
          %v5371 = vld [vmem:[#allocation4 + $0x70] sm:$0x1]
          %5372 = vst.msk [vmem:[%s5369 + $0x1] sm:$0x1] %vm4645, %v5371
          %v5373 = vld [vmem:[#allocation4 + $0x31] sm:$0x1]
          %v5376 = vunpack.c.l.s4 1983009808
          %v5377 = vunpack.c.0.s8 %v5376
          %v5378 = vlaneseq
          %v5379 = vshrl.u32 %v5378, 7
          %v5380 = vsub.s32 %v5377, %v5379
          %v5381 = vrot.slane %v5373, %v5380
          %5382 = vrot.lane.b32.xlu0 %v5381, 64
          %v5383 = vpop.permute.xlu0 %5382
          %5385 = vst.msk [vmem:[%s5369] sm:$0x1] %vm4661, %v5383
          %v5386 = vld [vmem:[#allocation4 + $0x71] sm:$0x1]
          %v5389 = vunpack.c.l.s4 1983009808
          %v5390 = vunpack.c.0.s8 %v5389
          %v5391 = vlaneseq
          %v5392 = vshrl.u32 %v5391, 7
          %v5393 = vsub.s32 %v5390, %v5392
          %v5394 = vrot.slane %v5386, %v5393
          %5395 = vrot.lane.b32.xlu0 %v5394, 64
          %v5396 = vpop.permute.xlu0 %5395
          %5398 = vst.msk [vmem:[%s5369 + $0x1] sm:$0x1] %vm4661, %v5396
          %v5399 = vld [vmem:[#allocation4 + $0x32] sm:$0x1]
          %5400 = vst.msk [vmem:[%s5369 + $0x2] sm:$0x1] %vm4645, %v5399
          %v5401 = vld [vmem:[#allocation4 + $0x72] sm:$0x1]
          %5402 = vst.msk [vmem:[%s5369 + $0x3] sm:$0x1] %vm4645, %v5401
          %v5403 = vld [vmem:[#allocation4 + $0x33] sm:$0x1]
          %v5406 = vunpack.c.l.s4 1983009808
          %v5407 = vunpack.c.0.s8 %v5406
          %v5408 = vlaneseq
          %v5409 = vshrl.u32 %v5408, 7
          %v5410 = vsub.s32 %v5407, %v5409
          %v5411 = vrot.slane %v5403, %v5410
          %5412 = vrot.lane.b32.xlu0 %v5411, 64
          %v5413 = vpop.permute.xlu0 %5412
          %5415 = vst.msk [vmem:[%s5369 + $0x2] sm:$0x1] %vm4661, %v5413
          %v5416 = vld [vmem:[#allocation4 + $0x73] sm:$0x1]
          %v5419 = vunpack.c.l.s4 1983009808
          %v5420 = vunpack.c.0.s8 %v5419
          %v5421 = vlaneseq
          %v5422 = vshrl.u32 %v5421, 7
          %v5423 = vsub.s32 %v5420, %v5422
          %v5424 = vrot.slane %v5416, %v5423
          %5425 = vrot.lane.b32.xlu0 %v5424, 64
          %v5426 = vpop.permute.xlu0 %5425
          %5428 = vst.msk [vmem:[%s5369 + $0x3] sm:$0x1] %vm4661, %v5426
          %v5429 = vld [vmem:[#allocation4 + $0x34] sm:$0x1]
          %5430 = vst.msk [vmem:[%s5369 + $0x4] sm:$0x1] %vm4645, %v5429
          %v5431 = vld [vmem:[#allocation4 + $0x74] sm:$0x1]
          %5432 = vst.msk [vmem:[%s5369 + $0x5] sm:$0x1] %vm4645, %v5431
          %v5433 = vld [vmem:[#allocation4 + $0x35] sm:$0x1]
          %v5436 = vunpack.c.l.s4 1983009808
          %v5437 = vunpack.c.0.s8 %v5436
          %v5438 = vlaneseq
          %v5439 = vshrl.u32 %v5438, 7
          %v5440 = vsub.s32 %v5437, %v5439
          %v5441 = vrot.slane %v5433, %v5440
          %5442 = vrot.lane.b32.xlu0 %v5441, 64
          %v5443 = vpop.permute.xlu0 %5442
          %5445 = vst.msk [vmem:[%s5369 + $0x4] sm:$0x1] %vm4661, %v5443
          %v5446 = vld [vmem:[#allocation4 + $0x75] sm:$0x1]
          %v5449 = vunpack.c.l.s4 1983009808
          %v5450 = vunpack.c.0.s8 %v5449
          %v5451 = vlaneseq
          %v5452 = vshrl.u32 %v5451, 7
          %v5453 = vsub.s32 %v5450, %v5452
          %v5454 = vrot.slane %v5446, %v5453
          %5455 = vrot.lane.b32.xlu0 %v5454, 64
          %v5456 = vpop.permute.xlu0 %5455
          %5458 = vst.msk [vmem:[%s5369 + $0x5] sm:$0x1] %vm4661, %v5456
          %v5459 = vld [vmem:[#allocation4 + $0x36] sm:$0x1]
          %5460 = vst.msk [vmem:[%s5369 + $0x6] sm:$0x1] %vm4645, %v5459
          %v5461 = vld [vmem:[#allocation4 + $0x76] sm:$0x1]
          %5462 = vst.msk [vmem:[%s5369 + $0x7] sm:$0x1] %vm4645, %v5461
          %v5463 = vld [vmem:[#allocation4 + $0x37] sm:$0x1]
          %v5466 = vunpack.c.l.s4 1983009808
          %v5467 = vunpack.c.0.s8 %v5466
          %v5468 = vlaneseq
          %v5469 = vshrl.u32 %v5468, 7
          %v5470 = vsub.s32 %v5467, %v5469
          %v5471 = vrot.slane %v5463, %v5470
          %5472 = vrot.lane.b32.xlu0 %v5471, 64
          %v5473 = vpop.permute.xlu0 %5472
          %5475 = vst.msk [vmem:[%s5369 + $0x6] sm:$0x1] %vm4661, %v5473
          %v5476 = vld [vmem:[#allocation4 + $0x77] sm:$0x1]
          %v5479 = vunpack.c.l.s4 1983009808
          %v5480 = vunpack.c.0.s8 %v5479
          %v5481 = vlaneseq
          %v5482 = vshrl.u32 %v5481, 7
          %v5483 = vsub.s32 %v5480, %v5482
          %v5484 = vrot.slane %v5476, %v5483
          %5485 = vrot.lane.b32.xlu0 %v5484, 64
          %v5486 = vpop.permute.xlu0 %5485
          %5488 = vst.msk [vmem:[%s5369 + $0x7] sm:$0x1] %vm4661, %v5486
          %v5489 = vld [vmem:[#allocation4 + $0x38] sm:$0x1]
          %5490 = vst.msk [vmem:[%s5369 + $0x8] sm:$0x1] %vm4645, %v5489
          %v5491 = vld [vmem:[#allocation4 + $0x78] sm:$0x1]
          %5492 = vst.msk [vmem:[%s5369 + $0x9] sm:$0x1] %vm4645, %v5491
          %v5493 = vld [vmem:[#allocation4 + $0x39] sm:$0x1]
          %v5496 = vunpack.c.l.s4 1983009808
          %v5497 = vunpack.c.0.s8 %v5496
          %v5498 = vlaneseq
          %v5499 = vshrl.u32 %v5498, 7
          %v5500 = vsub.s32 %v5497, %v5499
          %v5501 = vrot.slane %v5493, %v5500
          %5502 = vrot.lane.b32.xlu0 %v5501, 64
          %v5503 = vpop.permute.xlu0 %5502
          %5505 = vst.msk [vmem:[%s5369 + $0x8] sm:$0x1] %vm4661, %v5503
          %v5506 = vld [vmem:[#allocation4 + $0x79] sm:$0x1]
          %v5509 = vunpack.c.l.s4 1983009808
          %v5510 = vunpack.c.0.s8 %v5509
          %v5511 = vlaneseq
          %v5512 = vshrl.u32 %v5511, 7
          %v5513 = vsub.s32 %v5510, %v5512
          %v5514 = vrot.slane %v5506, %v5513
          %5515 = vrot.lane.b32.xlu0 %v5514, 64
          %v5516 = vpop.permute.xlu0 %5515
          %5518 = vst.msk [vmem:[%s5369 + $0x9] sm:$0x1] %vm4661, %v5516
          %v5519 = vld [vmem:[#allocation4 + $0x3a] sm:$0x1]
          %5520 = vst.msk [vmem:[%s5369 + $0xa] sm:$0x1] %vm4645, %v5519
          %v5521 = vld [vmem:[#allocation4 + $0x7a] sm:$0x1]
          %5522 = vst.msk [vmem:[%s5369 + $0xb] sm:$0x1] %vm4645, %v5521
          %v5523 = vld [vmem:[#allocation4 + $0x3b] sm:$0x1]
          %v5526 = vunpack.c.l.s4 1983009808
          %v5527 = vunpack.c.0.s8 %v5526
          %v5528 = vlaneseq
          %v5529 = vshrl.u32 %v5528, 7
          %v5530 = vsub.s32 %v5527, %v5529
          %v5531 = vrot.slane %v5523, %v5530
          %5532 = vrot.lane.b32.xlu0 %v5531, 64
          %v5533 = vpop.permute.xlu0 %5532
          %5535 = vst.msk [vmem:[%s5369 + $0xa] sm:$0x1] %vm4661, %v5533
          %v5536 = vld [vmem:[#allocation4 + $0x7b] sm:$0x1]
          %v5539 = vunpack.c.l.s4 1983009808
          %v5540 = vunpack.c.0.s8 %v5539
          %v5541 = vlaneseq
          %v5542 = vshrl.u32 %v5541, 7
          %v5543 = vsub.s32 %v5540, %v5542
          %v5544 = vrot.slane %v5536, %v5543
          %5545 = vrot.lane.b32.xlu0 %v5544, 64
          %v5546 = vpop.permute.xlu0 %5545
          %5548 = vst.msk [vmem:[%s5369 + $0xb] sm:$0x1] %vm4661, %v5546
          %v5549 = vld [vmem:[#allocation4 + $0x3c] sm:$0x1]
          %5550 = vst.msk [vmem:[%s5369 + $0xc] sm:$0x1] %vm4645, %v5549
          %v5551 = vld [vmem:[#allocation4 + $0x7c] sm:$0x1]
          %5552 = vst.msk [vmem:[%s5369 + $0xd] sm:$0x1] %vm4645, %v5551
          %v5553 = vld [vmem:[#allocation4 + $0x3d] sm:$0x1]
          %v5556 = vunpack.c.l.s4 1983009808
          %v5557 = vunpack.c.0.s8 %v5556
          %v5558 = vlaneseq
          %v5559 = vshrl.u32 %v5558, 7
          %v5560 = vsub.s32 %v5557, %v5559
          %v5561 = vrot.slane %v5553, %v5560
          %5562 = vrot.lane.b32.xlu0 %v5561, 64
          %v5563 = vpop.permute.xlu0 %5562
          %5565 = vst.msk [vmem:[%s5369 + $0xc] sm:$0x1] %vm4661, %v5563
          %v5566 = vld [vmem:[#allocation4 + $0x7d] sm:$0x1]
          %v5569 = vunpack.c.l.s4 1983009808
          %v5570 = vunpack.c.0.s8 %v5569
          %v5571 = vlaneseq
          %v5572 = vshrl.u32 %v5571, 7
          %v5573 = vsub.s32 %v5570, %v5572
          %v5574 = vrot.slane %v5566, %v5573
          %5575 = vrot.lane.b32.xlu0 %v5574, 64
          %v5576 = vpop.permute.xlu0 %5575
          %5578 = vst.msk [vmem:[%s5369 + $0xd] sm:$0x1] %vm4661, %v5576
          %v5579 = vld [vmem:[#allocation4 + $0x3e] sm:$0x1]
          %5580 = vst.msk [vmem:[%s5369 + $0xe] sm:$0x1] %vm4645, %v5579
          %v5581 = vld [vmem:[#allocation4 + $0x7e] sm:$0x1]
          %5582 = vst.msk [vmem:[%s5369 + $0xf] sm:$0x1] %vm4645, %v5581
          %v5583 = vld [vmem:[#allocation4 + $0x3f] sm:$0x1]
          %v5586 = vunpack.c.l.s4 1983009808
          %v5587 = vunpack.c.0.s8 %v5586
          %v5588 = vlaneseq
          %v5589 = vshrl.u32 %v5588, 7
          %v5590 = vsub.s32 %v5587, %v5589
          %v5591 = vrot.slane %v5583, %v5590
          %5592 = vrot.lane.b32.xlu0 %v5591, 64
          %v5593 = vpop.permute.xlu0 %5592
          %5595 = vst.msk [vmem:[%s5369 + $0xe] sm:$0x1] %vm4661, %v5593
          %v5596 = vld [vmem:[#allocation4 + $0x7f] sm:$0x1]
          %v5599 = vunpack.c.l.s4 1983009808
          %v5600 = vunpack.c.0.s8 %v5599
          %v5601 = vlaneseq
          %v5602 = vshrl.u32 %v5601, 7
          %v5603 = vsub.s32 %v5600, %v5602
          %v5604 = vrot.slane %v5596, %v5603
          %5605 = vrot.lane.b32.xlu0 %v5604, 64
          %v5606 = vpop.permute.xlu0 %5605
          %5608 = vst.msk [vmem:[%s5369 + $0xf] sm:$0x1] %vm4661, %v5606
          %5609 = vst [vmem:[#allocation6] sm:$0xf] 0.0
        $region68: #{custom_dqn_forward.1} parent=43 // pred_fallthru
          _
        %s5610 = smul.u32 %s20, 8
        %s5611 = smul.addr %s5610, 2
        %s5612 = scalar_lea.vmem [#allocation5], %s5611
        %v5613 = vld [vmem:[%s5612] sm:$0xff]
        %v5614 = vld [vmem:[%s5612 + $0x8] sm:$0xff]
        %v5617 = vcombine.high %v5613, %v5613
        %v5619 = vunpack.c.l.s4 1983009808
        %v5620 = vunpack.c.0.s8 %v5619
        %v5621 = vlaneseq
        %v5622 = vshrl.u32 %v5621, 7
        %v5623 = vsub.s32 %v5620, %v5622
        %v5624 = vrot.slane %v5613, %v5623
        %v5626 = vunpack.c.l.s4 1983009808
        %v5627 = vunpack.c.0.s8 %v5626
        %v5628 = vlaneseq
        %v5629 = vshrl.u32 %v5628, 7
        %v5630 = vsub.s32 %v5627, %v5629
        %v5631 = vrot.slane %v5617, %v5630
        %v5632 = vcombine.high %v5624, %v5624
        %v5633 = vcombine.high %v5631, %v5631
        %v5634 = vcombine.high %v5614, %v5614
        %v5636 = vunpack.c.l.s4 1983009808
        %v5637 = vunpack.c.0.s8 %v5636
        %v5638 = vlaneseq
        %v5639 = vshrl.u32 %v5638, 7
        %v5640 = vsub.s32 %v5637, %v5639
        %v5641 = vrot.slane %v5614, %v5640
        %v5643 = vunpack.c.l.s4 1983009808
        %v5644 = vunpack.c.0.s8 %v5643
        %v5645 = vlaneseq
        %v5646 = vshrl.u32 %v5645, 7
        %v5647 = vsub.s32 %v5644, %v5646
        %v5648 = vrot.slane %v5634, %v5647
        %v5649 = vcombine.high %v5641, %v5641
        %v5650 = vcombine.high %v5648, %v5648
        %v5659 = vpack.c.bf16 %v5624, %v5624
        %v5660 = vpack.c.bf16 %v5632, %v5632
        %v5661 = vpack.c.bf16 %v5631, %v5631
        %v5662 = vpack.c.bf16 %v5633, %v5633
        %v5663 = vpack.c.bf16 %v5641, %v5641
        %v5664 = vpack.c.bf16 %v5649, %v5649
        %v5665 = vpack.c.bf16 %v5648, %v5648
        %v5666 = vpack.c.bf16 %v5650, %v5650
        %v5667 = vld [vmem:[#allocation6] sm:$0xf]
        %v5668 = vld [vmem:[%s280] sm:$0xff]
        %v5669 = vld [vmem:[%s280 + $0x8] sm:$0xff]
        %v5670 = vld [vmem:[%s280 + $0x10] sm:$0xff]
        %v5671 = vld [vmem:[%s280 + $0x18] sm:$0xff]
        %v5672 = vld [vmem:[%s280 + $0x20] sm:$0xff]
        %v5673 = vld [vmem:[%s280 + $0x28] sm:$0xff]
        %v5674 = vld [vmem:[%s280 + $0x30] sm:$0xff]
        %v5675 = vld [vmem:[%s280 + $0x38] sm:$0xff]
        %v5676 = vld [vmem:[%s280 + $0x40] sm:$0xff]
        %v5677 = vld [vmem:[%s280 + $0x48] sm:$0xff]
        %v5678 = vld [vmem:[%s280 + $0x50] sm:$0xff]
        %v5679 = vld [vmem:[%s280 + $0x58] sm:$0xff]
        %v5680 = vld [vmem:[%s280 + $0x60] sm:$0xff]
        %v5681 = vld [vmem:[%s280 + $0x68] sm:$0xff]
        %v5682 = vld [vmem:[%s280 + $0x70] sm:$0xff]
        %v5683 = vld [vmem:[%s280 + $0x78] sm:$0xff]
        %v5684 = vld [vmem:[%s280 + $0x80] sm:$0xff]
        %v5685 = vld [vmem:[%s280 + $0x88] sm:$0xff]
        %v5686 = vld [vmem:[%s280 + $0x90] sm:$0xff]
        %v5687 = vld [vmem:[%s280 + $0x98] sm:$0xff]
        %v5688 = vld [vmem:[%s280 + $0xa0] sm:$0xff]
        %v5689 = vld [vmem:[%s280 + $0xa8] sm:$0xff]
        %v5690 = vld [vmem:[%s280 + $0xb0] sm:$0xff]
        %v5691 = vld [vmem:[%s280 + $0xb8] sm:$0xff]
        %v5692 = vld [vmem:[%s280 + $0xc0] sm:$0xff]
        %v5693 = vld [vmem:[%s280 + $0xc8] sm:$0xff]
        %v5694 = vld [vmem:[%s280 + $0xd0] sm:$0xff]
        %v5695 = vld [vmem:[%s280 + $0xd8] sm:$0xff]
        %v5696 = vld [vmem:[%s280 + $0xe0] sm:$0xff]
        %v5697 = vld [vmem:[%s280 + $0xe8] sm:$0xff]
        %v5698 = vld [vmem:[%s280 + $0xf0] sm:$0xff]
        %v5699 = vld [vmem:[%s280 + $0xf8] sm:$0xff]
        %v5700 = vld [vmem:[%s280 + $0x100] sm:$0xff]
        %v5701 = vld [vmem:[%s280 + $0x108] sm:$0xff]
        %v5702 = vld [vmem:[%s280 + $0x110] sm:$0xff]
        %v5703 = vld [vmem:[%s280 + $0x118] sm:$0xff]
        %v5704 = vld [vmem:[%s280 + $0x120] sm:$0xff]
        %v5705 = vld [vmem:[%s280 + $0x128] sm:$0xff]
        %v5706 = vld [vmem:[%s280 + $0x130] sm:$0xff]
        %v5707 = vld [vmem:[%s280 + $0x138] sm:$0xff]
        %v5708 = vld [vmem:[%s280 + $0x140] sm:$0xff]
        %v5709 = vld [vmem:[%s280 + $0x148] sm:$0xff]
        %v5710 = vld [vmem:[%s280 + $0x150] sm:$0xff]
        %v5711 = vld [vmem:[%s280 + $0x158] sm:$0xff]
        %v5712 = vld [vmem:[%s280 + $0x160] sm:$0xff]
        %v5713 = vld [vmem:[%s280 + $0x168] sm:$0xff]
        %v5714 = vld [vmem:[%s280 + $0x170] sm:$0xff]
        %v5715 = vld [vmem:[%s280 + $0x178] sm:$0xff]
        %v5716 = vld [vmem:[%s280 + $0x180] sm:$0xff]
        %v5717 = vld [vmem:[%s280 + $0x188] sm:$0xff]
        %v5718 = vld [vmem:[%s280 + $0x190] sm:$0xff]
        %v5719 = vld [vmem:[%s280 + $0x198] sm:$0xff]
        %v5720 = vld [vmem:[%s280 + $0x1a0] sm:$0xff]
        %v5721 = vld [vmem:[%s280 + $0x1a8] sm:$0xff]
        %v5722 = vld [vmem:[%s280 + $0x1b0] sm:$0xff]
        %v5723 = vld [vmem:[%s280 + $0x1b8] sm:$0xff]
        %v5724 = vld [vmem:[%s280 + $0x1c0] sm:$0xff]
        %v5725 = vld [vmem:[%s280 + $0x1c8] sm:$0xff]
        %v5726 = vld [vmem:[%s280 + $0x1d0] sm:$0xff]
        %v5727 = vld [vmem:[%s280 + $0x1d8] sm:$0xff]
        %v5728 = vld [vmem:[%s280 + $0x1e0] sm:$0xff]
        %v5729 = vld [vmem:[%s280 + $0x1e8] sm:$0xff]
        %v5730 = vld [vmem:[%s280 + $0x1f0] sm:$0xff]
        %v5731 = vld [vmem:[%s280 + $0x1f8] sm:$0xff]
        %v5732 = vld [vmem:[%s280 + $0x200] sm:$0xff]
        %v5733 = vld [vmem:[%s280 + $0x208] sm:$0xff]
        %v5734 = vld [vmem:[%s280 + $0x210] sm:$0xff]
        %v5735 = vld [vmem:[%s280 + $0x218] sm:$0xff]
        %v5736 = vld [vmem:[%s280 + $0x220] sm:$0xff]
        %v5737 = vld [vmem:[%s280 + $0x228] sm:$0xff]
        %v5738 = vld [vmem:[%s280 + $0x230] sm:$0xff]
        %v5739 = vld [vmem:[%s280 + $0x238] sm:$0xff]
        %v5740 = vld [vmem:[%s280 + $0x240] sm:$0xff]
        %v5741 = vld [vmem:[%s280 + $0x248] sm:$0xff]
        %v5742 = vld [vmem:[%s280 + $0x250] sm:$0xff]
        %v5743 = vld [vmem:[%s280 + $0x258] sm:$0xff]
        %v5744 = vld [vmem:[%s280 + $0x260] sm:$0xff]
        %v5745 = vld [vmem:[%s280 + $0x268] sm:$0xff]
        %v5746 = vld [vmem:[%s280 + $0x270] sm:$0xff]
        %v5747 = vld [vmem:[%s280 + $0x278] sm:$0xff]
        %v5748 = vld [vmem:[%s280 + $0x280] sm:$0xff]
        %v5749 = vld [vmem:[%s280 + $0x288] sm:$0xff]
        %v5750 = vld [vmem:[%s280 + $0x290] sm:$0xff]
        %v5751 = vld [vmem:[%s280 + $0x298] sm:$0xff]
        %v5752 = vld [vmem:[%s280 + $0x2a0] sm:$0xff]
        %v5753 = vld [vmem:[%s280 + $0x2a8] sm:$0xff]
        %v5754 = vld [vmem:[%s280 + $0x2b0] sm:$0xff]
        %v5755 = vld [vmem:[%s280 + $0x2b8] sm:$0xff]
        %v5756 = vld [vmem:[%s280 + $0x2c0] sm:$0xff]
        %v5757 = vld [vmem:[%s280 + $0x2c8] sm:$0xff]
        %v5758 = vld [vmem:[%s280 + $0x2d0] sm:$0xff]
        %v5759 = vld [vmem:[%s280 + $0x2d8] sm:$0xff]
        %v5760 = vld [vmem:[%s280 + $0x2e0] sm:$0xff]
        %v5761 = vld [vmem:[%s280 + $0x2e8] sm:$0xff]
        %v5762 = vld [vmem:[%s280 + $0x2f0] sm:$0xff]
        %v5763 = vld [vmem:[%s280 + $0x2f8] sm:$0xff]
        %v5764 = vld [vmem:[%s280 + $0x300] sm:$0xff]
        %v5765 = vld [vmem:[%s280 + $0x308] sm:$0xff]
        %v5766 = vld [vmem:[%s280 + $0x310] sm:$0xff]
        %v5767 = vld [vmem:[%s280 + $0x318] sm:$0xff]
        %v5768 = vld [vmem:[%s280 + $0x320] sm:$0xff]
        %v5769 = vld [vmem:[%s280 + $0x328] sm:$0xff]
        %v5770 = vld [vmem:[%s280 + $0x330] sm:$0xff]
        %v5771 = vld [vmem:[%s280 + $0x338] sm:$0xff]
        %v5772 = vld [vmem:[%s280 + $0x340] sm:$0xff]
        %v5773 = vld [vmem:[%s280 + $0x348] sm:$0xff]
        %v5774 = vld [vmem:[%s280 + $0x350] sm:$0xff]
        %v5775 = vld [vmem:[%s280 + $0x358] sm:$0xff]
        %v5776 = vld [vmem:[%s280 + $0x360] sm:$0xff]
        %v5777 = vld [vmem:[%s280 + $0x368] sm:$0xff]
        %v5778 = vld [vmem:[%s280 + $0x370] sm:$0xff]
        %v5779 = vld [vmem:[%s280 + $0x378] sm:$0xff]
        %v5780 = vld [vmem:[%s280 + $0x380] sm:$0xff]
        %v5781 = vld [vmem:[%s280 + $0x388] sm:$0xff]
        %v5782 = vld [vmem:[%s280 + $0x390] sm:$0xff]
        %v5783 = vld [vmem:[%s280 + $0x398] sm:$0xff]
        %v5784 = vld [vmem:[%s280 + $0x3a0] sm:$0xff]
        %v5785 = vld [vmem:[%s280 + $0x3a8] sm:$0xff]
        %v5786 = vld [vmem:[%s280 + $0x3b0] sm:$0xff]
        %v5787 = vld [vmem:[%s280 + $0x3b8] sm:$0xff]
        %v5788 = vld [vmem:[%s280 + $0x3c0] sm:$0xff]
        %v5789 = vld [vmem:[%s280 + $0x3c8] sm:$0xff]
        %v5790 = vld [vmem:[%s280 + $0x3d0] sm:$0xff]
        %v5791 = vld [vmem:[%s280 + $0x3d8] sm:$0xff]
        %v5792 = vld [vmem:[%s280 + $0x3e0] sm:$0xff]
        %v5793 = vld [vmem:[%s280 + $0x3e8] sm:$0xff]
        %v5794 = vld [vmem:[%s280 + $0x3f0] sm:$0xff]
        %v5795 = vld [vmem:[%s280 + $0x3f8] sm:$0xff]
        %v5924 = vunpack.c.l.b16 %v5668
        %v5925 = vunpack.c.h.b16 %v5668
        %v5926 = vunpack.c.l.b16 %v5669
        %v5927 = vunpack.c.h.b16 %v5669
        %v5928 = vunpack.c.l.b16 %v5670
        %v5929 = vunpack.c.h.b16 %v5670
        %v5930 = vunpack.c.l.b16 %v5671
        %v5931 = vunpack.c.h.b16 %v5671
        %v5932 = vunpack.c.l.b16 %v5672
        %v5933 = vunpack.c.h.b16 %v5672
        %v5934 = vunpack.c.l.b16 %v5673
        %v5935 = vunpack.c.h.b16 %v5673
        %v5936 = vunpack.c.l.b16 %v5674
        %v5937 = vunpack.c.h.b16 %v5674
        %v5938 = vunpack.c.l.b16 %v5675
        %v5939 = vunpack.c.h.b16 %v5675
        %v5940 = vunpack.c.l.b16 %v5676
        %v5941 = vunpack.c.h.b16 %v5676
        %v5942 = vunpack.c.l.b16 %v5677
        %v5943 = vunpack.c.h.b16 %v5677
        %v5944 = vunpack.c.l.b16 %v5678
        %v5945 = vunpack.c.h.b16 %v5678
        %v5946 = vunpack.c.l.b16 %v5679
        %v5947 = vunpack.c.h.b16 %v5679
        %v5948 = vunpack.c.l.b16 %v5680
        %v5949 = vunpack.c.h.b16 %v5680
        %v5950 = vunpack.c.l.b16 %v5681
        %v5951 = vunpack.c.h.b16 %v5681
        %v5952 = vunpack.c.l.b16 %v5682
        %v5953 = vunpack.c.h.b16 %v5682
        %v5954 = vunpack.c.l.b16 %v5683
        %v5955 = vunpack.c.h.b16 %v5683
        %v5956 = vunpack.c.l.b16 %v5684
        %v5957 = vunpack.c.h.b16 %v5684
        %v5958 = vunpack.c.l.b16 %v5685
        %v5959 = vunpack.c.h.b16 %v5685
        %v5960 = vunpack.c.l.b16 %v5686
        %v5961 = vunpack.c.h.b16 %v5686
        %v5962 = vunpack.c.l.b16 %v5687
        %v5963 = vunpack.c.h.b16 %v5687
        %v5964 = vunpack.c.l.b16 %v5688
        %v5965 = vunpack.c.h.b16 %v5688
        %v5966 = vunpack.c.l.b16 %v5689
        %v5967 = vunpack.c.h.b16 %v5689
        %v5968 = vunpack.c.l.b16 %v5690
        %v5969 = vunpack.c.h.b16 %v5690
        %v5970 = vunpack.c.l.b16 %v5691
        %v5971 = vunpack.c.h.b16 %v5691
        %v5972 = vunpack.c.l.b16 %v5692
        %v5973 = vunpack.c.h.b16 %v5692
        %v5974 = vunpack.c.l.b16 %v5693
        %v5975 = vunpack.c.h.b16 %v5693
        %v5976 = vunpack.c.l.b16 %v5694
        %v5977 = vunpack.c.h.b16 %v5694
        %v5978 = vunpack.c.l.b16 %v5695
        %v5979 = vunpack.c.h.b16 %v5695
        %v5980 = vunpack.c.l.b16 %v5696
        %v5981 = vunpack.c.h.b16 %v5696
        %v5982 = vunpack.c.l.b16 %v5697
        %v5983 = vunpack.c.h.b16 %v5697
        %v5984 = vunpack.c.l.b16 %v5698
        %v5985 = vunpack.c.h.b16 %v5698
        %v5986 = vunpack.c.l.b16 %v5699
        %v5987 = vunpack.c.h.b16 %v5699
        %v5988 = vunpack.c.l.b16 %v5700
        %v5989 = vunpack.c.h.b16 %v5700
        %v5990 = vunpack.c.l.b16 %v5701
        %v5991 = vunpack.c.h.b16 %v5701
        %v5992 = vunpack.c.l.b16 %v5702
        %v5993 = vunpack.c.h.b16 %v5702
        %v5994 = vunpack.c.l.b16 %v5703
        %v5995 = vunpack.c.h.b16 %v5703
        %v5996 = vunpack.c.l.b16 %v5704
        %v5997 = vunpack.c.h.b16 %v5704
        %v5998 = vunpack.c.l.b16 %v5705
        %v5999 = vunpack.c.h.b16 %v5705
        %v6000 = vunpack.c.l.b16 %v5706
        %v6001 = vunpack.c.h.b16 %v5706
        %v6002 = vunpack.c.l.b16 %v5707
        %v6003 = vunpack.c.h.b16 %v5707
        %v6004 = vunpack.c.l.b16 %v5708
        %v6005 = vunpack.c.h.b16 %v5708
        %v6006 = vunpack.c.l.b16 %v5709
        %v6007 = vunpack.c.h.b16 %v5709
        %v6008 = vunpack.c.l.b16 %v5710
        %v6009 = vunpack.c.h.b16 %v5710
        %v6010 = vunpack.c.l.b16 %v5711
        %v6011 = vunpack.c.h.b16 %v5711
        %v6012 = vunpack.c.l.b16 %v5712
        %v6013 = vunpack.c.h.b16 %v5712
        %v6014 = vunpack.c.l.b16 %v5713
        %v6015 = vunpack.c.h.b16 %v5713
        %v6016 = vunpack.c.l.b16 %v5714
        %v6017 = vunpack.c.h.b16 %v5714
        %v6018 = vunpack.c.l.b16 %v5715
        %v6019 = vunpack.c.h.b16 %v5715
        %v6020 = vunpack.c.l.b16 %v5716
        %v6021 = vunpack.c.h.b16 %v5716
        %v6022 = vunpack.c.l.b16 %v5717
        %v6023 = vunpack.c.h.b16 %v5717
        %v6024 = vunpack.c.l.b16 %v5718
        %v6025 = vunpack.c.h.b16 %v5718
        %v6026 = vunpack.c.l.b16 %v5719
        %v6027 = vunpack.c.h.b16 %v5719
        %v6028 = vunpack.c.l.b16 %v5720
        %v6029 = vunpack.c.h.b16 %v5720
        %v6030 = vunpack.c.l.b16 %v5721
        %v6031 = vunpack.c.h.b16 %v5721
        %v6032 = vunpack.c.l.b16 %v5722
        %v6033 = vunpack.c.h.b16 %v5722
        %v6034 = vunpack.c.l.b16 %v5723
        %v6035 = vunpack.c.h.b16 %v5723
        %v6036 = vunpack.c.l.b16 %v5724
        %v6037 = vunpack.c.h.b16 %v5724
        %v6038 = vunpack.c.l.b16 %v5725
        %v6039 = vunpack.c.h.b16 %v5725
        %v6040 = vunpack.c.l.b16 %v5726
        %v6041 = vunpack.c.h.b16 %v5726
        %v6042 = vunpack.c.l.b16 %v5727
        %v6043 = vunpack.c.h.b16 %v5727
        %v6044 = vunpack.c.l.b16 %v5728
        %v6045 = vunpack.c.h.b16 %v5728
        %v6046 = vunpack.c.l.b16 %v5729
        %v6047 = vunpack.c.h.b16 %v5729
        %v6048 = vunpack.c.l.b16 %v5730
        %v6049 = vunpack.c.h.b16 %v5730
        %v6050 = vunpack.c.l.b16 %v5731
        %v6051 = vunpack.c.h.b16 %v5731
        %v6052 = vunpack.c.l.b16 %v5732
        %v6053 = vunpack.c.h.b16 %v5732
        %v6054 = vunpack.c.l.b16 %v5733
        %v6055 = vunpack.c.h.b16 %v5733
        %v6056 = vunpack.c.l.b16 %v5734
        %v6057 = vunpack.c.h.b16 %v5734
        %v6058 = vunpack.c.l.b16 %v5735
        %v6059 = vunpack.c.h.b16 %v5735
        %v6060 = vunpack.c.l.b16 %v5736
        %v6061 = vunpack.c.h.b16 %v5736
        %v6062 = vunpack.c.l.b16 %v5737
        %v6063 = vunpack.c.h.b16 %v5737
        %v6064 = vunpack.c.l.b16 %v5738
        %v6065 = vunpack.c.h.b16 %v5738
        %v6066 = vunpack.c.l.b16 %v5739
        %v6067 = vunpack.c.h.b16 %v5739
        %v6068 = vunpack.c.l.b16 %v5740
        %v6069 = vunpack.c.h.b16 %v5740
        %v6070 = vunpack.c.l.b16 %v5741
        %v6071 = vunpack.c.h.b16 %v5741
        %v6072 = vunpack.c.l.b16 %v5742
        %v6073 = vunpack.c.h.b16 %v5742
        %v6074 = vunpack.c.l.b16 %v5743
        %v6075 = vunpack.c.h.b16 %v5743
        %v6076 = vunpack.c.l.b16 %v5744
        %v6077 = vunpack.c.h.b16 %v5744
        %v6078 = vunpack.c.l.b16 %v5745
        %v6079 = vunpack.c.h.b16 %v5745
        %v6080 = vunpack.c.l.b16 %v5746
        %v6081 = vunpack.c.h.b16 %v5746
        %v6082 = vunpack.c.l.b16 %v5747
        %v6083 = vunpack.c.h.b16 %v5747
        %v6084 = vunpack.c.l.b16 %v5748
        %v6085 = vunpack.c.h.b16 %v5748
        %v6086 = vunpack.c.l.b16 %v5749
        %v6087 = vunpack.c.h.b16 %v5749
        %v6088 = vunpack.c.l.b16 %v5750
        %v6089 = vunpack.c.h.b16 %v5750
        %v6090 = vunpack.c.l.b16 %v5751
        %v6091 = vunpack.c.h.b16 %v5751
        %v6092 = vunpack.c.l.b16 %v5752
        %v6093 = vunpack.c.h.b16 %v5752
        %v6094 = vunpack.c.l.b16 %v5753
        %v6095 = vunpack.c.h.b16 %v5753
        %v6096 = vunpack.c.l.b16 %v5754
        %v6097 = vunpack.c.h.b16 %v5754
        %v6098 = vunpack.c.l.b16 %v5755
        %v6099 = vunpack.c.h.b16 %v5755
        %v6100 = vunpack.c.l.b16 %v5756
        %v6101 = vunpack.c.h.b16 %v5756
        %v6102 = vunpack.c.l.b16 %v5757
        %v6103 = vunpack.c.h.b16 %v5757
        %v6104 = vunpack.c.l.b16 %v5758
        %v6105 = vunpack.c.h.b16 %v5758
        %v6106 = vunpack.c.l.b16 %v5759
        %v6107 = vunpack.c.h.b16 %v5759
        %v6108 = vunpack.c.l.b16 %v5760
        %v6109 = vunpack.c.h.b16 %v5760
        %v6110 = vunpack.c.l.b16 %v5761
        %v6111 = vunpack.c.h.b16 %v5761
        %v6112 = vunpack.c.l.b16 %v5762
        %v6113 = vunpack.c.h.b16 %v5762
        %v6114 = vunpack.c.l.b16 %v5763
        %v6115 = vunpack.c.h.b16 %v5763
        %v6116 = vunpack.c.l.b16 %v5764
        %v6117 = vunpack.c.h.b16 %v5764
        %v6118 = vunpack.c.l.b16 %v5765
        %v6119 = vunpack.c.h.b16 %v5765
        %v6120 = vunpack.c.l.b16 %v5766
        %v6121 = vunpack.c.h.b16 %v5766
        %v6122 = vunpack.c.l.b16 %v5767
        %v6123 = vunpack.c.h.b16 %v5767
        %v6124 = vunpack.c.l.b16 %v5768
        %v6125 = vunpack.c.h.b16 %v5768
        %v6126 = vunpack.c.l.b16 %v5769
        %v6127 = vunpack.c.h.b16 %v5769
        %v6128 = vunpack.c.l.b16 %v5770
        %v6129 = vunpack.c.h.b16 %v5770
        %v6130 = vunpack.c.l.b16 %v5771
        %v6131 = vunpack.c.h.b16 %v5771
        %v6132 = vunpack.c.l.b16 %v5772
        %v6133 = vunpack.c.h.b16 %v5772
        %v6134 = vunpack.c.l.b16 %v5773
        %v6135 = vunpack.c.h.b16 %v5773
        %v6136 = vunpack.c.l.b16 %v5774
        %v6137 = vunpack.c.h.b16 %v5774
        %v6138 = vunpack.c.l.b16 %v5775
        %v6139 = vunpack.c.h.b16 %v5775
        %v6140 = vunpack.c.l.b16 %v5776
        %v6141 = vunpack.c.h.b16 %v5776
        %v6142 = vunpack.c.l.b16 %v5777
        %v6143 = vunpack.c.h.b16 %v5777
        %v6144 = vunpack.c.l.b16 %v5778
        %v6145 = vunpack.c.h.b16 %v5778
        %v6146 = vunpack.c.l.b16 %v5779
        %v6147 = vunpack.c.h.b16 %v5779
        %v6148 = vunpack.c.l.b16 %v5780
        %v6149 = vunpack.c.h.b16 %v5780
        %v6150 = vunpack.c.l.b16 %v5781
        %v6151 = vunpack.c.h.b16 %v5781
        %v6152 = vunpack.c.l.b16 %v5782
        %v6153 = vunpack.c.h.b16 %v5782
        %v6154 = vunpack.c.l.b16 %v5783
        %v6155 = vunpack.c.h.b16 %v5783
        %v6156 = vunpack.c.l.b16 %v5784
        %v6157 = vunpack.c.h.b16 %v5784
        %v6158 = vunpack.c.l.b16 %v5785
        %v6159 = vunpack.c.h.b16 %v5785
        %v6160 = vunpack.c.l.b16 %v5786
        %v6161 = vunpack.c.h.b16 %v5786
        %v6162 = vunpack.c.l.b16 %v5787
        %v6163 = vunpack.c.h.b16 %v5787
        %v6164 = vunpack.c.l.b16 %v5788
        %v6165 = vunpack.c.h.b16 %v5788
        %v6166 = vunpack.c.l.b16 %v5789
        %v6167 = vunpack.c.h.b16 %v5789
        %v6168 = vunpack.c.l.b16 %v5790
        %v6169 = vunpack.c.h.b16 %v5790
        %v6170 = vunpack.c.l.b16 %v5791
        %v6171 = vunpack.c.h.b16 %v5791
        %v6172 = vunpack.c.l.b16 %v5792
        %v6173 = vunpack.c.h.b16 %v5792
        %v6174 = vunpack.c.l.b16 %v5793
        %v6175 = vunpack.c.h.b16 %v5793
        %v6176 = vunpack.c.l.b16 %v5794
        %v6177 = vunpack.c.h.b16 %v5794
        %v6178 = vunpack.c.l.b16 %v5795
        %v6179 = vunpack.c.h.b16 %v5795
        %v6180 = vpack.c.b16 %v5926, %v5924
        %v6181 = vpack.c.b16 %v5927, %v5925
        %v6182 = vpack.c.b16 %v5930, %v5928
        %v6183 = vpack.c.b16 %v5931, %v5929
        %v6184 = vpack.c.b16 %v5934, %v5932
        %v6185 = vpack.c.b16 %v5935, %v5933
        %v6186 = vpack.c.b16 %v5938, %v5936
        %v6187 = vpack.c.b16 %v5939, %v5937
        %v6188 = vpack.c.b16 %v5942, %v5940
        %v6189 = vpack.c.b16 %v5943, %v5941
        %v6190 = vpack.c.b16 %v5946, %v5944
        %v6191 = vpack.c.b16 %v5947, %v5945
        %v6192 = vpack.c.b16 %v5950, %v5948
        %v6193 = vpack.c.b16 %v5951, %v5949
        %v6194 = vpack.c.b16 %v5954, %v5952
        %v6195 = vpack.c.b16 %v5955, %v5953
        %v6196 = vpack.c.b16 %v5958, %v5956
        %v6197 = vpack.c.b16 %v5959, %v5957
        %v6198 = vpack.c.b16 %v5962, %v5960
        %v6199 = vpack.c.b16 %v5963, %v5961
        %v6200 = vpack.c.b16 %v5966, %v5964
        %v6201 = vpack.c.b16 %v5967, %v5965
        %v6202 = vpack.c.b16 %v5970, %v5968
        %v6203 = vpack.c.b16 %v5971, %v5969
        %v6204 = vpack.c.b16 %v5974, %v5972
        %v6205 = vpack.c.b16 %v5975, %v5973
        %v6206 = vpack.c.b16 %v5978, %v5976
        %v6207 = vpack.c.b16 %v5979, %v5977
        %v6208 = vpack.c.b16 %v5982, %v5980
        %v6209 = vpack.c.b16 %v5983, %v5981
        %v6210 = vpack.c.b16 %v5986, %v5984
        %v6211 = vpack.c.b16 %v5987, %v5985
        %v6212 = vpack.c.b16 %v5990, %v5988
        %v6213 = vpack.c.b16 %v5991, %v5989
        %v6214 = vpack.c.b16 %v5994, %v5992
        %v6215 = vpack.c.b16 %v5995, %v5993
        %v6216 = vpack.c.b16 %v5998, %v5996
        %v6217 = vpack.c.b16 %v5999, %v5997
        %v6218 = vpack.c.b16 %v6002, %v6000
        %v6219 = vpack.c.b16 %v6003, %v6001
        %v6220 = vpack.c.b16 %v6006, %v6004
        %v6221 = vpack.c.b16 %v6007, %v6005
        %v6222 = vpack.c.b16 %v6010, %v6008
        %v6223 = vpack.c.b16 %v6011, %v6009
        %v6224 = vpack.c.b16 %v6014, %v6012
        %v6225 = vpack.c.b16 %v6015, %v6013
        %v6226 = vpack.c.b16 %v6018, %v6016
        %v6227 = vpack.c.b16 %v6019, %v6017
        %v6228 = vpack.c.b16 %v6022, %v6020
        %v6229 = vpack.c.b16 %v6023, %v6021
        %v6230 = vpack.c.b16 %v6026, %v6024
        %v6231 = vpack.c.b16 %v6027, %v6025
        %v6232 = vpack.c.b16 %v6030, %v6028
        %v6233 = vpack.c.b16 %v6031, %v6029
        %v6234 = vpack.c.b16 %v6034, %v6032
        %v6235 = vpack.c.b16 %v6035, %v6033
        %v6236 = vpack.c.b16 %v6038, %v6036
        %v6237 = vpack.c.b16 %v6039, %v6037
        %v6238 = vpack.c.b16 %v6042, %v6040
        %v6239 = vpack.c.b16 %v6043, %v6041
        %v6240 = vpack.c.b16 %v6046, %v6044
        %v6241 = vpack.c.b16 %v6047, %v6045
        %v6242 = vpack.c.b16 %v6050, %v6048
        %v6243 = vpack.c.b16 %v6051, %v6049
        %v6244 = vpack.c.b16 %v6054, %v6052
        %v6245 = vpack.c.b16 %v6055, %v6053
        %v6246 = vpack.c.b16 %v6058, %v6056
        %v6247 = vpack.c.b16 %v6059, %v6057
        %v6248 = vpack.c.b16 %v6062, %v6060
        %v6249 = vpack.c.b16 %v6063, %v6061
        %v6250 = vpack.c.b16 %v6066, %v6064
        %v6251 = vpack.c.b16 %v6067, %v6065
        %v6252 = vpack.c.b16 %v6070, %v6068
        %v6253 = vpack.c.b16 %v6071, %v6069
        %v6254 = vpack.c.b16 %v6074, %v6072
        %v6255 = vpack.c.b16 %v6075, %v6073
        %v6256 = vpack.c.b16 %v6078, %v6076
        %v6257 = vpack.c.b16 %v6079, %v6077
        %v6258 = vpack.c.b16 %v6082, %v6080
        %v6259 = vpack.c.b16 %v6083, %v6081
        %v6260 = vpack.c.b16 %v6086, %v6084
        %v6261 = vpack.c.b16 %v6087, %v6085
        %v6262 = vpack.c.b16 %v6090, %v6088
        %v6263 = vpack.c.b16 %v6091, %v6089
        %v6264 = vpack.c.b16 %v6094, %v6092
        %v6265 = vpack.c.b16 %v6095, %v6093
        %v6266 = vpack.c.b16 %v6098, %v6096
        %v6267 = vpack.c.b16 %v6099, %v6097
        %v6268 = vpack.c.b16 %v6102, %v6100
        %v6269 = vpack.c.b16 %v6103, %v6101
        %v6270 = vpack.c.b16 %v6106, %v6104
        %v6271 = vpack.c.b16 %v6107, %v6105
        %v6272 = vpack.c.b16 %v6110, %v6108
        %v6273 = vpack.c.b16 %v6111, %v6109
        %v6274 = vpack.c.b16 %v6114, %v6112
        %v6275 = vpack.c.b16 %v6115, %v6113
        %v6276 = vpack.c.b16 %v6118, %v6116
        %v6277 = vpack.c.b16 %v6119, %v6117
        %v6278 = vpack.c.b16 %v6122, %v6120
        %v6279 = vpack.c.b16 %v6123, %v6121
        %v6280 = vpack.c.b16 %v6126, %v6124
        %v6281 = vpack.c.b16 %v6127, %v6125
        %v6282 = vpack.c.b16 %v6130, %v6128
        %v6283 = vpack.c.b16 %v6131, %v6129
        %v6284 = vpack.c.b16 %v6134, %v6132
        %v6285 = vpack.c.b16 %v6135, %v6133
        %v6286 = vpack.c.b16 %v6138, %v6136
        %v6287 = vpack.c.b16 %v6139, %v6137
        %v6288 = vpack.c.b16 %v6142, %v6140
        %v6289 = vpack.c.b16 %v6143, %v6141
        %v6290 = vpack.c.b16 %v6146, %v6144
        %v6291 = vpack.c.b16 %v6147, %v6145
        %v6292 = vpack.c.b16 %v6150, %v6148
        %v6293 = vpack.c.b16 %v6151, %v6149
        %v6294 = vpack.c.b16 %v6154, %v6152
        %v6295 = vpack.c.b16 %v6155, %v6153
        %v6296 = vpack.c.b16 %v6158, %v6156
        %v6297 = vpack.c.b16 %v6159, %v6157
        %v6298 = vpack.c.b16 %v6162, %v6160
        %v6299 = vpack.c.b16 %v6163, %v6161
        %v6300 = vpack.c.b16 %v6166, %v6164
        %v6301 = vpack.c.b16 %v6167, %v6165
        %v6302 = vpack.c.b16 %v6170, %v6168
        %v6303 = vpack.c.b16 %v6171, %v6169
        %v6304 = vpack.c.b16 %v6174, %v6172
        %v6305 = vpack.c.b16 %v6175, %v6173
        %v6306 = vpack.c.b16 %v6178, %v6176
        %v6307 = vpack.c.b16 %v6179, %v6177
        %6436 = vmatprep.subr.bf16.mxu0 %v6181
        %6437 = vmatpush1.bf16.msra.mxu0 %v6180
        %6438 = vmatprep.subr.bf16.mxu0 %v6183
        %6439 = vmatpush1.bf16.msra.mxu0 %v6182
        %6440 = vmatprep.subr.bf16.mxu0 %v6185
        %6441 = vmatpush1.bf16.msra.mxu0 %v6184
        %6442 = vmatprep.subr.bf16.mxu0 %v6187
        %6443 = vmatpush1.bf16.msra.mxu0 %v6186
        %6444 = vmatprep.subr.bf16.mxu0 %v6189
        %6445 = vmatpush1.bf16.msra.mxu0 %v6188
        %6446 = vmatprep.subr.bf16.mxu0 %v6191
        %6447 = vmatpush1.bf16.msra.mxu0 %v6190
        %6448 = vmatprep.subr.bf16.mxu0 %v6193
        %6449 = vmatpush1.bf16.msra.mxu0 %v6192
        %6450 = vmatprep.subr.bf16.mxu0 %v6195
        %6451 = vmatpush1.bf16.msra.mxu0 %v6194
        %6452 = vmatprep.subr.bf16.mxu0 %v6197
        %6453 = vmatpush1.bf16.msra.mxu0 %v6196
        %6454 = vmatprep.subr.bf16.mxu0 %v6199
        %6455 = vmatpush1.bf16.msra.mxu0 %v6198
        %6456 = vmatprep.subr.bf16.mxu0 %v6201
        %6457 = vmatpush1.bf16.msra.mxu0 %v6200
        %6458 = vmatprep.subr.bf16.mxu0 %v6203
        %6459 = vmatpush1.bf16.msra.mxu0 %v6202
        %6460 = vmatprep.subr.bf16.mxu0 %v6205
        %6461 = vmatpush1.bf16.msra.mxu0 %v6204
        %6462 = vmatprep.subr.bf16.mxu0 %v6207
        %6463 = vmatpush1.bf16.msra.mxu0 %v6206
        %6464 = vmatprep.subr.bf16.mxu0 %v6209
        %6465 = vmatpush1.bf16.msra.mxu0 %v6208
        %6466 = vmatprep.subr.bf16.mxu0 %v6211
        %6467 = vmatpush1.bf16.msra.mxu0 %v6210
        %6468 = vmatprep.mubr.bf16.mxu0 %v5660
        %6469 = vmatmul.mubr.bf16.gmra.mrb[0].mxu0 %v5659
        %v6470 = vpop.f32.mrb[0].mxu0
        %v6471 = vadd.f32 0.0, %v6470
        %v6472 = vpop.f32.mrb[0].mxu0
        %v6473 = vadd.f32 0.0, %v6472
        %v6474 = vpop.f32.mrb[0].mxu0
        %v6475 = vpop.f32.mrb[0].mxu0
        %6476 = vdwg.mxu0
        %6477 = vmatprep.subr.bf16.mxu0 %v6213
        %6478 = vmatpush1.bf16.msra.mxu0 %v6212
        %6479 = vmatprep.subr.bf16.mxu0 %v6215
        %6480 = vmatpush1.bf16.msra.mxu0 %v6214
        %6481 = vmatprep.subr.bf16.mxu0 %v6217
        %6482 = vmatpush1.bf16.msra.mxu0 %v6216
        %6483 = vmatprep.subr.bf16.mxu0 %v6219
        %6484 = vmatpush1.bf16.msra.mxu0 %v6218
        %6485 = vmatprep.subr.bf16.mxu0 %v6221
        %6486 = vmatpush1.bf16.msra.mxu0 %v6220
        %6487 = vmatprep.subr.bf16.mxu0 %v6223
        %6488 = vmatpush1.bf16.msra.mxu0 %v6222
        %6489 = vmatprep.subr.bf16.mxu0 %v6225
        %6490 = vmatpush1.bf16.msra.mxu0 %v6224
        %6491 = vmatprep.subr.bf16.mxu0 %v6227
        %6492 = vmatpush1.bf16.msra.mxu0 %v6226
        %6493 = vmatprep.subr.bf16.mxu0 %v6229
        %6494 = vmatpush1.bf16.msra.mxu0 %v6228
        %6495 = vmatprep.subr.bf16.mxu0 %v6231
        %6496 = vmatpush1.bf16.msra.mxu0 %v6230
        %6497 = vmatprep.subr.bf16.mxu0 %v6233
        %6498 = vmatpush1.bf16.msra.mxu0 %v6232
        %6499 = vmatprep.subr.bf16.mxu0 %v6235
        %6500 = vmatpush1.bf16.msra.mxu0 %v6234
        %6501 = vmatprep.subr.bf16.mxu0 %v6237
        %6502 = vmatpush1.bf16.msra.mxu0 %v6236
        %6503 = vmatprep.subr.bf16.mxu0 %v6239
        %6504 = vmatpush1.bf16.msra.mxu0 %v6238
        %6505 = vmatprep.subr.bf16.mxu0 %v6241
        %6506 = vmatpush1.bf16.msra.mxu0 %v6240
        %6507 = vmatprep.subr.bf16.mxu0 %v6243
        %6508 = vmatpush1.bf16.msra.mxu0 %v6242
        %6509 = vmatprep.mubr.bf16.mxu0 %v5662
        %6510 = vmatmul.mubr.bf16.gmra.mrb[0].mxu0 %v5661
        %v6511 = vpop.f32.mrb[0].mxu0
        %v6512 = vadd.f32 %v6471, %v6511
        %v6513 = vpop.f32.mrb[0].mxu0
        %v6514 = vadd.f32 %v6473, %v6513
        %v6515 = vpop.f32.mrb[0].mxu0
        %v6516 = vpop.f32.mrb[0].mxu0
        %6517 = vdwg.mxu0
        %6518 = vmatprep.subr.bf16.mxu0 %v6245
        %6519 = vmatpush1.bf16.msra.mxu0 %v6244
        %6520 = vmatprep.subr.bf16.mxu0 %v6247
        %6521 = vmatpush1.bf16.msra.mxu0 %v6246
        %6522 = vmatprep.subr.bf16.mxu0 %v6249
        %6523 = vmatpush1.bf16.msra.mxu0 %v6248
        %6524 = vmatprep.subr.bf16.mxu0 %v6251
        %6525 = vmatpush1.bf16.msra.mxu0 %v6250
        %6526 = vmatprep.subr.bf16.mxu0 %v6253
        %6527 = vmatpush1.bf16.msra.mxu0 %v6252
        %6528 = vmatprep.subr.bf16.mxu0 %v6255
        %6529 = vmatpush1.bf16.msra.mxu0 %v6254
        %6530 = vmatprep.subr.bf16.mxu0 %v6257
        %6531 = vmatpush1.bf16.msra.mxu0 %v6256
        %6532 = vmatprep.subr.bf16.mxu0 %v6259
        %6533 = vmatpush1.bf16.msra.mxu0 %v6258
        %6534 = vmatprep.subr.bf16.mxu0 %v6261
        %6535 = vmatpush1.bf16.msra.mxu0 %v6260
        %6536 = vmatprep.subr.bf16.mxu0 %v6263
        %6537 = vmatpush1.bf16.msra.mxu0 %v6262
        %6538 = vmatprep.subr.bf16.mxu0 %v6265
        %6539 = vmatpush1.bf16.msra.mxu0 %v6264
        %6540 = vmatprep.subr.bf16.mxu0 %v6267
        %6541 = vmatpush1.bf16.msra.mxu0 %v6266
        %6542 = vmatprep.subr.bf16.mxu0 %v6269
        %6543 = vmatpush1.bf16.msra.mxu0 %v6268
        %6544 = vmatprep.subr.bf16.mxu0 %v6271
        %6545 = vmatpush1.bf16.msra.mxu0 %v6270
        %6546 = vmatprep.subr.bf16.mxu0 %v6273
        %6547 = vmatpush1.bf16.msra.mxu0 %v6272
        %6548 = vmatprep.subr.bf16.mxu0 %v6275
        %6549 = vmatpush1.bf16.msra.mxu0 %v6274
        %6550 = vmatprep.mubr.bf16.mxu0 %v5664
        %6551 = vmatmul.mubr.bf16.gmra.mrb[0].mxu0 %v5663
        %v6552 = vpop.f32.mrb[0].mxu0
        %v6553 = vadd.f32 %v6512, %v6552
        %v6554 = vpop.f32.mrb[0].mxu0
        %v6555 = vadd.f32 %v6514, %v6554
        %v6556 = vpop.f32.mrb[0].mxu0
        %v6557 = vpop.f32.mrb[0].mxu0
        %6558 = vdwg.mxu0
        %6559 = vmatprep.subr.bf16.mxu0 %v6277
        %6560 = vmatpush1.bf16.msra.mxu0 %v6276
        %6561 = vmatprep.subr.bf16.mxu0 %v6279
        %6562 = vmatpush1.bf16.msra.mxu0 %v6278
        %6563 = vmatprep.subr.bf16.mxu0 %v6281
        %6564 = vmatpush1.bf16.msra.mxu0 %v6280
        %6565 = vmatprep.subr.bf16.mxu0 %v6283
        %6566 = vmatpush1.bf16.msra.mxu0 %v6282
        %6567 = vmatprep.subr.bf16.mxu0 %v6285
        %6568 = vmatpush1.bf16.msra.mxu0 %v6284
        %6569 = vmatprep.subr.bf16.mxu0 %v6287
        %6570 = vmatpush1.bf16.msra.mxu0 %v6286
        %6571 = vmatprep.subr.bf16.mxu0 %v6289
        %6572 = vmatpush1.bf16.msra.mxu0 %v6288
        %6573 = vmatprep.subr.bf16.mxu0 %v6291
        %6574 = vmatpush1.bf16.msra.mxu0 %v6290
        %6575 = vmatprep.subr.bf16.mxu0 %v6293
        %6576 = vmatpush1.bf16.msra.mxu0 %v6292
        %6577 = vmatprep.subr.bf16.mxu0 %v6295
        %6578 = vmatpush1.bf16.msra.mxu0 %v6294
        %6579 = vmatprep.subr.bf16.mxu0 %v6297
        %6580 = vmatpush1.bf16.msra.mxu0 %v6296
        %6581 = vmatprep.subr.bf16.mxu0 %v6299
        %6582 = vmatpush1.bf16.msra.mxu0 %v6298
        %6583 = vmatprep.subr.bf16.mxu0 %v6301
        %6584 = vmatpush1.bf16.msra.mxu0 %v6300
        %6585 = vmatprep.subr.bf16.mxu0 %v6303
        %6586 = vmatpush1.bf16.msra.mxu0 %v6302
        %6587 = vmatprep.subr.bf16.mxu0 %v6305
        %6588 = vmatpush1.bf16.msra.mxu0 %v6304
        %6589 = vmatprep.subr.bf16.mxu0 %v6307
        %6590 = vmatpush1.bf16.msra.mxu0 %v6306
        %6591 = vmatprep.mubr.bf16.mxu0 %v5666
        %6592 = vmatmul.mubr.bf16.gmra.mrb[0].mxu0 %v5665
        %v6593 = vpop.f32.mrb[0].mxu0
        %v6594 = vadd.f32 %v6553, %v6593
        %v6595 = vpop.f32.mrb[0].mxu0
        %v6596 = vadd.f32 %v6555, %v6595
        %v6597 = vpop.f32.mrb[0].mxu0
        %v6598 = vpop.f32.mrb[0].mxu0
        %6599 = vdwg.mxu0
        %v6602 = vcombine.low %v6594, %v6596
        %v6604 = vunpack.c.l.s4 1983009808
        %v6605 = vunpack.c.0.s8 %v6604
        %v6606 = vlaneseq
        %v6607 = vshrl.u32 %v6606, 7
        %v6608 = vsub.s32 %v6605, %v6607
        %v6609 = vrot.slane %v6602, %v6608
        %v6611 = vadd.f32 %v5667, %v6609
        %6612 = vst [vmem:[#allocation6] sm:$0xf] %v6611
        %p6613 = scmp.eq.s32.totalorder %s20, 3
        // Predicated region
        $region69: #{custom_dqn_forward.1} parent=43 // pred_check
          %p6614 = pneg %p6613
        $region70: #{custom_dqn_forward.1} parent=43 // pred_check_branch
          %6616 = sbr.rel (%p6614) target = $region72
        $region71: #{custom_dqn_forward.1} parent=43 // pred_region
          %v6617 = vld [vmem:[#allocation13 + $0x2] sm:$0x3]
          %v6618 = vld [vmem:[#allocation13 + $0x4] sm:$0x1]
          %v6619 = vld [vmem:[#allocation13 + $0x5] sm:$0x1]
          %v6620 = vld [vmem:[#allocation13 + $0x6] sm:$0x1]
          %v6621 = vld [vmem:[#allocation13 + $0x7] sm:$0x1]
          %v6622 = vld [vmem:[#allocation12] sm:$0xf]
          %v6623 = vld [vmem:[#allocation12 + $0x4] sm:$0xf]
          %v6624 = vld [vmem:[#allocation12 + $0x8] sm:$0xf]
          %v6625 = vld [vmem:[#allocation12 + $0xc] sm:$0xf]
          %v6626 = vld [vmem:[#allocation12 + $0x10] sm:$0xf]
          %v6627 = vld [vmem:[#allocation12 + $0x14] sm:$0xf]
          %v6628 = vld [vmem:[#allocation12 + $0x18] sm:$0xf]
          %v6629 = vld [vmem:[#allocation12 + $0x1c] sm:$0xf]
          %v6630 = vld [vmem:[#allocation12 + $0x20] sm:$0xf]
          %v6631 = vld [vmem:[#allocation12 + $0x24] sm:$0xf]
          %v6632 = vld [vmem:[#allocation12 + $0x28] sm:$0xf]
          %v6633 = vld [vmem:[#allocation12 + $0x2c] sm:$0xf]
          %v6634 = vld [vmem:[#allocation12 + $0x30] sm:$0xf]
          %v6635 = vld [vmem:[#allocation12 + $0x34] sm:$0xf]
          %v6636 = vld [vmem:[#allocation12 + $0x38] sm:$0xf]
          %v6637 = vld [vmem:[#allocation12 + $0x3c] sm:$0xf]
          %v6638 = vld [vmem:[#allocation12 + $0x40] sm:$0xf]
          %v6639 = vld [vmem:[#allocation12 + $0x44] sm:$0xf]
          %v6640 = vld [vmem:[#allocation12 + $0x48] sm:$0xf]
          %v6641 = vld [vmem:[#allocation12 + $0x4c] sm:$0xf]
          %v6642 = vld [vmem:[#allocation12 + $0x50] sm:$0xf]
          %v6643 = vld [vmem:[#allocation12 + $0x54] sm:$0xf]
          %v6644 = vld [vmem:[#allocation12 + $0x58] sm:$0xf]
          %v6645 = vld [vmem:[#allocation12 + $0x5c] sm:$0xf]
          %v6646 = vld [vmem:[#allocation12 + $0x60] sm:$0xf]
          %v6647 = vld [vmem:[#allocation12 + $0x64] sm:$0xf]
          %v6648 = vld [vmem:[#allocation12 + $0x68] sm:$0xf]
          %v6649 = vld [vmem:[#allocation12 + $0x6c] sm:$0xf]
          %v6650 = vld [vmem:[#allocation12 + $0x70] sm:$0xf]
          %v6651 = vld [vmem:[#allocation12 + $0x74] sm:$0xf]
          %v6652 = vld [vmem:[#allocation12 + $0x78] sm:$0xf]
          %v6653 = vld [vmem:[#allocation12 + $0x7c] sm:$0xf]
          %v6654 = vld [vmem:[#allocation12 + $0x80] sm:$0xf]
          %v6655 = vld [vmem:[#allocation12 + $0x84] sm:$0xf]
          %v6656 = vld [vmem:[#allocation12 + $0x88] sm:$0xf]
          %v6657 = vld [vmem:[#allocation12 + $0x8c] sm:$0xf]
          %v6658 = vld [vmem:[#allocation12 + $0x90] sm:$0xf]
          %v6659 = vld [vmem:[#allocation12 + $0x94] sm:$0xf]
          %v6660 = vld [vmem:[#allocation12 + $0x98] sm:$0xf]
          %v6661 = vld [vmem:[#allocation12 + $0x9c] sm:$0xf]
          %v6662 = vld [vmem:[#allocation12 + $0xa0] sm:$0xf]
          %v6663 = vld [vmem:[#allocation12 + $0xa4] sm:$0xf]
          %v6664 = vld [vmem:[#allocation12 + $0xa8] sm:$0xf]
          %v6665 = vld [vmem:[#allocation12 + $0xac] sm:$0xf]
          %v6666 = vld [vmem:[#allocation12 + $0xb0] sm:$0xf]
          %v6667 = vld [vmem:[#allocation12 + $0xb4] sm:$0xf]
          %v6668 = vld [vmem:[#allocation12 + $0xb8] sm:$0xf]
          %v6669 = vld [vmem:[#allocation12 + $0xbc] sm:$0xf]
          %v6670 = vld [vmem:[#allocation12 + $0xc0] sm:$0xf]
          %v6671 = vld [vmem:[#allocation12 + $0xc4] sm:$0xf]
          %v6672 = vld [vmem:[#allocation12 + $0xc8] sm:$0xf]
          %v6673 = vld [vmem:[#allocation12 + $0xcc] sm:$0xf]
          %v6674 = vld [vmem:[#allocation12 + $0xd0] sm:$0xf]
          %v6675 = vld [vmem:[#allocation12 + $0xd4] sm:$0xf]
          %v6676 = vld [vmem:[#allocation12 + $0xd8] sm:$0xf]
          %v6677 = vld [vmem:[#allocation12 + $0xdc] sm:$0xf]
          %v6678 = vld [vmem:[#allocation12 + $0xe0] sm:$0xf]
          %v6679 = vld [vmem:[#allocation12 + $0xe4] sm:$0xf]
          %v6680 = vld [vmem:[#allocation12 + $0xe8] sm:$0xf]
          %v6681 = vld [vmem:[#allocation12 + $0xec] sm:$0xf]
          %v6682 = vld [vmem:[#allocation12 + $0xf0] sm:$0xf]
          %v6683 = vld [vmem:[#allocation12 + $0xf4] sm:$0xf]
          %v6684 = vld [vmem:[#allocation12 + $0xf8] sm:$0xf]
          %v6685 = vld [vmem:[#allocation12 + $0xfc] sm:$0xf]
          %v6686 = vld [vmem:[#allocation6] sm:$0xf]
          %v6688 = vlaneseq
          %v6689 = vshrl.u32 %v6688, 7
          %v6690 = vsub.s32 0, %v6689
          %v6691 = vrot.slane %v6617, %v6690
          %v6692 = vlaneseq
          %v6693 = vshrl.u32 %v6692, 7
          %v6694 = vsub.s32 1, %v6693
          %v6695 = vrot.slane %v6617, %v6694
          %v6696 = vcombine.low %v6691, %v6695
          %v6698 = vunpack.c.l.s4 1983009808
          %v6699 = vunpack.c.0.s8 %v6698
          %v6700 = vlaneseq
          %v6701 = vshrl.u32 %v6700, 7
          %v6702 = vsub.s32 %v6699, %v6701
          %v6703 = vrot.slane %v6696, %v6702
          %v6705 = vadd.f32 %v6686, %v6703
          %v6706 = vmax.f32 %v6705, 0.0
          %v6709 = vunpack.c.l.s4 1983009808
          %v6710 = vunpack.c.0.s8 %v6709
          %v6711 = vlaneseq
          %v6712 = vshrl.u32 %v6711, 7
          %v6713 = vsub.s32 %v6710, %v6712
          %v6714 = vrot.slane %v6706, %v6713
          %v6715 = vcombine.high %v6714, %v6714
          %v6718 = vpack.c.bf16 %v6714, %v6714
          %v6719 = vpack.c.bf16 %v6715, %v6715
          %v6721 = vlaneseq
          %v6722 = vshrl.u32 %v6721, 7
          %v6723 = vsub.s32 0, %v6722
          %v6724 = vrot.slane %v6618, %v6723
          %v6758 = vunpack.c.l.b16 %v6622
          %v6759 = vunpack.c.l.b16 %v6623
          %v6760 = vunpack.c.l.b16 %v6624
          %v6761 = vunpack.c.l.b16 %v6625
          %v6762 = vunpack.c.l.b16 %v6626
          %v6763 = vunpack.c.l.b16 %v6627
          %v6764 = vunpack.c.l.b16 %v6628
          %v6765 = vunpack.c.l.b16 %v6629
          %v6766 = vunpack.c.l.b16 %v6630
          %v6767 = vunpack.c.l.b16 %v6631
          %v6768 = vunpack.c.l.b16 %v6632
          %v6769 = vunpack.c.l.b16 %v6633
          %v6770 = vunpack.c.l.b16 %v6634
          %v6771 = vunpack.c.l.b16 %v6635
          %v6772 = vunpack.c.l.b16 %v6636
          %v6773 = vunpack.c.l.b16 %v6637
          %v6774 = vunpack.c.l.b16 %v6638
          %v6775 = vunpack.c.l.b16 %v6639
          %v6776 = vunpack.c.l.b16 %v6640
          %v6777 = vunpack.c.l.b16 %v6641
          %v6778 = vunpack.c.l.b16 %v6642
          %v6779 = vunpack.c.l.b16 %v6643
          %v6780 = vunpack.c.l.b16 %v6644
          %v6781 = vunpack.c.l.b16 %v6645
          %v6782 = vunpack.c.l.b16 %v6646
          %v6783 = vunpack.c.l.b16 %v6647
          %v6784 = vunpack.c.l.b16 %v6648
          %v6785 = vunpack.c.l.b16 %v6649
          %v6786 = vunpack.c.l.b16 %v6650
          %v6787 = vunpack.c.l.b16 %v6651
          %v6788 = vunpack.c.l.b16 %v6652
          %v6789 = vunpack.c.l.b16 %v6653
          %v6790 = vpack.c.b16 %v6759, %v6758
          %v6791 = vpack.c.b16 %v6761, %v6760
          %v6792 = vpack.c.b16 %v6763, %v6762
          %v6793 = vpack.c.b16 %v6765, %v6764
          %v6794 = vpack.c.b16 %v6767, %v6766
          %v6795 = vpack.c.b16 %v6769, %v6768
          %v6796 = vpack.c.b16 %v6771, %v6770
          %v6797 = vpack.c.b16 %v6773, %v6772
          %v6798 = vpack.c.b16 %v6775, %v6774
          %v6799 = vpack.c.b16 %v6777, %v6776
          %v6800 = vpack.c.b16 %v6779, %v6778
          %v6801 = vpack.c.b16 %v6781, %v6780
          %v6802 = vpack.c.b16 %v6783, %v6782
          %v6803 = vpack.c.b16 %v6785, %v6784
          %v6804 = vpack.c.b16 %v6787, %v6786
          %v6805 = vpack.c.b16 %v6789, %v6788
          %6822 = vmatprep.subr.bf16.mxu0 0
          %6823 = vmatpush1.bf16.msra.mxu0 %v6790
          %6824 = vmatprep.subr.bf16.mxu0 0
          %6825 = vmatpush1.bf16.msra.mxu0 %v6791
          %6826 = vmatprep.subr.bf16.mxu0 0
          %6827 = vmatpush1.bf16.msra.mxu0 %v6792
          %6828 = vmatprep.subr.bf16.mxu0 0
          %6829 = vmatpush1.bf16.msra.mxu0 %v6793
          %6830 = vmatprep.subr.bf16.mxu0 0
          %6831 = vmatpush1.bf16.msra.mxu0 %v6794
          %6832 = vmatprep.subr.bf16.mxu0 0
          %6833 = vmatpush1.bf16.msra.mxu0 %v6795
          %6834 = vmatprep.subr.bf16.mxu0 0
          %6835 = vmatpush1.bf16.msra.mxu0 %v6796
          %6836 = vmatprep.subr.bf16.mxu0 0
          %6837 = vmatpush1.bf16.msra.mxu0 %v6797
          %6838 = vmatprep.subr.bf16.mxu0 0
          %6839 = vmatpush1.bf16.msra.mxu0 %v6798
          %6840 = vmatprep.subr.bf16.mxu0 0
          %6841 = vmatpush1.bf16.msra.mxu0 %v6799
          %6842 = vmatprep.subr.bf16.mxu0 0
          %6843 = vmatpush1.bf16.msra.mxu0 %v6800
          %6844 = vmatprep.subr.bf16.mxu0 0
          %6845 = vmatpush1.bf16.msra.mxu0 %v6801
          %6846 = vmatprep.subr.bf16.mxu0 0
          %6847 = vmatpush1.bf16.msra.mxu0 %v6802
          %6848 = vmatprep.subr.bf16.mxu0 0
          %6849 = vmatpush1.bf16.msra.mxu0 %v6803
          %6850 = vmatprep.subr.bf16.mxu0 0
          %6851 = vmatpush1.bf16.msra.mxu0 %v6804
          %6852 = vmatprep.subr.bf16.mxu0 0
          %6853 = vmatpush1.bf16.msra.mxu0 %v6805
          %6854 = vmatprep.mubr.bf16.mxu0 %v6719
          %6855 = vmatmul.mubr.bf16.gmra.mrb[0].mxu0 %v6718
          %v6856 = vpop.f32.mrb[0].mxu0
          %v6857 = vadd.f32 %v6724, %v6856
          %v6858 = vpop.f32.mrb[0].mxu0
          %v6859 = vpop.f32.mrb[0].mxu0
          %v6860 = vpop.f32.mrb[0].mxu0
          %6861 = vdwg.mxu0
          %v6862 = vpack.c.bf16 %v6857, %v6857
          %v6864 = vlaneseq
          %v6865 = vshrl.u32 %v6864, 7
          %v6866 = vsub.s32 0, %v6865
          %v6867 = vrot.slane %v6619, %v6866
          %v6877 = vunpack.c.l.b16 %v6654
          %v6878 = vunpack.c.l.b16 %v6655
          %v6879 = vunpack.c.l.b16 %v6656
          %v6880 = vunpack.c.l.b16 %v6657
          %v6881 = vunpack.c.l.b16 %v6658
          %v6882 = vunpack.c.l.b16 %v6659
          %v6883 = vunpack.c.l.b16 %v6660
          %v6884 = vunpack.c.l.b16 %v6661
          %v6885 = vpack.c.b16 %v6878, %v6877
          %v6886 = vpack.c.b16 %v6880, %v6879
          %v6887 = vpack.c.b16 %v6882, %v6881
          %v6888 = vpack.c.b16 %v6884, %v6883
          %vm6893 = vcmask 523264
          %v6895 = vsel %vm6893, %v6862, 0
          %6897 = vmatprep.subr.bf16.mxu0 0
          %6898 = vmatpush1.bf16.msra.mxu0 %v6885
          %6899 = vmatprep.subr.bf16.mxu0 0
          %6900 = vmatpush1.bf16.msra.mxu0 %v6886
          %6901 = vmatprep.subr.bf16.mxu0 0
          %6902 = vmatpush1.bf16.msra.mxu0 %v6887
          %6903 = vmatprep.subr.bf16.mxu0 0
          %6904 = vmatpush1.bf16.msra.mxu0 %v6888
          %6905 = vmatprep.subr.bf16.mxu0 0
          %6906 = vmatpush1.bf16.msra.mxu0 0
          %6907 = vmatprep.subr.bf16.mxu0 0
          %6908 = vmatpush1.bf16.msra.mxu0 0
          %6909 = vmatprep.subr.bf16.mxu0 0
          %6910 = vmatpush1.bf16.msra.mxu0 0
          %6911 = vmatprep.subr.bf16.mxu0 0
          %6912 = vmatpush1.bf16.msra.mxu0 0
          %6913 = vmatprep.subr.bf16.mxu0 0
          %6914 = vmatpush1.bf16.msra.mxu0 0
          %6915 = vmatprep.subr.bf16.mxu0 0
          %6916 = vmatpush1.bf16.msra.mxu0 0
          %6917 = vmatprep.subr.bf16.mxu0 0
          %6918 = vmatpush1.bf16.msra.mxu0 0
          %6919 = vmatprep.subr.bf16.mxu0 0
          %6920 = vmatpush1.bf16.msra.mxu0 0
          %6921 = vmatprep.subr.bf16.mxu0 0
          %6922 = vmatpush1.bf16.msra.mxu0 0
          %6923 = vmatprep.subr.bf16.mxu0 0
          %6924 = vmatpush1.bf16.msra.mxu0 0
          %6925 = vmatprep.subr.bf16.mxu0 0
          %6926 = vmatpush1.bf16.msra.mxu0 0
          %6927 = vmatprep.subr.bf16.mxu0 0
          %6928 = vmatpush1.bf16.msra.mxu0 0
          %6929 = vmatprep.mubr.bf16.mxu0 0
          %6930 = vmatmul.mubr.bf16.gmra.mrb[0].mxu0 %v6895
          %v6931 = vpop.f32.mrb[0].mxu0
          %v6932 = vadd.f32 %v6867, %v6931
          %v6933 = vpop.f32.mrb[0].mxu0
          %v6934 = vpop.f32.mrb[0].mxu0
          %v6935 = vpop.f32.mrb[0].mxu0
          %6936 = vdwg.mxu0
          %v6937 = vmax.f32 %v6932, 0.0
          %v6938 = vpack.c.bf16 %v6937, %v6937
          %v6940 = vlaneseq
          %v6941 = vshrl.u32 %v6940, 7
          %v6942 = vsub.s32 0, %v6941
          %v6943 = vrot.slane %v6620, %v6942
          %v6961 = vunpack.c.l.b16 %v6662
          %v6962 = vunpack.c.l.b16 %v6663
          %v6963 = vunpack.c.l.b16 %v6664
          %v6964 = vunpack.c.l.b16 %v6665
          %v6965 = vunpack.c.l.b16 %v6666
          %v6966 = vunpack.c.l.b16 %v6667
          %v6967 = vunpack.c.l.b16 %v6668
          %v6968 = vunpack.c.l.b16 %v6669
          %v6969 = vunpack.c.l.b16 %v6670
          %v6970 = vunpack.c.l.b16 %v6671
          %v6971 = vunpack.c.l.b16 %v6672
          %v6972 = vunpack.c.l.b16 %v6673
          %v6973 = vunpack.c.l.b16 %v6674
          %v6974 = vunpack.c.l.b16 %v6675
          %v6975 = vunpack.c.l.b16 %v6676
          %v6976 = vunpack.c.l.b16 %v6677
          %v6977 = vpack.c.b16 %v6962, %v6961
          %v6978 = vpack.c.b16 %v6964, %v6963
          %v6979 = vpack.c.b16 %v6966, %v6965
          %v6980 = vpack.c.b16 %v6968, %v6967
          %v6981 = vpack.c.b16 %v6970, %v6969
          %v6982 = vpack.c.b16 %v6972, %v6971
          %v6983 = vpack.c.b16 %v6974, %v6973
          %v6984 = vpack.c.b16 %v6976, %v6975
          %6993 = vmatprep.subr.bf16.mxu0 0
          %6994 = vmatpush1.bf16.msra.mxu0 %v6977
          %6995 = vmatprep.subr.bf16.mxu0 0
          %6996 = vmatpush1.bf16.msra.mxu0 %v6978
          %6997 = vmatprep.subr.bf16.mxu0 0
          %6998 = vmatpush1.bf16.msra.mxu0 %v6979
          %6999 = vmatprep.subr.bf16.mxu0 0
          %7000 = vmatpush1.bf16.msra.mxu0 %v6980
          %7001 = vmatprep.subr.bf16.mxu0 0
          %7002 = vmatpush1.bf16.msra.mxu0 %v6981
          %7003 = vmatprep.subr.bf16.mxu0 0
          %7004 = vmatpush1.bf16.msra.mxu0 %v6982
          %7005 = vmatprep.subr.bf16.mxu0 0
          %7006 = vmatpush1.bf16.msra.mxu0 %v6983
          %7007 = vmatprep.subr.bf16.mxu0 0
          %7008 = vmatpush1.bf16.msra.mxu0 %v6984
          %7009 = vmatprep.subr.bf16.mxu0 0
          %7010 = vmatpush1.bf16.msra.mxu0 0
          %7011 = vmatprep.subr.bf16.mxu0 0
          %7012 = vmatpush1.bf16.msra.mxu0 0
          %7013 = vmatprep.subr.bf16.mxu0 0
          %7014 = vmatpush1.bf16.msra.mxu0 0
          %7015 = vmatprep.subr.bf16.mxu0 0
          %7016 = vmatpush1.bf16.msra.mxu0 0
          %7017 = vmatprep.subr.bf16.mxu0 0
          %7018 = vmatpush1.bf16.msra.mxu0 0
          %7019 = vmatprep.subr.bf16.mxu0 0
          %7020 = vmatpush1.bf16.msra.mxu0 0
          %7021 = vmatprep.subr.bf16.mxu0 0
          %7022 = vmatpush1.bf16.msra.mxu0 0
          %7023 = vmatprep.subr.bf16.mxu0 0
          %7024 = vmatpush1.bf16.msra.mxu0 0
          %7025 = vmatprep.mubr.bf16.mxu0 0
          %7026 = vmatmul.mubr.bf16.gmra.mrb[0].mxu0 %v6938
          %v7027 = vpop.f32.mrb[0].mxu0
          %v7028 = vadd.f32 %v6943, %v7027
          %v7029 = vpop.f32.mrb[0].mxu0
          %v7030 = vpop.f32.mrb[0].mxu0
          %v7031 = vpop.f32.mrb[0].mxu0
          %7032 = vdwg.mxu0
          %v7033 = vmax.f32 %v7028, 0.0
          %v7034 = vpack.c.bf16 %v7033, %v7033
          %v7036 = vlaneseq
          %v7037 = vshrl.u32 %v7036, 7
          %v7038 = vsub.s32 0, %v7037
          %v7039 = vrot.slane %v6621, %v7038
          %v7049 = vunpack.c.l.b16 %v6678
          %v7050 = vunpack.c.l.b16 %v6679
          %v7051 = vunpack.c.l.b16 %v6680
          %v7052 = vunpack.c.l.b16 %v6681
          %v7053 = vunpack.c.l.b16 %v6682
          %v7054 = vunpack.c.l.b16 %v6683
          %v7055 = vunpack.c.l.b16 %v6684
          %v7056 = vunpack.c.l.b16 %v6685
          %v7057 = vpack.c.b16 %v7050, %v7049
          %v7058 = vpack.c.b16 %v7052, %v7051
          %v7059 = vpack.c.b16 %v7054, %v7053
          %v7060 = vpack.c.b16 %v7056, %v7055
          %v7066 = vsel %vm6893, %v7034, 0
          %7068 = vmatprep.subr.bf16.mxu0 0
          %7069 = vmatpush1.bf16.msra.mxu0 %v7057
          %7070 = vmatprep.subr.bf16.mxu0 0
          %7071 = vmatpush1.bf16.msra.mxu0 %v7058
          %7072 = vmatprep.subr.bf16.mxu0 0
          %7073 = vmatpush1.bf16.msra.mxu0 %v7059
          %7074 = vmatprep.subr.bf16.mxu0 0
          %7075 = vmatpush1.bf16.msra.mxu0 %v7060
          %7076 = vmatprep.subr.bf16.mxu0 0
          %7077 = vmatpush1.bf16.msra.mxu0 0
          %7078 = vmatprep.subr.bf16.mxu0 0
          %7079 = vmatpush1.bf16.msra.mxu0 0
          %7080 = vmatprep.subr.bf16.mxu0 0
          %7081 = vmatpush1.bf16.msra.mxu0 0
          %7082 = vmatprep.subr.bf16.mxu0 0
          %7083 = vmatpush1.bf16.msra.mxu0 0
          %7084 = vmatprep.subr.bf16.mxu0 0
          %7085 = vmatpush1.bf16.msra.mxu0 0
          %7086 = vmatprep.subr.bf16.mxu0 0
          %7087 = vmatpush1.bf16.msra.mxu0 0
          %7088 = vmatprep.subr.bf16.mxu0 0
          %7089 = vmatpush1.bf16.msra.mxu0 0
          %7090 = vmatprep.subr.bf16.mxu0 0
          %7091 = vmatpush1.bf16.msra.mxu0 0
          %7092 = vmatprep.subr.bf16.mxu0 0
          %7093 = vmatpush1.bf16.msra.mxu0 0
          %7094 = vmatprep.subr.bf16.mxu0 0
          %7095 = vmatpush1.bf16.msra.mxu0 0
          %7096 = vmatprep.subr.bf16.mxu0 0
          %7097 = vmatpush1.bf16.msra.mxu0 0
          %7098 = vmatprep.subr.bf16.mxu0 0
          %7099 = vmatpush1.bf16.msra.mxu0 0
          %7100 = vmatprep.mubr.bf16.mxu0 0
          %7101 = vmatmul.mubr.bf16.gmra.mrb[0].mxu0 %v7066
          %v7102 = vpop.f32.mrb[0].mxu0
          %v7103 = vadd.f32 %v7039, %v7102
          %v7104 = vpop.f32.mrb[0].mxu0
          %v7105 = vpop.f32.mrb[0].mxu0
          %v7106 = vpop.f32.mrb[0].mxu0
          %7107 = vdwg.mxu0
          %vm7108 = vcmask 25600
          %v7109 = vsel %vm7108, %v7103, -inf
          %7110 = vmax.xlane.f32.xlu0 %v7109
          %v7111 = vpop.xlane.xlu0 %7110
          %v7112 = vlaneseq
          %v7113 = vand.u32 %v7112, 127
          %vm7114 = vcmp.ge.f32.partialorder %v7103, %v7111
          %v7115 = vsel %vm7114, %v7113, 4
          %v7116 = vsel %vm7108, %v7115, 2147483647
          %v7117 = vand.u32 %v7116, 65535
          %v7118 = vshra.s32 %v7116, 16
          %v7119 = vcvt.s32.f32 %v7117
          %v7120 = vcvt.s32.f32 %v7118
          %7121 = vmin.xlane.f32.xlu0 %v7120
          %v7122 = vpop.xlane.xlu0 %7121
          %vm7123 = vcmp.eq.f32.partialorder %v7120, %v7122
          %v7124 = vsel %vm7123, %v7119, inf
          %7125 = vmin.xlane.f32.xlu0 %v7124
          %v7126 = vpop.xlane.xlu0 %7125
          %v7127 = vcvt.f32.s32 %v7126
          %v7128 = vcvt.f32.s32 %v7122
          %v7129 = vshll.u32 %v7128, 16
          %v7130 = vadd.s32 %v7129, %v7127
          %vm7131 = vcmp.lt.s32.totalorder %v7130, 3
          %v7132 = vsel %vm7131, %v7130, 3
          %7133 = vst [vmem:[%s6] sm:$0x3] %v7132
        $region72: #{custom_dqn_forward.1} parent=43 // pred_fallthru
          _
        // Predicated region
        $region73: #{custom_dqn_forward.1} parent=43 // pred_check
          %p7134 = pneg %p164
        $region74: #{custom_dqn_forward.1} parent=43 // pred_check_branch
          %7136 = sbr.rel (%p7134) target = $region76
        $region75: #{custom_dqn_forward.1} parent=43 // pred_region
          _
        $region76: #{custom_dqn_forward.1} parent=43 // pred_fallthru
          _
        // Predicated region
        $region77: #{custom_dqn_forward.1} parent=43 // pred_check
          %p7137 = pneg %p164
        $region78: #{custom_dqn_forward.1} parent=43 // pred_check_branch
          %7139 = sbr.rel (%p7137) target = $region80
        $region79: #{custom_dqn_forward.1} parent=43 // pred_region
          _
        $region80: #{custom_dqn_forward.1} parent=43 // pred_fallthru
          _
      $region44: #{custom_dqn_forward.1} parent=5 // pred_fallthru
        _
      %p7140 = scmp.le.s32.totalorder 2, %s15
      // Predicated region
      $region81: #{custom_dqn_forward.1} parent=5 // pred_check
        %p7141 = pneg %p7140
      $region82: #{custom_dqn_forward.1} parent=5 // pred_check_branch
        %7143 = sbr.rel (%p7141) target = $region84
      $region83: #{custom_dqn_forward.1} parent=5 // pred_region
        %s7144 = ssub.s32 %s15, 2
      $region84: #{custom_dqn_forward.1} parent=5 // pred_fallthru
        _
    $region6: #{custom_dqn_forward.1} parent=1 // loop_footer
      %s19 = sadd.s32 1, %s15
    $region7: #{custom_dqn_forward.1} parent=1 // loop_footer_branch
      %14 = sbr.rel target = $region3
    $region8: #{custom_dqn_forward.1} parent=1 // loop_exit
      _
    %7145 = vsyncpa [#allocation8], 1
    %s7146 = scalar_lea.sflag [#allocation8], 1
    %7147 = vsyncpa %s7146, 1
    %7148 = vsyncpa [#allocation10], 1
    %7149 = vsyncpa [#allocation14], 1

</llo_original>
